<compile_context>
chip_gen: v5e
topology: v5e:2x2
jax: 0.10.0
libtpu: 0.0.40
codegen_flags: <defaults>
</compile_context>

<pallas_src>
import jax
import jax.numpy as jnp
from jax import lax
from jax.experimental import pallas as pl
from jax.experimental.pallas import tpu as pltpu


# ----------------------------------------------------------------------------
# Fused kernel: whole forward pass for one image per grid step
# ----------------------------------------------------------------------------
def net_kernel(patches_ref, wd_ref, bd_ref, wc_ref, bc_ref, w1_ref, b1_ref,
               w2_ref, b2_ref, out_ref):
    f32 = jnp.float32
    bf16 = jnp.bfloat16

    p = patches_ref[0]                                   # (832, 25) f32 dyn patches

    # ---- DynamicLayer: firstConv for all 6 kernels at once (25 taps -> 150 cols),
    #      then the tanh-gated shifted sum.  Column o*25+s pairs with tap s.
    fc = jnp.tanh(
        jnp.dot(p.astype(bf16), wd_ref[...], preferred_element_type=f32)
        + bd_ref[...])                                   # (832, 150) f32
    prod = jnp.concatenate([p] * 6, axis=1) * fc         # (832, 150)
    # group-sum of each kernel's 25 slots via a 0/1 matrix on the MXU (no concat of
    # 1-wide columns, no narrow masked stores)
    k_idx = lax.broadcasted_iota(jnp.int32, (150, 6), 0)
    o_lo = lax.broadcasted_iota(jnp.int32, (150, 6), 1) * 25
    g = ((k_idx >= o_lo) & (k_idx < o_lo + 25)).astype(f32)
    d = jnp.dot(prod, g, preferred_element_type=f32)     # (832, 6)

    # ---- crop + 2x2 max-pool + relu: rows were pre-ordered as 4 window-offset slabs
    #      of 208 rows each (196 pooled pixels, y-major, + 12 zero pad rows).
    p1 = jnp.maximum(jnp.maximum(d[0:208], d[208:416]),
                     jnp.maximum(d[416:624], d[624:832]))
    p1 = jnp.maximum(p1, 0.0)                            # (208, 6) = 14x14 grid + pad

    # ---- conv2 (6->50, 5x5 valid) as one matmul: im2col along lanes from 25 shifted
    #      contiguous row-slices of p1 (row m = 14*Y + X on the 14-wide grid).
    pieces = [p1[14 * ky + kx: 14 * ky + kx + 140, :]
              for ky in range(5) for kx in range(5)]
    patches2 = jnp.concatenate(pieces, axis=1)           # (140, 150)
    acc = jnp.dot(patches2.astype(bf16), wc_ref[...],
                  preferred_element_type=f32)            # (140, 64), 50 real channels

    # ---- 2x2 max-pool of the 10x10 conv grid via 4 contiguous shifted slabs.
    pooled = jnp.maximum(jnp.maximum(acc[0:125], acc[1:126]),
                         jnp.maximum(acc[14:139], acc[15:140]))   # (125, 64)
    # select the 25 pooled positions (row 28*PY + 2*PX) and lay them out lane-dense
    rows = [pooled[28 * py + 2 * px: 28 * py + 2 * px + 1, :]
            for py in range(5) for px in range(5)]
    feat = jnp.concatenate(rows, axis=1)                 # (1, 1600) = 25 x 64 lanes
    bias = jnp.concatenate([bc_ref[...]] * 25, axis=1)   # per-channel conv2 bias
    # NOTE: adding the conv2 bias after the window max is valid only because the bias
    # is constant per output channel across each 2x2 window.
    # TODO(synk): Dropout2d / F.dropout are identity here (inference semantics).
    feat = jnp.maximum(feat + bias, 0.0)

    # ---- fc1 + relu (torch channel-major flatten folded into w1 row order), fc2,
    #      log_softmax.  Padded cols (channels 50..63, hidden 100..127) are zero.
    h = jnp.maximum(
        jnp.dot(feat.astype(bf16), w1_ref[...], preferred_element_type=f32)
        + b1_ref[...], 0.0)                              # (1, 128)
    logits = (jnp.dot(h.astype(bf16), w2_ref[...], preferred_element_type=f32)
              + b2_ref[...])                             # (1, 10)
    m = jnp.max(logits, axis=1, keepdims=True)
    s = logits - m
    lse = jnp.log(jnp.sum(jnp.exp(s), axis=1, keepdims=True))
    out_ref[...] = (s - lse).reshape(1, 1, 10)


# ----------------------------------------------------------------------------
# JAX glue: dyn-layer im2col with pool-friendly row ordering (only XLA work)
# ----------------------------------------------------------------------------
def build_dyn_patches(x2d):
    """x2d (B,28,28) -> (B, 832, 25).

    Rows: 4 slabs of 208 (one per 2x2-pool window offset (e,f)); inside a slab the row
    is 14*y1 + x1 over the pooled 14x14 grid (rows 196..207 are zero padding).  Column
    t = 5*ty+tx is the pad-4 image tap at cropped pixel (2+2*y1+e, 2+2*x1+f)."""
    B = x2d.shape[0]
    x36 = jnp.pad(x2d, ((0, 0), (4, 4), (4, 4)))
    taps = [x36[:, 2 + ty:2 + ty + 28, 2 + tx:2 + tx + 28]
            for ty in range(5) for tx in range(5)]
    t = jnp.stack(taps, axis=-1)                         # (B, 28, 28, 25)
    t = t.reshape(B, 14, 2, 14, 2, 25)
    t = t.transpose(0, 2, 4, 1, 3, 5)                    # (B, e, f, y1, x1, 25)
    t = t.reshape(B, 4, 196, 25)
    t = jnp.pad(t, ((0, 0), (0, 0), (0, 12), (0, 0)))    # zero rows -> zero dyn output
    return t.reshape(B, 832, 25)


# ----------------------------------------------------------------------------
# Forward pass: one pallas_call, grid over batch
# ----------------------------------------------------------------------------
def net_forward(x, params):
    B = x.shape[0]
    patches = build_dyn_patches(x[:, 0])

    out = pl.pallas_call(
        net_kernel,
        grid=(B,),
        in_specs=[
            pl.BlockSpec((1, 832, 25), lambda b: (b, 0, 0)),   # dyn patches
            pl.BlockSpec((25, 150), lambda b: (0, 0)),         # wd
            pl.BlockSpec((1, 150), lambda b: (0, 0)),          # bd
            pl.BlockSpec((150, 64), lambda b: (0, 0)),         # wc
            pl.BlockSpec((1, 64), lambda b: (0, 0)),           # bc
            pl.BlockSpec((1600, 128), lambda b: (0, 0)),       # w1
            pl.BlockSpec((1, 128), lambda b: (0, 0)),          # b1
            pl.BlockSpec((128, 10), lambda b: (0, 0)),         # w2
            pl.BlockSpec((1, 10), lambda b: (0, 0)),           # b2
        ],
        out_specs=pl.BlockSpec((1, 1, 10), lambda b: (b, 0, 0)),
        out_shape=jax.ShapeDtypeStruct((B, 1, 10), jnp.float32),
        compiler_params=pltpu.CompilerParams(dimension_semantics=("parallel",)),
    )(patches, params["wd"], params["bd"], params["wc"], params["bc"],
      params["w1"], params["b1"], params["w2"], params["b2"])
    return out.reshape(B, 10)


# ----------------------------------------------------------------------------
# Parameter packing (torch layouts -> kernel layouts) and deterministic init
# ----------------------------------------------------------------------------
def pack_params(w_dyn, b_dyn, w_c2, b_c2, w_fc1, b_fc1, w_fc2, b_fc2):
    bf16 = jnp.bfloat16
    # DynamicLayer: slot s (paired elementwise with tap s) uses firstConv channel
    # 5*(s%5) + s//5 (the F.pad(x,(4-i,i,4-j,j)) <-> firstConv[5*i+j] pairing).
    perm = jnp.array([5 * (s % 5) + s // 5 for s in range(25)], dtype=jnp.int32)
    wf = w_dyn.reshape(6, 25, 25)[:, perm, :]             # (kernel o, slot s, tap t)
    wd = jnp.transpose(wf, (2, 0, 1)).reshape(25, 150)    # [t, o*25 + s]
    bd = b_dyn[:, perm].reshape(1, 150)
    # conv2: row (5*ky+kx)*6 + c, output channels padded 50 -> 64 (zeros).
    wc = jnp.transpose(w_c2, (2, 3, 1, 0)).reshape(150, 50)
    wc = jnp.pad(wc, ((0, 0), (0, 14)))
    bc = jnp.pad(b_c2.reshape(1, 50), ((0, 0), (0, 14)))
    # fc1: feat lane = q*64 + c (q = 5*PY+PX); torch flat index = c*25 + q.
    w1 = jnp.transpose(w_fc1.reshape(100, 50, 25), (2, 1, 0))   # (q, c, j)
    w1 = jnp.pad(w1, ((0, 0), (0, 14), (0, 28))).reshape(1600, 128)
    b1 = jnp.pad(b_fc1.reshape(1, 100), ((0, 0), (0, 28)))
    # fc2: rows padded 100 -> 128 (zeros).
    w2 = jnp.pad(w_fc2.T, ((0, 28), (0, 0)))
    b2 = b_fc2.reshape(1, 10)
    return dict(wd=wd.astype(bf16), bd=bd, wc=wc.astype(bf16), bc=bc,
                w1=w1.astype(bf16), b1=b1, w2=w2.astype(bf16), b2=b2)


def init_params(key):
    ks = jax.random.split(key, 8)

    def rnd(k, shape, fan_in):
        return jax.random.normal(k, shape, jnp.float32) / jnp.sqrt(jnp.float32(fan_in))

    # DynamicLayer: 6 x Conv2d(1, 25, 5, pad=2)  (QConv / h are unused in forward)
    w_dyn = rnd(ks[0], (6, 25, 5, 5), 25.0)
    b_dyn = rnd(ks[1], (6, 25), 25.0)
    # conv2: Conv2d(6, 50, 5)
    w_c2 = rnd(ks[2], (50, 6, 5, 5), 150.0)
    b_c2 = rnd(ks[3], (50,), 150.0)
    # fc1: Linear(1250, 100), fc2: Linear(100, 10)
    w_fc1 = rnd(ks[4], (100, 1250), 1250.0)
    b_fc1 = rnd(ks[5], (100,), 1250.0)
    w_fc2 = rnd(ks[6], (10, 100), 100.0)
    b_fc2 = rnd(ks[7], (10,), 100.0)
    return pack_params(w_dyn, b_dyn, w_c2, b_c2, w_fc1, b_fc1, w_fc2, b_fc2)


if __name__ == "__main__":
    key = jax.random.PRNGKey(0)
    kx, kp = jax.random.split(key)
    # batch=2, NCHW (B, 1, 28, 28) — spatial/channels fixed by fc1 = 50*5*5 = 1250
    x = jax.random.normal(kx, (2, 1, 28, 28), jnp.float32)
    params = init_params(kp)

    out = jax.jit(net_forward)(x, params)
    out = jax.block_until_ready(out)

    assert out.shape == (2, 10) and out.dtype == jnp.float32
    assert bool(jnp.all(jnp.isfinite(out)))
    # log_softmax rows must exponentiate-sum to 1
    assert bool(jnp.allclose(jnp.sum(jnp.exp(out), axis=1), 1.0, atol=1e-3))
    print("KERNEL_OK")
</pallas_src>

<mosaic_0001>
module attributes {stable_mosaic.version = 11 : i64} {
  func.func @net_kernel(%arg0: i32, %arg1: memref<1x832x25xf32, #tpu.memory_space<vmem>>, %arg2: memref<25x150xbf16, #tpu.memory_space<vmem>>, %arg3: memref<1x150xf32, #tpu.memory_space<vmem>>, %arg4: memref<150x64xbf16, #tpu.memory_space<vmem>>, %arg5: memref<1x64xf32, #tpu.memory_space<vmem>>, %arg6: memref<1600x128xbf16, #tpu.memory_space<vmem>>, %arg7: memref<1x128xf32, #tpu.memory_space<vmem>>, %arg8: memref<128x10xbf16, #tpu.memory_space<vmem>>, %arg9: memref<1x10xf32, #tpu.memory_space<vmem>>, %arg10: memref<1x1x10xf32, #tpu.memory_space<vmem>>) attributes {dimension_semantics = [#tpu.dimension_semantics<parallel>], iteration_bounds = array<i64: 2>, scalar_prefetch = 0 : i64, scratch_operands = 0 : i64, tpu.core_type = #tpu.core_type<tc>, window_params = [{transform_indices = @transform_0, window_bounds = array<i64: 1, 832, 25>}, {pipeline_mode = #tpu.pipeline_mode<synchronous>, transform_indices = @transform_1, window_bounds = array<i64: 25, 150>}, {pipeline_mode = #tpu.pipeline_mode<synchronous>, transform_indices = @transform_2, window_bounds = array<i64: 1, 150>}, {pipeline_mode = #tpu.pipeline_mode<synchronous>, transform_indices = @transform_3, window_bounds = array<i64: 150, 64>}, {pipeline_mode = #tpu.pipeline_mode<synchronous>, transform_indices = @transform_4, window_bounds = array<i64: 1, 64>}, {pipeline_mode = #tpu.pipeline_mode<synchronous>, transform_indices = @transform_5, window_bounds = array<i64: 1600, 128>}, {pipeline_mode = #tpu.pipeline_mode<synchronous>, transform_indices = @transform_6, window_bounds = array<i64: 1, 128>}, {pipeline_mode = #tpu.pipeline_mode<synchronous>, transform_indices = @transform_7, window_bounds = array<i64: 128, 10>}, {pipeline_mode = #tpu.pipeline_mode<synchronous>, transform_indices = @transform_8, window_bounds = array<i64: 1, 10>}, {transform_indices = @transform_9, window_bounds = array<i64: 1, 1, 10>}]} {
    %c0 = arith.constant 0 : index
    %c0_0 = arith.constant 0 : index
    %c0_1 = arith.constant 0 : index
    %0 = vector.load %arg1[%c0, %c0_0, %c0_1] : memref<1x832x25xf32, #tpu.memory_space<vmem>>, vector<1x832x25xf32>
    %1 = vector.shape_cast %0 : vector<1x832x25xf32> to vector<832x25xf32>
    %2 = arith.truncf %1 : vector<832x25xf32> to vector<832x25xbf16>
    %c0_2 = arith.constant 0 : index
    %c0_3 = arith.constant 0 : index
    %3 = vector.load %arg2[%c0_2, %c0_3] : memref<25x150xbf16, #tpu.memory_space<vmem>>, vector<25x150xbf16>
    %cst = arith.constant dense<0.000000e+00> : vector<832x150xf32>
    %4 = tpu.matmul %2, %3, %cst {dimension_numbers = #tpu.dot_dimension_numbers<[1], [0], [0], [1], [0, 0, 1, 1], [], []>} : vector<832x25xbf16>, vector<25x150xbf16>, vector<832x150xf32> -> vector<832x150xf32>
    %c0_4 = arith.constant 0 : index
    %c0_5 = arith.constant 0 : index
    %5 = vector.load %arg3[%c0_4, %c0_5] : memref<1x150xf32, #tpu.memory_space<vmem>>, vector<1x150xf32>
    %6 = vector.broadcast %5 : vector<1x150xf32> to vector<832x150xf32>
    %7 = arith.addf %4, %6 : vector<832x150xf32>
    %8 = math.tanh %7 : vector<832x150xf32>
    %9 = tpu.concatenate %1, %1, %1, %1, %1, %1 in 1 : vector<832x25xf32>, vector<832x25xf32>, vector<832x25xf32>, vector<832x25xf32>, vector<832x25xf32>, vector<832x25xf32> -> vector<832x150xf32>
    %10 = arith.mulf %9, %8 : vector<832x150xf32>
    %11 = tpu.iota {dimensions = array<i32: 0>} : vector<150x6xi32>
    %12 = tpu.iota {dimensions = array<i32: 1>} : vector<150x6xi32>
    %c25_i32 = arith.constant 25 : i32
    %13 = vector.broadcast %c25_i32 : i32 to vector<150x6xi32>
    %14 = arith.muli %12, %13 : vector<150x6xi32>
    %15 = arith.cmpi sge, %11, %14 : vector<150x6xi32>
    %c25_i32_6 = arith.constant 25 : i32
    %16 = vector.broadcast %c25_i32_6 : i32 to vector<150x6xi32>
    %17 = arith.addi %14, %16 : vector<150x6xi32>
    %18 = arith.cmpi slt, %11, %17 : vector<150x6xi32>
    %19 = arith.andi %15, %18 : vector<150x6xi1>
    %20 = arith.extui %19 : vector<150x6xi1> to vector<150x6xi32>
    %21 = arith.sitofp %20 : vector<150x6xi32> to vector<150x6xf32>
    %cst_7 = arith.constant dense<0.000000e+00> : vector<832x6xf32>
    %22 = tpu.matmul %10, %21, %cst_7 {dimension_numbers = #tpu.dot_dimension_numbers<[1], [0], [0], [1], [0, 0, 1, 1], [], []>} : vector<832x150xf32>, vector<150x6xf32>, vector<832x6xf32> -> vector<832x6xf32>
    %23 = vector.extract_strided_slice %22 {offsets = [0, 0], sizes = [208, 6], strides = [1, 1]} : vector<832x6xf32> to vector<208x6xf32>
    %24 = vector.extract_strided_slice %22 {offsets = [208, 0], sizes = [208, 6], strides = [1, 1]} : vector<832x6xf32> to vector<208x6xf32>
    %25 = arith.maximumf %23, %24 : vector<208x6xf32>
    %26 = vector.extract_strided_slice %22 {offsets = [416, 0], sizes = [208, 6], strides = [1, 1]} : vector<832x6xf32> to vector<208x6xf32>
    %27 = vector.extract_strided_slice %22 {offsets = [624, 0], sizes = [208, 6], strides = [1, 1]} : vector<832x6xf32> to vector<208x6xf32>
    %28 = arith.maximumf %26, %27 : vector<208x6xf32>
    %29 = arith.maximumf %25, %28 : vector<208x6xf32>
    %cst_8 = arith.constant 0.000000e+00 : f32
    %30 = vector.broadcast %cst_8 : f32 to vector<208x6xf32>
    %31 = arith.maximumf %29, %30 : vector<208x6xf32>
    %32 = vector.extract_strided_slice %31 {offsets = [0, 0], sizes = [140, 6], strides = [1, 1]} : vector<208x6xf32> to vector<140x6xf32>
    %33 = vector.extract_strided_slice %31 {offsets = [1, 0], sizes = [140, 6], strides = [1, 1]} : vector<208x6xf32> to vector<140x6xf32>
    %34 = vector.extract_strided_slice %31 {offsets = [2, 0], sizes = [140, 6], strides = [1, 1]} : vector<208x6xf32> to vector<140x6xf32>
    %35 = vector.extract_strided_slice %31 {offsets = [3, 0], sizes = [140, 6], strides = [1, 1]} : vector<208x6xf32> to vector<140x6xf32>
    %36 = vector.extract_strided_slice %31 {offsets = [4, 0], sizes = [140, 6], strides = [1, 1]} : vector<208x6xf32> to vector<140x6xf32>
    %37 = vector.extract_strided_slice %31 {offsets = [14, 0], sizes = [140, 6], strides = [1, 1]} : vector<208x6xf32> to vector<140x6xf32>
    %38 = vector.extract_strided_slice %31 {offsets = [15, 0], sizes = [140, 6], strides = [1, 1]} : vector<208x6xf32> to vector<140x6xf32>
    %39 = vector.extract_strided_slice %31 {offsets = [16, 0], sizes = [140, 6], strides = [1, 1]} : vector<208x6xf32> to vector<140x6xf32>
    %40 = vector.extract_strided_slice %31 {offsets = [17, 0], sizes = [140, 6], strides = [1, 1]} : vector<208x6xf32> to vector<140x6xf32>
    %41 = vector.extract_strided_slice %31 {offsets = [18, 0], sizes = [140, 6], strides = [1, 1]} : vector<208x6xf32> to vector<140x6xf32>
    %42 = vector.extract_strided_slice %31 {offsets = [28, 0], sizes = [140, 6], strides = [1, 1]} : vector<208x6xf32> to vector<140x6xf32>
    %43 = vector.extract_strided_slice %31 {offsets = [29, 0], sizes = [140, 6], strides = [1, 1]} : vector<208x6xf32> to vector<140x6xf32>
    %44 = vector.extract_strided_slice %31 {offsets = [30, 0], sizes = [140, 6], strides = [1, 1]} : vector<208x6xf32> to vector<140x6xf32>
    %45 = vector.extract_strided_slice %31 {offsets = [31, 0], sizes = [140, 6], strides = [1, 1]} : vector<208x6xf32> to vector<140x6xf32>
    %46 = vector.extract_strided_slice %31 {offsets = [32, 0], sizes = [140, 6], strides = [1, 1]} : vector<208x6xf32> to vector<140x6xf32>
    %47 = vector.extract_strided_slice %31 {offsets = [42, 0], sizes = [140, 6], strides = [1, 1]} : vector<208x6xf32> to vector<140x6xf32>
    %48 = vector.extract_strided_slice %31 {offsets = [43, 0], sizes = [140, 6], strides = [1, 1]} : vector<208x6xf32> to vector<140x6xf32>
    %49 = vector.extract_strided_slice %31 {offsets = [44, 0], sizes = [140, 6], strides = [1, 1]} : vector<208x6xf32> to vector<140x6xf32>
    %50 = vector.extract_strided_slice %31 {offsets = [45, 0], sizes = [140, 6], strides = [1, 1]} : vector<208x6xf32> to vector<140x6xf32>
    %51 = vector.extract_strided_slice %31 {offsets = [46, 0], sizes = [140, 6], strides = [1, 1]} : vector<208x6xf32> to vector<140x6xf32>
    %52 = vector.extract_strided_slice %31 {offsets = [56, 0], sizes = [140, 6], strides = [1, 1]} : vector<208x6xf32> to vector<140x6xf32>
    %53 = vector.extract_strided_slice %31 {offsets = [57, 0], sizes = [140, 6], strides = [1, 1]} : vector<208x6xf32> to vector<140x6xf32>
    %54 = vector.extract_strided_slice %31 {offsets = [58, 0], sizes = [140, 6], strides = [1, 1]} : vector<208x6xf32> to vector<140x6xf32>
    %55 = vector.extract_strided_slice %31 {offsets = [59, 0], sizes = [140, 6], strides = [1, 1]} : vector<208x6xf32> to vector<140x6xf32>
    %56 = vector.extract_strided_slice %31 {offsets = [60, 0], sizes = [140, 6], strides = [1, 1]} : vector<208x6xf32> to vector<140x6xf32>
    %57 = tpu.concatenate %32, %33, %34, %35, %36, %37, %38, %39, %40, %41, %42, %43, %44, %45, %46, %47 in 1 : vector<140x6xf32>, vector<140x6xf32>, vector<140x6xf32>, vector<140x6xf32>, vector<140x6xf32>, vector<140x6xf32>, vector<140x6xf32>, vector<140x6xf32>, vector<140x6xf32>, vector<140x6xf32>, vector<140x6xf32>, vector<140x6xf32>, vector<140x6xf32>, vector<140x6xf32>, vector<140x6xf32>, vector<140x6xf32> -> vector<140x96xf32>
    %58 = tpu.concatenate %48, %49, %50, %51, %52, %53, %54, %55, %56 in 1 : vector<140x6xf32>, vector<140x6xf32>, vector<140x6xf32>, vector<140x6xf32>, vector<140x6xf32>, vector<140x6xf32>, vector<140x6xf32>, vector<140x6xf32>, vector<140x6xf32> -> vector<140x54xf32>
    %59 = tpu.concatenate %57, %58 in 1 : vector<140x96xf32>, vector<140x54xf32> -> vector<140x150xf32>
    %60 = arith.truncf %59 : vector<140x150xf32> to vector<140x150xbf16>
    %c0_9 = arith.constant 0 : index
    %c0_10 = arith.constant 0 : index
    %61 = vector.load %arg4[%c0_9, %c0_10] : memref<150x64xbf16, #tpu.memory_space<vmem>>, vector<150x64xbf16>
    %cst_11 = arith.constant dense<0.000000e+00> : vector<140x64xf32>
    %62 = tpu.matmul %60, %61, %cst_11 {dimension_numbers = #tpu.dot_dimension_numbers<[1], [0], [0], [1], [0, 0, 1, 1], [], []>} : vector<140x150xbf16>, vector<150x64xbf16>, vector<140x64xf32> -> vector<140x64xf32>
    %63 = vector.extract_strided_slice %62 {offsets = [0, 0], sizes = [125, 64], strides = [1, 1]} : vector<140x64xf32> to vector<125x64xf32>
    %64 = vector.extract_strided_slice %62 {offsets = [1, 0], sizes = [125, 64], strides = [1, 1]} : vector<140x64xf32> to vector<125x64xf32>
    %65 = arith.maximumf %63, %64 : vector<125x64xf32>
    %66 = vector.extract_strided_slice %62 {offsets = [14, 0], sizes = [125, 64], strides = [1, 1]} : vector<140x64xf32> to vector<125x64xf32>
    %67 = vector.extract_strided_slice %62 {offsets = [15, 0], sizes = [125, 64], strides = [1, 1]} : vector<140x64xf32> to vector<125x64xf32>
    %68 = arith.maximumf %66, %67 : vector<125x64xf32>
    %69 = arith.maximumf %65, %68 : vector<125x64xf32>
    %70 = vector.extract_strided_slice %69 {offsets = [0, 0], sizes = [1, 64], strides = [1, 1]} : vector<125x64xf32> to vector<1x64xf32>
    %71 = vector.extract_strided_slice %69 {offsets = [2, 0], sizes = [1, 64], strides = [1, 1]} : vector<125x64xf32> to vector<1x64xf32>
    %72 = vector.extract_strided_slice %69 {offsets = [4, 0], sizes = [1, 64], strides = [1, 1]} : vector<125x64xf32> to vector<1x64xf32>
    %73 = vector.extract_strided_slice %69 {offsets = [6, 0], sizes = [1, 64], strides = [1, 1]} : vector<125x64xf32> to vector<1x64xf32>
    %74 = vector.extract_strided_slice %69 {offsets = [8, 0], sizes = [1, 64], strides = [1, 1]} : vector<125x64xf32> to vector<1x64xf32>
    %75 = vector.extract_strided_slice %69 {offsets = [28, 0], sizes = [1, 64], strides = [1, 1]} : vector<125x64xf32> to vector<1x64xf32>
    %76 = vector.extract_strided_slice %69 {offsets = [30, 0], sizes = [1, 64], strides = [1, 1]} : vector<125x64xf32> to vector<1x64xf32>
    %77 = vector.extract_strided_slice %69 {offsets = [32, 0], sizes = [1, 64], strides = [1, 1]} : vector<125x64xf32> to vector<1x64xf32>
    %78 = vector.extract_strided_slice %69 {offsets = [34, 0], sizes = [1, 64], strides = [1, 1]} : vector<125x64xf32> to vector<1x64xf32>
    %79 = vector.extract_strided_slice %69 {offsets = [36, 0], sizes = [1, 64], strides = [1, 1]} : vector<125x64xf32> to vector<1x64xf32>
    %80 = vector.extract_strided_slice %69 {offsets = [56, 0], sizes = [1, 64], strides = [1, 1]} : vector<125x64xf32> to vector<1x64xf32>
    %81 = vector.extract_strided_slice %69 {offsets = [58, 0], sizes = [1, 64], strides = [1, 1]} : vector<125x64xf32> to vector<1x64xf32>
    %82 = vector.extract_strided_slice %69 {offsets = [60, 0], sizes = [1, 64], strides = [1, 1]} : vector<125x64xf32> to vector<1x64xf32>
    %83 = vector.extract_strided_slice %69 {offsets = [62, 0], sizes = [1, 64], strides = [1, 1]} : vector<125x64xf32> to vector<1x64xf32>
    %84 = vector.extract_strided_slice %69 {offsets = [64, 0], sizes = [1, 64], strides = [1, 1]} : vector<125x64xf32> to vector<1x64xf32>
    %85 = vector.extract_strided_slice %69 {offsets = [84, 0], sizes = [1, 64], strides = [1, 1]} : vector<125x64xf32> to vector<1x64xf32>
    %86 = vector.extract_strided_slice %69 {offsets = [86, 0], sizes = [1, 64], strides = [1, 1]} : vector<125x64xf32> to vector<1x64xf32>
    %87 = vector.extract_strided_slice %69 {offsets = [88, 0], sizes = [1, 64], strides = [1, 1]} : vector<125x64xf32> to vector<1x64xf32>
    %88 = vector.extract_strided_slice %69 {offsets = [90, 0], sizes = [1, 64], strides = [1, 1]} : vector<125x64xf32> to vector<1x64xf32>
    %89 = vector.extract_strided_slice %69 {offsets = [92, 0], sizes = [1, 64], strides = [1, 1]} : vector<125x64xf32> to vector<1x64xf32>
    %90 = vector.extract_strided_slice %69 {offsets = [112, 0], sizes = [1, 64], strides = [1, 1]} : vector<125x64xf32> to vector<1x64xf32>
    %91 = vector.extract_strided_slice %69 {offsets = [114, 0], sizes = [1, 64], strides = [1, 1]} : vector<125x64xf32> to vector<1x64xf32>
    %92 = vector.extract_strided_slice %69 {offsets = [116, 0], sizes = [1, 64], strides = [1, 1]} : vector<125x64xf32> to vector<1x64xf32>
    %93 = vector.extract_strided_slice %69 {offsets = [118, 0], sizes = [1, 64], strides = [1, 1]} : vector<125x64xf32> to vector<1x64xf32>
    %94 = vector.extract_strided_slice %69 {offsets = [120, 0], sizes = [1, 64], strides = [1, 1]} : vector<125x64xf32> to vector<1x64xf32>
    %95 = tpu.concatenate %70, %71, %72, %73, %74, %75, %76, %77, %78, %79, %80, %81, %82, %83, %84, %85 in 1 : vector<1x64xf32>, vector<1x64xf32>, vector<1x64xf32>, vector<1x64xf32>, vector<1x64xf32>, vector<1x64xf32>, vector<1x64xf32>, vector<1x64xf32>, vector<1x64xf32>, vector<1x64xf32>, vector<1x64xf32>, vector<1x64xf32>, vector<1x64xf32>, vector<1x64xf32>, vector<1x64xf32>, vector<1x64xf32> -> vector<1x1024xf32>
    %96 = tpu.concatenate %86, %87, %88, %89, %90, %91, %92, %93, %94 in 1 : vector<1x64xf32>, vector<1x64xf32>, vector<1x64xf32>, vector<1x64xf32>, vector<1x64xf32>, vector<1x64xf32>, vector<1x64xf32>, vector<1x64xf32>, vector<1x64xf32> -> vector<1x576xf32>
    %97 = tpu.concatenate %95, %96 in 1 : vector<1x1024xf32>, vector<1x576xf32> -> vector<1x1600xf32>
    %c0_12 = arith.constant 0 : index
    %c0_13 = arith.constant 0 : index
    %98 = vector.load %arg5[%c0_12, %c0_13] : memref<1x64xf32, #tpu.memory_space<vmem>>, vector<1x64xf32>
    %99 = tpu.concatenate %98, %98, %98, %98, %98, %98, %98, %98, %98, %98, %98, %98, %98, %98, %98, %98 in 1 : vector<1x64xf32>, vector<1x64xf32>, vector<1x64xf32>, vector<1x64xf32>, vector<1x64xf32>, vector<1x64xf32>, vector<1x64xf32>, vector<1x64xf32>, vector<1x64xf32>, vector<1x64xf32>, vector<1x64xf32>, vector<1x64xf32>, vector<1x64xf32>, vector<1x64xf32>, vector<1x64xf32>, vector<1x64xf32> -> vector<1x1024xf32>
    %100 = tpu.concatenate %98, %98, %98, %98, %98, %98, %98, %98, %98 in 1 : vector<1x64xf32>, vector<1x64xf32>, vector<1x64xf32>, vector<1x64xf32>, vector<1x64xf32>, vector<1x64xf32>, vector<1x64xf32>, vector<1x64xf32>, vector<1x64xf32> -> vector<1x576xf32>
    %101 = tpu.concatenate %99, %100 in 1 : vector<1x1024xf32>, vector<1x576xf32> -> vector<1x1600xf32>
    %102 = arith.addf %97, %101 : vector<1x1600xf32>
    %cst_14 = arith.constant 0.000000e+00 : f32
    %103 = vector.broadcast %cst_14 : f32 to vector<1x1600xf32>
    %104 = arith.maximumf %102, %103 : vector<1x1600xf32>
    %105 = arith.truncf %104 : vector<1x1600xf32> to vector<1x1600xbf16>
    %c0_15 = arith.constant 0 : index
    %c0_16 = arith.constant 0 : index
    %106 = vector.load %arg6[%c0_15, %c0_16] : memref<1600x128xbf16, #tpu.memory_space<vmem>>, vector<1600x128xbf16>
    %cst_17 = arith.constant dense<0.000000e+00> : vector<1x128xf32>
    %107 = tpu.matmul %105, %106, %cst_17 {dimension_numbers = #tpu.dot_dimension_numbers<[1], [0], [0], [1], [0, 0, 1, 1], [], []>} : vector<1x1600xbf16>, vector<1600x128xbf16>, vector<1x128xf32> -> vector<1x128xf32>
    %c0_18 = arith.constant 0 : index
    %c0_19 = arith.constant 0 : index
    %108 = vector.load %arg7[%c0_18, %c0_19] : memref<1x128xf32, #tpu.memory_space<vmem>>, vector<1x128xf32>
    %109 = arith.addf %107, %108 : vector<1x128xf32>
    %cst_20 = arith.constant 0.000000e+00 : f32
    %110 = vector.broadcast %cst_20 : f32 to vector<1x128xf32>
    %111 = arith.maximumf %109, %110 : vector<1x128xf32>
    %112 = arith.truncf %111 : vector<1x128xf32> to vector<1x128xbf16>
    %c0_21 = arith.constant 0 : index
    %c0_22 = arith.constant 0 : index
    %113 = vector.load %arg8[%c0_21, %c0_22] : memref<128x10xbf16, #tpu.memory_space<vmem>>, vector<128x10xbf16>
    %cst_23 = arith.constant dense<0.000000e+00> : vector<1x10xf32>
    %114 = tpu.matmul %112, %113, %cst_23 {dimension_numbers = #tpu.dot_dimension_numbers<[1], [0], [0], [1], [0, 0, 1, 1], [], []>} : vector<1x128xbf16>, vector<128x10xbf16>, vector<1x10xf32> -> vector<1x10xf32>
    %c0_24 = arith.constant 0 : index
    %c0_25 = arith.constant 0 : index
    %115 = vector.load %arg9[%c0_24, %c0_25] : memref<1x10xf32, #tpu.memory_space<vmem>>, vector<1x10xf32>
    %116 = arith.addf %114, %115 : vector<1x10xf32>
    %cst_26 = arith.constant dense<0xFF800000> : vector<1xf32>
    %117 = vector.multi_reduction <maximumf>, %116, %cst_26 [1] : vector<1x10xf32> to vector<1xf32>
    %118 = vector.shape_cast %117 : vector<1xf32> to vector<1x1xf32>
    %119 = vector.broadcast %118 : vector<1x1xf32> to vector<1x10xf32>
    %120 = arith.subf %116, %119 : vector<1x10xf32>
    %121 = math.exp %120 : vector<1x10xf32>
    %cst_27 = arith.constant dense<0.000000e+00> : vector<1xf32>
    %122 = vector.multi_reduction <add>, %121, %cst_27 [1] : vector<1x10xf32> to vector<1xf32>
    %123 = vector.shape_cast %122 : vector<1xf32> to vector<1x1xf32>
    %124 = math.log %123 : vector<1x1xf32>
    %125 = vector.broadcast %124 : vector<1x1xf32> to vector<1x10xf32>
    %126 = arith.subf %120, %125 : vector<1x10xf32>
    %127 = vector.shape_cast %126 : vector<1x10xf32> to vector<1x1x10xf32>
    %c0_28 = arith.constant 0 : index
    %c0_29 = arith.constant 0 : index
    %c0_30 = arith.constant 0 : index
    %128 = vector.load %arg10[%c0_28, %c0_29, %c0_30] : memref<1x1x10xf32, #tpu.memory_space<vmem>>, vector<1x1x10xf32>
    tpu.vector_store %arg10[%c0_28, %c0_29, %c0_30], %127 {strides = array<i32>} : memref<1x1x10xf32, #tpu.memory_space<vmem>>, vector<1x1x10xf32>,
    return
  }
  func.func @transform_0(%arg0: i32) -> (i32, i32, i32) {
    %c0_i32 = arith.constant 0 : i32
    %c0_i32_0 = arith.constant 0 : i32
    %c0_i32_1 = arith.constant 0 : i32
    return %arg0, %c0_i32, %c0_i32_0 : i32, i32, i32
  }
  func.func @transform_1(%arg0: i32) -> (i32, i32) {
    %c0_i32 = arith.constant 0 : i32
    %c0_i32_0 = arith.constant 0 : i32
    %c0_i32_1 = arith.constant 0 : i32
    return %c0_i32, %c0_i32_0 : i32, i32
  }
  func.func @transform_2(%arg0: i32) -> (i32, i32) {
    %c0_i32 = arith.constant 0 : i32
    %c0_i32_0 = arith.constant 0 : i32
    %c0_i32_1 = arith.constant 0 : i32
    return %c0_i32, %c0_i32_0 : i32, i32
  }
  func.func @transform_3(%arg0: i32) -> (i32, i32) {
    %c0_i32 = arith.constant 0 : i32
    %c0_i32_0 = arith.constant 0 : i32
    %c0_i32_1 = arith.constant 0 : i32
    return %c0_i32, %c0_i32_0 : i32, i32
  }
  func.func @transform_4(%arg0: i32) -> (i32, i32) {
    %c0_i32 = arith.constant 0 : i32
    %c0_i32_0 = arith.constant 0 : i32
    %c0_i32_1 = arith.constant 0 : i32
    return %c0_i32, %c0_i32_0 : i32, i32
  }
  func.func @transform_5(%arg0: i32) -> (i32, i32) {
    %c0_i32 = arith.constant 0 : i32
    %c0_i32_0 = arith.constant 0 : i32
    %c0_i32_1 = arith.constant 0 : i32
    return %c0_i32, %c0_i32_0 : i32, i32
  }
  func.func @transform_6(%arg0: i32) -> (i32, i32) {
    %c0_i32 = arith.constant 0 : i32
    %c0_i32_0 = arith.constant 0 : i32
    %c0_i32_1 = arith.constant 0 : i32
    return %c0_i32, %c0_i32_0 : i32, i32
  }
  func.func @transform_7(%arg0: i32) -> (i32, i32) {
    %c0_i32 = arith.constant 0 : i32
    %c0_i32_0 = arith.constant 0 : i32
    %c0_i32_1 = arith.constant 0 : i32
    return %c0_i32, %c0_i32_0 : i32, i32
  }
  func.func @transform_8(%arg0: i32) -> (i32, i32) {
    %c0_i32 = arith.constant 0 : i32
    %c0_i32_0 = arith.constant 0 : i32
    %c0_i32_1 = arith.constant 0 : i32
    return %c0_i32, %c0_i32_0 : i32, i32
  }
  func.func @transform_9(%arg0: i32) -> (i32, i32, i32) {
    %c0_i32 = arith.constant 0 : i32
    %c0_i32_0 = arith.constant 0 : i32
    %c0_i32_1 = arith.constant 0 : i32
    return %arg0, %c0_i32, %c0_i32_0 : i32, i32, i32
  }
}

</mosaic_0001>

<llo_original>
// kernel: net_forward.1
$region0: #{net_forward.1}
  #allocation0 [shape = 'u32[]', space=smem, size = 0x4, offset = 0x4, fixed_abs, tag = 'smem constant byte address 0x4 - core index']
  #allocation1 [shape = 'u32[72,128]{1,0:T(1,128)}', space=vmem, size = 0x9000, scoped, tag = 'internal scratch']
  %s0 = inlined_call_operand.vmem [shape: f32[2,832,25], index: 0, kind: input, shape index: {}]
  %s1 = inlined_call_operand.vmem [shape: bf16[25,150], index: 1, kind: input, shape index: {}]
  %s2 = inlined_call_operand.vmem [shape: f32[1,150], index: 2, kind: input, shape index: {}]
  %s3 = inlined_call_operand.vmem [shape: bf16[150,64], index: 3, kind: input, shape index: {}]
  %s4 = inlined_call_operand.vmem [shape: f32[1,64], index: 4, kind: input, shape index: {}]
  %s5 = inlined_call_operand.vmem [shape: bf16[1600,128], index: 5, kind: input, shape index: {}]
  %s6 = inlined_call_operand.vmem [shape: f32[1,128], index: 6, kind: input, shape index: {}]
  %s7 = inlined_call_operand.vmem [shape: bf16[128,10], index: 7, kind: input, shape index: {}]
  %s8 = inlined_call_operand.vmem [shape: f32[1,10], index: 8, kind: input, shape index: {}]
  %s9 = inlined_call_operand.hbm [shape: f32[2,1,10], index: 9, kind: output, shape index: {}]
  %s10 = sld [smem:[#allocation0]]
  $region69: #{net_forward.1} parent=0
    _
  %s12 = ssub.s32 1, %s10
  %s13 = scalar_select 0, %s12, %s10
  $region1: #{net_forward.1} parent=0
    #allocation2 [shape = 'u8[1024]{0}', space=vmem, size = 0x400, scoped, tag = 'output window, operand 0']
    #allocation3 [shape = 's32[2]{0}', space=sflag, size = 0x8, scoped, tag = 'scoped memory for net_forward.1']
    %14 = vsyncpa [#allocation3], 0
    %s15 = scalar_lea.sflag [#allocation3], 1
    %16 = vsyncpa %s15, 0
    loop: start=0, step=1, limit=4
    $region2: #{net_forward.1} parent=1 // loop_pre_header
      _
    $region3: #{net_forward.1} parent=1 // loop_header
      %s18 = sphi 0, %s22
      %p19 = scmp.ge.s32.totalorder %s18, 4
      %s28 = sphi 0, %s30
      %s31 = sphi 0, %s28
      %s32 = sphi 0, %s31
      %s48 = sphi 0, %s32
      %s52 = sphi 0, %s52
      %s54 = sphi 0, %s52
      %s55 = sphi 0, %s54
      %s69 = sphi 0, %s55
      %s73 = sphi 0, %s73
      %s75 = sphi 0, %s73
      %s76 = sphi 0, %s75
      %s90 = sphi 0, %s76
      %s94 = sphi 0, %s94
      %s96 = sphi 0, %s94
      %s97 = sphi 0, %s96
      %s111 = sphi 0, %s97
      %s115 = sphi 0, %s115
      %s117 = sphi 0, %s115
      %s118 = sphi 0, %s117
      %s132 = sphi 0, %s118
      %s136 = sphi 0, %s136
      %s138 = sphi 0, %s136
      %s139 = sphi 0, %s138
      %s153 = sphi 0, %s139
      %s157 = sphi 0, %s157
      %s159 = sphi 0, %s157
      %s160 = sphi 0, %s159
      %s174 = sphi 0, %s160
      %s178 = sphi 0, %s178
      %s180 = sphi 0, %s178
      %s181 = sphi 0, %s180
      %s195 = sphi 0, %s181
      %s199 = sphi 0, %s199
      %s201 = sphi 0, %s199
      %s202 = sphi 0, %s201
      %s216 = sphi 0, %s202
      %s222 = sphi 0, %s224
      %s225 = sphi 0, %s222
      %s226 = sphi 0, %s225
      %s242 = sphi 0, %s226
    $region4: #{net_forward.1} parent=1 // loop_header_branch
      %21 = sbr.rel (%p19) target = $region8
    $region5: #{net_forward.1} parent=1 // loop_body
      %s23 = ssub.s32 %s18, 1
      %s24 = ssub.s32 %s18, 2
      %s25 = sadd.s32 %s18, 1
      %s26 = ssub.s32 %s18, %s25
      %p27 = scmp.eq.s32.totalorder %s26, 0
      %s29 = sadd.s32 %s28, 1
      %s30 = scalar_select %p27, %s28, %s29
      %p33 = pneg %p27
      %p34 = scmp.eq.s32.totalorder %s18, 1
      %p35 = por %p33, %p34
      %p36 = scmp.ne.s32.totalorder %s28, %s31
      %p37 = scmp.eq.s32.totalorder %s18, 0
      %p38 = por %p36, %p37
      %p39 = scmp.ne.s32.totalorder %s28, %s31
      %p40 = scmp.eq.s32.totalorder %s23, 1
      %p41 = por %p39, %p40
      %p42 = scmp.ne.s32.totalorder %s31, %s32
      %p43 = scmp.eq.s32.totalorder %s23, 0
      %p44 = por %p42, %p43
      %p45 = scmp.ne.s32.totalorder %s31, %s32
      %p46 = scmp.eq.s32.totalorder %s24, 1
      %p47 = por %p45, %p46
      %p49 = scmp.ne.s32.totalorder %s32, %s48
      %p50 = scmp.eq.s32.totalorder %s24, 0
      %p51 = por %p49, %p50
      %s53 = sadd.s32 %s52, 1
      %p56 = scmp.eq.s32.totalorder %s18, 1
      %p57 = scmp.ne.s32.totalorder %s52, %s54
      %p58 = scmp.eq.s32.totalorder %s18, 0
      %p59 = por %p57, %p58
      %p60 = scmp.ne.s32.totalorder %s52, %s54
      %p61 = scmp.eq.s32.totalorder %s23, 1
      %p62 = por %p60, %p61
      %p63 = scmp.ne.s32.totalorder %s54, %s55
      %p64 = scmp.eq.s32.totalorder %s23, 0
      %p65 = por %p63, %p64
      %p66 = scmp.ne.s32.totalorder %s54, %s55
      %p67 = scmp.eq.s32.totalorder %s24, 1
      %p68 = por %p66, %p67
      %p70 = scmp.ne.s32.totalorder %s55, %s69
      %p71 = scmp.eq.s32.totalorder %s24, 0
      %p72 = por %p70, %p71
      %s74 = sadd.s32 %s73, 1
      %p77 = scmp.eq.s32.totalorder %s18, 1
      %p78 = scmp.ne.s32.totalorder %s73, %s75
      %p79 = scmp.eq.s32.totalorder %s18, 0
      %p80 = por %p78, %p79
      %p81 = scmp.ne.s32.totalorder %s73, %s75
      %p82 = scmp.eq.s32.totalorder %s23, 1
      %p83 = por %p81, %p82
      %p84 = scmp.ne.s32.totalorder %s75, %s76
      %p85 = scmp.eq.s32.totalorder %s23, 0
      %p86 = por %p84, %p85
      %p87 = scmp.ne.s32.totalorder %s75, %s76
      %p88 = scmp.eq.s32.totalorder %s24, 1
      %p89 = por %p87, %p88
      %p91 = scmp.ne.s32.totalorder %s76, %s90
      %p92 = scmp.eq.s32.totalorder %s24, 0
      %p93 = por %p91, %p92
      %s95 = sadd.s32 %s94, 1
      %p98 = scmp.eq.s32.totalorder %s18, 1
      %p99 = scmp.ne.s32.totalorder %s94, %s96
      %p100 = scmp.eq.s32.totalorder %s18, 0
      %p101 = por %p99, %p100
      %p102 = scmp.ne.s32.totalorder %s94, %s96
      %p103 = scmp.eq.s32.totalorder %s23, 1
      %p104 = por %p102, %p103
      %p105 = scmp.ne.s32.totalorder %s96, %s97
      %p106 = scmp.eq.s32.totalorder %s23, 0
      %p107 = por %p105, %p106
      %p108 = scmp.ne.s32.totalorder %s96, %s97
      %p109 = scmp.eq.s32.totalorder %s24, 1
      %p110 = por %p108, %p109
      %p112 = scmp.ne.s32.totalorder %s97, %s111
      %p113 = scmp.eq.s32.totalorder %s24, 0
      %p114 = por %p112, %p113
      %s116 = sadd.s32 %s115, 1
      %p119 = scmp.eq.s32.totalorder %s18, 1
      %p120 = scmp.ne.s32.totalorder %s115, %s117
      %p121 = scmp.eq.s32.totalorder %s18, 0
      %p122 = por %p120, %p121
      %p123 = scmp.ne.s32.totalorder %s115, %s117
      %p124 = scmp.eq.s32.totalorder %s23, 1
      %p125 = por %p123, %p124
      %p126 = scmp.ne.s32.totalorder %s117, %s118
      %p127 = scmp.eq.s32.totalorder %s23, 0
      %p128 = por %p126, %p127
      %p129 = scmp.ne.s32.totalorder %s117, %s118
      %p130 = scmp.eq.s32.totalorder %s24, 1
      %p131 = por %p129, %p130
      %p133 = scmp.ne.s32.totalorder %s118, %s132
      %p134 = scmp.eq.s32.totalorder %s24, 0
      %p135 = por %p133, %p134
      %s137 = sadd.s32 %s136, 1
      %p140 = scmp.eq.s32.totalorder %s18, 1
      %p141 = scmp.ne.s32.totalorder %s136, %s138
      %p142 = scmp.eq.s32.totalorder %s18, 0
      %p143 = por %p141, %p142
      %p144 = scmp.ne.s32.totalorder %s136, %s138
      %p145 = scmp.eq.s32.totalorder %s23, 1
      %p146 = por %p144, %p145
      %p147 = scmp.ne.s32.totalorder %s138, %s139
      %p148 = scmp.eq.s32.totalorder %s23, 0
      %p149 = por %p147, %p148
      %p150 = scmp.ne.s32.totalorder %s138, %s139
      %p151 = scmp.eq.s32.totalorder %s24, 1
      %p152 = por %p150, %p151
      %p154 = scmp.ne.s32.totalorder %s139, %s153
      %p155 = scmp.eq.s32.totalorder %s24, 0
      %p156 = por %p154, %p155
      %s158 = sadd.s32 %s157, 1
      %p161 = scmp.eq.s32.totalorder %s18, 1
      %p162 = scmp.ne.s32.totalorder %s157, %s159
      %p163 = scmp.eq.s32.totalorder %s18, 0
      %p164 = por %p162, %p163
      %p165 = scmp.ne.s32.totalorder %s157, %s159
      %p166 = scmp.eq.s32.totalorder %s23, 1
      %p167 = por %p165, %p166
      %p168 = scmp.ne.s32.totalorder %s159, %s160
      %p169 = scmp.eq.s32.totalorder %s23, 0
      %p170 = por %p168, %p169
      %p171 = scmp.ne.s32.totalorder %s159, %s160
      %p172 = scmp.eq.s32.totalorder %s24, 1
      %p173 = por %p171, %p172
      %p175 = scmp.ne.s32.totalorder %s160, %s174
      %p176 = scmp.eq.s32.totalorder %s24, 0
      %p177 = por %p175, %p176
      %s179 = sadd.s32 %s178, 1
      %p182 = scmp.eq.s32.totalorder %s18, 1
      %p183 = scmp.ne.s32.totalorder %s178, %s180
      %p184 = scmp.eq.s32.totalorder %s18, 0
      %p185 = por %p183, %p184
      %p186 = scmp.ne.s32.totalorder %s178, %s180
      %p187 = scmp.eq.s32.totalorder %s23, 1
      %p188 = por %p186, %p187
      %p189 = scmp.ne.s32.totalorder %s180, %s181
      %p190 = scmp.eq.s32.totalorder %s23, 0
      %p191 = por %p189, %p190
      %p192 = scmp.ne.s32.totalorder %s180, %s181
      %p193 = scmp.eq.s32.totalorder %s24, 1
      %p194 = por %p192, %p193
      %p196 = scmp.ne.s32.totalorder %s181, %s195
      %p197 = scmp.eq.s32.totalorder %s24, 0
      %p198 = por %p196, %p197
      %s200 = sadd.s32 %s199, 1
      %p203 = scmp.eq.s32.totalorder %s18, 1
      %p204 = scmp.ne.s32.totalorder %s199, %s201
      %p205 = scmp.eq.s32.totalorder %s18, 0
      %p206 = por %p204, %p205
      %p207 = scmp.ne.s32.totalorder %s199, %s201
      %p208 = scmp.eq.s32.totalorder %s23, 1
      %p209 = por %p207, %p208
      %p210 = scmp.ne.s32.totalorder %s201, %s202
      %p211 = scmp.eq.s32.totalorder %s23, 0
      %p212 = por %p210, %p211
      %p213 = scmp.ne.s32.totalorder %s201, %s202
      %p214 = scmp.eq.s32.totalorder %s24, 1
      %p215 = por %p213, %p214
      %p217 = scmp.ne.s32.totalorder %s202, %s216
      %p218 = scmp.eq.s32.totalorder %s24, 0
      %p219 = por %p217, %p218
      %s220 = ssub.s32 %s18, %s25
      %p221 = scmp.eq.s32.totalorder %s220, 0
      %s223 = sadd.s32 %s222, 1
      %s224 = scalar_select %p221, %s222, %s223
      %p227 = pneg %p221
      %p228 = scmp.eq.s32.totalorder %s18, 1
      %p229 = por %p227, %p228
      %p230 = scmp.ne.s32.totalorder %s222, %s225
      %p231 = scmp.eq.s32.totalorder %s18, 0
      %p232 = por %p230, %p231
      %p233 = scmp.ne.s32.totalorder %s222, %s225
      %p234 = scmp.eq.s32.totalorder %s23, 1
      %p235 = por %p233, %p234
      %p236 = scmp.ne.s32.totalorder %s225, %s226
      %p237 = scmp.eq.s32.totalorder %s23, 0
      %p238 = por %p236, %p237
      %p239 = scmp.ne.s32.totalorder %s225, %s226
      %p240 = scmp.eq.s32.totalorder %s24, 1
      %p241 = por %p239, %p240
      %p243 = scmp.ne.s32.totalorder %s226, %s242
      %p244 = scmp.eq.s32.totalorder %s24, 0
      %p245 = por %p243, %p244
      %p246 = scmp.le.s32.totalorder 1, %s18
      %p247 = scmp.lt.s32.totalorder %s18, 3
      %p248 = pnand %p246, %p247
      %p249 = pneg %p248
      // Predicated region
      $region9: #{net_forward.1} parent=5 // pred_check
        _
      $region10: #{net_forward.1} parent=5 // pred_check_branch
        %251 = sbr.rel (%p248) target = $region12
      $region11: #{net_forward.1} parent=5 // pred_region
        %s252 = ssub.s32 %s18, 1
        // Predicated region
        $region13: #{net_forward.1} parent=11 // pred_check
          %p253 = pneg %p65
        $region14: #{net_forward.1} parent=11 // pred_check_branch
          %255 = sbr.rel (%p253) target = $region16
        $region15: #{net_forward.1} parent=11 // pred_region
          _
        $region16: #{net_forward.1} parent=11 // pred_fallthru
          _
        // Predicated region
        $region17: #{net_forward.1} parent=11 // pred_check
          %p256 = pneg %p86
        $region18: #{net_forward.1} parent=11 // pred_check_branch
          %258 = sbr.rel (%p256) target = $region20
        $region19: #{net_forward.1} parent=11 // pred_region
          _
        $region20: #{net_forward.1} parent=11 // pred_fallthru
          _
        // Predicated region
        $region21: #{net_forward.1} parent=11 // pred_check
          %p259 = pneg %p107
        $region22: #{net_forward.1} parent=11 // pred_check_branch
          %261 = sbr.rel (%p259) target = $region24
        $region23: #{net_forward.1} parent=11 // pred_region
          _
        $region24: #{net_forward.1} parent=11 // pred_fallthru
          _
        // Predicated region
        $region25: #{net_forward.1} parent=11 // pred_check
          %p262 = pneg %p128
        $region26: #{net_forward.1} parent=11 // pred_check_branch
          %264 = sbr.rel (%p262) target = $region28
        $region27: #{net_forward.1} parent=11 // pred_region
          _
        $region28: #{net_forward.1} parent=11 // pred_fallthru
          _
        // Predicated region
        $region29: #{net_forward.1} parent=11 // pred_check
          %p265 = pneg %p149
        $region30: #{net_forward.1} parent=11 // pred_check_branch
          %267 = sbr.rel (%p265) target = $region32
        $region31: #{net_forward.1} parent=11 // pred_region
          _
        $region32: #{net_forward.1} parent=11 // pred_fallthru
          _
        // Predicated region
        $region33: #{net_forward.1} parent=11 // pred_check
          %p268 = pneg %p170
        $region34: #{net_forward.1} parent=11 // pred_check_branch
          %270 = sbr.rel (%p268) target = $region36
        $region35: #{net_forward.1} parent=11 // pred_region
          _
        $region36: #{net_forward.1} parent=11 // pred_fallthru
          _
        // Predicated region
        $region37: #{net_forward.1} parent=11 // pred_check
          %p271 = pneg %p191
        $region38: #{net_forward.1} parent=11 // pred_check_branch
          %273 = sbr.rel (%p271) target = $region40
        $region39: #{net_forward.1} parent=11 // pred_region
          _
        $region40: #{net_forward.1} parent=11 // pred_fallthru
          _
        // Predicated region
        $region41: #{net_forward.1} parent=11 // pred_check
          %p274 = pneg %p212
        $region42: #{net_forward.1} parent=11 // pred_check_branch
          %276 = sbr.rel (%p274) target = $region44
        $region43: #{net_forward.1} parent=11 // pred_region
          _
        $region44: #{net_forward.1} parent=11 // pred_fallthru
          _
      $region12: #{net_forward.1} parent=5 // pred_fallthru
        _
      %p277 = scmp.lt.s32.totalorder %s18, 2
      // Predicated region
      $region45: #{net_forward.1} parent=5 // pred_check
        %p278 = pneg %p277
      $region46: #{net_forward.1} parent=5 // pred_check_branch
        %280 = sbr.rel (%p278) target = $region48
      $region47: #{net_forward.1} parent=5 // pred_region
        // Predicated region
        $region49: #{net_forward.1} parent=47 // pred_check
          %p281 = pneg %p38
        $region50: #{net_forward.1} parent=47 // pred_check_branch
          %283 = sbr.rel (%p281) target = $region52
        $region51: #{net_forward.1} parent=47 // pred_region
          %p284 = scmp.lt.s32.totalorder %s18, 1
          %s285 = scalar_select %p284, %s18, 1
          %s286 = smul.addr %s285, 104
          %s287 = smul.addr %s286, 8
          %s288 = scalar_lea.vmem %s0, %s287
        $region52: #{net_forward.1} parent=47 // pred_fallthru
          _
      $region48: #{net_forward.1} parent=5 // pred_fallthru
        _
      %p289 = scmp.le.s32.totalorder 1, %s18
      %p290 = scmp.lt.s32.totalorder %s18, 3
      %p291 = pnand %p289, %p290
      %p292 = pneg %p291
      // Predicated region
      $region53: #{net_forward.1} parent=5 // pred_check
        _
      $region54: #{net_forward.1} parent=5 // pred_check_branch
        %294 = sbr.rel (%p291) target = $region56
      $region55: #{net_forward.1} parent=5 // pred_region
        %s295 = ssub.s32 %s18, 1
        %p296 = scmp.lt.s32.totalorder %s23, 1
        %s297 = scalar_select %p296, %s23, 1
        %s298 = smul.addr %s297, 104
        %s299 = smul.addr %s298, 8
        %s300 = scalar_lea.vmem %s0, %s299
        %p301 = pneg %p44
        %p302 = pneg %p41
        %p303 = pneg %p65
        %p304 = pneg %p62
        %p305 = pneg %p86
        %p306 = pneg %p83
        %p307 = pneg %p107
        %p308 = pneg %p104
        %p309 = pneg %p128
        %p310 = pneg %p125
        %p311 = pneg %p149
        %p312 = pneg %p146
        %p313 = pneg %p170
        %p314 = pneg %p167
        %p315 = pneg %p191
        %p316 = pneg %p188
        %p317 = pneg %p212
        %p318 = pneg %p209
        %p319 = pneg %p238
        %p320 = pneg %p235
        %s321 = sand.u32 %s225, 1
        %s322 = scalar_lea.sflag [#allocation3], %s321
        %s323 = sand.u32 %s225, 1
        %s324 = scalar_lea.vmem [#allocation2], %s323
        %p325 = scmp.lt.s32.totalorder %s23, 1
        %s326 = scalar_select %p325, %s23, 1
        %s327 = smul.addr %s326, 104
        %s328 = smul.addr %s327, 8
        %s329 = scalar_lea.vmem %s0, %s328
        %v331 = vld [vmem:[%s329] sm:$0xff]
        %v332 = vld [vmem:[%s329 + $0x8] sm:$0xff]
        %v333 = vld [vmem:[%s329 + $0x10] sm:$0xff]
        %v334 = vld [vmem:[%s329 + $0x18] sm:$0xff]
        %v335 = vld [vmem:[%s329 + $0x20] sm:$0xff]
        %v336 = vld [vmem:[%s329 + $0x28] sm:$0xff]
        %v337 = vld [vmem:[%s329 + $0x30] sm:$0xff]
        %v338 = vld [vmem:[%s329 + $0x38] sm:$0xff]
        %v339 = vld [vmem:[%s329 + $0x40] sm:$0xff]
        %v340 = vld [vmem:[%s329 + $0x48] sm:$0xff]
        %v341 = vld [vmem:[%s329 + $0x50] sm:$0xff]
        %v342 = vld [vmem:[%s329 + $0x58] sm:$0xff]
        %v343 = vld [vmem:[%s329 + $0x60] sm:$0xff]
        %v344 = vld [vmem:[%s329 + $0x68] sm:$0xff]
        %v345 = vld [vmem:[%s329 + $0x70] sm:$0xff]
        %v346 = vld [vmem:[%s329 + $0x78] sm:$0xff]
        %v347 = vld [vmem:[%s329 + $0x80] sm:$0xff]
        %v348 = vld [vmem:[%s329 + $0x88] sm:$0xff]
        %v349 = vld [vmem:[%s329 + $0x90] sm:$0xff]
        %v350 = vld [vmem:[%s329 + $0x98] sm:$0xff]
        %v351 = vld [vmem:[%s329 + $0xa0] sm:$0xff]
        %v352 = vld [vmem:[%s329 + $0xa8] sm:$0xff]
        %v353 = vld [vmem:[%s329 + $0xb0] sm:$0xff]
        %v354 = vld [vmem:[%s329 + $0xb8] sm:$0xff]
        %v355 = vld [vmem:[%s329 + $0xc0] sm:$0xff]
        %v356 = vld [vmem:[%s329 + $0xc8] sm:$0xff]
        %v357 = vld [vmem:[%s329 + $0xd0] sm:$0xff]
        %v358 = vld [vmem:[%s329 + $0xd8] sm:$0xff]
        %v359 = vld [vmem:[%s329 + $0xe0] sm:$0xff]
        %v360 = vld [vmem:[%s329 + $0xe8] sm:$0xff]
        %v361 = vld [vmem:[%s329 + $0xf0] sm:$0xff]
        %v362 = vld [vmem:[%s329 + $0xf8] sm:$0xff]
        %v363 = vld [vmem:[%s329 + $0x100] sm:$0xff]
        %v364 = vld [vmem:[%s329 + $0x108] sm:$0xff]
        %v365 = vld [vmem:[%s329 + $0x110] sm:$0xff]
        %v366 = vld [vmem:[%s329 + $0x118] sm:$0xff]
        %v367 = vld [vmem:[%s329 + $0x120] sm:$0xff]
        %v368 = vld [vmem:[%s329 + $0x128] sm:$0xff]
        %v369 = vld [vmem:[%s329 + $0x130] sm:$0xff]
        %v370 = vld [vmem:[%s329 + $0x138] sm:$0xff]
        %v371 = vld [vmem:[%s329 + $0x140] sm:$0xff]
        %v372 = vld [vmem:[%s329 + $0x148] sm:$0xff]
        %v373 = vld [vmem:[%s329 + $0x150] sm:$0xff]
        %v374 = vld [vmem:[%s329 + $0x158] sm:$0xff]
        %v375 = vld [vmem:[%s329 + $0x160] sm:$0xff]
        %v376 = vld [vmem:[%s329 + $0x168] sm:$0xff]
        %v377 = vld [vmem:[%s329 + $0x170] sm:$0xff]
        %v378 = vld [vmem:[%s329 + $0x178] sm:$0xff]
        %v379 = vld [vmem:[%s329 + $0x180] sm:$0xff]
        %v380 = vld [vmem:[%s329 + $0x188] sm:$0xff]
        %v381 = vld [vmem:[%s329 + $0x190] sm:$0xff]
        %v382 = vld [vmem:[%s329 + $0x198] sm:$0xff]
        %v383 = vld [vmem:[%s329 + $0x1a0] sm:$0xff]
        %v384 = vld [vmem:[%s329 + $0x1a8] sm:$0xff]
        %v385 = vld [vmem:[%s329 + $0x1b0] sm:$0xff]
        %v386 = vld [vmem:[%s329 + $0x1b8] sm:$0xff]
        %v387 = vld [vmem:[%s329 + $0x1c0] sm:$0xff]
        %v388 = vld [vmem:[%s329 + $0x1c8] sm:$0xff]
        %v389 = vld [vmem:[%s329 + $0x1d0] sm:$0xff]
        %v390 = vld [vmem:[%s329 + $0x1d8] sm:$0xff]
        %v391 = vld [vmem:[%s329 + $0x1e0] sm:$0xff]
        %v392 = vld [vmem:[%s329 + $0x1e8] sm:$0xff]
        %v393 = vld [vmem:[%s329 + $0x1f0] sm:$0xff]
        %v394 = vld [vmem:[%s329 + $0x1f8] sm:$0xff]
        %v395 = vld [vmem:[%s329 + $0x200] sm:$0xff]
        %v396 = vld [vmem:[%s329 + $0x208] sm:$0xff]
        %v397 = vld [vmem:[%s329 + $0x210] sm:$0xff]
        %v398 = vld [vmem:[%s329 + $0x218] sm:$0xff]
        %v399 = vld [vmem:[%s329 + $0x220] sm:$0xff]
        %v400 = vld [vmem:[%s329 + $0x228] sm:$0xff]
        %v401 = vld [vmem:[%s329 + $0x230] sm:$0xff]
        %v402 = vld [vmem:[%s329 + $0x238] sm:$0xff]
        %v403 = vld [vmem:[%s329 + $0x240] sm:$0xff]
        %v404 = vld [vmem:[%s329 + $0x248] sm:$0xff]
        %v405 = vld [vmem:[%s329 + $0x250] sm:$0xff]
        %v406 = vld [vmem:[%s329 + $0x258] sm:$0xff]
        %v407 = vld [vmem:[%s329 + $0x260] sm:$0xff]
        %v408 = vld [vmem:[%s329 + $0x268] sm:$0xff]
        %v409 = vld [vmem:[%s329 + $0x270] sm:$0xff]
        %v410 = vld [vmem:[%s329 + $0x278] sm:$0xff]
        %v411 = vld [vmem:[%s329 + $0x280] sm:$0xff]
        %v412 = vld [vmem:[%s329 + $0x288] sm:$0xff]
        %v413 = vld [vmem:[%s329 + $0x290] sm:$0xff]
        %v414 = vld [vmem:[%s329 + $0x298] sm:$0xff]
        %v415 = vld [vmem:[%s329 + $0x2a0] sm:$0xff]
        %v416 = vld [vmem:[%s329 + $0x2a8] sm:$0xff]
        %v417 = vld [vmem:[%s329 + $0x2b0] sm:$0xff]
        %v418 = vld [vmem:[%s329 + $0x2b8] sm:$0xff]
        %v419 = vld [vmem:[%s329 + $0x2c0] sm:$0xff]
        %v420 = vld [vmem:[%s329 + $0x2c8] sm:$0xff]
        %v421 = vld [vmem:[%s329 + $0x2d0] sm:$0xff]
        %v422 = vld [vmem:[%s329 + $0x2d8] sm:$0xff]
        %v423 = vld [vmem:[%s329 + $0x2e0] sm:$0xff]
        %v424 = vld [vmem:[%s329 + $0x2e8] sm:$0xff]
        %v425 = vld [vmem:[%s329 + $0x2f0] sm:$0xff]
        %v426 = vld [vmem:[%s329 + $0x2f8] sm:$0xff]
        %v427 = vld [vmem:[%s329 + $0x300] sm:$0xff]
        %v428 = vld [vmem:[%s329 + $0x308] sm:$0xff]
        %v429 = vld [vmem:[%s329 + $0x310] sm:$0xff]
        %v430 = vld [vmem:[%s329 + $0x318] sm:$0xff]
        %v431 = vld [vmem:[%s329 + $0x320] sm:$0xff]
        %v432 = vld [vmem:[%s329 + $0x328] sm:$0xff]
        %v433 = vld [vmem:[%s329 + $0x330] sm:$0xff]
        %v434 = vld [vmem:[%s329 + $0x338] sm:$0xff]
        %v435 = vpack.c.bf16 %v332, %v331
        %v436 = vpack.c.bf16 %v334, %v333
        %v437 = vpack.c.bf16 %v336, %v335
        %v438 = vpack.c.bf16 %v338, %v337
        %v439 = vpack.c.bf16 %v340, %v339
        %v440 = vpack.c.bf16 %v342, %v341
        %v441 = vpack.c.bf16 %v344, %v343
        %v442 = vpack.c.bf16 %v346, %v345
        %v443 = vpack.c.bf16 %v348, %v347
        %v444 = vpack.c.bf16 %v350, %v349
        %v445 = vpack.c.bf16 %v352, %v351
        %v446 = vpack.c.bf16 %v354, %v353
        %v447 = vpack.c.bf16 %v356, %v355
        %v448 = vpack.c.bf16 %v358, %v357
        %v449 = vpack.c.bf16 %v360, %v359
        %v450 = vpack.c.bf16 %v362, %v361
        %v451 = vpack.c.bf16 %v364, %v363
        %v452 = vpack.c.bf16 %v366, %v365
        %v453 = vpack.c.bf16 %v368, %v367
        %v454 = vpack.c.bf16 %v370, %v369
        %v455 = vpack.c.bf16 %v372, %v371
        %v456 = vpack.c.bf16 %v374, %v373
        %v457 = vpack.c.bf16 %v376, %v375
        %v458 = vpack.c.bf16 %v378, %v377
        %v459 = vpack.c.bf16 %v380, %v379
        %v460 = vpack.c.bf16 %v382, %v381
        %v461 = vpack.c.bf16 %v384, %v383
        %v462 = vpack.c.bf16 %v386, %v385
        %v463 = vpack.c.bf16 %v388, %v387
        %v464 = vpack.c.bf16 %v390, %v389
        %v465 = vpack.c.bf16 %v392, %v391
        %v466 = vpack.c.bf16 %v394, %v393
        %v467 = vpack.c.bf16 %v396, %v395
        %v468 = vpack.c.bf16 %v398, %v397
        %v469 = vpack.c.bf16 %v400, %v399
        %v470 = vpack.c.bf16 %v402, %v401
        %v471 = vpack.c.bf16 %v404, %v403
        %v472 = vpack.c.bf16 %v406, %v405
        %v473 = vpack.c.bf16 %v408, %v407
        %v474 = vpack.c.bf16 %v410, %v409
        %v475 = vpack.c.bf16 %v412, %v411
        %v476 = vpack.c.bf16 %v414, %v413
        %v477 = vpack.c.bf16 %v416, %v415
        %v478 = vpack.c.bf16 %v418, %v417
        %v479 = vpack.c.bf16 %v420, %v419
        %v480 = vpack.c.bf16 %v422, %v421
        %v481 = vpack.c.bf16 %v424, %v423
        %v482 = vpack.c.bf16 %v426, %v425
        %v483 = vpack.c.bf16 %v428, %v427
        %v484 = vpack.c.bf16 %v430, %v429
        %v485 = vpack.c.bf16 %v432, %v431
        %v486 = vpack.c.bf16 %v434, %v433
        %v487 = vld [vmem:[%s1] sm:$0xff]
        %v488 = vld [vmem:[%s1 + $0x8] sm:$0xff]
        %v489 = vld [vmem:[%s1 + $0x10] sm:$0xff]
        %v490 = vld [vmem:[%s1 + $0x18] sm:$0x11]
        %v491 = vld [vmem:[%s2] sm:$0x3]
        %v493 = vperm.slane %v491, 0
        %v494 = vperm.slane %v491, 1
        %v501 = vunpack.c.l.b16 %v487
        %v502 = vunpack.c.h.b16 %v487
        %v503 = vunpack.c.l.b16 %v488
        %v504 = vunpack.c.h.b16 %v488
        %v505 = vunpack.c.l.b16 %v489
        %v506 = vunpack.c.h.b16 %v489
        %v507 = vunpack.c.l.b16 %v490
        %v508 = vunpack.c.h.b16 %v490
        %v509 = vpack.c.b16 %v503, %v501
        %v510 = vpack.c.b16 %v504, %v502
        %v511 = vpack.c.b16 %v507, %v505
        %v512 = vpack.c.b16 %v508, %v506
        %vm515 = vcmask 203776
        %v517 = vsel %vm515, %v435, 0
        %v520 = vsel %vm515, %v436, 0
        %v523 = vsel %vm515, %v437, 0
        %v526 = vsel %vm515, %v438, 0
        %v529 = vsel %vm515, %v439, 0
        %v532 = vsel %vm515, %v440, 0
        %v535 = vsel %vm515, %v441, 0
        %v538 = vsel %vm515, %v442, 0
        %v541 = vsel %vm515, %v443, 0
        %v544 = vsel %vm515, %v444, 0
        %v547 = vsel %vm515, %v445, 0
        %v550 = vsel %vm515, %v446, 0
        %v553 = vsel %vm515, %v447, 0
        %v556 = vsel %vm515, %v448, 0
        %v559 = vsel %vm515, %v449, 0
        %v562 = vsel %vm515, %v450, 0
        %v565 = vsel %vm515, %v451, 0
        %v568 = vsel %vm515, %v452, 0
        %v571 = vsel %vm515, %v453, 0
        %v574 = vsel %vm515, %v454, 0
        %v577 = vsel %vm515, %v455, 0
        %v580 = vsel %vm515, %v456, 0
        %v583 = vsel %vm515, %v457, 0
        %v586 = vsel %vm515, %v458, 0
        %v589 = vsel %vm515, %v459, 0
        %v592 = vsel %vm515, %v460, 0
        %v595 = vsel %vm515, %v461, 0
        %v598 = vsel %vm515, %v462, 0
        %v601 = vsel %vm515, %v463, 0
        %v604 = vsel %vm515, %v464, 0
        %v607 = vsel %vm515, %v465, 0
        %v610 = vsel %vm515, %v466, 0
        %v613 = vsel %vm515, %v467, 0
        %v616 = vsel %vm515, %v468, 0
        %v619 = vsel %vm515, %v469, 0
        %v622 = vsel %vm515, %v470, 0
        %v625 = vsel %vm515, %v471, 0
        %v628 = vsel %vm515, %v472, 0
        %v631 = vsel %vm515, %v473, 0
        %v634 = vsel %vm515, %v474, 0
        %v637 = vsel %vm515, %v475, 0
        %v640 = vsel %vm515, %v476, 0
        %v643 = vsel %vm515, %v477, 0
        %v646 = vsel %vm515, %v478, 0
        %v649 = vsel %vm515, %v479, 0
        %v652 = vsel %vm515, %v480, 0
        %v655 = vsel %vm515, %v481, 0
        %v658 = vsel %vm515, %v482, 0
        %v661 = vsel %vm515, %v483, 0
        %v664 = vsel %vm515, %v484, 0
        %v667 = vsel %vm515, %v485, 0
        %v670 = vsel %vm515, %v486, 0
        %vm672 = vcmask 1043456
        %vm673 = vcmask 1044480
        %v674 = vsel %vm672, 4294967295, 65535
        %v675 = vsel %vm673, %v674, 0
        %v677 = vand.u32 %v511, %v675
        %v680 = vand.u32 %v512, %v675
        %682 = vmatpush.bf16.msra.mxu0 0
        %683 = vmatpush.bf16.msra.mxu0 0
        %684 = vmatpush.bf16.msra.mxu0 0
        %685 = vmatpush.bf16.msra.mxu0 0
        %686 = vmatpush.bf16.msra.mxu0 0
        %687 = vmatpush.bf16.msra.mxu0 0
        %688 = vmatpush.bf16.msra.mxu0 %v677
        %689 = vmatpush.bf16.msra.mxu0 %v509
        %690 = vmatmul.bf16.gmra.mxu0 %v517
        %v691 = vpop.f32.mrf.mxu0
        %v692 = vadd.f32 %v493, %v691
        %v693 = vpop.f32.mrf.mxu0
        %v694 = vadd.f32 %v493, %v693
        %695 = vmatmul.bf16.gmra.mxu0 %v520
        %v696 = vpop.f32.mrf.mxu0
        %v697 = vadd.f32 %v493, %v696
        %v698 = vpop.f32.mrf.mxu0
        %v699 = vadd.f32 %v493, %v698
        %700 = vmatmul.bf16.gmra.mxu0 %v523
        %v701 = vpop.f32.mrf.mxu0
        %v702 = vadd.f32 %v493, %v701
        %v703 = vpop.f32.mrf.mxu0
        %v704 = vadd.f32 %v493, %v703
        %705 = vmatmul.bf16.gmra.mxu0 %v526
        %v706 = vpop.f32.mrf.mxu0
        %v707 = vadd.f32 %v493, %v706
        %v708 = vpop.f32.mrf.mxu0
        %v709 = vadd.f32 %v493, %v708
        %710 = vmatmul.bf16.gmra.mxu0 %v529
        %v711 = vpop.f32.mrf.mxu0
        %v712 = vadd.f32 %v493, %v711
        %v713 = vpop.f32.mrf.mxu0
        %v714 = vadd.f32 %v493, %v713
        %715 = vmatmul.bf16.gmra.mxu0 %v532
        %v716 = vpop.f32.mrf.mxu0
        %v717 = vadd.f32 %v493, %v716
        %v718 = vpop.f32.mrf.mxu0
        %v719 = vadd.f32 %v493, %v718
        %720 = vmatmul.bf16.gmra.mxu0 %v535
        %v721 = vpop.f32.mrf.mxu0
        %v722 = vadd.f32 %v493, %v721
        %v723 = vpop.f32.mrf.mxu0
        %v724 = vadd.f32 %v493, %v723
        %725 = vmatmul.bf16.gmra.mxu0 %v538
        %v726 = vpop.f32.mrf.mxu0
        %v727 = vadd.f32 %v493, %v726
        %v728 = vpop.f32.mrf.mxu0
        %v729 = vadd.f32 %v493, %v728
        %730 = vmatmul.bf16.gmra.mxu0 %v541
        %v731 = vpop.f32.mrf.mxu0
        %v732 = vadd.f32 %v493, %v731
        %v733 = vpop.f32.mrf.mxu0
        %v734 = vadd.f32 %v493, %v733
        %735 = vmatmul.bf16.gmra.mxu0 %v544
        %v736 = vpop.f32.mrf.mxu0
        %v737 = vadd.f32 %v493, %v736
        %v738 = vpop.f32.mrf.mxu0
        %v739 = vadd.f32 %v493, %v738
        %740 = vmatmul.bf16.gmra.mxu0 %v547
        %v741 = vpop.f32.mrf.mxu0
        %v742 = vadd.f32 %v493, %v741
        %v743 = vpop.f32.mrf.mxu0
        %v744 = vadd.f32 %v493, %v743
        %745 = vmatmul.bf16.gmra.mxu0 %v550
        %v746 = vpop.f32.mrf.mxu0
        %v747 = vadd.f32 %v493, %v746
        %v748 = vpop.f32.mrf.mxu0
        %v749 = vadd.f32 %v493, %v748
        %750 = vmatmul.bf16.gmra.mxu0 %v553
        %v751 = vpop.f32.mrf.mxu0
        %v752 = vadd.f32 %v493, %v751
        %v753 = vpop.f32.mrf.mxu0
        %v754 = vadd.f32 %v493, %v753
        %755 = vmatmul.bf16.gmra.mxu0 %v556
        %v756 = vpop.f32.mrf.mxu0
        %v757 = vadd.f32 %v493, %v756
        %v758 = vpop.f32.mrf.mxu0
        %v759 = vadd.f32 %v493, %v758
        %760 = vmatmul.bf16.gmra.mxu0 %v559
        %v761 = vpop.f32.mrf.mxu0
        %v762 = vadd.f32 %v493, %v761
        %v763 = vpop.f32.mrf.mxu0
        %v764 = vadd.f32 %v493, %v763
        %765 = vmatmul.bf16.gmra.mxu0 %v562
        %v766 = vpop.f32.mrf.mxu0
        %v767 = vadd.f32 %v493, %v766
        %v768 = vpop.f32.mrf.mxu0
        %v769 = vadd.f32 %v493, %v768
        %770 = vmatmul.bf16.gmra.mxu0 %v565
        %v771 = vpop.f32.mrf.mxu0
        %v772 = vadd.f32 %v493, %v771
        %v773 = vpop.f32.mrf.mxu0
        %v774 = vadd.f32 %v493, %v773
        %775 = vmatmul.bf16.gmra.mxu0 %v568
        %v776 = vpop.f32.mrf.mxu0
        %v777 = vadd.f32 %v493, %v776
        %v778 = vpop.f32.mrf.mxu0
        %v779 = vadd.f32 %v493, %v778
        %780 = vmatmul.bf16.gmra.mxu0 %v571
        %v781 = vpop.f32.mrf.mxu0
        %v782 = vadd.f32 %v493, %v781
        %v783 = vpop.f32.mrf.mxu0
        %v784 = vadd.f32 %v493, %v783
        %785 = vmatmul.bf16.gmra.mxu0 %v574
        %v786 = vpop.f32.mrf.mxu0
        %v787 = vadd.f32 %v493, %v786
        %v788 = vpop.f32.mrf.mxu0
        %v789 = vadd.f32 %v493, %v788
        %790 = vmatmul.bf16.gmra.mxu0 %v577
        %v791 = vpop.f32.mrf.mxu0
        %v792 = vadd.f32 %v493, %v791
        %v793 = vpop.f32.mrf.mxu0
        %v794 = vadd.f32 %v493, %v793
        %795 = vmatmul.bf16.gmra.mxu0 %v580
        %v796 = vpop.f32.mrf.mxu0
        %v797 = vadd.f32 %v493, %v796
        %v798 = vpop.f32.mrf.mxu0
        %v799 = vadd.f32 %v493, %v798
        %800 = vmatmul.bf16.gmra.mxu0 %v583
        %v801 = vpop.f32.mrf.mxu0
        %v802 = vadd.f32 %v493, %v801
        %v803 = vpop.f32.mrf.mxu0
        %v804 = vadd.f32 %v493, %v803
        %805 = vmatmul.bf16.gmra.mxu0 %v586
        %v806 = vpop.f32.mrf.mxu0
        %v807 = vadd.f32 %v493, %v806
        %v808 = vpop.f32.mrf.mxu0
        %v809 = vadd.f32 %v493, %v808
        %810 = vmatmul.bf16.gmra.mxu0 %v589
        %v811 = vpop.f32.mrf.mxu0
        %v812 = vadd.f32 %v493, %v811
        %v813 = vpop.f32.mrf.mxu0
        %v814 = vadd.f32 %v493, %v813
        %815 = vmatmul.bf16.gmra.mxu0 %v592
        %v816 = vpop.f32.mrf.mxu0
        %v817 = vadd.f32 %v493, %v816
        %v818 = vpop.f32.mrf.mxu0
        %v819 = vadd.f32 %v493, %v818
        %820 = vmatmul.bf16.gmra.mxu0 %v595
        %v821 = vpop.f32.mrf.mxu0
        %v822 = vadd.f32 %v493, %v821
        %v823 = vpop.f32.mrf.mxu0
        %v824 = vadd.f32 %v493, %v823
        %825 = vmatmul.bf16.gmra.mxu0 %v598
        %v826 = vpop.f32.mrf.mxu0
        %v827 = vadd.f32 %v493, %v826
        %v828 = vpop.f32.mrf.mxu0
        %v829 = vadd.f32 %v493, %v828
        %830 = vmatmul.bf16.gmra.mxu0 %v601
        %v831 = vpop.f32.mrf.mxu0
        %v832 = vadd.f32 %v493, %v831
        %v833 = vpop.f32.mrf.mxu0
        %v834 = vadd.f32 %v493, %v833
        %835 = vmatmul.bf16.gmra.mxu0 %v604
        %v836 = vpop.f32.mrf.mxu0
        %v837 = vadd.f32 %v493, %v836
        %v838 = vpop.f32.mrf.mxu0
        %v839 = vadd.f32 %v493, %v838
        %840 = vmatmul.bf16.gmra.mxu0 %v607
        %v841 = vpop.f32.mrf.mxu0
        %v842 = vadd.f32 %v493, %v841
        %v843 = vpop.f32.mrf.mxu0
        %v844 = vadd.f32 %v493, %v843
        %845 = vmatmul.bf16.gmra.mxu0 %v610
        %v846 = vpop.f32.mrf.mxu0
        %v847 = vadd.f32 %v493, %v846
        %v848 = vpop.f32.mrf.mxu0
        %v849 = vadd.f32 %v493, %v848
        %850 = vmatmul.bf16.gmra.mxu0 %v613
        %v851 = vpop.f32.mrf.mxu0
        %v852 = vadd.f32 %v493, %v851
        %v853 = vpop.f32.mrf.mxu0
        %v854 = vadd.f32 %v493, %v853
        %855 = vmatmul.bf16.gmra.mxu0 %v616
        %v856 = vpop.f32.mrf.mxu0
        %v857 = vadd.f32 %v493, %v856
        %v858 = vpop.f32.mrf.mxu0
        %v859 = vadd.f32 %v493, %v858
        %860 = vmatmul.bf16.gmra.mxu0 %v619
        %v861 = vpop.f32.mrf.mxu0
        %v862 = vadd.f32 %v493, %v861
        %v863 = vpop.f32.mrf.mxu0
        %v864 = vadd.f32 %v493, %v863
        %865 = vmatmul.bf16.gmra.mxu0 %v622
        %v866 = vpop.f32.mrf.mxu0
        %v867 = vadd.f32 %v493, %v866
        %v868 = vpop.f32.mrf.mxu0
        %v869 = vadd.f32 %v493, %v868
        %870 = vmatmul.bf16.gmra.mxu0 %v625
        %v871 = vpop.f32.mrf.mxu0
        %v872 = vadd.f32 %v493, %v871
        %v873 = vpop.f32.mrf.mxu0
        %v874 = vadd.f32 %v493, %v873
        %875 = vmatmul.bf16.gmra.mxu0 %v628
        %v876 = vpop.f32.mrf.mxu0
        %v877 = vadd.f32 %v493, %v876
        %v878 = vpop.f32.mrf.mxu0
        %v879 = vadd.f32 %v493, %v878
        %880 = vmatmul.bf16.gmra.mxu0 %v631
        %v881 = vpop.f32.mrf.mxu0
        %v882 = vadd.f32 %v493, %v881
        %v883 = vpop.f32.mrf.mxu0
        %v884 = vadd.f32 %v493, %v883
        %885 = vmatmul.bf16.gmra.mxu0 %v634
        %v886 = vpop.f32.mrf.mxu0
        %v887 = vadd.f32 %v493, %v886
        %v888 = vpop.f32.mrf.mxu0
        %v889 = vadd.f32 %v493, %v888
        %890 = vmatmul.bf16.gmra.mxu0 %v637
        %v891 = vpop.f32.mrf.mxu0
        %v892 = vadd.f32 %v493, %v891
        %v893 = vpop.f32.mrf.mxu0
        %v894 = vadd.f32 %v493, %v893
        %895 = vmatmul.bf16.gmra.mxu0 %v640
        %v896 = vpop.f32.mrf.mxu0
        %v897 = vadd.f32 %v493, %v896
        %v898 = vpop.f32.mrf.mxu0
        %v899 = vadd.f32 %v493, %v898
        %900 = vmatmul.bf16.gmra.mxu0 %v643
        %v901 = vpop.f32.mrf.mxu0
        %v902 = vadd.f32 %v493, %v901
        %v903 = vpop.f32.mrf.mxu0
        %v904 = vadd.f32 %v493, %v903
        %905 = vmatmul.bf16.gmra.mxu0 %v646
        %v906 = vpop.f32.mrf.mxu0
        %v907 = vadd.f32 %v493, %v906
        %v908 = vpop.f32.mrf.mxu0
        %v909 = vadd.f32 %v493, %v908
        %910 = vmatmul.bf16.gmra.mxu0 %v649
        %v911 = vpop.f32.mrf.mxu0
        %v912 = vadd.f32 %v493, %v911
        %v913 = vpop.f32.mrf.mxu0
        %v914 = vadd.f32 %v493, %v913
        %915 = vmatmul.bf16.gmra.mxu0 %v652
        %v916 = vpop.f32.mrf.mxu0
        %v917 = vadd.f32 %v493, %v916
        %v918 = vpop.f32.mrf.mxu0
        %v919 = vadd.f32 %v493, %v918
        %920 = vmatmul.bf16.gmra.mxu0 %v655
        %v921 = vpop.f32.mrf.mxu0
        %v922 = vadd.f32 %v493, %v921
        %v923 = vpop.f32.mrf.mxu0
        %v924 = vadd.f32 %v493, %v923
        %925 = vmatmul.bf16.gmra.mxu0 %v658
        %v926 = vpop.f32.mrf.mxu0
        %v927 = vadd.f32 %v493, %v926
        %v928 = vpop.f32.mrf.mxu0
        %v929 = vadd.f32 %v493, %v928
        %930 = vmatmul.bf16.gmra.mxu0 %v661
        %v931 = vpop.f32.mrf.mxu0
        %v932 = vadd.f32 %v493, %v931
        %v933 = vpop.f32.mrf.mxu0
        %v934 = vadd.f32 %v493, %v933
        %935 = vmatmul.bf16.gmra.mxu0 %v664
        %v936 = vpop.f32.mrf.mxu0
        %v937 = vadd.f32 %v493, %v936
        %v938 = vpop.f32.mrf.mxu0
        %v939 = vadd.f32 %v493, %v938
        %940 = vmatmul.bf16.gmra.mxu0 %v667
        %v941 = vpop.f32.mrf.mxu0
        %v942 = vadd.f32 %v493, %v941
        %v943 = vpop.f32.mrf.mxu0
        %v944 = vadd.f32 %v493, %v943
        %945 = vmatmul.bf16.gmra.mxu0 %v670
        %v946 = vpop.f32.mrf.mxu0
        %v947 = vadd.f32 %v493, %v946
        %v948 = vpop.f32.mrf.mxu0
        %v949 = vadd.f32 %v493, %v948
        %950 = vdwg.mxu0
        %951 = vmatpush.bf16.msra.mxu0 0
        %952 = vmatpush.bf16.msra.mxu0 0
        %953 = vmatpush.bf16.msra.mxu0 0
        %954 = vmatpush.bf16.msra.mxu0 0
        %955 = vmatpush.bf16.msra.mxu0 0
        %956 = vmatpush.bf16.msra.mxu0 0
        %957 = vmatpush.bf16.msra.mxu0 %v680
        %958 = vmatpush.bf16.msra.mxu0 %v510
        %959 = vmatmul.bf16.gmra.mxu0 %v517
        %v960 = vpop.f32.mrf.mxu0
        %v961 = vadd.f32 %v494, %v960
        %v962 = vpop.f32.mrf.mxu0
        %v963 = vadd.f32 %v494, %v962
        %964 = vmatmul.bf16.gmra.mxu0 %v520
        %v965 = vpop.f32.mrf.mxu0
        %v966 = vadd.f32 %v494, %v965
        %v967 = vpop.f32.mrf.mxu0
        %v968 = vadd.f32 %v494, %v967
        %969 = vmatmul.bf16.gmra.mxu0 %v523
        %v970 = vpop.f32.mrf.mxu0
        %v971 = vadd.f32 %v494, %v970
        %v972 = vpop.f32.mrf.mxu0
        %v973 = vadd.f32 %v494, %v972
        %974 = vmatmul.bf16.gmra.mxu0 %v526
        %v975 = vpop.f32.mrf.mxu0
        %v976 = vadd.f32 %v494, %v975
        %v977 = vpop.f32.mrf.mxu0
        %v978 = vadd.f32 %v494, %v977
        %979 = vmatmul.bf16.gmra.mxu0 %v529
        %v980 = vpop.f32.mrf.mxu0
        %v981 = vadd.f32 %v494, %v980
        %v982 = vpop.f32.mrf.mxu0
        %v983 = vadd.f32 %v494, %v982
        %984 = vmatmul.bf16.gmra.mxu0 %v532
        %v985 = vpop.f32.mrf.mxu0
        %v986 = vadd.f32 %v494, %v985
        %v987 = vpop.f32.mrf.mxu0
        %v988 = vadd.f32 %v494, %v987
        %989 = vmatmul.bf16.gmra.mxu0 %v535
        %v990 = vpop.f32.mrf.mxu0
        %v991 = vadd.f32 %v494, %v990
        %v992 = vpop.f32.mrf.mxu0
        %v993 = vadd.f32 %v494, %v992
        %994 = vmatmul.bf16.gmra.mxu0 %v538
        %v995 = vpop.f32.mrf.mxu0
        %v996 = vadd.f32 %v494, %v995
        %v997 = vpop.f32.mrf.mxu0
        %v998 = vadd.f32 %v494, %v997
        %999 = vmatmul.bf16.gmra.mxu0 %v541
        %v1000 = vpop.f32.mrf.mxu0
        %v1001 = vadd.f32 %v494, %v1000
        %v1002 = vpop.f32.mrf.mxu0
        %v1003 = vadd.f32 %v494, %v1002
        %1004 = vmatmul.bf16.gmra.mxu0 %v544
        %v1005 = vpop.f32.mrf.mxu0
        %v1006 = vadd.f32 %v494, %v1005
        %v1007 = vpop.f32.mrf.mxu0
        %v1008 = vadd.f32 %v494, %v1007
        %1009 = vmatmul.bf16.gmra.mxu0 %v547
        %v1010 = vpop.f32.mrf.mxu0
        %v1011 = vadd.f32 %v494, %v1010
        %v1012 = vpop.f32.mrf.mxu0
        %v1013 = vadd.f32 %v494, %v1012
        %1014 = vmatmul.bf16.gmra.mxu0 %v550
        %v1015 = vpop.f32.mrf.mxu0
        %v1016 = vadd.f32 %v494, %v1015
        %v1017 = vpop.f32.mrf.mxu0
        %v1018 = vadd.f32 %v494, %v1017
        %1019 = vmatmul.bf16.gmra.mxu0 %v553
        %v1020 = vpop.f32.mrf.mxu0
        %v1021 = vadd.f32 %v494, %v1020
        %v1022 = vpop.f32.mrf.mxu0
        %v1023 = vadd.f32 %v494, %v1022
        %1024 = vmatmul.bf16.gmra.mxu0 %v556
        %v1025 = vpop.f32.mrf.mxu0
        %v1026 = vadd.f32 %v494, %v1025
        %v1027 = vpop.f32.mrf.mxu0
        %v1028 = vadd.f32 %v494, %v1027
        %1029 = vmatmul.bf16.gmra.mxu0 %v559
        %v1030 = vpop.f32.mrf.mxu0
        %v1031 = vadd.f32 %v494, %v1030
        %v1032 = vpop.f32.mrf.mxu0
        %v1033 = vadd.f32 %v494, %v1032
        %1034 = vmatmul.bf16.gmra.mxu0 %v562
        %v1035 = vpop.f32.mrf.mxu0
        %v1036 = vadd.f32 %v494, %v1035
        %v1037 = vpop.f32.mrf.mxu0
        %v1038 = vadd.f32 %v494, %v1037
        %1039 = vmatmul.bf16.gmra.mxu0 %v565
        %v1040 = vpop.f32.mrf.mxu0
        %v1041 = vadd.f32 %v494, %v1040
        %v1042 = vpop.f32.mrf.mxu0
        %v1043 = vadd.f32 %v494, %v1042
        %1044 = vmatmul.bf16.gmra.mxu0 %v568
        %v1045 = vpop.f32.mrf.mxu0
        %v1046 = vadd.f32 %v494, %v1045
        %v1047 = vpop.f32.mrf.mxu0
        %v1048 = vadd.f32 %v494, %v1047
        %1049 = vmatmul.bf16.gmra.mxu0 %v571
        %v1050 = vpop.f32.mrf.mxu0
        %v1051 = vadd.f32 %v494, %v1050
        %v1052 = vpop.f32.mrf.mxu0
        %v1053 = vadd.f32 %v494, %v1052
        %1054 = vmatmul.bf16.gmra.mxu0 %v574
        %v1055 = vpop.f32.mrf.mxu0
        %v1056 = vadd.f32 %v494, %v1055
        %v1057 = vpop.f32.mrf.mxu0
        %v1058 = vadd.f32 %v494, %v1057
        %1059 = vmatmul.bf16.gmra.mxu0 %v577
        %v1060 = vpop.f32.mrf.mxu0
        %v1061 = vadd.f32 %v494, %v1060
        %v1062 = vpop.f32.mrf.mxu0
        %v1063 = vadd.f32 %v494, %v1062
        %1064 = vmatmul.bf16.gmra.mxu0 %v580
        %v1065 = vpop.f32.mrf.mxu0
        %v1066 = vadd.f32 %v494, %v1065
        %v1067 = vpop.f32.mrf.mxu0
        %v1068 = vadd.f32 %v494, %v1067
        %1069 = vmatmul.bf16.gmra.mxu0 %v583
        %v1070 = vpop.f32.mrf.mxu0
        %v1071 = vadd.f32 %v494, %v1070
        %v1072 = vpop.f32.mrf.mxu0
        %v1073 = vadd.f32 %v494, %v1072
        %1074 = vmatmul.bf16.gmra.mxu0 %v586
        %v1075 = vpop.f32.mrf.mxu0
        %v1076 = vadd.f32 %v494, %v1075
        %v1077 = vpop.f32.mrf.mxu0
        %v1078 = vadd.f32 %v494, %v1077
        %1079 = vmatmul.bf16.gmra.mxu0 %v589
        %v1080 = vpop.f32.mrf.mxu0
        %v1081 = vadd.f32 %v494, %v1080
        %v1082 = vpop.f32.mrf.mxu0
        %v1083 = vadd.f32 %v494, %v1082
        %1084 = vmatmul.bf16.gmra.mxu0 %v592
        %v1085 = vpop.f32.mrf.mxu0
        %v1086 = vadd.f32 %v494, %v1085
        %v1087 = vpop.f32.mrf.mxu0
        %v1088 = vadd.f32 %v494, %v1087
        %1089 = vmatmul.bf16.gmra.mxu0 %v595
        %v1090 = vpop.f32.mrf.mxu0
        %v1091 = vadd.f32 %v494, %v1090
        %v1092 = vpop.f32.mrf.mxu0
        %v1093 = vadd.f32 %v494, %v1092
        %1094 = vmatmul.bf16.gmra.mxu0 %v598
        %v1095 = vpop.f32.mrf.mxu0
        %v1096 = vadd.f32 %v494, %v1095
        %v1097 = vpop.f32.mrf.mxu0
        %v1098 = vadd.f32 %v494, %v1097
        %1099 = vmatmul.bf16.gmra.mxu0 %v601
        %v1100 = vpop.f32.mrf.mxu0
        %v1101 = vadd.f32 %v494, %v1100
        %v1102 = vpop.f32.mrf.mxu0
        %v1103 = vadd.f32 %v494, %v1102
        %1104 = vmatmul.bf16.gmra.mxu0 %v604
        %v1105 = vpop.f32.mrf.mxu0
        %v1106 = vadd.f32 %v494, %v1105
        %v1107 = vpop.f32.mrf.mxu0
        %v1108 = vadd.f32 %v494, %v1107
        %1109 = vmatmul.bf16.gmra.mxu0 %v607
        %v1110 = vpop.f32.mrf.mxu0
        %v1111 = vadd.f32 %v494, %v1110
        %v1112 = vpop.f32.mrf.mxu0
        %v1113 = vadd.f32 %v494, %v1112
        %1114 = vmatmul.bf16.gmra.mxu0 %v610
        %v1115 = vpop.f32.mrf.mxu0
        %v1116 = vadd.f32 %v494, %v1115
        %v1117 = vpop.f32.mrf.mxu0
        %v1118 = vadd.f32 %v494, %v1117
        %1119 = vmatmul.bf16.gmra.mxu0 %v613
        %v1120 = vpop.f32.mrf.mxu0
        %v1121 = vadd.f32 %v494, %v1120
        %v1122 = vpop.f32.mrf.mxu0
        %v1123 = vadd.f32 %v494, %v1122
        %1124 = vmatmul.bf16.gmra.mxu0 %v616
        %v1125 = vpop.f32.mrf.mxu0
        %v1126 = vadd.f32 %v494, %v1125
        %v1127 = vpop.f32.mrf.mxu0
        %v1128 = vadd.f32 %v494, %v1127
        %1129 = vmatmul.bf16.gmra.mxu0 %v619
        %v1130 = vpop.f32.mrf.mxu0
        %v1131 = vadd.f32 %v494, %v1130
        %v1132 = vpop.f32.mrf.mxu0
        %v1133 = vadd.f32 %v494, %v1132
        %1134 = vmatmul.bf16.gmra.mxu0 %v622
        %v1135 = vpop.f32.mrf.mxu0
        %v1136 = vadd.f32 %v494, %v1135
        %v1137 = vpop.f32.mrf.mxu0
        %v1138 = vadd.f32 %v494, %v1137
        %1139 = vmatmul.bf16.gmra.mxu0 %v625
        %v1140 = vpop.f32.mrf.mxu0
        %v1141 = vadd.f32 %v494, %v1140
        %v1142 = vpop.f32.mrf.mxu0
        %v1143 = vadd.f32 %v494, %v1142
        %1144 = vmatmul.bf16.gmra.mxu0 %v628
        %v1145 = vpop.f32.mrf.mxu0
        %v1146 = vadd.f32 %v494, %v1145
        %v1147 = vpop.f32.mrf.mxu0
        %v1148 = vadd.f32 %v494, %v1147
        %1149 = vmatmul.bf16.gmra.mxu0 %v631
        %v1150 = vpop.f32.mrf.mxu0
        %v1151 = vadd.f32 %v494, %v1150
        %v1152 = vpop.f32.mrf.mxu0
        %v1153 = vadd.f32 %v494, %v1152
        %1154 = vmatmul.bf16.gmra.mxu0 %v634
        %v1155 = vpop.f32.mrf.mxu0
        %v1156 = vadd.f32 %v494, %v1155
        %v1157 = vpop.f32.mrf.mxu0
        %v1158 = vadd.f32 %v494, %v1157
        %1159 = vmatmul.bf16.gmra.mxu0 %v637
        %v1160 = vpop.f32.mrf.mxu0
        %v1161 = vadd.f32 %v494, %v1160
        %v1162 = vpop.f32.mrf.mxu0
        %v1163 = vadd.f32 %v494, %v1162
        %1164 = vmatmul.bf16.gmra.mxu0 %v640
        %v1165 = vpop.f32.mrf.mxu0
        %v1166 = vadd.f32 %v494, %v1165
        %v1167 = vpop.f32.mrf.mxu0
        %v1168 = vadd.f32 %v494, %v1167
        %1169 = vmatmul.bf16.gmra.mxu0 %v643
        %v1170 = vpop.f32.mrf.mxu0
        %v1171 = vadd.f32 %v494, %v1170
        %v1172 = vpop.f32.mrf.mxu0
        %v1173 = vadd.f32 %v494, %v1172
        %1174 = vmatmul.bf16.gmra.mxu0 %v646
        %v1175 = vpop.f32.mrf.mxu0
        %v1176 = vadd.f32 %v494, %v1175
        %v1177 = vpop.f32.mrf.mxu0
        %v1178 = vadd.f32 %v494, %v1177
        %1179 = vmatmul.bf16.gmra.mxu0 %v649
        %v1180 = vpop.f32.mrf.mxu0
        %v1181 = vadd.f32 %v494, %v1180
        %v1182 = vpop.f32.mrf.mxu0
        %v1183 = vadd.f32 %v494, %v1182
        %1184 = vmatmul.bf16.gmra.mxu0 %v652
        %v1185 = vpop.f32.mrf.mxu0
        %v1186 = vadd.f32 %v494, %v1185
        %v1187 = vpop.f32.mrf.mxu0
        %v1188 = vadd.f32 %v494, %v1187
        %1189 = vmatmul.bf16.gmra.mxu0 %v655
        %v1190 = vpop.f32.mrf.mxu0
        %v1191 = vadd.f32 %v494, %v1190
        %v1192 = vpop.f32.mrf.mxu0
        %v1193 = vadd.f32 %v494, %v1192
        %1194 = vmatmul.bf16.gmra.mxu0 %v658
        %v1195 = vpop.f32.mrf.mxu0
        %v1196 = vadd.f32 %v494, %v1195
        %v1197 = vpop.f32.mrf.mxu0
        %v1198 = vadd.f32 %v494, %v1197
        %1199 = vmatmul.bf16.gmra.mxu0 %v661
        %v1200 = vpop.f32.mrf.mxu0
        %v1201 = vadd.f32 %v494, %v1200
        %v1202 = vpop.f32.mrf.mxu0
        %v1203 = vadd.f32 %v494, %v1202
        %1204 = vmatmul.bf16.gmra.mxu0 %v664
        %v1205 = vpop.f32.mrf.mxu0
        %v1206 = vadd.f32 %v494, %v1205
        %v1207 = vpop.f32.mrf.mxu0
        %v1208 = vadd.f32 %v494, %v1207
        %1209 = vmatmul.bf16.gmra.mxu0 %v667
        %v1210 = vpop.f32.mrf.mxu0
        %v1211 = vadd.f32 %v494, %v1210
        %v1212 = vpop.f32.mrf.mxu0
        %v1213 = vadd.f32 %v494, %v1212
        %1214 = vmatmul.bf16.gmra.mxu0 %v670
        %v1215 = vpop.f32.mrf.mxu0
        %v1216 = vadd.f32 %v494, %v1215
        %v1217 = vpop.f32.mrf.mxu0
        %v1218 = vadd.f32 %v494, %v1217
        %1219 = vdwg.mxu0
        %v1220 = vtanh.pop %v692
        %v1221 = vtanh.pop %v961
        %v1222 = vtanh.pop %v694
        %v1223 = vtanh.pop %v963
        %v1224 = vtanh.pop %v697
        %v1225 = vtanh.pop %v966
        %v1226 = vtanh.pop %v699
        %v1227 = vtanh.pop %v968
        %v1228 = vtanh.pop %v702
        %v1229 = vtanh.pop %v971
        %v1230 = vtanh.pop %v704
        %v1231 = vtanh.pop %v973
        %v1232 = vtanh.pop %v707
        %v1233 = vtanh.pop %v976
        %v1234 = vtanh.pop %v709
        %v1235 = vtanh.pop %v978
        %v1236 = vtanh.pop %v712
        %v1237 = vtanh.pop %v981
        %v1238 = vtanh.pop %v714
        %v1239 = vtanh.pop %v983
        %v1240 = vtanh.pop %v717
        %v1241 = vtanh.pop %v986
        %v1242 = vtanh.pop %v719
        %v1243 = vtanh.pop %v988
        %v1244 = vtanh.pop %v722
        %v1245 = vtanh.pop %v991
        %v1246 = vtanh.pop %v724
        %v1247 = vtanh.pop %v993
        %v1248 = vtanh.pop %v727
        %v1249 = vtanh.pop %v996
        %v1250 = vtanh.pop %v729
        %v1251 = vtanh.pop %v998
        %v1252 = vtanh.pop %v732
        %v1253 = vtanh.pop %v1001
        %v1254 = vtanh.pop %v734
        %v1255 = vtanh.pop %v1003
        %v1256 = vtanh.pop %v737
        %v1257 = vtanh.pop %v1006
        %v1258 = vtanh.pop %v739
        %v1259 = vtanh.pop %v1008
        %v1260 = vtanh.pop %v742
        %v1261 = vtanh.pop %v1011
        %v1262 = vtanh.pop %v744
        %v1263 = vtanh.pop %v1013
        %v1264 = vtanh.pop %v747
        %v1265 = vtanh.pop %v1016
        %v1266 = vtanh.pop %v749
        %v1267 = vtanh.pop %v1018
        %v1268 = vtanh.pop %v752
        %v1269 = vtanh.pop %v1021
        %v1270 = vtanh.pop %v754
        %v1271 = vtanh.pop %v1023
        %v1272 = vtanh.pop %v757
        %v1273 = vtanh.pop %v1026
        %v1274 = vtanh.pop %v759
        %v1275 = vtanh.pop %v1028
        %v1276 = vtanh.pop %v762
        %v1277 = vtanh.pop %v1031
        %v1278 = vtanh.pop %v764
        %v1279 = vtanh.pop %v1033
        %v1280 = vtanh.pop %v767
        %v1281 = vtanh.pop %v1036
        %v1282 = vtanh.pop %v769
        %v1283 = vtanh.pop %v1038
        %v1284 = vtanh.pop %v772
        %v1285 = vtanh.pop %v1041
        %v1286 = vtanh.pop %v774
        %v1287 = vtanh.pop %v1043
        %v1288 = vtanh.pop %v777
        %v1289 = vtanh.pop %v1046
        %v1290 = vtanh.pop %v779
        %v1291 = vtanh.pop %v1048
        %v1292 = vtanh.pop %v782
        %v1293 = vtanh.pop %v1051
        %v1294 = vtanh.pop %v784
        %v1295 = vtanh.pop %v1053
        %v1296 = vtanh.pop %v787
        %v1297 = vtanh.pop %v1056
        %v1298 = vtanh.pop %v789
        %v1299 = vtanh.pop %v1058
        %v1300 = vtanh.pop %v792
        %v1301 = vtanh.pop %v1061
        %v1302 = vtanh.pop %v794
        %v1303 = vtanh.pop %v1063
        %v1304 = vtanh.pop %v797
        %v1305 = vtanh.pop %v1066
        %v1306 = vtanh.pop %v799
        %v1307 = vtanh.pop %v1068
        %v1308 = vtanh.pop %v802
        %v1309 = vtanh.pop %v1071
        %v1310 = vtanh.pop %v804
        %v1311 = vtanh.pop %v1073
        %v1312 = vtanh.pop %v807
        %v1313 = vtanh.pop %v1076
        %v1314 = vtanh.pop %v809
        %v1315 = vtanh.pop %v1078
        %v1316 = vtanh.pop %v812
        %v1317 = vtanh.pop %v1081
        %v1318 = vtanh.pop %v814
        %v1319 = vtanh.pop %v1083
        %v1320 = vtanh.pop %v817
        %v1321 = vtanh.pop %v1086
        %v1322 = vtanh.pop %v819
        %v1323 = vtanh.pop %v1088
        %v1324 = vtanh.pop %v822
        %v1325 = vtanh.pop %v1091
        %v1326 = vtanh.pop %v824
        %v1327 = vtanh.pop %v1093
        %v1328 = vtanh.pop %v827
        %v1329 = vtanh.pop %v1096
        %v1330 = vtanh.pop %v829
        %v1331 = vtanh.pop %v1098
        %v1332 = vtanh.pop %v832
        %v1333 = vtanh.pop %v1101
        %v1334 = vtanh.pop %v834
        %v1335 = vtanh.pop %v1103
        %v1336 = vtanh.pop %v837
        %v1337 = vtanh.pop %v1106
        %v1338 = vtanh.pop %v839
        %v1339 = vtanh.pop %v1108
        %v1340 = vtanh.pop %v842
        %v1341 = vtanh.pop %v1111
        %v1342 = vtanh.pop %v844
        %v1343 = vtanh.pop %v1113
        %v1344 = vtanh.pop %v847
        %v1345 = vtanh.pop %v1116
        %v1346 = vtanh.pop %v849
        %v1347 = vtanh.pop %v1118
        %v1348 = vtanh.pop %v852
        %v1349 = vtanh.pop %v1121
        %v1350 = vtanh.pop %v854
        %v1351 = vtanh.pop %v1123
        %v1352 = vtanh.pop %v857
        %v1353 = vtanh.pop %v1126
        %v1354 = vtanh.pop %v859
        %v1355 = vtanh.pop %v1128
        %v1356 = vtanh.pop %v862
        %v1357 = vtanh.pop %v1131
        %v1358 = vtanh.pop %v864
        %v1359 = vtanh.pop %v1133
        %v1360 = vtanh.pop %v867
        %v1361 = vtanh.pop %v1136
        %v1362 = vtanh.pop %v869
        %v1363 = vtanh.pop %v1138
        %v1364 = vtanh.pop %v872
        %v1365 = vtanh.pop %v1141
        %v1366 = vtanh.pop %v874
        %v1367 = vtanh.pop %v1143
        %v1368 = vtanh.pop %v877
        %v1369 = vtanh.pop %v1146
        %v1370 = vtanh.pop %v879
        %v1371 = vtanh.pop %v1148
        %v1372 = vtanh.pop %v882
        %v1373 = vtanh.pop %v1151
        %v1374 = vtanh.pop %v884
        %v1375 = vtanh.pop %v1153
        %v1376 = vtanh.pop %v887
        %v1377 = vtanh.pop %v1156
        %v1378 = vtanh.pop %v889
        %v1379 = vtanh.pop %v1158
        %v1380 = vtanh.pop %v892
        %v1381 = vtanh.pop %v1161
        %v1382 = vtanh.pop %v894
        %v1383 = vtanh.pop %v1163
        %v1384 = vtanh.pop %v897
        %v1385 = vtanh.pop %v1166
        %v1386 = vtanh.pop %v899
        %v1387 = vtanh.pop %v1168
        %v1388 = vtanh.pop %v902
        %v1389 = vtanh.pop %v1171
        %v1390 = vtanh.pop %v904
        %v1391 = vtanh.pop %v1173
        %v1392 = vtanh.pop %v907
        %v1393 = vtanh.pop %v1176
        %v1394 = vtanh.pop %v909
        %v1395 = vtanh.pop %v1178
        %v1396 = vtanh.pop %v912
        %v1397 = vtanh.pop %v1181
        %v1398 = vtanh.pop %v914
        %v1399 = vtanh.pop %v1183
        %v1400 = vtanh.pop %v917
        %v1401 = vtanh.pop %v1186
        %v1402 = vtanh.pop %v919
        %v1403 = vtanh.pop %v1188
        %v1404 = vtanh.pop %v922
        %v1405 = vtanh.pop %v1191
        %v1406 = vtanh.pop %v924
        %v1407 = vtanh.pop %v1193
        %v1408 = vtanh.pop %v927
        %v1409 = vtanh.pop %v1196
        %v1410 = vtanh.pop %v929
        %v1411 = vtanh.pop %v1198
        %v1412 = vtanh.pop %v932
        %v1413 = vtanh.pop %v1201
        %v1414 = vtanh.pop %v934
        %v1415 = vtanh.pop %v1203
        %v1416 = vtanh.pop %v937
        %v1417 = vtanh.pop %v1206
        %v1418 = vtanh.pop %v939
        %v1419 = vtanh.pop %v1208
        %v1420 = vtanh.pop %v942
        %v1421 = vtanh.pop %v1211
        %v1422 = vtanh.pop %v944
        %v1423 = vtanh.pop %v1213
        %v1424 = vtanh.pop %v947
        %v1425 = vtanh.pop %v1216
        %v1426 = vtanh.pop %v949
        %v1427 = vtanh.pop %v1218
        %1532 = vrot.lane.b32.xlu0 %v331, 25
        %v1533 = vpop.permute.xlu0 %1532
        %1534 = vrot.lane.b32.xlu0 %v332, 25
        %v1535 = vpop.permute.xlu0 %1534
        %1536 = vrot.lane.b32.xlu0 %v333, 25
        %v1537 = vpop.permute.xlu0 %1536
        %1538 = vrot.lane.b32.xlu0 %v334, 25
        %v1539 = vpop.permute.xlu0 %1538
        %1540 = vrot.lane.b32.xlu0 %v335, 25
        %v1541 = vpop.permute.xlu0 %1540
        %1542 = vrot.lane.b32.xlu0 %v336, 25
        %v1543 = vpop.permute.xlu0 %1542
        %1544 = vrot.lane.b32.xlu0 %v337, 25
        %v1545 = vpop.permute.xlu0 %1544
        %1546 = vrot.lane.b32.xlu0 %v338, 25
        %v1547 = vpop.permute.xlu0 %1546
        %1548 = vrot.lane.b32.xlu0 %v339, 25
        %v1549 = vpop.permute.xlu0 %1548
        %1550 = vrot.lane.b32.xlu0 %v340, 25
        %v1551 = vpop.permute.xlu0 %1550
        %1552 = vrot.lane.b32.xlu0 %v341, 25
        %v1553 = vpop.permute.xlu0 %1552
        %1554 = vrot.lane.b32.xlu0 %v342, 25
        %v1555 = vpop.permute.xlu0 %1554
        %1556 = vrot.lane.b32.xlu0 %v343, 25
        %v1557 = vpop.permute.xlu0 %1556
        %1558 = vrot.lane.b32.xlu0 %v344, 25
        %v1559 = vpop.permute.xlu0 %1558
        %1560 = vrot.lane.b32.xlu0 %v345, 25
        %v1561 = vpop.permute.xlu0 %1560
        %1562 = vrot.lane.b32.xlu0 %v346, 25
        %v1563 = vpop.permute.xlu0 %1562
        %1564 = vrot.lane.b32.xlu0 %v347, 25
        %v1565 = vpop.permute.xlu0 %1564
        %1566 = vrot.lane.b32.xlu0 %v348, 25
        %v1567 = vpop.permute.xlu0 %1566
        %1568 = vrot.lane.b32.xlu0 %v349, 25
        %v1569 = vpop.permute.xlu0 %1568
        %1570 = vrot.lane.b32.xlu0 %v350, 25
        %v1571 = vpop.permute.xlu0 %1570
        %1572 = vrot.lane.b32.xlu0 %v351, 25
        %v1573 = vpop.permute.xlu0 %1572
        %1574 = vrot.lane.b32.xlu0 %v352, 25
        %v1575 = vpop.permute.xlu0 %1574
        %1576 = vrot.lane.b32.xlu0 %v353, 25
        %v1577 = vpop.permute.xlu0 %1576
        %1578 = vrot.lane.b32.xlu0 %v354, 25
        %v1579 = vpop.permute.xlu0 %1578
        %1580 = vrot.lane.b32.xlu0 %v355, 25
        %v1581 = vpop.permute.xlu0 %1580
        %1582 = vrot.lane.b32.xlu0 %v356, 25
        %v1583 = vpop.permute.xlu0 %1582
        %1584 = vrot.lane.b32.xlu0 %v357, 25
        %v1585 = vpop.permute.xlu0 %1584
        %1586 = vrot.lane.b32.xlu0 %v358, 25
        %v1587 = vpop.permute.xlu0 %1586
        %1588 = vrot.lane.b32.xlu0 %v359, 25
        %v1589 = vpop.permute.xlu0 %1588
        %1590 = vrot.lane.b32.xlu0 %v360, 25
        %v1591 = vpop.permute.xlu0 %1590
        %1592 = vrot.lane.b32.xlu0 %v361, 25
        %v1593 = vpop.permute.xlu0 %1592
        %1594 = vrot.lane.b32.xlu0 %v362, 25
        %v1595 = vpop.permute.xlu0 %1594
        %1596 = vrot.lane.b32.xlu0 %v363, 25
        %v1597 = vpop.permute.xlu0 %1596
        %1598 = vrot.lane.b32.xlu0 %v364, 25
        %v1599 = vpop.permute.xlu0 %1598
        %1600 = vrot.lane.b32.xlu0 %v365, 25
        %v1601 = vpop.permute.xlu0 %1600
        %1602 = vrot.lane.b32.xlu0 %v366, 25
        %v1603 = vpop.permute.xlu0 %1602
        %1604 = vrot.lane.b32.xlu0 %v367, 25
        %v1605 = vpop.permute.xlu0 %1604
        %1606 = vrot.lane.b32.xlu0 %v368, 25
        %v1607 = vpop.permute.xlu0 %1606
        %1608 = vrot.lane.b32.xlu0 %v369, 25
        %v1609 = vpop.permute.xlu0 %1608
        %1610 = vrot.lane.b32.xlu0 %v370, 25
        %v1611 = vpop.permute.xlu0 %1610
        %1612 = vrot.lane.b32.xlu0 %v371, 25
        %v1613 = vpop.permute.xlu0 %1612
        %1614 = vrot.lane.b32.xlu0 %v372, 25
        %v1615 = vpop.permute.xlu0 %1614
        %1616 = vrot.lane.b32.xlu0 %v373, 25
        %v1617 = vpop.permute.xlu0 %1616
        %1618 = vrot.lane.b32.xlu0 %v374, 25
        %v1619 = vpop.permute.xlu0 %1618
        %1620 = vrot.lane.b32.xlu0 %v375, 25
        %v1621 = vpop.permute.xlu0 %1620
        %1622 = vrot.lane.b32.xlu0 %v376, 25
        %v1623 = vpop.permute.xlu0 %1622
        %1624 = vrot.lane.b32.xlu0 %v377, 25
        %v1625 = vpop.permute.xlu0 %1624
        %1626 = vrot.lane.b32.xlu0 %v378, 25
        %v1627 = vpop.permute.xlu0 %1626
        %1628 = vrot.lane.b32.xlu0 %v379, 25
        %v1629 = vpop.permute.xlu0 %1628
        %1630 = vrot.lane.b32.xlu0 %v380, 25
        %v1631 = vpop.permute.xlu0 %1630
        %1632 = vrot.lane.b32.xlu0 %v381, 25
        %v1633 = vpop.permute.xlu0 %1632
        %1634 = vrot.lane.b32.xlu0 %v382, 25
        %v1635 = vpop.permute.xlu0 %1634
        %1636 = vrot.lane.b32.xlu0 %v383, 25
        %v1637 = vpop.permute.xlu0 %1636
        %1638 = vrot.lane.b32.xlu0 %v384, 25
        %v1639 = vpop.permute.xlu0 %1638
        %1640 = vrot.lane.b32.xlu0 %v385, 25
        %v1641 = vpop.permute.xlu0 %1640
        %1642 = vrot.lane.b32.xlu0 %v386, 25
        %v1643 = vpop.permute.xlu0 %1642
        %1644 = vrot.lane.b32.xlu0 %v387, 25
        %v1645 = vpop.permute.xlu0 %1644
        %1646 = vrot.lane.b32.xlu0 %v388, 25
        %v1647 = vpop.permute.xlu0 %1646
        %1648 = vrot.lane.b32.xlu0 %v389, 25
        %v1649 = vpop.permute.xlu0 %1648
        %1650 = vrot.lane.b32.xlu0 %v390, 25
        %v1651 = vpop.permute.xlu0 %1650
        %1652 = vrot.lane.b32.xlu0 %v391, 25
        %v1653 = vpop.permute.xlu0 %1652
        %1654 = vrot.lane.b32.xlu0 %v392, 25
        %v1655 = vpop.permute.xlu0 %1654
        %1656 = vrot.lane.b32.xlu0 %v393, 25
        %v1657 = vpop.permute.xlu0 %1656
        %1658 = vrot.lane.b32.xlu0 %v394, 25
        %v1659 = vpop.permute.xlu0 %1658
        %1660 = vrot.lane.b32.xlu0 %v395, 25
        %v1661 = vpop.permute.xlu0 %1660
        %1662 = vrot.lane.b32.xlu0 %v396, 25
        %v1663 = vpop.permute.xlu0 %1662
        %1664 = vrot.lane.b32.xlu0 %v397, 25
        %v1665 = vpop.permute.xlu0 %1664
        %1666 = vrot.lane.b32.xlu0 %v398, 25
        %v1667 = vpop.permute.xlu0 %1666
        %1668 = vrot.lane.b32.xlu0 %v399, 25
        %v1669 = vpop.permute.xlu0 %1668
        %1670 = vrot.lane.b32.xlu0 %v400, 25
        %v1671 = vpop.permute.xlu0 %1670
        %1672 = vrot.lane.b32.xlu0 %v401, 25
        %v1673 = vpop.permute.xlu0 %1672
        %1674 = vrot.lane.b32.xlu0 %v402, 25
        %v1675 = vpop.permute.xlu0 %1674
        %1676 = vrot.lane.b32.xlu0 %v403, 25
        %v1677 = vpop.permute.xlu0 %1676
        %1678 = vrot.lane.b32.xlu0 %v404, 25
        %v1679 = vpop.permute.xlu0 %1678
        %1680 = vrot.lane.b32.xlu0 %v405, 25
        %v1681 = vpop.permute.xlu0 %1680
        %1682 = vrot.lane.b32.xlu0 %v406, 25
        %v1683 = vpop.permute.xlu0 %1682
        %1684 = vrot.lane.b32.xlu0 %v407, 25
        %v1685 = vpop.permute.xlu0 %1684
        %1686 = vrot.lane.b32.xlu0 %v408, 25
        %v1687 = vpop.permute.xlu0 %1686
        %1688 = vrot.lane.b32.xlu0 %v409, 25
        %v1689 = vpop.permute.xlu0 %1688
        %1690 = vrot.lane.b32.xlu0 %v410, 25
        %v1691 = vpop.permute.xlu0 %1690
        %1692 = vrot.lane.b32.xlu0 %v411, 25
        %v1693 = vpop.permute.xlu0 %1692
        %1694 = vrot.lane.b32.xlu0 %v412, 25
        %v1695 = vpop.permute.xlu0 %1694
        %1696 = vrot.lane.b32.xlu0 %v413, 25
        %v1697 = vpop.permute.xlu0 %1696
        %1698 = vrot.lane.b32.xlu0 %v414, 25
        %v1699 = vpop.permute.xlu0 %1698
        %1700 = vrot.lane.b32.xlu0 %v415, 25
        %v1701 = vpop.permute.xlu0 %1700
        %1702 = vrot.lane.b32.xlu0 %v416, 25
        %v1703 = vpop.permute.xlu0 %1702
        %1704 = vrot.lane.b32.xlu0 %v417, 25
        %v1705 = vpop.permute.xlu0 %1704
        %1706 = vrot.lane.b32.xlu0 %v418, 25
        %v1707 = vpop.permute.xlu0 %1706
        %1708 = vrot.lane.b32.xlu0 %v419, 25
        %v1709 = vpop.permute.xlu0 %1708
        %1710 = vrot.lane.b32.xlu0 %v420, 25
        %v1711 = vpop.permute.xlu0 %1710
        %1712 = vrot.lane.b32.xlu0 %v421, 25
        %v1713 = vpop.permute.xlu0 %1712
        %1714 = vrot.lane.b32.xlu0 %v422, 25
        %v1715 = vpop.permute.xlu0 %1714
        %1716 = vrot.lane.b32.xlu0 %v423, 25
        %v1717 = vpop.permute.xlu0 %1716
        %1718 = vrot.lane.b32.xlu0 %v424, 25
        %v1719 = vpop.permute.xlu0 %1718
        %1720 = vrot.lane.b32.xlu0 %v425, 25
        %v1721 = vpop.permute.xlu0 %1720
        %1722 = vrot.lane.b32.xlu0 %v426, 25
        %v1723 = vpop.permute.xlu0 %1722
        %1724 = vrot.lane.b32.xlu0 %v427, 25
        %v1725 = vpop.permute.xlu0 %1724
        %1726 = vrot.lane.b32.xlu0 %v428, 25
        %v1727 = vpop.permute.xlu0 %1726
        %1728 = vrot.lane.b32.xlu0 %v429, 25
        %v1729 = vpop.permute.xlu0 %1728
        %1730 = vrot.lane.b32.xlu0 %v430, 25
        %v1731 = vpop.permute.xlu0 %1730
        %1732 = vrot.lane.b32.xlu0 %v431, 25
        %v1733 = vpop.permute.xlu0 %1732
        %1734 = vrot.lane.b32.xlu0 %v432, 25
        %v1735 = vpop.permute.xlu0 %1734
        %1736 = vrot.lane.b32.xlu0 %v433, 25
        %v1737 = vpop.permute.xlu0 %1736
        %1738 = vrot.lane.b32.xlu0 %v434, 25
        %v1739 = vpop.permute.xlu0 %1738
        %1844 = vrot.lane.b32.xlu0 %v331, 50
        %v1845 = vpop.permute.xlu0 %1844
        %1846 = vrot.lane.b32.xlu0 %v332, 50
        %v1847 = vpop.permute.xlu0 %1846
        %1848 = vrot.lane.b32.xlu0 %v333, 50
        %v1849 = vpop.permute.xlu0 %1848
        %1850 = vrot.lane.b32.xlu0 %v334, 50
        %v1851 = vpop.permute.xlu0 %1850
        %1852 = vrot.lane.b32.xlu0 %v335, 50
        %v1853 = vpop.permute.xlu0 %1852
        %1854 = vrot.lane.b32.xlu0 %v336, 50
        %v1855 = vpop.permute.xlu0 %1854
        %1856 = vrot.lane.b32.xlu0 %v337, 50
        %v1857 = vpop.permute.xlu0 %1856
        %1858 = vrot.lane.b32.xlu0 %v338, 50
        %v1859 = vpop.permute.xlu0 %1858
        %1860 = vrot.lane.b32.xlu0 %v339, 50
        %v1861 = vpop.permute.xlu0 %1860
        %1862 = vrot.lane.b32.xlu0 %v340, 50
        %v1863 = vpop.permute.xlu0 %1862
        %1864 = vrot.lane.b32.xlu0 %v341, 50
        %v1865 = vpop.permute.xlu0 %1864
        %1866 = vrot.lane.b32.xlu0 %v342, 50
        %v1867 = vpop.permute.xlu0 %1866
        %1868 = vrot.lane.b32.xlu0 %v343, 50
        %v1869 = vpop.permute.xlu0 %1868
        %1870 = vrot.lane.b32.xlu0 %v344, 50
        %v1871 = vpop.permute.xlu0 %1870
        %1872 = vrot.lane.b32.xlu0 %v345, 50
        %v1873 = vpop.permute.xlu0 %1872
        %1874 = vrot.lane.b32.xlu0 %v346, 50
        %v1875 = vpop.permute.xlu0 %1874
        %1876 = vrot.lane.b32.xlu0 %v347, 50
        %v1877 = vpop.permute.xlu0 %1876
        %1878 = vrot.lane.b32.xlu0 %v348, 50
        %v1879 = vpop.permute.xlu0 %1878
        %1880 = vrot.lane.b32.xlu0 %v349, 50
        %v1881 = vpop.permute.xlu0 %1880
        %1882 = vrot.lane.b32.xlu0 %v350, 50
        %v1883 = vpop.permute.xlu0 %1882
        %1884 = vrot.lane.b32.xlu0 %v351, 50
        %v1885 = vpop.permute.xlu0 %1884
        %1886 = vrot.lane.b32.xlu0 %v352, 50
        %v1887 = vpop.permute.xlu0 %1886
        %1888 = vrot.lane.b32.xlu0 %v353, 50
        %v1889 = vpop.permute.xlu0 %1888
        %1890 = vrot.lane.b32.xlu0 %v354, 50
        %v1891 = vpop.permute.xlu0 %1890
        %1892 = vrot.lane.b32.xlu0 %v355, 50
        %v1893 = vpop.permute.xlu0 %1892
        %1894 = vrot.lane.b32.xlu0 %v356, 50
        %v1895 = vpop.permute.xlu0 %1894
        %1896 = vrot.lane.b32.xlu0 %v357, 50
        %v1897 = vpop.permute.xlu0 %1896
        %1898 = vrot.lane.b32.xlu0 %v358, 50
        %v1899 = vpop.permute.xlu0 %1898
        %1900 = vrot.lane.b32.xlu0 %v359, 50
        %v1901 = vpop.permute.xlu0 %1900
        %1902 = vrot.lane.b32.xlu0 %v360, 50
        %v1903 = vpop.permute.xlu0 %1902
        %1904 = vrot.lane.b32.xlu0 %v361, 50
        %v1905 = vpop.permute.xlu0 %1904
        %1906 = vrot.lane.b32.xlu0 %v362, 50
        %v1907 = vpop.permute.xlu0 %1906
        %1908 = vrot.lane.b32.xlu0 %v363, 50
        %v1909 = vpop.permute.xlu0 %1908
        %1910 = vrot.lane.b32.xlu0 %v364, 50
        %v1911 = vpop.permute.xlu0 %1910
        %1912 = vrot.lane.b32.xlu0 %v365, 50
        %v1913 = vpop.permute.xlu0 %1912
        %1914 = vrot.lane.b32.xlu0 %v366, 50
        %v1915 = vpop.permute.xlu0 %1914
        %1916 = vrot.lane.b32.xlu0 %v367, 50
        %v1917 = vpop.permute.xlu0 %1916
        %1918 = vrot.lane.b32.xlu0 %v368, 50
        %v1919 = vpop.permute.xlu0 %1918
        %1920 = vrot.lane.b32.xlu0 %v369, 50
        %v1921 = vpop.permute.xlu0 %1920
        %1922 = vrot.lane.b32.xlu0 %v370, 50
        %v1923 = vpop.permute.xlu0 %1922
        %1924 = vrot.lane.b32.xlu0 %v371, 50
        %v1925 = vpop.permute.xlu0 %1924
        %1926 = vrot.lane.b32.xlu0 %v372, 50
        %v1927 = vpop.permute.xlu0 %1926
        %1928 = vrot.lane.b32.xlu0 %v373, 50
        %v1929 = vpop.permute.xlu0 %1928
        %1930 = vrot.lane.b32.xlu0 %v374, 50
        %v1931 = vpop.permute.xlu0 %1930
        %1932 = vrot.lane.b32.xlu0 %v375, 50
        %v1933 = vpop.permute.xlu0 %1932
        %1934 = vrot.lane.b32.xlu0 %v376, 50
        %v1935 = vpop.permute.xlu0 %1934
        %1936 = vrot.lane.b32.xlu0 %v377, 50
        %v1937 = vpop.permute.xlu0 %1936
        %1938 = vrot.lane.b32.xlu0 %v378, 50
        %v1939 = vpop.permute.xlu0 %1938
        %1940 = vrot.lane.b32.xlu0 %v379, 50
        %v1941 = vpop.permute.xlu0 %1940
        %1942 = vrot.lane.b32.xlu0 %v380, 50
        %v1943 = vpop.permute.xlu0 %1942
        %1944 = vrot.lane.b32.xlu0 %v381, 50
        %v1945 = vpop.permute.xlu0 %1944
        %1946 = vrot.lane.b32.xlu0 %v382, 50
        %v1947 = vpop.permute.xlu0 %1946
        %1948 = vrot.lane.b32.xlu0 %v383, 50
        %v1949 = vpop.permute.xlu0 %1948
        %1950 = vrot.lane.b32.xlu0 %v384, 50
        %v1951 = vpop.permute.xlu0 %1950
        %1952 = vrot.lane.b32.xlu0 %v385, 50
        %v1953 = vpop.permute.xlu0 %1952
        %1954 = vrot.lane.b32.xlu0 %v386, 50
        %v1955 = vpop.permute.xlu0 %1954
        %1956 = vrot.lane.b32.xlu0 %v387, 50
        %v1957 = vpop.permute.xlu0 %1956
        %1958 = vrot.lane.b32.xlu0 %v388, 50
        %v1959 = vpop.permute.xlu0 %1958
        %1960 = vrot.lane.b32.xlu0 %v389, 50
        %v1961 = vpop.permute.xlu0 %1960
        %1962 = vrot.lane.b32.xlu0 %v390, 50
        %v1963 = vpop.permute.xlu0 %1962
        %1964 = vrot.lane.b32.xlu0 %v391, 50
        %v1965 = vpop.permute.xlu0 %1964
        %1966 = vrot.lane.b32.xlu0 %v392, 50
        %v1967 = vpop.permute.xlu0 %1966
        %1968 = vrot.lane.b32.xlu0 %v393, 50
        %v1969 = vpop.permute.xlu0 %1968
        %1970 = vrot.lane.b32.xlu0 %v394, 50
        %v1971 = vpop.permute.xlu0 %1970
        %1972 = vrot.lane.b32.xlu0 %v395, 50
        %v1973 = vpop.permute.xlu0 %1972
        %1974 = vrot.lane.b32.xlu0 %v396, 50
        %v1975 = vpop.permute.xlu0 %1974
        %1976 = vrot.lane.b32.xlu0 %v397, 50
        %v1977 = vpop.permute.xlu0 %1976
        %1978 = vrot.lane.b32.xlu0 %v398, 50
        %v1979 = vpop.permute.xlu0 %1978
        %1980 = vrot.lane.b32.xlu0 %v399, 50
        %v1981 = vpop.permute.xlu0 %1980
        %1982 = vrot.lane.b32.xlu0 %v400, 50
        %v1983 = vpop.permute.xlu0 %1982
        %1984 = vrot.lane.b32.xlu0 %v401, 50
        %v1985 = vpop.permute.xlu0 %1984
        %1986 = vrot.lane.b32.xlu0 %v402, 50
        %v1987 = vpop.permute.xlu0 %1986
        %1988 = vrot.lane.b32.xlu0 %v403, 50
        %v1989 = vpop.permute.xlu0 %1988
        %1990 = vrot.lane.b32.xlu0 %v404, 50
        %v1991 = vpop.permute.xlu0 %1990
        %1992 = vrot.lane.b32.xlu0 %v405, 50
        %v1993 = vpop.permute.xlu0 %1992
        %1994 = vrot.lane.b32.xlu0 %v406, 50
        %v1995 = vpop.permute.xlu0 %1994
        %1996 = vrot.lane.b32.xlu0 %v407, 50
        %v1997 = vpop.permute.xlu0 %1996
        %1998 = vrot.lane.b32.xlu0 %v408, 50
        %v1999 = vpop.permute.xlu0 %1998
        %2000 = vrot.lane.b32.xlu0 %v409, 50
        %v2001 = vpop.permute.xlu0 %2000
        %2002 = vrot.lane.b32.xlu0 %v410, 50
        %v2003 = vpop.permute.xlu0 %2002
        %2004 = vrot.lane.b32.xlu0 %v411, 50
        %v2005 = vpop.permute.xlu0 %2004
        %2006 = vrot.lane.b32.xlu0 %v412, 50
        %v2007 = vpop.permute.xlu0 %2006
        %2008 = vrot.lane.b32.xlu0 %v413, 50
        %v2009 = vpop.permute.xlu0 %2008
        %2010 = vrot.lane.b32.xlu0 %v414, 50
        %v2011 = vpop.permute.xlu0 %2010
        %2012 = vrot.lane.b32.xlu0 %v415, 50
        %v2013 = vpop.permute.xlu0 %2012
        %2014 = vrot.lane.b32.xlu0 %v416, 50
        %v2015 = vpop.permute.xlu0 %2014
        %2016 = vrot.lane.b32.xlu0 %v417, 50
        %v2017 = vpop.permute.xlu0 %2016
        %2018 = vrot.lane.b32.xlu0 %v418, 50
        %v2019 = vpop.permute.xlu0 %2018
        %2020 = vrot.lane.b32.xlu0 %v419, 50
        %v2021 = vpop.permute.xlu0 %2020
        %2022 = vrot.lane.b32.xlu0 %v420, 50
        %v2023 = vpop.permute.xlu0 %2022
        %2024 = vrot.lane.b32.xlu0 %v421, 50
        %v2025 = vpop.permute.xlu0 %2024
        %2026 = vrot.lane.b32.xlu0 %v422, 50
        %v2027 = vpop.permute.xlu0 %2026
        %2028 = vrot.lane.b32.xlu0 %v423, 50
        %v2029 = vpop.permute.xlu0 %2028
        %2030 = vrot.lane.b32.xlu0 %v424, 50
        %v2031 = vpop.permute.xlu0 %2030
        %2032 = vrot.lane.b32.xlu0 %v425, 50
        %v2033 = vpop.permute.xlu0 %2032
        %2034 = vrot.lane.b32.xlu0 %v426, 50
        %v2035 = vpop.permute.xlu0 %2034
        %2036 = vrot.lane.b32.xlu0 %v427, 50
        %v2037 = vpop.permute.xlu0 %2036
        %2038 = vrot.lane.b32.xlu0 %v428, 50
        %v2039 = vpop.permute.xlu0 %2038
        %2040 = vrot.lane.b32.xlu0 %v429, 50
        %v2041 = vpop.permute.xlu0 %2040
        %2042 = vrot.lane.b32.xlu0 %v430, 50
        %v2043 = vpop.permute.xlu0 %2042
        %2044 = vrot.lane.b32.xlu0 %v431, 50
        %v2045 = vpop.permute.xlu0 %2044
        %2046 = vrot.lane.b32.xlu0 %v432, 50
        %v2047 = vpop.permute.xlu0 %2046
        %2048 = vrot.lane.b32.xlu0 %v433, 50
        %v2049 = vpop.permute.xlu0 %2048
        %2050 = vrot.lane.b32.xlu0 %v434, 50
        %v2051 = vpop.permute.xlu0 %2050
        %2156 = vrot.lane.b32.xlu0 %v331, 75
        %v2157 = vpop.permute.xlu0 %2156
        %2158 = vrot.lane.b32.xlu0 %v332, 75
        %v2159 = vpop.permute.xlu0 %2158
        %2160 = vrot.lane.b32.xlu0 %v333, 75
        %v2161 = vpop.permute.xlu0 %2160
        %2162 = vrot.lane.b32.xlu0 %v334, 75
        %v2163 = vpop.permute.xlu0 %2162
        %2164 = vrot.lane.b32.xlu0 %v335, 75
        %v2165 = vpop.permute.xlu0 %2164
        %2166 = vrot.lane.b32.xlu0 %v336, 75
        %v2167 = vpop.permute.xlu0 %2166
        %2168 = vrot.lane.b32.xlu0 %v337, 75
        %v2169 = vpop.permute.xlu0 %2168
        %2170 = vrot.lane.b32.xlu0 %v338, 75
        %v2171 = vpop.permute.xlu0 %2170
        %2172 = vrot.lane.b32.xlu0 %v339, 75
        %v2173 = vpop.permute.xlu0 %2172
        %2174 = vrot.lane.b32.xlu0 %v340, 75
        %v2175 = vpop.permute.xlu0 %2174
        %2176 = vrot.lane.b32.xlu0 %v341, 75
        %v2177 = vpop.permute.xlu0 %2176
        %2178 = vrot.lane.b32.xlu0 %v342, 75
        %v2179 = vpop.permute.xlu0 %2178
        %2180 = vrot.lane.b32.xlu0 %v343, 75
        %v2181 = vpop.permute.xlu0 %2180
        %2182 = vrot.lane.b32.xlu0 %v344, 75
        %v2183 = vpop.permute.xlu0 %2182
        %2184 = vrot.lane.b32.xlu0 %v345, 75
        %v2185 = vpop.permute.xlu0 %2184
        %2186 = vrot.lane.b32.xlu0 %v346, 75
        %v2187 = vpop.permute.xlu0 %2186
        %2188 = vrot.lane.b32.xlu0 %v347, 75
        %v2189 = vpop.permute.xlu0 %2188
        %2190 = vrot.lane.b32.xlu0 %v348, 75
        %v2191 = vpop.permute.xlu0 %2190
        %2192 = vrot.lane.b32.xlu0 %v349, 75
        %v2193 = vpop.permute.xlu0 %2192
        %2194 = vrot.lane.b32.xlu0 %v350, 75
        %v2195 = vpop.permute.xlu0 %2194
        %2196 = vrot.lane.b32.xlu0 %v351, 75
        %v2197 = vpop.permute.xlu0 %2196
        %2198 = vrot.lane.b32.xlu0 %v352, 75
        %v2199 = vpop.permute.xlu0 %2198
        %2200 = vrot.lane.b32.xlu0 %v353, 75
        %v2201 = vpop.permute.xlu0 %2200
        %2202 = vrot.lane.b32.xlu0 %v354, 75
        %v2203 = vpop.permute.xlu0 %2202
        %2204 = vrot.lane.b32.xlu0 %v355, 75
        %v2205 = vpop.permute.xlu0 %2204
        %2206 = vrot.lane.b32.xlu0 %v356, 75
        %v2207 = vpop.permute.xlu0 %2206
        %2208 = vrot.lane.b32.xlu0 %v357, 75
        %v2209 = vpop.permute.xlu0 %2208
        %2210 = vrot.lane.b32.xlu0 %v358, 75
        %v2211 = vpop.permute.xlu0 %2210
        %2212 = vrot.lane.b32.xlu0 %v359, 75
        %v2213 = vpop.permute.xlu0 %2212
        %2214 = vrot.lane.b32.xlu0 %v360, 75
        %v2215 = vpop.permute.xlu0 %2214
        %2216 = vrot.lane.b32.xlu0 %v361, 75
        %v2217 = vpop.permute.xlu0 %2216
        %2218 = vrot.lane.b32.xlu0 %v362, 75
        %v2219 = vpop.permute.xlu0 %2218
        %2220 = vrot.lane.b32.xlu0 %v363, 75
        %v2221 = vpop.permute.xlu0 %2220
        %2222 = vrot.lane.b32.xlu0 %v364, 75
        %v2223 = vpop.permute.xlu0 %2222
        %2224 = vrot.lane.b32.xlu0 %v365, 75
        %v2225 = vpop.permute.xlu0 %2224
        %2226 = vrot.lane.b32.xlu0 %v366, 75
        %v2227 = vpop.permute.xlu0 %2226
        %2228 = vrot.lane.b32.xlu0 %v367, 75
        %v2229 = vpop.permute.xlu0 %2228
        %2230 = vrot.lane.b32.xlu0 %v368, 75
        %v2231 = vpop.permute.xlu0 %2230
        %2232 = vrot.lane.b32.xlu0 %v369, 75
        %v2233 = vpop.permute.xlu0 %2232
        %2234 = vrot.lane.b32.xlu0 %v370, 75
        %v2235 = vpop.permute.xlu0 %2234
        %2236 = vrot.lane.b32.xlu0 %v371, 75
        %v2237 = vpop.permute.xlu0 %2236
        %2238 = vrot.lane.b32.xlu0 %v372, 75
        %v2239 = vpop.permute.xlu0 %2238
        %2240 = vrot.lane.b32.xlu0 %v373, 75
        %v2241 = vpop.permute.xlu0 %2240
        %2242 = vrot.lane.b32.xlu0 %v374, 75
        %v2243 = vpop.permute.xlu0 %2242
        %2244 = vrot.lane.b32.xlu0 %v375, 75
        %v2245 = vpop.permute.xlu0 %2244
        %2246 = vrot.lane.b32.xlu0 %v376, 75
        %v2247 = vpop.permute.xlu0 %2246
        %2248 = vrot.lane.b32.xlu0 %v377, 75
        %v2249 = vpop.permute.xlu0 %2248
        %2250 = vrot.lane.b32.xlu0 %v378, 75
        %v2251 = vpop.permute.xlu0 %2250
        %2252 = vrot.lane.b32.xlu0 %v379, 75
        %v2253 = vpop.permute.xlu0 %2252
        %2254 = vrot.lane.b32.xlu0 %v380, 75
        %v2255 = vpop.permute.xlu0 %2254
        %2256 = vrot.lane.b32.xlu0 %v381, 75
        %v2257 = vpop.permute.xlu0 %2256
        %2258 = vrot.lane.b32.xlu0 %v382, 75
        %v2259 = vpop.permute.xlu0 %2258
        %2260 = vrot.lane.b32.xlu0 %v383, 75
        %v2261 = vpop.permute.xlu0 %2260
        %2262 = vrot.lane.b32.xlu0 %v384, 75
        %v2263 = vpop.permute.xlu0 %2262
        %2264 = vrot.lane.b32.xlu0 %v385, 75
        %v2265 = vpop.permute.xlu0 %2264
        %2266 = vrot.lane.b32.xlu0 %v386, 75
        %v2267 = vpop.permute.xlu0 %2266
        %2268 = vrot.lane.b32.xlu0 %v387, 75
        %v2269 = vpop.permute.xlu0 %2268
        %2270 = vrot.lane.b32.xlu0 %v388, 75
        %v2271 = vpop.permute.xlu0 %2270
        %2272 = vrot.lane.b32.xlu0 %v389, 75
        %v2273 = vpop.permute.xlu0 %2272
        %2274 = vrot.lane.b32.xlu0 %v390, 75
        %v2275 = vpop.permute.xlu0 %2274
        %2276 = vrot.lane.b32.xlu0 %v391, 75
        %v2277 = vpop.permute.xlu0 %2276
        %2278 = vrot.lane.b32.xlu0 %v392, 75
        %v2279 = vpop.permute.xlu0 %2278
        %2280 = vrot.lane.b32.xlu0 %v393, 75
        %v2281 = vpop.permute.xlu0 %2280
        %2282 = vrot.lane.b32.xlu0 %v394, 75
        %v2283 = vpop.permute.xlu0 %2282
        %2284 = vrot.lane.b32.xlu0 %v395, 75
        %v2285 = vpop.permute.xlu0 %2284
        %2286 = vrot.lane.b32.xlu0 %v396, 75
        %v2287 = vpop.permute.xlu0 %2286
        %2288 = vrot.lane.b32.xlu0 %v397, 75
        %v2289 = vpop.permute.xlu0 %2288
        %2290 = vrot.lane.b32.xlu0 %v398, 75
        %v2291 = vpop.permute.xlu0 %2290
        %2292 = vrot.lane.b32.xlu0 %v399, 75
        %v2293 = vpop.permute.xlu0 %2292
        %2294 = vrot.lane.b32.xlu0 %v400, 75
        %v2295 = vpop.permute.xlu0 %2294
        %2296 = vrot.lane.b32.xlu0 %v401, 75
        %v2297 = vpop.permute.xlu0 %2296
        %2298 = vrot.lane.b32.xlu0 %v402, 75
        %v2299 = vpop.permute.xlu0 %2298
        %2300 = vrot.lane.b32.xlu0 %v403, 75
        %v2301 = vpop.permute.xlu0 %2300
        %2302 = vrot.lane.b32.xlu0 %v404, 75
        %v2303 = vpop.permute.xlu0 %2302
        %2304 = vrot.lane.b32.xlu0 %v405, 75
        %v2305 = vpop.permute.xlu0 %2304
        %2306 = vrot.lane.b32.xlu0 %v406, 75
        %v2307 = vpop.permute.xlu0 %2306
        %2308 = vrot.lane.b32.xlu0 %v407, 75
        %v2309 = vpop.permute.xlu0 %2308
        %2310 = vrot.lane.b32.xlu0 %v408, 75
        %v2311 = vpop.permute.xlu0 %2310
        %2312 = vrot.lane.b32.xlu0 %v409, 75
        %v2313 = vpop.permute.xlu0 %2312
        %2314 = vrot.lane.b32.xlu0 %v410, 75
        %v2315 = vpop.permute.xlu0 %2314
        %2316 = vrot.lane.b32.xlu0 %v411, 75
        %v2317 = vpop.permute.xlu0 %2316
        %2318 = vrot.lane.b32.xlu0 %v412, 75
        %v2319 = vpop.permute.xlu0 %2318
        %2320 = vrot.lane.b32.xlu0 %v413, 75
        %v2321 = vpop.permute.xlu0 %2320
        %2322 = vrot.lane.b32.xlu0 %v414, 75
        %v2323 = vpop.permute.xlu0 %2322
        %2324 = vrot.lane.b32.xlu0 %v415, 75
        %v2325 = vpop.permute.xlu0 %2324
        %2326 = vrot.lane.b32.xlu0 %v416, 75
        %v2327 = vpop.permute.xlu0 %2326
        %2328 = vrot.lane.b32.xlu0 %v417, 75
        %v2329 = vpop.permute.xlu0 %2328
        %2330 = vrot.lane.b32.xlu0 %v418, 75
        %v2331 = vpop.permute.xlu0 %2330
        %2332 = vrot.lane.b32.xlu0 %v419, 75
        %v2333 = vpop.permute.xlu0 %2332
        %2334 = vrot.lane.b32.xlu0 %v420, 75
        %v2335 = vpop.permute.xlu0 %2334
        %2336 = vrot.lane.b32.xlu0 %v421, 75
        %v2337 = vpop.permute.xlu0 %2336
        %2338 = vrot.lane.b32.xlu0 %v422, 75
        %v2339 = vpop.permute.xlu0 %2338
        %2340 = vrot.lane.b32.xlu0 %v423, 75
        %v2341 = vpop.permute.xlu0 %2340
        %2342 = vrot.lane.b32.xlu0 %v424, 75
        %v2343 = vpop.permute.xlu0 %2342
        %2344 = vrot.lane.b32.xlu0 %v425, 75
        %v2345 = vpop.permute.xlu0 %2344
        %2346 = vrot.lane.b32.xlu0 %v426, 75
        %v2347 = vpop.permute.xlu0 %2346
        %2348 = vrot.lane.b32.xlu0 %v427, 75
        %v2349 = vpop.permute.xlu0 %2348
        %2350 = vrot.lane.b32.xlu0 %v428, 75
        %v2351 = vpop.permute.xlu0 %2350
        %2352 = vrot.lane.b32.xlu0 %v429, 75
        %v2353 = vpop.permute.xlu0 %2352
        %2354 = vrot.lane.b32.xlu0 %v430, 75
        %v2355 = vpop.permute.xlu0 %2354
        %2356 = vrot.lane.b32.xlu0 %v431, 75
        %v2357 = vpop.permute.xlu0 %2356
        %2358 = vrot.lane.b32.xlu0 %v432, 75
        %v2359 = vpop.permute.xlu0 %2358
        %2360 = vrot.lane.b32.xlu0 %v433, 75
        %v2361 = vpop.permute.xlu0 %2360
        %2362 = vrot.lane.b32.xlu0 %v434, 75
        %v2363 = vpop.permute.xlu0 %2362
        %2468 = vrot.lane.b32.xlu0 %v331, 100
        %v2469 = vpop.permute.xlu0 %2468
        %2470 = vrot.lane.b32.xlu0 %v332, 100
        %v2471 = vpop.permute.xlu0 %2470
        %2472 = vrot.lane.b32.xlu0 %v333, 100
        %v2473 = vpop.permute.xlu0 %2472
        %2474 = vrot.lane.b32.xlu0 %v334, 100
        %v2475 = vpop.permute.xlu0 %2474
        %2476 = vrot.lane.b32.xlu0 %v335, 100
        %v2477 = vpop.permute.xlu0 %2476
        %2478 = vrot.lane.b32.xlu0 %v336, 100
        %v2479 = vpop.permute.xlu0 %2478
        %2480 = vrot.lane.b32.xlu0 %v337, 100
        %v2481 = vpop.permute.xlu0 %2480
        %2482 = vrot.lane.b32.xlu0 %v338, 100
        %v2483 = vpop.permute.xlu0 %2482
        %2484 = vrot.lane.b32.xlu0 %v339, 100
        %v2485 = vpop.permute.xlu0 %2484
        %2486 = vrot.lane.b32.xlu0 %v340, 100
        %v2487 = vpop.permute.xlu0 %2486
        %2488 = vrot.lane.b32.xlu0 %v341, 100
        %v2489 = vpop.permute.xlu0 %2488
        %2490 = vrot.lane.b32.xlu0 %v342, 100
        %v2491 = vpop.permute.xlu0 %2490
        %2492 = vrot.lane.b32.xlu0 %v343, 100
        %v2493 = vpop.permute.xlu0 %2492
        %2494 = vrot.lane.b32.xlu0 %v344, 100
        %v2495 = vpop.permute.xlu0 %2494
        %2496 = vrot.lane.b32.xlu0 %v345, 100
        %v2497 = vpop.permute.xlu0 %2496
        %2498 = vrot.lane.b32.xlu0 %v346, 100
        %v2499 = vpop.permute.xlu0 %2498
        %2500 = vrot.lane.b32.xlu0 %v347, 100
        %v2501 = vpop.permute.xlu0 %2500
        %2502 = vrot.lane.b32.xlu0 %v348, 100
        %v2503 = vpop.permute.xlu0 %2502
        %2504 = vrot.lane.b32.xlu0 %v349, 100
        %v2505 = vpop.permute.xlu0 %2504
        %2506 = vrot.lane.b32.xlu0 %v350, 100
        %v2507 = vpop.permute.xlu0 %2506
        %2508 = vrot.lane.b32.xlu0 %v351, 100
        %v2509 = vpop.permute.xlu0 %2508
        %2510 = vrot.lane.b32.xlu0 %v352, 100
        %v2511 = vpop.permute.xlu0 %2510
        %2512 = vrot.lane.b32.xlu0 %v353, 100
        %v2513 = vpop.permute.xlu0 %2512
        %2514 = vrot.lane.b32.xlu0 %v354, 100
        %v2515 = vpop.permute.xlu0 %2514
        %2516 = vrot.lane.b32.xlu0 %v355, 100
        %v2517 = vpop.permute.xlu0 %2516
        %2518 = vrot.lane.b32.xlu0 %v356, 100
        %v2519 = vpop.permute.xlu0 %2518
        %2520 = vrot.lane.b32.xlu0 %v357, 100
        %v2521 = vpop.permute.xlu0 %2520
        %2522 = vrot.lane.b32.xlu0 %v358, 100
        %v2523 = vpop.permute.xlu0 %2522
        %2524 = vrot.lane.b32.xlu0 %v359, 100
        %v2525 = vpop.permute.xlu0 %2524
        %2526 = vrot.lane.b32.xlu0 %v360, 100
        %v2527 = vpop.permute.xlu0 %2526
        %2528 = vrot.lane.b32.xlu0 %v361, 100
        %v2529 = vpop.permute.xlu0 %2528
        %2530 = vrot.lane.b32.xlu0 %v362, 100
        %v2531 = vpop.permute.xlu0 %2530
        %2532 = vrot.lane.b32.xlu0 %v363, 100
        %v2533 = vpop.permute.xlu0 %2532
        %2534 = vrot.lane.b32.xlu0 %v364, 100
        %v2535 = vpop.permute.xlu0 %2534
        %2536 = vrot.lane.b32.xlu0 %v365, 100
        %v2537 = vpop.permute.xlu0 %2536
        %2538 = vrot.lane.b32.xlu0 %v366, 100
        %v2539 = vpop.permute.xlu0 %2538
        %2540 = vrot.lane.b32.xlu0 %v367, 100
        %v2541 = vpop.permute.xlu0 %2540
        %2542 = vrot.lane.b32.xlu0 %v368, 100
        %v2543 = vpop.permute.xlu0 %2542
        %2544 = vrot.lane.b32.xlu0 %v369, 100
        %v2545 = vpop.permute.xlu0 %2544
        %2546 = vrot.lane.b32.xlu0 %v370, 100
        %v2547 = vpop.permute.xlu0 %2546
        %2548 = vrot.lane.b32.xlu0 %v371, 100
        %v2549 = vpop.permute.xlu0 %2548
        %2550 = vrot.lane.b32.xlu0 %v372, 100
        %v2551 = vpop.permute.xlu0 %2550
        %2552 = vrot.lane.b32.xlu0 %v373, 100
        %v2553 = vpop.permute.xlu0 %2552
        %2554 = vrot.lane.b32.xlu0 %v374, 100
        %v2555 = vpop.permute.xlu0 %2554
        %2556 = vrot.lane.b32.xlu0 %v375, 100
        %v2557 = vpop.permute.xlu0 %2556
        %2558 = vrot.lane.b32.xlu0 %v376, 100
        %v2559 = vpop.permute.xlu0 %2558
        %2560 = vrot.lane.b32.xlu0 %v377, 100
        %v2561 = vpop.permute.xlu0 %2560
        %2562 = vrot.lane.b32.xlu0 %v378, 100
        %v2563 = vpop.permute.xlu0 %2562
        %2564 = vrot.lane.b32.xlu0 %v379, 100
        %v2565 = vpop.permute.xlu0 %2564
        %2566 = vrot.lane.b32.xlu0 %v380, 100
        %v2567 = vpop.permute.xlu0 %2566
        %2568 = vrot.lane.b32.xlu0 %v381, 100
        %v2569 = vpop.permute.xlu0 %2568
        %2570 = vrot.lane.b32.xlu0 %v382, 100
        %v2571 = vpop.permute.xlu0 %2570
        %2572 = vrot.lane.b32.xlu0 %v383, 100
        %v2573 = vpop.permute.xlu0 %2572
        %2574 = vrot.lane.b32.xlu0 %v384, 100
        %v2575 = vpop.permute.xlu0 %2574
        %2576 = vrot.lane.b32.xlu0 %v385, 100
        %v2577 = vpop.permute.xlu0 %2576
        %2578 = vrot.lane.b32.xlu0 %v386, 100
        %v2579 = vpop.permute.xlu0 %2578
        %2580 = vrot.lane.b32.xlu0 %v387, 100
        %v2581 = vpop.permute.xlu0 %2580
        %2582 = vrot.lane.b32.xlu0 %v388, 100
        %v2583 = vpop.permute.xlu0 %2582
        %2584 = vrot.lane.b32.xlu0 %v389, 100
        %v2585 = vpop.permute.xlu0 %2584
        %2586 = vrot.lane.b32.xlu0 %v390, 100
        %v2587 = vpop.permute.xlu0 %2586
        %2588 = vrot.lane.b32.xlu0 %v391, 100
        %v2589 = vpop.permute.xlu0 %2588
        %2590 = vrot.lane.b32.xlu0 %v392, 100
        %v2591 = vpop.permute.xlu0 %2590
        %2592 = vrot.lane.b32.xlu0 %v393, 100
        %v2593 = vpop.permute.xlu0 %2592
        %2594 = vrot.lane.b32.xlu0 %v394, 100
        %v2595 = vpop.permute.xlu0 %2594
        %2596 = vrot.lane.b32.xlu0 %v395, 100
        %v2597 = vpop.permute.xlu0 %2596
        %2598 = vrot.lane.b32.xlu0 %v396, 100
        %v2599 = vpop.permute.xlu0 %2598
        %2600 = vrot.lane.b32.xlu0 %v397, 100
        %v2601 = vpop.permute.xlu0 %2600
        %2602 = vrot.lane.b32.xlu0 %v398, 100
        %v2603 = vpop.permute.xlu0 %2602
        %2604 = vrot.lane.b32.xlu0 %v399, 100
        %v2605 = vpop.permute.xlu0 %2604
        %2606 = vrot.lane.b32.xlu0 %v400, 100
        %v2607 = vpop.permute.xlu0 %2606
        %2608 = vrot.lane.b32.xlu0 %v401, 100
        %v2609 = vpop.permute.xlu0 %2608
        %2610 = vrot.lane.b32.xlu0 %v402, 100
        %v2611 = vpop.permute.xlu0 %2610
        %2612 = vrot.lane.b32.xlu0 %v403, 100
        %v2613 = vpop.permute.xlu0 %2612
        %2614 = vrot.lane.b32.xlu0 %v404, 100
        %v2615 = vpop.permute.xlu0 %2614
        %2616 = vrot.lane.b32.xlu0 %v405, 100
        %v2617 = vpop.permute.xlu0 %2616
        %2618 = vrot.lane.b32.xlu0 %v406, 100
        %v2619 = vpop.permute.xlu0 %2618
        %2620 = vrot.lane.b32.xlu0 %v407, 100
        %v2621 = vpop.permute.xlu0 %2620
        %2622 = vrot.lane.b32.xlu0 %v408, 100
        %v2623 = vpop.permute.xlu0 %2622
        %2624 = vrot.lane.b32.xlu0 %v409, 100
        %v2625 = vpop.permute.xlu0 %2624
        %2626 = vrot.lane.b32.xlu0 %v410, 100
        %v2627 = vpop.permute.xlu0 %2626
        %2628 = vrot.lane.b32.xlu0 %v411, 100
        %v2629 = vpop.permute.xlu0 %2628
        %2630 = vrot.lane.b32.xlu0 %v412, 100
        %v2631 = vpop.permute.xlu0 %2630
        %2632 = vrot.lane.b32.xlu0 %v413, 100
        %v2633 = vpop.permute.xlu0 %2632
        %2634 = vrot.lane.b32.xlu0 %v414, 100
        %v2635 = vpop.permute.xlu0 %2634
        %2636 = vrot.lane.b32.xlu0 %v415, 100
        %v2637 = vpop.permute.xlu0 %2636
        %2638 = vrot.lane.b32.xlu0 %v416, 100
        %v2639 = vpop.permute.xlu0 %2638
        %2640 = vrot.lane.b32.xlu0 %v417, 100
        %v2641 = vpop.permute.xlu0 %2640
        %2642 = vrot.lane.b32.xlu0 %v418, 100
        %v2643 = vpop.permute.xlu0 %2642
        %2644 = vrot.lane.b32.xlu0 %v419, 100
        %v2645 = vpop.permute.xlu0 %2644
        %2646 = vrot.lane.b32.xlu0 %v420, 100
        %v2647 = vpop.permute.xlu0 %2646
        %2648 = vrot.lane.b32.xlu0 %v421, 100
        %v2649 = vpop.permute.xlu0 %2648
        %2650 = vrot.lane.b32.xlu0 %v422, 100
        %v2651 = vpop.permute.xlu0 %2650
        %2652 = vrot.lane.b32.xlu0 %v423, 100
        %v2653 = vpop.permute.xlu0 %2652
        %2654 = vrot.lane.b32.xlu0 %v424, 100
        %v2655 = vpop.permute.xlu0 %2654
        %2656 = vrot.lane.b32.xlu0 %v425, 100
        %v2657 = vpop.permute.xlu0 %2656
        %2658 = vrot.lane.b32.xlu0 %v426, 100
        %v2659 = vpop.permute.xlu0 %2658
        %2660 = vrot.lane.b32.xlu0 %v427, 100
        %v2661 = vpop.permute.xlu0 %2660
        %2662 = vrot.lane.b32.xlu0 %v428, 100
        %v2663 = vpop.permute.xlu0 %2662
        %2664 = vrot.lane.b32.xlu0 %v429, 100
        %v2665 = vpop.permute.xlu0 %2664
        %2666 = vrot.lane.b32.xlu0 %v430, 100
        %v2667 = vpop.permute.xlu0 %2666
        %2668 = vrot.lane.b32.xlu0 %v431, 100
        %v2669 = vpop.permute.xlu0 %2668
        %2670 = vrot.lane.b32.xlu0 %v432, 100
        %v2671 = vpop.permute.xlu0 %2670
        %2672 = vrot.lane.b32.xlu0 %v433, 100
        %v2673 = vpop.permute.xlu0 %2672
        %2674 = vrot.lane.b32.xlu0 %v434, 100
        %v2675 = vpop.permute.xlu0 %2674
        %2780 = vrot.lane.b32.xlu0 %v331, 125
        %v2781 = vpop.permute.xlu0 %2780
        %2782 = vrot.lane.b32.xlu0 %v332, 125
        %v2783 = vpop.permute.xlu0 %2782
        %2784 = vrot.lane.b32.xlu0 %v333, 125
        %v2785 = vpop.permute.xlu0 %2784
        %2786 = vrot.lane.b32.xlu0 %v334, 125
        %v2787 = vpop.permute.xlu0 %2786
        %2788 = vrot.lane.b32.xlu0 %v335, 125
        %v2789 = vpop.permute.xlu0 %2788
        %2790 = vrot.lane.b32.xlu0 %v336, 125
        %v2791 = vpop.permute.xlu0 %2790
        %2792 = vrot.lane.b32.xlu0 %v337, 125
        %v2793 = vpop.permute.xlu0 %2792
        %2794 = vrot.lane.b32.xlu0 %v338, 125
        %v2795 = vpop.permute.xlu0 %2794
        %2796 = vrot.lane.b32.xlu0 %v339, 125
        %v2797 = vpop.permute.xlu0 %2796
        %2798 = vrot.lane.b32.xlu0 %v340, 125
        %v2799 = vpop.permute.xlu0 %2798
        %2800 = vrot.lane.b32.xlu0 %v341, 125
        %v2801 = vpop.permute.xlu0 %2800
        %2802 = vrot.lane.b32.xlu0 %v342, 125
        %v2803 = vpop.permute.xlu0 %2802
        %2804 = vrot.lane.b32.xlu0 %v343, 125
        %v2805 = vpop.permute.xlu0 %2804
        %2806 = vrot.lane.b32.xlu0 %v344, 125
        %v2807 = vpop.permute.xlu0 %2806
        %2808 = vrot.lane.b32.xlu0 %v345, 125
        %v2809 = vpop.permute.xlu0 %2808
        %2810 = vrot.lane.b32.xlu0 %v346, 125
        %v2811 = vpop.permute.xlu0 %2810
        %2812 = vrot.lane.b32.xlu0 %v347, 125
        %v2813 = vpop.permute.xlu0 %2812
        %2814 = vrot.lane.b32.xlu0 %v348, 125
        %v2815 = vpop.permute.xlu0 %2814
        %2816 = vrot.lane.b32.xlu0 %v349, 125
        %v2817 = vpop.permute.xlu0 %2816
        %2818 = vrot.lane.b32.xlu0 %v350, 125
        %v2819 = vpop.permute.xlu0 %2818
        %2820 = vrot.lane.b32.xlu0 %v351, 125
        %v2821 = vpop.permute.xlu0 %2820
        %2822 = vrot.lane.b32.xlu0 %v352, 125
        %v2823 = vpop.permute.xlu0 %2822
        %2824 = vrot.lane.b32.xlu0 %v353, 125
        %v2825 = vpop.permute.xlu0 %2824
        %2826 = vrot.lane.b32.xlu0 %v354, 125
        %v2827 = vpop.permute.xlu0 %2826
        %2828 = vrot.lane.b32.xlu0 %v355, 125
        %v2829 = vpop.permute.xlu0 %2828
        %2830 = vrot.lane.b32.xlu0 %v356, 125
        %v2831 = vpop.permute.xlu0 %2830
        %2832 = vrot.lane.b32.xlu0 %v357, 125
        %v2833 = vpop.permute.xlu0 %2832
        %2834 = vrot.lane.b32.xlu0 %v358, 125
        %v2835 = vpop.permute.xlu0 %2834
        %2836 = vrot.lane.b32.xlu0 %v359, 125
        %v2837 = vpop.permute.xlu0 %2836
        %2838 = vrot.lane.b32.xlu0 %v360, 125
        %v2839 = vpop.permute.xlu0 %2838
        %2840 = vrot.lane.b32.xlu0 %v361, 125
        %v2841 = vpop.permute.xlu0 %2840
        %2842 = vrot.lane.b32.xlu0 %v362, 125
        %v2843 = vpop.permute.xlu0 %2842
        %2844 = vrot.lane.b32.xlu0 %v363, 125
        %v2845 = vpop.permute.xlu0 %2844
        %2846 = vrot.lane.b32.xlu0 %v364, 125
        %v2847 = vpop.permute.xlu0 %2846
        %2848 = vrot.lane.b32.xlu0 %v365, 125
        %v2849 = vpop.permute.xlu0 %2848
        %2850 = vrot.lane.b32.xlu0 %v366, 125
        %v2851 = vpop.permute.xlu0 %2850
        %2852 = vrot.lane.b32.xlu0 %v367, 125
        %v2853 = vpop.permute.xlu0 %2852
        %2854 = vrot.lane.b32.xlu0 %v368, 125
        %v2855 = vpop.permute.xlu0 %2854
        %2856 = vrot.lane.b32.xlu0 %v369, 125
        %v2857 = vpop.permute.xlu0 %2856
        %2858 = vrot.lane.b32.xlu0 %v370, 125
        %v2859 = vpop.permute.xlu0 %2858
        %2860 = vrot.lane.b32.xlu0 %v371, 125
        %v2861 = vpop.permute.xlu0 %2860
        %2862 = vrot.lane.b32.xlu0 %v372, 125
        %v2863 = vpop.permute.xlu0 %2862
        %2864 = vrot.lane.b32.xlu0 %v373, 125
        %v2865 = vpop.permute.xlu0 %2864
        %2866 = vrot.lane.b32.xlu0 %v374, 125
        %v2867 = vpop.permute.xlu0 %2866
        %2868 = vrot.lane.b32.xlu0 %v375, 125
        %v2869 = vpop.permute.xlu0 %2868
        %2870 = vrot.lane.b32.xlu0 %v376, 125
        %v2871 = vpop.permute.xlu0 %2870
        %2872 = vrot.lane.b32.xlu0 %v377, 125
        %v2873 = vpop.permute.xlu0 %2872
        %2874 = vrot.lane.b32.xlu0 %v378, 125
        %v2875 = vpop.permute.xlu0 %2874
        %2876 = vrot.lane.b32.xlu0 %v379, 125
        %v2877 = vpop.permute.xlu0 %2876
        %2878 = vrot.lane.b32.xlu0 %v380, 125
        %v2879 = vpop.permute.xlu0 %2878
        %2880 = vrot.lane.b32.xlu0 %v381, 125
        %v2881 = vpop.permute.xlu0 %2880
        %2882 = vrot.lane.b32.xlu0 %v382, 125
        %v2883 = vpop.permute.xlu0 %2882
        %2884 = vrot.lane.b32.xlu0 %v383, 125
        %v2885 = vpop.permute.xlu0 %2884
        %2886 = vrot.lane.b32.xlu0 %v384, 125
        %v2887 = vpop.permute.xlu0 %2886
        %2888 = vrot.lane.b32.xlu0 %v385, 125
        %v2889 = vpop.permute.xlu0 %2888
        %2890 = vrot.lane.b32.xlu0 %v386, 125
        %v2891 = vpop.permute.xlu0 %2890
        %2892 = vrot.lane.b32.xlu0 %v387, 125
        %v2893 = vpop.permute.xlu0 %2892
        %2894 = vrot.lane.b32.xlu0 %v388, 125
        %v2895 = vpop.permute.xlu0 %2894
        %2896 = vrot.lane.b32.xlu0 %v389, 125
        %v2897 = vpop.permute.xlu0 %2896
        %2898 = vrot.lane.b32.xlu0 %v390, 125
        %v2899 = vpop.permute.xlu0 %2898
        %2900 = vrot.lane.b32.xlu0 %v391, 125
        %v2901 = vpop.permute.xlu0 %2900
        %2902 = vrot.lane.b32.xlu0 %v392, 125
        %v2903 = vpop.permute.xlu0 %2902
        %2904 = vrot.lane.b32.xlu0 %v393, 125
        %v2905 = vpop.permute.xlu0 %2904
        %2906 = vrot.lane.b32.xlu0 %v394, 125
        %v2907 = vpop.permute.xlu0 %2906
        %2908 = vrot.lane.b32.xlu0 %v395, 125
        %v2909 = vpop.permute.xlu0 %2908
        %2910 = vrot.lane.b32.xlu0 %v396, 125
        %v2911 = vpop.permute.xlu0 %2910
        %2912 = vrot.lane.b32.xlu0 %v397, 125
        %v2913 = vpop.permute.xlu0 %2912
        %2914 = vrot.lane.b32.xlu0 %v398, 125
        %v2915 = vpop.permute.xlu0 %2914
        %2916 = vrot.lane.b32.xlu0 %v399, 125
        %v2917 = vpop.permute.xlu0 %2916
        %2918 = vrot.lane.b32.xlu0 %v400, 125
        %v2919 = vpop.permute.xlu0 %2918
        %2920 = vrot.lane.b32.xlu0 %v401, 125
        %v2921 = vpop.permute.xlu0 %2920
        %2922 = vrot.lane.b32.xlu0 %v402, 125
        %v2923 = vpop.permute.xlu0 %2922
        %2924 = vrot.lane.b32.xlu0 %v403, 125
        %v2925 = vpop.permute.xlu0 %2924
        %2926 = vrot.lane.b32.xlu0 %v404, 125
        %v2927 = vpop.permute.xlu0 %2926
        %2928 = vrot.lane.b32.xlu0 %v405, 125
        %v2929 = vpop.permute.xlu0 %2928
        %2930 = vrot.lane.b32.xlu0 %v406, 125
        %v2931 = vpop.permute.xlu0 %2930
        %2932 = vrot.lane.b32.xlu0 %v407, 125
        %v2933 = vpop.permute.xlu0 %2932
        %2934 = vrot.lane.b32.xlu0 %v408, 125
        %v2935 = vpop.permute.xlu0 %2934
        %2936 = vrot.lane.b32.xlu0 %v409, 125
        %v2937 = vpop.permute.xlu0 %2936
        %2938 = vrot.lane.b32.xlu0 %v410, 125
        %v2939 = vpop.permute.xlu0 %2938
        %2940 = vrot.lane.b32.xlu0 %v411, 125
        %v2941 = vpop.permute.xlu0 %2940
        %2942 = vrot.lane.b32.xlu0 %v412, 125
        %v2943 = vpop.permute.xlu0 %2942
        %2944 = vrot.lane.b32.xlu0 %v413, 125
        %v2945 = vpop.permute.xlu0 %2944
        %2946 = vrot.lane.b32.xlu0 %v414, 125
        %v2947 = vpop.permute.xlu0 %2946
        %2948 = vrot.lane.b32.xlu0 %v415, 125
        %v2949 = vpop.permute.xlu0 %2948
        %2950 = vrot.lane.b32.xlu0 %v416, 125
        %v2951 = vpop.permute.xlu0 %2950
        %2952 = vrot.lane.b32.xlu0 %v417, 125
        %v2953 = vpop.permute.xlu0 %2952
        %2954 = vrot.lane.b32.xlu0 %v418, 125
        %v2955 = vpop.permute.xlu0 %2954
        %2956 = vrot.lane.b32.xlu0 %v419, 125
        %v2957 = vpop.permute.xlu0 %2956
        %2958 = vrot.lane.b32.xlu0 %v420, 125
        %v2959 = vpop.permute.xlu0 %2958
        %2960 = vrot.lane.b32.xlu0 %v421, 125
        %v2961 = vpop.permute.xlu0 %2960
        %2962 = vrot.lane.b32.xlu0 %v422, 125
        %v2963 = vpop.permute.xlu0 %2962
        %2964 = vrot.lane.b32.xlu0 %v423, 125
        %v2965 = vpop.permute.xlu0 %2964
        %2966 = vrot.lane.b32.xlu0 %v424, 125
        %v2967 = vpop.permute.xlu0 %2966
        %2968 = vrot.lane.b32.xlu0 %v425, 125
        %v2969 = vpop.permute.xlu0 %2968
        %2970 = vrot.lane.b32.xlu0 %v426, 125
        %v2971 = vpop.permute.xlu0 %2970
        %2972 = vrot.lane.b32.xlu0 %v427, 125
        %v2973 = vpop.permute.xlu0 %2972
        %2974 = vrot.lane.b32.xlu0 %v428, 125
        %v2975 = vpop.permute.xlu0 %2974
        %2976 = vrot.lane.b32.xlu0 %v429, 125
        %v2977 = vpop.permute.xlu0 %2976
        %2978 = vrot.lane.b32.xlu0 %v430, 125
        %v2979 = vpop.permute.xlu0 %2978
        %2980 = vrot.lane.b32.xlu0 %v431, 125
        %v2981 = vpop.permute.xlu0 %2980
        %2982 = vrot.lane.b32.xlu0 %v432, 125
        %v2983 = vpop.permute.xlu0 %2982
        %2984 = vrot.lane.b32.xlu0 %v433, 125
        %v2985 = vpop.permute.xlu0 %2984
        %2986 = vrot.lane.b32.xlu0 %v434, 125
        %v2987 = vpop.permute.xlu0 %2986
        %v3092 = vsel %vm515, %v331, %v1533
        %v3093 = vsel %vm515, %v332, %v1535
        %v3094 = vsel %vm515, %v333, %v1537
        %v3095 = vsel %vm515, %v334, %v1539
        %v3096 = vsel %vm515, %v335, %v1541
        %v3097 = vsel %vm515, %v336, %v1543
        %v3098 = vsel %vm515, %v337, %v1545
        %v3099 = vsel %vm515, %v338, %v1547
        %v3100 = vsel %vm515, %v339, %v1549
        %v3101 = vsel %vm515, %v340, %v1551
        %v3102 = vsel %vm515, %v341, %v1553
        %v3103 = vsel %vm515, %v342, %v1555
        %v3104 = vsel %vm515, %v343, %v1557
        %v3105 = vsel %vm515, %v344, %v1559
        %v3106 = vsel %vm515, %v345, %v1561
        %v3107 = vsel %vm515, %v346, %v1563
        %v3108 = vsel %vm515, %v347, %v1565
        %v3109 = vsel %vm515, %v348, %v1567
        %v3110 = vsel %vm515, %v349, %v1569
        %v3111 = vsel %vm515, %v350, %v1571
        %v3112 = vsel %vm515, %v351, %v1573
        %v3113 = vsel %vm515, %v352, %v1575
        %v3114 = vsel %vm515, %v353, %v1577
        %v3115 = vsel %vm515, %v354, %v1579
        %v3116 = vsel %vm515, %v355, %v1581
        %v3117 = vsel %vm515, %v356, %v1583
        %v3118 = vsel %vm515, %v357, %v1585
        %v3119 = vsel %vm515, %v358, %v1587
        %v3120 = vsel %vm515, %v359, %v1589
        %v3121 = vsel %vm515, %v360, %v1591
        %v3122 = vsel %vm515, %v361, %v1593
        %v3123 = vsel %vm515, %v362, %v1595
        %v3124 = vsel %vm515, %v363, %v1597
        %v3125 = vsel %vm515, %v364, %v1599
        %v3126 = vsel %vm515, %v365, %v1601
        %v3127 = vsel %vm515, %v366, %v1603
        %v3128 = vsel %vm515, %v367, %v1605
        %v3129 = vsel %vm515, %v368, %v1607
        %v3130 = vsel %vm515, %v369, %v1609
        %v3131 = vsel %vm515, %v370, %v1611
        %v3132 = vsel %vm515, %v371, %v1613
        %v3133 = vsel %vm515, %v372, %v1615
        %v3134 = vsel %vm515, %v373, %v1617
        %v3135 = vsel %vm515, %v374, %v1619
        %v3136 = vsel %vm515, %v375, %v1621
        %v3137 = vsel %vm515, %v376, %v1623
        %v3138 = vsel %vm515, %v377, %v1625
        %v3139 = vsel %vm515, %v378, %v1627
        %v3140 = vsel %vm515, %v379, %v1629
        %v3141 = vsel %vm515, %v380, %v1631
        %v3142 = vsel %vm515, %v381, %v1633
        %v3143 = vsel %vm515, %v382, %v1635
        %v3144 = vsel %vm515, %v383, %v1637
        %v3145 = vsel %vm515, %v384, %v1639
        %v3146 = vsel %vm515, %v385, %v1641
        %v3147 = vsel %vm515, %v386, %v1643
        %v3148 = vsel %vm515, %v387, %v1645
        %v3149 = vsel %vm515, %v388, %v1647
        %v3150 = vsel %vm515, %v389, %v1649
        %v3151 = vsel %vm515, %v390, %v1651
        %v3152 = vsel %vm515, %v391, %v1653
        %v3153 = vsel %vm515, %v392, %v1655
        %v3154 = vsel %vm515, %v393, %v1657
        %v3155 = vsel %vm515, %v394, %v1659
        %v3156 = vsel %vm515, %v395, %v1661
        %v3157 = vsel %vm515, %v396, %v1663
        %v3158 = vsel %vm515, %v397, %v1665
        %v3159 = vsel %vm515, %v398, %v1667
        %v3160 = vsel %vm515, %v399, %v1669
        %v3161 = vsel %vm515, %v400, %v1671
        %v3162 = vsel %vm515, %v401, %v1673
        %v3163 = vsel %vm515, %v402, %v1675
        %v3164 = vsel %vm515, %v403, %v1677
        %v3165 = vsel %vm515, %v404, %v1679
        %v3166 = vsel %vm515, %v405, %v1681
        %v3167 = vsel %vm515, %v406, %v1683
        %v3168 = vsel %vm515, %v407, %v1685
        %v3169 = vsel %vm515, %v408, %v1687
        %v3170 = vsel %vm515, %v409, %v1689
        %v3171 = vsel %vm515, %v410, %v1691
        %v3172 = vsel %vm515, %v411, %v1693
        %v3173 = vsel %vm515, %v412, %v1695
        %v3174 = vsel %vm515, %v413, %v1697
        %v3175 = vsel %vm515, %v414, %v1699
        %v3176 = vsel %vm515, %v415, %v1701
        %v3177 = vsel %vm515, %v416, %v1703
        %v3178 = vsel %vm515, %v417, %v1705
        %v3179 = vsel %vm515, %v418, %v1707
        %v3180 = vsel %vm515, %v419, %v1709
        %v3181 = vsel %vm515, %v420, %v1711
        %v3182 = vsel %vm515, %v421, %v1713
        %v3183 = vsel %vm515, %v422, %v1715
        %v3184 = vsel %vm515, %v423, %v1717
        %v3185 = vsel %vm515, %v424, %v1719
        %v3186 = vsel %vm515, %v425, %v1721
        %v3187 = vsel %vm515, %v426, %v1723
        %v3188 = vsel %vm515, %v427, %v1725
        %v3189 = vsel %vm515, %v428, %v1727
        %v3190 = vsel %vm515, %v429, %v1729
        %v3191 = vsel %vm515, %v430, %v1731
        %v3192 = vsel %vm515, %v431, %v1733
        %v3193 = vsel %vm515, %v432, %v1735
        %v3194 = vsel %vm515, %v433, %v1737
        %v3195 = vsel %vm515, %v434, %v1739
        %vm3196 = vcmask 408576
        %v3197 = vsel %vm3196, %v3092, %v1845
        %v3198 = vsel %vm3196, %v3093, %v1847
        %v3199 = vsel %vm3196, %v3094, %v1849
        %v3200 = vsel %vm3196, %v3095, %v1851
        %v3201 = vsel %vm3196, %v3096, %v1853
        %v3202 = vsel %vm3196, %v3097, %v1855
        %v3203 = vsel %vm3196, %v3098, %v1857
        %v3204 = vsel %vm3196, %v3099, %v1859
        %v3205 = vsel %vm3196, %v3100, %v1861
        %v3206 = vsel %vm3196, %v3101, %v1863
        %v3207 = vsel %vm3196, %v3102, %v1865
        %v3208 = vsel %vm3196, %v3103, %v1867
        %v3209 = vsel %vm3196, %v3104, %v1869
        %v3210 = vsel %vm3196, %v3105, %v1871
        %v3211 = vsel %vm3196, %v3106, %v1873
        %v3212 = vsel %vm3196, %v3107, %v1875
        %v3213 = vsel %vm3196, %v3108, %v1877
        %v3214 = vsel %vm3196, %v3109, %v1879
        %v3215 = vsel %vm3196, %v3110, %v1881
        %v3216 = vsel %vm3196, %v3111, %v1883
        %v3217 = vsel %vm3196, %v3112, %v1885
        %v3218 = vsel %vm3196, %v3113, %v1887
        %v3219 = vsel %vm3196, %v3114, %v1889
        %v3220 = vsel %vm3196, %v3115, %v1891
        %v3221 = vsel %vm3196, %v3116, %v1893
        %v3222 = vsel %vm3196, %v3117, %v1895
        %v3223 = vsel %vm3196, %v3118, %v1897
        %v3224 = vsel %vm3196, %v3119, %v1899
        %v3225 = vsel %vm3196, %v3120, %v1901
        %v3226 = vsel %vm3196, %v3121, %v1903
        %v3227 = vsel %vm3196, %v3122, %v1905
        %v3228 = vsel %vm3196, %v3123, %v1907
        %v3229 = vsel %vm3196, %v3124, %v1909
        %v3230 = vsel %vm3196, %v3125, %v1911
        %v3231 = vsel %vm3196, %v3126, %v1913
        %v3232 = vsel %vm3196, %v3127, %v1915
        %v3233 = vsel %vm3196, %v3128, %v1917
        %v3234 = vsel %vm3196, %v3129, %v1919
        %v3235 = vsel %vm3196, %v3130, %v1921
        %v3236 = vsel %vm3196, %v3131, %v1923
        %v3237 = vsel %vm3196, %v3132, %v1925
        %v3238 = vsel %vm3196, %v3133, %v1927
        %v3239 = vsel %vm3196, %v3134, %v1929
        %v3240 = vsel %vm3196, %v3135, %v1931
        %v3241 = vsel %vm3196, %v3136, %v1933
        %v3242 = vsel %vm3196, %v3137, %v1935
        %v3243 = vsel %vm3196, %v3138, %v1937
        %v3244 = vsel %vm3196, %v3139, %v1939
        %v3245 = vsel %vm3196, %v3140, %v1941
        %v3246 = vsel %vm3196, %v3141, %v1943
        %v3247 = vsel %vm3196, %v3142, %v1945
        %v3248 = vsel %vm3196, %v3143, %v1947
        %v3249 = vsel %vm3196, %v3144, %v1949
        %v3250 = vsel %vm3196, %v3145, %v1951
        %v3251 = vsel %vm3196, %v3146, %v1953
        %v3252 = vsel %vm3196, %v3147, %v1955
        %v3253 = vsel %vm3196, %v3148, %v1957
        %v3254 = vsel %vm3196, %v3149, %v1959
        %v3255 = vsel %vm3196, %v3150, %v1961
        %v3256 = vsel %vm3196, %v3151, %v1963
        %v3257 = vsel %vm3196, %v3152, %v1965
        %v3258 = vsel %vm3196, %v3153, %v1967
        %v3259 = vsel %vm3196, %v3154, %v1969
        %v3260 = vsel %vm3196, %v3155, %v1971
        %v3261 = vsel %vm3196, %v3156, %v1973
        %v3262 = vsel %vm3196, %v3157, %v1975
        %v3263 = vsel %vm3196, %v3158, %v1977
        %v3264 = vsel %vm3196, %v3159, %v1979
        %v3265 = vsel %vm3196, %v3160, %v1981
        %v3266 = vsel %vm3196, %v3161, %v1983
        %v3267 = vsel %vm3196, %v3162, %v1985
        %v3268 = vsel %vm3196, %v3163, %v1987
        %v3269 = vsel %vm3196, %v3164, %v1989
        %v3270 = vsel %vm3196, %v3165, %v1991
        %v3271 = vsel %vm3196, %v3166, %v1993
        %v3272 = vsel %vm3196, %v3167, %v1995
        %v3273 = vsel %vm3196, %v3168, %v1997
        %v3274 = vsel %vm3196, %v3169, %v1999
        %v3275 = vsel %vm3196, %v3170, %v2001
        %v3276 = vsel %vm3196, %v3171, %v2003
        %v3277 = vsel %vm3196, %v3172, %v2005
        %v3278 = vsel %vm3196, %v3173, %v2007
        %v3279 = vsel %vm3196, %v3174, %v2009
        %v3280 = vsel %vm3196, %v3175, %v2011
        %v3281 = vsel %vm3196, %v3176, %v2013
        %v3282 = vsel %vm3196, %v3177, %v2015
        %v3283 = vsel %vm3196, %v3178, %v2017
        %v3284 = vsel %vm3196, %v3179, %v2019
        %v3285 = vsel %vm3196, %v3180, %v2021
        %v3286 = vsel %vm3196, %v3181, %v2023
        %v3287 = vsel %vm3196, %v3182, %v2025
        %v3288 = vsel %vm3196, %v3183, %v2027
        %v3289 = vsel %vm3196, %v3184, %v2029
        %v3290 = vsel %vm3196, %v3185, %v2031
        %v3291 = vsel %vm3196, %v3186, %v2033
        %v3292 = vsel %vm3196, %v3187, %v2035
        %v3293 = vsel %vm3196, %v3188, %v2037
        %v3294 = vsel %vm3196, %v3189, %v2039
        %v3295 = vsel %vm3196, %v3190, %v2041
        %v3296 = vsel %vm3196, %v3191, %v2043
        %v3297 = vsel %vm3196, %v3192, %v2045
        %v3298 = vsel %vm3196, %v3193, %v2047
        %v3299 = vsel %vm3196, %v3194, %v2049
        %v3300 = vsel %vm3196, %v3195, %v2051
        %vm3301 = vcmask 613376
        %v3302 = vsel %vm3301, %v3197, %v2157
        %v3303 = vsel %vm3301, %v3198, %v2159
        %v3304 = vsel %vm3301, %v3199, %v2161
        %v3305 = vsel %vm3301, %v3200, %v2163
        %v3306 = vsel %vm3301, %v3201, %v2165
        %v3307 = vsel %vm3301, %v3202, %v2167
        %v3308 = vsel %vm3301, %v3203, %v2169
        %v3309 = vsel %vm3301, %v3204, %v2171
        %v3310 = vsel %vm3301, %v3205, %v2173
        %v3311 = vsel %vm3301, %v3206, %v2175
        %v3312 = vsel %vm3301, %v3207, %v2177
        %v3313 = vsel %vm3301, %v3208, %v2179
        %v3314 = vsel %vm3301, %v3209, %v2181
        %v3315 = vsel %vm3301, %v3210, %v2183
        %v3316 = vsel %vm3301, %v3211, %v2185
        %v3317 = vsel %vm3301, %v3212, %v2187
        %v3318 = vsel %vm3301, %v3213, %v2189
        %v3319 = vsel %vm3301, %v3214, %v2191
        %v3320 = vsel %vm3301, %v3215, %v2193
        %v3321 = vsel %vm3301, %v3216, %v2195
        %v3322 = vsel %vm3301, %v3217, %v2197
        %v3323 = vsel %vm3301, %v3218, %v2199
        %v3324 = vsel %vm3301, %v3219, %v2201
        %v3325 = vsel %vm3301, %v3220, %v2203
        %v3326 = vsel %vm3301, %v3221, %v2205
        %v3327 = vsel %vm3301, %v3222, %v2207
        %v3328 = vsel %vm3301, %v3223, %v2209
        %v3329 = vsel %vm3301, %v3224, %v2211
        %v3330 = vsel %vm3301, %v3225, %v2213
        %v3331 = vsel %vm3301, %v3226, %v2215
        %v3332 = vsel %vm3301, %v3227, %v2217
        %v3333 = vsel %vm3301, %v3228, %v2219
        %v3334 = vsel %vm3301, %v3229, %v2221
        %v3335 = vsel %vm3301, %v3230, %v2223
        %v3336 = vsel %vm3301, %v3231, %v2225
        %v3337 = vsel %vm3301, %v3232, %v2227
        %v3338 = vsel %vm3301, %v3233, %v2229
        %v3339 = vsel %vm3301, %v3234, %v2231
        %v3340 = vsel %vm3301, %v3235, %v2233
        %v3341 = vsel %vm3301, %v3236, %v2235
        %v3342 = vsel %vm3301, %v3237, %v2237
        %v3343 = vsel %vm3301, %v3238, %v2239
        %v3344 = vsel %vm3301, %v3239, %v2241
        %v3345 = vsel %vm3301, %v3240, %v2243
        %v3346 = vsel %vm3301, %v3241, %v2245
        %v3347 = vsel %vm3301, %v3242, %v2247
        %v3348 = vsel %vm3301, %v3243, %v2249
        %v3349 = vsel %vm3301, %v3244, %v2251
        %v3350 = vsel %vm3301, %v3245, %v2253
        %v3351 = vsel %vm3301, %v3246, %v2255
        %v3352 = vsel %vm3301, %v3247, %v2257
        %v3353 = vsel %vm3301, %v3248, %v2259
        %v3354 = vsel %vm3301, %v3249, %v2261
        %v3355 = vsel %vm3301, %v3250, %v2263
        %v3356 = vsel %vm3301, %v3251, %v2265
        %v3357 = vsel %vm3301, %v3252, %v2267
        %v3358 = vsel %vm3301, %v3253, %v2269
        %v3359 = vsel %vm3301, %v3254, %v2271
        %v3360 = vsel %vm3301, %v3255, %v2273
        %v3361 = vsel %vm3301, %v3256, %v2275
        %v3362 = vsel %vm3301, %v3257, %v2277
        %v3363 = vsel %vm3301, %v3258, %v2279
        %v3364 = vsel %vm3301, %v3259, %v2281
        %v3365 = vsel %vm3301, %v3260, %v2283
        %v3366 = vsel %vm3301, %v3261, %v2285
        %v3367 = vsel %vm3301, %v3262, %v2287
        %v3368 = vsel %vm3301, %v3263, %v2289
        %v3369 = vsel %vm3301, %v3264, %v2291
        %v3370 = vsel %vm3301, %v3265, %v2293
        %v3371 = vsel %vm3301, %v3266, %v2295
        %v3372 = vsel %vm3301, %v3267, %v2297
        %v3373 = vsel %vm3301, %v3268, %v2299
        %v3374 = vsel %vm3301, %v3269, %v2301
        %v3375 = vsel %vm3301, %v3270, %v2303
        %v3376 = vsel %vm3301, %v3271, %v2305
        %v3377 = vsel %vm3301, %v3272, %v2307
        %v3378 = vsel %vm3301, %v3273, %v2309
        %v3379 = vsel %vm3301, %v3274, %v2311
        %v3380 = vsel %vm3301, %v3275, %v2313
        %v3381 = vsel %vm3301, %v3276, %v2315
        %v3382 = vsel %vm3301, %v3277, %v2317
        %v3383 = vsel %vm3301, %v3278, %v2319
        %v3384 = vsel %vm3301, %v3279, %v2321
        %v3385 = vsel %vm3301, %v3280, %v2323
        %v3386 = vsel %vm3301, %v3281, %v2325
        %v3387 = vsel %vm3301, %v3282, %v2327
        %v3388 = vsel %vm3301, %v3283, %v2329
        %v3389 = vsel %vm3301, %v3284, %v2331
        %v3390 = vsel %vm3301, %v3285, %v2333
        %v3391 = vsel %vm3301, %v3286, %v2335
        %v3392 = vsel %vm3301, %v3287, %v2337
        %v3393 = vsel %vm3301, %v3288, %v2339
        %v3394 = vsel %vm3301, %v3289, %v2341
        %v3395 = vsel %vm3301, %v3290, %v2343
        %v3396 = vsel %vm3301, %v3291, %v2345
        %v3397 = vsel %vm3301, %v3292, %v2347
        %v3398 = vsel %vm3301, %v3293, %v2349
        %v3399 = vsel %vm3301, %v3294, %v2351
        %v3400 = vsel %vm3301, %v3295, %v2353
        %v3401 = vsel %vm3301, %v3296, %v2355
        %v3402 = vsel %vm3301, %v3297, %v2357
        %v3403 = vsel %vm3301, %v3298, %v2359
        %v3404 = vsel %vm3301, %v3299, %v2361
        %v3405 = vsel %vm3301, %v3300, %v2363
        %vm3406 = vcmask 818176
        %v3407 = vsel %vm3406, %v3302, %v2469
        %v3408 = vsel %vm3406, %v3303, %v2471
        %v3409 = vsel %vm3406, %v3304, %v2473
        %v3410 = vsel %vm3406, %v3305, %v2475
        %v3411 = vsel %vm3406, %v3306, %v2477
        %v3412 = vsel %vm3406, %v3307, %v2479
        %v3413 = vsel %vm3406, %v3308, %v2481
        %v3414 = vsel %vm3406, %v3309, %v2483
        %v3415 = vsel %vm3406, %v3310, %v2485
        %v3416 = vsel %vm3406, %v3311, %v2487
        %v3417 = vsel %vm3406, %v3312, %v2489
        %v3418 = vsel %vm3406, %v3313, %v2491
        %v3419 = vsel %vm3406, %v3314, %v2493
        %v3420 = vsel %vm3406, %v3315, %v2495
        %v3421 = vsel %vm3406, %v3316, %v2497
        %v3422 = vsel %vm3406, %v3317, %v2499
        %v3423 = vsel %vm3406, %v3318, %v2501
        %v3424 = vsel %vm3406, %v3319, %v2503
        %v3425 = vsel %vm3406, %v3320, %v2505
        %v3426 = vsel %vm3406, %v3321, %v2507
        %v3427 = vsel %vm3406, %v3322, %v2509
        %v3428 = vsel %vm3406, %v3323, %v2511
        %v3429 = vsel %vm3406, %v3324, %v2513
        %v3430 = vsel %vm3406, %v3325, %v2515
        %v3431 = vsel %vm3406, %v3326, %v2517
        %v3432 = vsel %vm3406, %v3327, %v2519
        %v3433 = vsel %vm3406, %v3328, %v2521
        %v3434 = vsel %vm3406, %v3329, %v2523
        %v3435 = vsel %vm3406, %v3330, %v2525
        %v3436 = vsel %vm3406, %v3331, %v2527
        %v3437 = vsel %vm3406, %v3332, %v2529
        %v3438 = vsel %vm3406, %v3333, %v2531
        %v3439 = vsel %vm3406, %v3334, %v2533
        %v3440 = vsel %vm3406, %v3335, %v2535
        %v3441 = vsel %vm3406, %v3336, %v2537
        %v3442 = vsel %vm3406, %v3337, %v2539
        %v3443 = vsel %vm3406, %v3338, %v2541
        %v3444 = vsel %vm3406, %v3339, %v2543
        %v3445 = vsel %vm3406, %v3340, %v2545
        %v3446 = vsel %vm3406, %v3341, %v2547
        %v3447 = vsel %vm3406, %v3342, %v2549
        %v3448 = vsel %vm3406, %v3343, %v2551
        %v3449 = vsel %vm3406, %v3344, %v2553
        %v3450 = vsel %vm3406, %v3345, %v2555
        %v3451 = vsel %vm3406, %v3346, %v2557
        %v3452 = vsel %vm3406, %v3347, %v2559
        %v3453 = vsel %vm3406, %v3348, %v2561
        %v3454 = vsel %vm3406, %v3349, %v2563
        %v3455 = vsel %vm3406, %v3350, %v2565
        %v3456 = vsel %vm3406, %v3351, %v2567
        %v3457 = vsel %vm3406, %v3352, %v2569
        %v3458 = vsel %vm3406, %v3353, %v2571
        %v3459 = vsel %vm3406, %v3354, %v2573
        %v3460 = vsel %vm3406, %v3355, %v2575
        %v3461 = vsel %vm3406, %v3356, %v2577
        %v3462 = vsel %vm3406, %v3357, %v2579
        %v3463 = vsel %vm3406, %v3358, %v2581
        %v3464 = vsel %vm3406, %v3359, %v2583
        %v3465 = vsel %vm3406, %v3360, %v2585
        %v3466 = vsel %vm3406, %v3361, %v2587
        %v3467 = vsel %vm3406, %v3362, %v2589
        %v3468 = vsel %vm3406, %v3363, %v2591
        %v3469 = vsel %vm3406, %v3364, %v2593
        %v3470 = vsel %vm3406, %v3365, %v2595
        %v3471 = vsel %vm3406, %v3366, %v2597
        %v3472 = vsel %vm3406, %v3367, %v2599
        %v3473 = vsel %vm3406, %v3368, %v2601
        %v3474 = vsel %vm3406, %v3369, %v2603
        %v3475 = vsel %vm3406, %v3370, %v2605
        %v3476 = vsel %vm3406, %v3371, %v2607
        %v3477 = vsel %vm3406, %v3372, %v2609
        %v3478 = vsel %vm3406, %v3373, %v2611
        %v3479 = vsel %vm3406, %v3374, %v2613
        %v3480 = vsel %vm3406, %v3375, %v2615
        %v3481 = vsel %vm3406, %v3376, %v2617
        %v3482 = vsel %vm3406, %v3377, %v2619
        %v3483 = vsel %vm3406, %v3378, %v2621
        %v3484 = vsel %vm3406, %v3379, %v2623
        %v3485 = vsel %vm3406, %v3380, %v2625
        %v3486 = vsel %vm3406, %v3381, %v2627
        %v3487 = vsel %vm3406, %v3382, %v2629
        %v3488 = vsel %vm3406, %v3383, %v2631
        %v3489 = vsel %vm3406, %v3384, %v2633
        %v3490 = vsel %vm3406, %v3385, %v2635
        %v3491 = vsel %vm3406, %v3386, %v2637
        %v3492 = vsel %vm3406, %v3387, %v2639
        %v3493 = vsel %vm3406, %v3388, %v2641
        %v3494 = vsel %vm3406, %v3389, %v2643
        %v3495 = vsel %vm3406, %v3390, %v2645
        %v3496 = vsel %vm3406, %v3391, %v2647
        %v3497 = vsel %vm3406, %v3392, %v2649
        %v3498 = vsel %vm3406, %v3393, %v2651
        %v3499 = vsel %vm3406, %v3394, %v2653
        %v3500 = vsel %vm3406, %v3395, %v2655
        %v3501 = vsel %vm3406, %v3396, %v2657
        %v3502 = vsel %vm3406, %v3397, %v2659
        %v3503 = vsel %vm3406, %v3398, %v2661
        %v3504 = vsel %vm3406, %v3399, %v2663
        %v3505 = vsel %vm3406, %v3400, %v2665
        %v3506 = vsel %vm3406, %v3401, %v2667
        %v3507 = vsel %vm3406, %v3402, %v2669
        %v3508 = vsel %vm3406, %v3403, %v2671
        %v3509 = vsel %vm3406, %v3404, %v2673
        %v3510 = vsel %vm3406, %v3405, %v2675
        %vm3511 = vcmask 1022976
        %v3512 = vsel %vm3511, %v3407, %v2781
        %v3513 = vsel %vm3511, %v3408, %v2783
        %v3514 = vsel %vm3511, %v3409, %v2785
        %v3515 = vsel %vm3511, %v3410, %v2787
        %v3516 = vsel %vm3511, %v3411, %v2789
        %v3517 = vsel %vm3511, %v3412, %v2791
        %v3518 = vsel %vm3511, %v3413, %v2793
        %v3519 = vsel %vm3511, %v3414, %v2795
        %v3520 = vsel %vm3511, %v3415, %v2797
        %v3521 = vsel %vm3511, %v3416, %v2799
        %v3522 = vsel %vm3511, %v3417, %v2801
        %v3523 = vsel %vm3511, %v3418, %v2803
        %v3524 = vsel %vm3511, %v3419, %v2805
        %v3525 = vsel %vm3511, %v3420, %v2807
        %v3526 = vsel %vm3511, %v3421, %v2809
        %v3527 = vsel %vm3511, %v3422, %v2811
        %v3528 = vsel %vm3511, %v3423, %v2813
        %v3529 = vsel %vm3511, %v3424, %v2815
        %v3530 = vsel %vm3511, %v3425, %v2817
        %v3531 = vsel %vm3511, %v3426, %v2819
        %v3532 = vsel %vm3511, %v3427, %v2821
        %v3533 = vsel %vm3511, %v3428, %v2823
        %v3534 = vsel %vm3511, %v3429, %v2825
        %v3535 = vsel %vm3511, %v3430, %v2827
        %v3536 = vsel %vm3511, %v3431, %v2829
        %v3537 = vsel %vm3511, %v3432, %v2831
        %v3538 = vsel %vm3511, %v3433, %v2833
        %v3539 = vsel %vm3511, %v3434, %v2835
        %v3540 = vsel %vm3511, %v3435, %v2837
        %v3541 = vsel %vm3511, %v3436, %v2839
        %v3542 = vsel %vm3511, %v3437, %v2841
        %v3543 = vsel %vm3511, %v3438, %v2843
        %v3544 = vsel %vm3511, %v3439, %v2845
        %v3545 = vsel %vm3511, %v3440, %v2847
        %v3546 = vsel %vm3511, %v3441, %v2849
        %v3547 = vsel %vm3511, %v3442, %v2851
        %v3548 = vsel %vm3511, %v3443, %v2853
        %v3549 = vsel %vm3511, %v3444, %v2855
        %v3550 = vsel %vm3511, %v3445, %v2857
        %v3551 = vsel %vm3511, %v3446, %v2859
        %v3552 = vsel %vm3511, %v3447, %v2861
        %v3553 = vsel %vm3511, %v3448, %v2863
        %v3554 = vsel %vm3511, %v3449, %v2865
        %v3555 = vsel %vm3511, %v3450, %v2867
        %v3556 = vsel %vm3511, %v3451, %v2869
        %v3557 = vsel %vm3511, %v3452, %v2871
        %v3558 = vsel %vm3511, %v3453, %v2873
        %v3559 = vsel %vm3511, %v3454, %v2875
        %v3560 = vsel %vm3511, %v3455, %v2877
        %v3561 = vsel %vm3511, %v3456, %v2879
        %v3562 = vsel %vm3511, %v3457, %v2881
        %v3563 = vsel %vm3511, %v3458, %v2883
        %v3564 = vsel %vm3511, %v3459, %v2885
        %v3565 = vsel %vm3511, %v3460, %v2887
        %v3566 = vsel %vm3511, %v3461, %v2889
        %v3567 = vsel %vm3511, %v3462, %v2891
        %v3568 = vsel %vm3511, %v3463, %v2893
        %v3569 = vsel %vm3511, %v3464, %v2895
        %v3570 = vsel %vm3511, %v3465, %v2897
        %v3571 = vsel %vm3511, %v3466, %v2899
        %v3572 = vsel %vm3511, %v3467, %v2901
        %v3573 = vsel %vm3511, %v3468, %v2903
        %v3574 = vsel %vm3511, %v3469, %v2905
        %v3575 = vsel %vm3511, %v3470, %v2907
        %v3576 = vsel %vm3511, %v3471, %v2909
        %v3577 = vsel %vm3511, %v3472, %v2911
        %v3578 = vsel %vm3511, %v3473, %v2913
        %v3579 = vsel %vm3511, %v3474, %v2915
        %v3580 = vsel %vm3511, %v3475, %v2917
        %v3581 = vsel %vm3511, %v3476, %v2919
        %v3582 = vsel %vm3511, %v3477, %v2921
        %v3583 = vsel %vm3511, %v3478, %v2923
        %v3584 = vsel %vm3511, %v3479, %v2925
        %v3585 = vsel %vm3511, %v3480, %v2927
        %v3586 = vsel %vm3511, %v3481, %v2929
        %v3587 = vsel %vm3511, %v3482, %v2931
        %v3588 = vsel %vm3511, %v3483, %v2933
        %v3589 = vsel %vm3511, %v3484, %v2935
        %v3590 = vsel %vm3511, %v3485, %v2937
        %v3591 = vsel %vm3511, %v3486, %v2939
        %v3592 = vsel %vm3511, %v3487, %v2941
        %v3593 = vsel %vm3511, %v3488, %v2943
        %v3594 = vsel %vm3511, %v3489, %v2945
        %v3595 = vsel %vm3511, %v3490, %v2947
        %v3596 = vsel %vm3511, %v3491, %v2949
        %v3597 = vsel %vm3511, %v3492, %v2951
        %v3598 = vsel %vm3511, %v3493, %v2953
        %v3599 = vsel %vm3511, %v3494, %v2955
        %v3600 = vsel %vm3511, %v3495, %v2957
        %v3601 = vsel %vm3511, %v3496, %v2959
        %v3602 = vsel %vm3511, %v3497, %v2961
        %v3603 = vsel %vm3511, %v3498, %v2963
        %v3604 = vsel %vm3511, %v3499, %v2965
        %v3605 = vsel %vm3511, %v3500, %v2967
        %v3606 = vsel %vm3511, %v3501, %v2969
        %v3607 = vsel %vm3511, %v3502, %v2971
        %v3608 = vsel %vm3511, %v3503, %v2973
        %v3609 = vsel %vm3511, %v3504, %v2975
        %v3610 = vsel %vm3511, %v3505, %v2977
        %v3611 = vsel %vm3511, %v3506, %v2979
        %v3612 = vsel %vm3511, %v3507, %v2981
        %v3613 = vsel %vm3511, %v3508, %v2983
        %v3614 = vsel %vm3511, %v3509, %v2985
        %v3615 = vsel %vm3511, %v3510, %v2987
        %v3616 = vmul.f32 %v3512, %v1220
        %v3617 = vmul.f32 %v2781, %v1221
        %v3618 = vmul.f32 %v3513, %v1222
        %v3619 = vmul.f32 %v2783, %v1223
        %v3620 = vmul.f32 %v3514, %v1224
        %v3621 = vmul.f32 %v2785, %v1225
        %v3622 = vmul.f32 %v3515, %v1226
        %v3623 = vmul.f32 %v2787, %v1227
        %v3624 = vmul.f32 %v3516, %v1228
        %v3625 = vmul.f32 %v2789, %v1229
        %v3626 = vmul.f32 %v3517, %v1230
        %v3627 = vmul.f32 %v2791, %v1231
        %v3628 = vmul.f32 %v3518, %v1232
        %v3629 = vmul.f32 %v2793, %v1233
        %v3630 = vmul.f32 %v3519, %v1234
        %v3631 = vmul.f32 %v2795, %v1235
        %v3632 = vmul.f32 %v3520, %v1236
        %v3633 = vmul.f32 %v2797, %v1237
        %v3634 = vmul.f32 %v3521, %v1238
        %v3635 = vmul.f32 %v2799, %v1239
        %v3636 = vmul.f32 %v3522, %v1240
        %v3637 = vmul.f32 %v2801, %v1241
        %v3638 = vmul.f32 %v3523, %v1242
        %v3639 = vmul.f32 %v2803, %v1243
        %v3640 = vmul.f32 %v3524, %v1244
        %v3641 = vmul.f32 %v2805, %v1245
        %v3642 = vmul.f32 %v3525, %v1246
        %v3643 = vmul.f32 %v2807, %v1247
        %v3644 = vmul.f32 %v3526, %v1248
        %v3645 = vmul.f32 %v2809, %v1249
        %v3646 = vmul.f32 %v3527, %v1250
        %v3647 = vmul.f32 %v2811, %v1251
        %v3648 = vmul.f32 %v3528, %v1252
        %v3649 = vmul.f32 %v2813, %v1253
        %v3650 = vmul.f32 %v3529, %v1254
        %v3651 = vmul.f32 %v2815, %v1255
        %v3652 = vmul.f32 %v3530, %v1256
        %v3653 = vmul.f32 %v2817, %v1257
        %v3654 = vmul.f32 %v3531, %v1258
        %v3655 = vmul.f32 %v2819, %v1259
        %v3656 = vmul.f32 %v3532, %v1260
        %v3657 = vmul.f32 %v2821, %v1261
        %v3658 = vmul.f32 %v3533, %v1262
        %v3659 = vmul.f32 %v2823, %v1263
        %v3660 = vmul.f32 %v3534, %v1264
        %v3661 = vmul.f32 %v2825, %v1265
        %v3662 = vmul.f32 %v3535, %v1266
        %v3663 = vmul.f32 %v2827, %v1267
        %v3664 = vmul.f32 %v3536, %v1268
        %v3665 = vmul.f32 %v2829, %v1269
        %v3666 = vmul.f32 %v3537, %v1270
        %v3667 = vmul.f32 %v2831, %v1271
        %v3668 = vmul.f32 %v3538, %v1272
        %v3669 = vmul.f32 %v2833, %v1273
        %v3670 = vmul.f32 %v3539, %v1274
        %v3671 = vmul.f32 %v2835, %v1275
        %v3672 = vmul.f32 %v3540, %v1276
        %v3673 = vmul.f32 %v2837, %v1277
        %v3674 = vmul.f32 %v3541, %v1278
        %v3675 = vmul.f32 %v2839, %v1279
        %v3676 = vmul.f32 %v3542, %v1280
        %v3677 = vmul.f32 %v2841, %v1281
        %v3678 = vmul.f32 %v3543, %v1282
        %v3679 = vmul.f32 %v2843, %v1283
        %v3680 = vmul.f32 %v3544, %v1284
        %v3681 = vmul.f32 %v2845, %v1285
        %v3682 = vmul.f32 %v3545, %v1286
        %v3683 = vmul.f32 %v2847, %v1287
        %v3684 = vmul.f32 %v3546, %v1288
        %v3685 = vmul.f32 %v2849, %v1289
        %v3686 = vmul.f32 %v3547, %v1290
        %v3687 = vmul.f32 %v2851, %v1291
        %v3688 = vmul.f32 %v3548, %v1292
        %v3689 = vmul.f32 %v2853, %v1293
        %v3690 = vmul.f32 %v3549, %v1294
        %v3691 = vmul.f32 %v2855, %v1295
        %v3692 = vmul.f32 %v3550, %v1296
        %v3693 = vmul.f32 %v2857, %v1297
        %v3694 = vmul.f32 %v3551, %v1298
        %v3695 = vmul.f32 %v2859, %v1299
        %v3696 = vmul.f32 %v3552, %v1300
        %v3697 = vmul.f32 %v2861, %v1301
        %v3698 = vmul.f32 %v3553, %v1302
        %v3699 = vmul.f32 %v2863, %v1303
        %v3700 = vmul.f32 %v3554, %v1304
        %v3701 = vmul.f32 %v2865, %v1305
        %v3702 = vmul.f32 %v3555, %v1306
        %v3703 = vmul.f32 %v2867, %v1307
        %v3704 = vmul.f32 %v3556, %v1308
        %v3705 = vmul.f32 %v2869, %v1309
        %v3706 = vmul.f32 %v3557, %v1310
        %v3707 = vmul.f32 %v2871, %v1311
        %v3708 = vmul.f32 %v3558, %v1312
        %v3709 = vmul.f32 %v2873, %v1313
        %v3710 = vmul.f32 %v3559, %v1314
        %v3711 = vmul.f32 %v2875, %v1315
        %v3712 = vmul.f32 %v3560, %v1316
        %v3713 = vmul.f32 %v2877, %v1317
        %v3714 = vmul.f32 %v3561, %v1318
        %v3715 = vmul.f32 %v2879, %v1319
        %v3716 = vmul.f32 %v3562, %v1320
        %v3717 = vmul.f32 %v2881, %v1321
        %v3718 = vmul.f32 %v3563, %v1322
        %v3719 = vmul.f32 %v2883, %v1323
        %v3720 = vmul.f32 %v3564, %v1324
        %v3721 = vmul.f32 %v2885, %v1325
        %v3722 = vmul.f32 %v3565, %v1326
        %v3723 = vmul.f32 %v2887, %v1327
        %v3724 = vmul.f32 %v3566, %v1328
        %v3725 = vmul.f32 %v2889, %v1329
        %v3726 = vmul.f32 %v3567, %v1330
        %v3727 = vmul.f32 %v2891, %v1331
        %v3728 = vmul.f32 %v3568, %v1332
        %v3729 = vmul.f32 %v2893, %v1333
        %v3730 = vmul.f32 %v3569, %v1334
        %v3731 = vmul.f32 %v2895, %v1335
        %v3732 = vmul.f32 %v3570, %v1336
        %v3733 = vmul.f32 %v2897, %v1337
        %v3734 = vmul.f32 %v3571, %v1338
        %v3735 = vmul.f32 %v2899, %v1339
        %v3736 = vmul.f32 %v3572, %v1340
        %v3737 = vmul.f32 %v2901, %v1341
        %v3738 = vmul.f32 %v3573, %v1342
        %v3739 = vmul.f32 %v2903, %v1343
        %v3740 = vmul.f32 %v3574, %v1344
        %v3741 = vmul.f32 %v2905, %v1345
        %v3742 = vmul.f32 %v3575, %v1346
        %v3743 = vmul.f32 %v2907, %v1347
        %v3744 = vmul.f32 %v3576, %v1348
        %v3745 = vmul.f32 %v2909, %v1349
        %v3746 = vmul.f32 %v3577, %v1350
        %v3747 = vmul.f32 %v2911, %v1351
        %v3748 = vmul.f32 %v3578, %v1352
        %v3749 = vmul.f32 %v2913, %v1353
        %v3750 = vmul.f32 %v3579, %v1354
        %v3751 = vmul.f32 %v2915, %v1355
        %v3752 = vmul.f32 %v3580, %v1356
        %v3753 = vmul.f32 %v2917, %v1357
        %v3754 = vmul.f32 %v3581, %v1358
        %v3755 = vmul.f32 %v2919, %v1359
        %v3756 = vmul.f32 %v3582, %v1360
        %v3757 = vmul.f32 %v2921, %v1361
        %v3758 = vmul.f32 %v3583, %v1362
        %v3759 = vmul.f32 %v2923, %v1363
        %v3760 = vmul.f32 %v3584, %v1364
        %v3761 = vmul.f32 %v2925, %v1365
        %v3762 = vmul.f32 %v3585, %v1366
        %v3763 = vmul.f32 %v2927, %v1367
        %v3764 = vmul.f32 %v3586, %v1368
        %v3765 = vmul.f32 %v2929, %v1369
        %v3766 = vmul.f32 %v3587, %v1370
        %v3767 = vmul.f32 %v2931, %v1371
        %v3768 = vmul.f32 %v3588, %v1372
        %v3769 = vmul.f32 %v2933, %v1373
        %v3770 = vmul.f32 %v3589, %v1374
        %v3771 = vmul.f32 %v2935, %v1375
        %v3772 = vmul.f32 %v3590, %v1376
        %v3773 = vmul.f32 %v2937, %v1377
        %v3774 = vmul.f32 %v3591, %v1378
        %v3775 = vmul.f32 %v2939, %v1379
        %v3776 = vmul.f32 %v3592, %v1380
        %v3777 = vmul.f32 %v2941, %v1381
        %v3778 = vmul.f32 %v3593, %v1382
        %v3779 = vmul.f32 %v2943, %v1383
        %v3780 = vmul.f32 %v3594, %v1384
        %v3781 = vmul.f32 %v2945, %v1385
        %v3782 = vmul.f32 %v3595, %v1386
        %v3783 = vmul.f32 %v2947, %v1387
        %v3784 = vmul.f32 %v3596, %v1388
        %v3785 = vmul.f32 %v2949, %v1389
        %v3786 = vmul.f32 %v3597, %v1390
        %v3787 = vmul.f32 %v2951, %v1391
        %v3788 = vmul.f32 %v3598, %v1392
        %v3789 = vmul.f32 %v2953, %v1393
        %v3790 = vmul.f32 %v3599, %v1394
        %v3791 = vmul.f32 %v2955, %v1395
        %v3792 = vmul.f32 %v3600, %v1396
        %v3793 = vmul.f32 %v2957, %v1397
        %v3794 = vmul.f32 %v3601, %v1398
        %v3795 = vmul.f32 %v2959, %v1399
        %v3796 = vmul.f32 %v3602, %v1400
        %v3797 = vmul.f32 %v2961, %v1401
        %v3798 = vmul.f32 %v3603, %v1402
        %v3799 = vmul.f32 %v2963, %v1403
        %v3800 = vmul.f32 %v3604, %v1404
        %v3801 = vmul.f32 %v2965, %v1405
        %v3802 = vmul.f32 %v3605, %v1406
        %v3803 = vmul.f32 %v2967, %v1407
        %v3804 = vmul.f32 %v3606, %v1408
        %v3805 = vmul.f32 %v2969, %v1409
        %v3806 = vmul.f32 %v3607, %v1410
        %v3807 = vmul.f32 %v2971, %v1411
        %v3808 = vmul.f32 %v3608, %v1412
        %v3809 = vmul.f32 %v2973, %v1413
        %v3810 = vmul.f32 %v3609, %v1414
        %v3811 = vmul.f32 %v2975, %v1415
        %v3812 = vmul.f32 %v3610, %v1416
        %v3813 = vmul.f32 %v2977, %v1417
        %v3814 = vmul.f32 %v3611, %v1418
        %v3815 = vmul.f32 %v2979, %v1419
        %v3816 = vmul.f32 %v3612, %v1420
        %v3817 = vmul.f32 %v2981, %v1421
        %v3818 = vmul.f32 %v3613, %v1422
        %v3819 = vmul.f32 %v2983, %v1423
        %v3820 = vmul.f32 %v3614, %v1424
        %v3821 = vmul.f32 %v2985, %v1425
        %v3822 = vmul.f32 %v3615, %v1426
        %v3823 = vmul.f32 %v2987, %v1427
        %v3824 = vlaneseq
        %v3825 = vshrl.u32 %v3824, 7
        %v3826 = vadd.s32 %v3825, 8
        %v3827 = vadd.s32 %v3825, 16
        %v3828 = vadd.s32 %v3825, 24
        %v3829 = vadd.s32 %v3825, 32
        %v3830 = vadd.s32 %v3825, 40
        %v3831 = vadd.s32 %v3825, 48
        %v3832 = vadd.s32 %v3825, 56
        %v3833 = vadd.s32 %v3825, 64
        %v3834 = vadd.s32 %v3825, 72
        %v3835 = vadd.s32 %v3825, 80
        %v3836 = vadd.s32 %v3825, 88
        %v3837 = vadd.s32 %v3825, 96
        %v3838 = vadd.s32 %v3825, 104
        %v3839 = vadd.s32 %v3825, 112
        %v3840 = vadd.s32 %v3825, 120
        %v3841 = vadd.s32 %v3825, 128
        %v3842 = vadd.s32 %v3825, 136
        %v3843 = vadd.s32 %v3825, 144
        %v3844 = vlaneseq
        %v3845 = vand.u32 %v3844, 127
        %v3846 = vmul.u32 %v3845, 25
        %vm3847 = vcmp.ge.s32.totalorder %v3825, %v3846
        %vm3848 = vcmp.ge.s32.totalorder %v3826, %v3846
        %vm3849 = vcmp.ge.s32.totalorder %v3827, %v3846
        %vm3850 = vcmp.ge.s32.totalorder %v3828, %v3846
        %vm3851 = vcmp.ge.s32.totalorder %v3829, %v3846
        %vm3852 = vcmp.ge.s32.totalorder %v3830, %v3846
        %vm3853 = vcmp.ge.s32.totalorder %v3831, %v3846
        %vm3854 = vcmp.ge.s32.totalorder %v3832, %v3846
        %vm3855 = vcmp.ge.s32.totalorder %v3833, %v3846
        %vm3856 = vcmp.ge.s32.totalorder %v3834, %v3846
        %vm3857 = vcmp.ge.s32.totalorder %v3835, %v3846
        %vm3858 = vcmp.ge.s32.totalorder %v3836, %v3846
        %vm3859 = vcmp.ge.s32.totalorder %v3837, %v3846
        %vm3860 = vcmp.ge.s32.totalorder %v3838, %v3846
        %vm3861 = vcmp.ge.s32.totalorder %v3839, %v3846
        %vm3862 = vcmp.ge.s32.totalorder %v3840, %v3846
        %vm3863 = vcmp.ge.s32.totalorder %v3841, %v3846
        %vm3864 = vcmp.ge.s32.totalorder %v3842, %v3846
        %vm3865 = vcmp.ge.s32.totalorder %v3843, %v3846
        %v3866 = vadd.s32 %v3846, 25
        %vm3867 = vcmp.lt.s32.totalorder %v3825, %v3866
        %vm3868 = vcmp.lt.s32.totalorder %v3826, %v3866
        %vm3869 = vcmp.lt.s32.totalorder %v3827, %v3866
        %vm3870 = vcmp.lt.s32.totalorder %v3828, %v3866
        %vm3871 = vcmp.lt.s32.totalorder %v3829, %v3866
        %vm3872 = vcmp.lt.s32.totalorder %v3830, %v3866
        %vm3873 = vcmp.lt.s32.totalorder %v3831, %v3866
        %vm3874 = vcmp.lt.s32.totalorder %v3832, %v3866
        %vm3875 = vcmp.lt.s32.totalorder %v3833, %v3866
        %vm3876 = vcmp.lt.s32.totalorder %v3834, %v3866
        %vm3877 = vcmp.lt.s32.totalorder %v3835, %v3866
        %vm3878 = vcmp.lt.s32.totalorder %v3836, %v3866
        %vm3879 = vcmp.lt.s32.totalorder %v3837, %v3866
        %vm3880 = vcmp.lt.s32.totalorder %v3838, %v3866
        %vm3881 = vcmp.lt.s32.totalorder %v3839, %v3866
        %vm3882 = vcmp.lt.s32.totalorder %v3840, %v3866
        %vm3883 = vcmp.lt.s32.totalorder %v3841, %v3866
        %vm3884 = vcmp.lt.s32.totalorder %v3842, %v3866
        %vm3885 = vcmp.lt.s32.totalorder %v3843, %v3866
        %vm3886 = vmand %vm3847, %vm3867
        %vm3887 = vmand %vm3848, %vm3868
        %vm3888 = vmand %vm3849, %vm3869
        %vm3889 = vmand %vm3850, %vm3870
        %vm3890 = vmand %vm3851, %vm3871
        %vm3891 = vmand %vm3852, %vm3872
        %vm3892 = vmand %vm3853, %vm3873
        %vm3893 = vmand %vm3854, %vm3874
        %vm3894 = vmand %vm3855, %vm3875
        %vm3895 = vmand %vm3856, %vm3876
        %vm3896 = vmand %vm3857, %vm3877
        %vm3897 = vmand %vm3858, %vm3878
        %vm3898 = vmand %vm3859, %vm3879
        %vm3899 = vmand %vm3860, %vm3880
        %vm3900 = vmand %vm3861, %vm3881
        %vm3901 = vmand %vm3862, %vm3882
        %vm3902 = vmand %vm3863, %vm3883
        %vm3903 = vmand %vm3864, %vm3884
        %vm3904 = vmand %vm3865, %vm3885
        %v3905 = vsel %vm3886, 1, 0
        %v3906 = vsel %vm3887, 1, 0
        %v3907 = vsel %vm3888, 1, 0
        %v3908 = vsel %vm3889, 1, 0
        %v3909 = vsel %vm3890, 1, 0
        %v3910 = vsel %vm3891, 1, 0
        %v3911 = vsel %vm3892, 1, 0
        %v3912 = vsel %vm3893, 1, 0
        %v3913 = vsel %vm3894, 1, 0
        %v3914 = vsel %vm3895, 1, 0
        %v3915 = vsel %vm3896, 1, 0
        %v3916 = vsel %vm3897, 1, 0
        %v3917 = vsel %vm3898, 1, 0
        %v3918 = vsel %vm3899, 1, 0
        %v3919 = vsel %vm3900, 1, 0
        %v3920 = vsel %vm3901, 1, 0
        %v3921 = vsel %vm3902, 1, 0
        %v3922 = vsel %vm3903, 1, 0
        %v3923 = vsel %vm3904, 1, 0
        %v3924 = vcvt.s32.f32 %v3905
        %v3925 = vcvt.s32.f32 %v3906
        %v3926 = vcvt.s32.f32 %v3907
        %v3927 = vcvt.s32.f32 %v3908
        %v3928 = vcvt.s32.f32 %v3909
        %v3929 = vcvt.s32.f32 %v3910
        %v3930 = vcvt.s32.f32 %v3911
        %v3931 = vcvt.s32.f32 %v3912
        %v3932 = vcvt.s32.f32 %v3913
        %v3933 = vcvt.s32.f32 %v3914
        %v3934 = vcvt.s32.f32 %v3915
        %v3935 = vcvt.s32.f32 %v3916
        %v3936 = vcvt.s32.f32 %v3917
        %v3937 = vcvt.s32.f32 %v3918
        %v3938 = vcvt.s32.f32 %v3919
        %v3939 = vcvt.s32.f32 %v3920
        %v3940 = vcvt.s32.f32 %v3921
        %v3941 = vcvt.s32.f32 %v3922
        %v3942 = vcvt.s32.f32 %v3923
        %vm3943 = vcmask 179200
        %v3945 = vsel %vm3943, %v3617, 0
        %v3948 = vsel %vm3943, %v3619, 0
        %v3951 = vsel %vm3943, %v3621, 0
        %v3954 = vsel %vm3943, %v3623, 0
        %v3957 = vsel %vm3943, %v3625, 0
        %v3960 = vsel %vm3943, %v3627, 0
        %v3963 = vsel %vm3943, %v3629, 0
        %v3966 = vsel %vm3943, %v3631, 0
        %v3969 = vsel %vm3943, %v3633, 0
        %v3972 = vsel %vm3943, %v3635, 0
        %v3975 = vsel %vm3943, %v3637, 0
        %v3978 = vsel %vm3943, %v3639, 0
        %v3981 = vsel %vm3943, %v3641, 0
        %v3984 = vsel %vm3943, %v3643, 0
        %v3987 = vsel %vm3943, %v3645, 0
        %v3990 = vsel %vm3943, %v3647, 0
        %v3993 = vsel %vm3943, %v3649, 0
        %v3996 = vsel %vm3943, %v3651, 0
        %v3999 = vsel %vm3943, %v3653, 0
        %v4002 = vsel %vm3943, %v3655, 0
        %v4005 = vsel %vm3943, %v3657, 0
        %v4008 = vsel %vm3943, %v3659, 0
        %v4011 = vsel %vm3943, %v3661, 0
        %v4014 = vsel %vm3943, %v3663, 0
        %v4017 = vsel %vm3943, %v3665, 0
        %v4020 = vsel %vm3943, %v3667, 0
        %v4023 = vsel %vm3943, %v3669, 0
        %v4026 = vsel %vm3943, %v3671, 0
        %v4029 = vsel %vm3943, %v3673, 0
        %v4032 = vsel %vm3943, %v3675, 0
        %v4035 = vsel %vm3943, %v3677, 0
        %v4038 = vsel %vm3943, %v3679, 0
        %v4041 = vsel %vm3943, %v3681, 0
        %v4044 = vsel %vm3943, %v3683, 0
        %v4047 = vsel %vm3943, %v3685, 0
        %v4050 = vsel %vm3943, %v3687, 0
        %v4053 = vsel %vm3943, %v3689, 0
        %v4056 = vsel %vm3943, %v3691, 0
        %v4059 = vsel %vm3943, %v3693, 0
        %v4062 = vsel %vm3943, %v3695, 0
        %v4065 = vsel %vm3943, %v3697, 0
        %v4068 = vsel %vm3943, %v3699, 0
        %v4071 = vsel %vm3943, %v3701, 0
        %v4074 = vsel %vm3943, %v3703, 0
        %v4077 = vsel %vm3943, %v3705, 0
        %v4080 = vsel %vm3943, %v3707, 0
        %v4083 = vsel %vm3943, %v3709, 0
        %v4086 = vsel %vm3943, %v3711, 0
        %v4089 = vsel %vm3943, %v3713, 0
        %v4092 = vsel %vm3943, %v3715, 0
        %v4095 = vsel %vm3943, %v3717, 0
        %v4098 = vsel %vm3943, %v3719, 0
        %v4101 = vsel %vm3943, %v3721, 0
        %v4104 = vsel %vm3943, %v3723, 0
        %v4107 = vsel %vm3943, %v3725, 0
        %v4110 = vsel %vm3943, %v3727, 0
        %v4113 = vsel %vm3943, %v3729, 0
        %v4116 = vsel %vm3943, %v3731, 0
        %v4119 = vsel %vm3943, %v3733, 0
        %v4122 = vsel %vm3943, %v3735, 0
        %v4125 = vsel %vm3943, %v3737, 0
        %v4128 = vsel %vm3943, %v3739, 0
        %v4131 = vsel %vm3943, %v3741, 0
        %v4134 = vsel %vm3943, %v3743, 0
        %v4137 = vsel %vm3943, %v3745, 0
        %v4140 = vsel %vm3943, %v3747, 0
        %v4143 = vsel %vm3943, %v3749, 0
        %v4146 = vsel %vm3943, %v3751, 0
        %v4149 = vsel %vm3943, %v3753, 0
        %v4152 = vsel %vm3943, %v3755, 0
        %v4155 = vsel %vm3943, %v3757, 0
        %v4158 = vsel %vm3943, %v3759, 0
        %v4161 = vsel %vm3943, %v3761, 0
        %v4164 = vsel %vm3943, %v3763, 0
        %v4167 = vsel %vm3943, %v3765, 0
        %v4170 = vsel %vm3943, %v3767, 0
        %v4173 = vsel %vm3943, %v3769, 0
        %v4176 = vsel %vm3943, %v3771, 0
        %v4179 = vsel %vm3943, %v3773, 0
        %v4182 = vsel %vm3943, %v3775, 0
        %v4185 = vsel %vm3943, %v3777, 0
        %v4188 = vsel %vm3943, %v3779, 0
        %v4191 = vsel %vm3943, %v3781, 0
        %v4194 = vsel %vm3943, %v3783, 0
        %v4197 = vsel %vm3943, %v3785, 0
        %v4200 = vsel %vm3943, %v3787, 0
        %v4203 = vsel %vm3943, %v3789, 0
        %v4206 = vsel %vm3943, %v3791, 0
        %v4209 = vsel %vm3943, %v3793, 0
        %v4212 = vsel %vm3943, %v3795, 0
        %v4215 = vsel %vm3943, %v3797, 0
        %v4218 = vsel %vm3943, %v3799, 0
        %v4221 = vsel %vm3943, %v3801, 0
        %v4224 = vsel %vm3943, %v3803, 0
        %v4227 = vsel %vm3943, %v3805, 0
        %v4230 = vsel %vm3943, %v3807, 0
        %v4233 = vsel %vm3943, %v3809, 0
        %v4236 = vsel %vm3943, %v3811, 0
        %v4239 = vsel %vm3943, %v3813, 0
        %v4242 = vsel %vm3943, %v3815, 0
        %v4245 = vsel %vm3943, %v3817, 0
        %v4248 = vsel %vm3943, %v3819, 0
        %v4251 = vsel %vm3943, %v3821, 0
        %v4254 = vsel %vm3943, %v3823, 0
        %vm4256 = vcmask 1045504
        %v4258 = vsel %vm4256, %v3942, 0
        %4260 = vmatpush.msra.mxu0 %v3939
        %4261 = vmatpush.msra.mxu0 %v3938
        %4262 = vmatpush.msra.mxu0 %v3937
        %4263 = vmatpush.msra.mxu0 %v3936
        %4264 = vmatpush.msra.mxu0 %v3935
        %4265 = vmatpush.msra.mxu0 %v3934
        %4266 = vmatpush.msra.mxu0 %v3933
        %4267 = vmatpush.msra.mxu0 %v3932
        %4268 = vmatpush.msra.mxu0 %v3931
        %4269 = vmatpush.msra.mxu0 %v3930
        %4270 = vmatpush.msra.mxu0 %v3929
        %4271 = vmatpush.msra.mxu0 %v3928
        %4272 = vmatpush.msra.mxu0 %v3927
        %4273 = vmatpush.msra.mxu0 %v3926
        %4274 = vmatpush.msra.mxu0 %v3925
        %4275 = vmatpush.msra.mxu0 %v3924
        %4276 = vmatmul.f32.gmra.mxu0 %v3616
        %v4277 = vpop.f32.mrf.mxu0
        %v4278 = vadd.f32 0.0, %v4277
        %4279 = vmatmul.f32.gmra.mxu0 %v3618
        %v4280 = vpop.f32.mrf.mxu0
        %v4281 = vadd.f32 0.0, %v4280
        %4282 = vmatmul.f32.gmra.mxu0 %v3620
        %v4283 = vpop.f32.mrf.mxu0
        %v4284 = vadd.f32 0.0, %v4283
        %4285 = vmatmul.f32.gmra.mxu0 %v3622
        %v4286 = vpop.f32.mrf.mxu0
        %v4287 = vadd.f32 0.0, %v4286
        %4288 = vmatmul.f32.gmra.mxu0 %v3624
        %v4289 = vpop.f32.mrf.mxu0
        %v4290 = vadd.f32 0.0, %v4289
        %4291 = vmatmul.f32.gmra.mxu0 %v3626
        %v4292 = vpop.f32.mrf.mxu0
        %v4293 = vadd.f32 0.0, %v4292
        %4294 = vmatmul.f32.gmra.mxu0 %v3628
        %v4295 = vpop.f32.mrf.mxu0
        %v4296 = vadd.f32 0.0, %v4295
        %4297 = vmatmul.f32.gmra.mxu0 %v3630
        %v4298 = vpop.f32.mrf.mxu0
        %v4299 = vadd.f32 0.0, %v4298
        %4300 = vmatmul.f32.gmra.mxu0 %v3632
        %v4301 = vpop.f32.mrf.mxu0
        %v4302 = vadd.f32 0.0, %v4301
        %4303 = vmatmul.f32.gmra.mxu0 %v3634
        %v4304 = vpop.f32.mrf.mxu0
        %v4305 = vadd.f32 0.0, %v4304
        %4306 = vmatmul.f32.gmra.mxu0 %v3636
        %v4307 = vpop.f32.mrf.mxu0
        %v4308 = vadd.f32 0.0, %v4307
        %4309 = vmatmul.f32.gmra.mxu0 %v3638
        %v4310 = vpop.f32.mrf.mxu0
        %v4311 = vadd.f32 0.0, %v4310
        %4312 = vmatmul.f32.gmra.mxu0 %v3640
        %v4313 = vpop.f32.mrf.mxu0
        %v4314 = vadd.f32 0.0, %v4313
        %4315 = vmatmul.f32.gmra.mxu0 %v3642
        %v4316 = vpop.f32.mrf.mxu0
        %v4317 = vadd.f32 0.0, %v4316
        %4318 = vmatmul.f32.gmra.mxu0 %v3644
        %v4319 = vpop.f32.mrf.mxu0
        %v4320 = vadd.f32 0.0, %v4319
        %4321 = vmatmul.f32.gmra.mxu0 %v3646
        %v4322 = vpop.f32.mrf.mxu0
        %v4323 = vadd.f32 0.0, %v4322
        %4324 = vmatmul.f32.gmra.mxu0 %v3648
        %v4325 = vpop.f32.mrf.mxu0
        %v4326 = vadd.f32 0.0, %v4325
        %4327 = vmatmul.f32.gmra.mxu0 %v3650
        %v4328 = vpop.f32.mrf.mxu0
        %v4329 = vadd.f32 0.0, %v4328
        %4330 = vmatmul.f32.gmra.mxu0 %v3652
        %v4331 = vpop.f32.mrf.mxu0
        %v4332 = vadd.f32 0.0, %v4331
        %4333 = vmatmul.f32.gmra.mxu0 %v3654
        %v4334 = vpop.f32.mrf.mxu0
        %v4335 = vadd.f32 0.0, %v4334
        %4336 = vmatmul.f32.gmra.mxu0 %v3656
        %v4337 = vpop.f32.mrf.mxu0
        %v4338 = vadd.f32 0.0, %v4337
        %4339 = vmatmul.f32.gmra.mxu0 %v3658
        %v4340 = vpop.f32.mrf.mxu0
        %v4341 = vadd.f32 0.0, %v4340
        %4342 = vmatmul.f32.gmra.mxu0 %v3660
        %v4343 = vpop.f32.mrf.mxu0
        %v4344 = vadd.f32 0.0, %v4343
        %4345 = vmatmul.f32.gmra.mxu0 %v3662
        %v4346 = vpop.f32.mrf.mxu0
        %v4347 = vadd.f32 0.0, %v4346
        %4348 = vmatmul.f32.gmra.mxu0 %v3664
        %v4349 = vpop.f32.mrf.mxu0
        %v4350 = vadd.f32 0.0, %v4349
        %4351 = vmatmul.f32.gmra.mxu0 %v3666
        %v4352 = vpop.f32.mrf.mxu0
        %4353 = vmatmul.f32.gmra.mxu0 %v3668
        %v4354 = vpop.f32.mrf.mxu0
        %v4355 = vadd.f32 0.0, %v4354
        %4356 = vmatmul.f32.gmra.mxu0 %v3670
        %v4357 = vpop.f32.mrf.mxu0
        %v4358 = vadd.f32 0.0, %v4357
        %4359 = vmatmul.f32.gmra.mxu0 %v3672
        %v4360 = vpop.f32.mrf.mxu0
        %v4361 = vadd.f32 0.0, %v4360
        %4362 = vmatmul.f32.gmra.mxu0 %v3674
        %v4363 = vpop.f32.mrf.mxu0
        %v4364 = vadd.f32 0.0, %v4363
        %4365 = vmatmul.f32.gmra.mxu0 %v3676
        %v4366 = vpop.f32.mrf.mxu0
        %v4367 = vadd.f32 0.0, %v4366
        %4368 = vmatmul.f32.gmra.mxu0 %v3678
        %v4369 = vpop.f32.mrf.mxu0
        %v4370 = vadd.f32 0.0, %v4369
        %4371 = vmatmul.f32.gmra.mxu0 %v3680
        %v4372 = vpop.f32.mrf.mxu0
        %v4373 = vadd.f32 0.0, %v4372
        %4374 = vmatmul.f32.gmra.mxu0 %v3682
        %v4375 = vpop.f32.mrf.mxu0
        %v4376 = vadd.f32 0.0, %v4375
        %4377 = vmatmul.f32.gmra.mxu0 %v3684
        %v4378 = vpop.f32.mrf.mxu0
        %v4379 = vadd.f32 0.0, %v4378
        %4380 = vmatmul.f32.gmra.mxu0 %v3686
        %v4381 = vpop.f32.mrf.mxu0
        %v4382 = vadd.f32 0.0, %v4381
        %4383 = vmatmul.f32.gmra.mxu0 %v3688
        %v4384 = vpop.f32.mrf.mxu0
        %v4385 = vadd.f32 0.0, %v4384
        %4386 = vmatmul.f32.gmra.mxu0 %v3690
        %v4387 = vpop.f32.mrf.mxu0
        %v4388 = vadd.f32 0.0, %v4387
        %4389 = vmatmul.f32.gmra.mxu0 %v3692
        %v4390 = vpop.f32.mrf.mxu0
        %v4391 = vadd.f32 0.0, %v4390
        %4392 = vmatmul.f32.gmra.mxu0 %v3694
        %v4393 = vpop.f32.mrf.mxu0
        %v4394 = vadd.f32 0.0, %v4393
        %4395 = vmatmul.f32.gmra.mxu0 %v3696
        %v4396 = vpop.f32.mrf.mxu0
        %v4397 = vadd.f32 0.0, %v4396
        %4398 = vmatmul.f32.gmra.mxu0 %v3698
        %v4399 = vpop.f32.mrf.mxu0
        %v4400 = vadd.f32 0.0, %v4399
        %4401 = vmatmul.f32.gmra.mxu0 %v3700
        %v4402 = vpop.f32.mrf.mxu0
        %v4403 = vadd.f32 0.0, %v4402
        %4404 = vmatmul.f32.gmra.mxu0 %v3702
        %v4405 = vpop.f32.mrf.mxu0
        %v4406 = vadd.f32 0.0, %v4405
        %4407 = vmatmul.f32.gmra.mxu0 %v3704
        %v4408 = vpop.f32.mrf.mxu0
        %v4409 = vadd.f32 0.0, %v4408
        %4410 = vmatmul.f32.gmra.mxu0 %v3706
        %v4411 = vpop.f32.mrf.mxu0
        %v4412 = vadd.f32 0.0, %v4411
        %4413 = vmatmul.f32.gmra.mxu0 %v3708
        %v4414 = vpop.f32.mrf.mxu0
        %v4415 = vadd.f32 0.0, %v4414
        %4416 = vmatmul.f32.gmra.mxu0 %v3710
        %v4417 = vpop.f32.mrf.mxu0
        %v4418 = vadd.f32 0.0, %v4417
        %4419 = vmatmul.f32.gmra.mxu0 %v3712
        %v4420 = vpop.f32.mrf.mxu0
        %v4421 = vadd.f32 0.0, %v4420
        %4422 = vmatmul.f32.gmra.mxu0 %v3714
        %v4423 = vpop.f32.mrf.mxu0
        %v4424 = vadd.f32 0.0, %v4423
        %4425 = vmatmul.f32.gmra.mxu0 %v3716
        %v4426 = vpop.f32.mrf.mxu0
        %v4427 = vadd.f32 0.0, %v4426
        %4428 = vmatmul.f32.gmra.mxu0 %v3718
        %v4429 = vpop.f32.mrf.mxu0
        %4430 = vmatmul.f32.gmra.mxu0 %v3720
        %v4431 = vpop.f32.mrf.mxu0
        %v4432 = vadd.f32 0.0, %v4431
        %4433 = vmatmul.f32.gmra.mxu0 %v3722
        %v4434 = vpop.f32.mrf.mxu0
        %v4435 = vadd.f32 0.0, %v4434
        %4436 = vmatmul.f32.gmra.mxu0 %v3724
        %v4437 = vpop.f32.mrf.mxu0
        %v4438 = vadd.f32 0.0, %v4437
        %4439 = vmatmul.f32.gmra.mxu0 %v3726
        %v4440 = vpop.f32.mrf.mxu0
        %v4441 = vadd.f32 0.0, %v4440
        %4442 = vmatmul.f32.gmra.mxu0 %v3728
        %v4443 = vpop.f32.mrf.mxu0
        %v4444 = vadd.f32 0.0, %v4443
        %4445 = vmatmul.f32.gmra.mxu0 %v3730
        %v4446 = vpop.f32.mrf.mxu0
        %v4447 = vadd.f32 0.0, %v4446
        %4448 = vmatmul.f32.gmra.mxu0 %v3732
        %v4449 = vpop.f32.mrf.mxu0
        %v4450 = vadd.f32 0.0, %v4449
        %4451 = vmatmul.f32.gmra.mxu0 %v3734
        %v4452 = vpop.f32.mrf.mxu0
        %v4453 = vadd.f32 0.0, %v4452
        %4454 = vmatmul.f32.gmra.mxu0 %v3736
        %v4455 = vpop.f32.mrf.mxu0
        %v4456 = vadd.f32 0.0, %v4455
        %4457 = vmatmul.f32.gmra.mxu0 %v3738
        %v4458 = vpop.f32.mrf.mxu0
        %v4459 = vadd.f32 0.0, %v4458
        %4460 = vmatmul.f32.gmra.mxu0 %v3740
        %v4461 = vpop.f32.mrf.mxu0
        %v4462 = vadd.f32 0.0, %v4461
        %4463 = vmatmul.f32.gmra.mxu0 %v3742
        %v4464 = vpop.f32.mrf.mxu0
        %v4465 = vadd.f32 0.0, %v4464
        %4466 = vmatmul.f32.gmra.mxu0 %v3744
        %v4467 = vpop.f32.mrf.mxu0
        %v4468 = vadd.f32 0.0, %v4467
        %4469 = vmatmul.f32.gmra.mxu0 %v3746
        %v4470 = vpop.f32.mrf.mxu0
        %v4471 = vadd.f32 0.0, %v4470
        %4472 = vmatmul.f32.gmra.mxu0 %v3748
        %v4473 = vpop.f32.mrf.mxu0
        %v4474 = vadd.f32 0.0, %v4473
        %4475 = vmatmul.f32.gmra.mxu0 %v3750
        %v4476 = vpop.f32.mrf.mxu0
        %v4477 = vadd.f32 0.0, %v4476
        %4478 = vmatmul.f32.gmra.mxu0 %v3752
        %v4479 = vpop.f32.mrf.mxu0
        %v4480 = vadd.f32 0.0, %v4479
        %4481 = vmatmul.f32.gmra.mxu0 %v3754
        %v4482 = vpop.f32.mrf.mxu0
        %v4483 = vadd.f32 0.0, %v4482
        %4484 = vmatmul.f32.gmra.mxu0 %v3756
        %v4485 = vpop.f32.mrf.mxu0
        %v4486 = vadd.f32 0.0, %v4485
        %4487 = vmatmul.f32.gmra.mxu0 %v3758
        %v4488 = vpop.f32.mrf.mxu0
        %v4489 = vadd.f32 0.0, %v4488
        %4490 = vmatmul.f32.gmra.mxu0 %v3760
        %v4491 = vpop.f32.mrf.mxu0
        %v4492 = vadd.f32 0.0, %v4491
        %4493 = vmatmul.f32.gmra.mxu0 %v3762
        %v4494 = vpop.f32.mrf.mxu0
        %v4495 = vadd.f32 0.0, %v4494
        %4496 = vmatmul.f32.gmra.mxu0 %v3764
        %v4497 = vpop.f32.mrf.mxu0
        %v4498 = vadd.f32 0.0, %v4497
        %4499 = vmatmul.f32.gmra.mxu0 %v3766
        %v4500 = vpop.f32.mrf.mxu0
        %v4501 = vadd.f32 0.0, %v4500
        %4502 = vmatmul.f32.gmra.mxu0 %v3768
        %v4503 = vpop.f32.mrf.mxu0
        %v4504 = vadd.f32 0.0, %v4503
        %4505 = vmatmul.f32.gmra.mxu0 %v3770
        %v4506 = vpop.f32.mrf.mxu0
        %4507 = vmatmul.f32.gmra.mxu0 %v3772
        %v4508 = vpop.f32.mrf.mxu0
        %v4509 = vadd.f32 0.0, %v4508
        %4510 = vmatmul.f32.gmra.mxu0 %v3774
        %v4511 = vpop.f32.mrf.mxu0
        %v4512 = vadd.f32 0.0, %v4511
        %4513 = vmatmul.f32.gmra.mxu0 %v3776
        %v4514 = vpop.f32.mrf.mxu0
        %v4515 = vadd.f32 0.0, %v4514
        %4516 = vmatmul.f32.gmra.mxu0 %v3778
        %v4517 = vpop.f32.mrf.mxu0
        %v4518 = vadd.f32 0.0, %v4517
        %4519 = vmatmul.f32.gmra.mxu0 %v3780
        %v4520 = vpop.f32.mrf.mxu0
        %v4521 = vadd.f32 0.0, %v4520
        %4522 = vmatmul.f32.gmra.mxu0 %v3782
        %v4523 = vpop.f32.mrf.mxu0
        %v4524 = vadd.f32 0.0, %v4523
        %4525 = vmatmul.f32.gmra.mxu0 %v3784
        %v4526 = vpop.f32.mrf.mxu0
        %v4527 = vadd.f32 0.0, %v4526
        %4528 = vmatmul.f32.gmra.mxu0 %v3786
        %v4529 = vpop.f32.mrf.mxu0
        %v4530 = vadd.f32 0.0, %v4529
        %4531 = vmatmul.f32.gmra.mxu0 %v3788
        %v4532 = vpop.f32.mrf.mxu0
        %v4533 = vadd.f32 0.0, %v4532
        %4534 = vmatmul.f32.gmra.mxu0 %v3790
        %v4535 = vpop.f32.mrf.mxu0
        %v4536 = vadd.f32 0.0, %v4535
        %4537 = vmatmul.f32.gmra.mxu0 %v3792
        %v4538 = vpop.f32.mrf.mxu0
        %v4539 = vadd.f32 0.0, %v4538
        %4540 = vmatmul.f32.gmra.mxu0 %v3794
        %v4541 = vpop.f32.mrf.mxu0
        %v4542 = vadd.f32 0.0, %v4541
        %4543 = vmatmul.f32.gmra.mxu0 %v3796
        %v4544 = vpop.f32.mrf.mxu0
        %v4545 = vadd.f32 0.0, %v4544
        %4546 = vmatmul.f32.gmra.mxu0 %v3798
        %v4547 = vpop.f32.mrf.mxu0
        %v4548 = vadd.f32 0.0, %v4547
        %4549 = vmatmul.f32.gmra.mxu0 %v3800
        %v4550 = vpop.f32.mrf.mxu0
        %v4551 = vadd.f32 0.0, %v4550
        %4552 = vmatmul.f32.gmra.mxu0 %v3802
        %v4553 = vpop.f32.mrf.mxu0
        %v4554 = vadd.f32 0.0, %v4553
        %4555 = vmatmul.f32.gmra.mxu0 %v3804
        %v4556 = vpop.f32.mrf.mxu0
        %v4557 = vadd.f32 0.0, %v4556
        %4558 = vmatmul.f32.gmra.mxu0 %v3806
        %v4559 = vpop.f32.mrf.mxu0
        %v4560 = vadd.f32 0.0, %v4559
        %4561 = vmatmul.f32.gmra.mxu0 %v3808
        %v4562 = vpop.f32.mrf.mxu0
        %v4563 = vadd.f32 0.0, %v4562
        %4564 = vmatmul.f32.gmra.mxu0 %v3810
        %v4565 = vpop.f32.mrf.mxu0
        %v4566 = vadd.f32 0.0, %v4565
        %4567 = vmatmul.f32.gmra.mxu0 %v3812
        %v4568 = vpop.f32.mrf.mxu0
        %v4569 = vadd.f32 0.0, %v4568
        %4570 = vmatmul.f32.gmra.mxu0 %v3814
        %v4571 = vpop.f32.mrf.mxu0
        %v4572 = vadd.f32 0.0, %v4571
        %4573 = vmatmul.f32.gmra.mxu0 %v3816
        %v4574 = vpop.f32.mrf.mxu0
        %v4575 = vadd.f32 0.0, %v4574
        %4576 = vmatmul.f32.gmra.mxu0 %v3818
        %v4577 = vpop.f32.mrf.mxu0
        %v4578 = vadd.f32 0.0, %v4577
        %4579 = vmatmul.f32.gmra.mxu0 %v3820
        %v4580 = vpop.f32.mrf.mxu0
        %v4581 = vadd.f32 0.0, %v4580
        %4582 = vmatmul.f32.gmra.mxu0 %v3822
        %v4583 = vpop.f32.mrf.mxu0
        %4584 = vdwg.mxu0
        %4585 = vmatpush.msra.mxu0 0.0
        %4586 = vmatpush.msra.mxu0 0.0
        %4587 = vmatpush.msra.mxu0 0.0
        %4588 = vmatpush.msra.mxu0 0.0
        %4589 = vmatpush.msra.mxu0 0.0
        %4590 = vmatpush.msra.mxu0 0.0
        %4591 = vmatpush.msra.mxu0 0.0
        %4592 = vmatpush.msra.mxu0 0.0
        %4593 = vmatpush.msra.mxu0 0.0
        %4594 = vmatpush.msra.mxu0 0.0
        %4595 = vmatpush.msra.mxu0 0.0
        %4596 = vmatpush.msra.mxu0 0.0
        %4597 = vmatpush.msra.mxu0 0.0
        %4598 = vmatpush.msra.mxu0 %v4258
        %4599 = vmatpush.msra.mxu0 %v3941
        %4600 = vmatpush.msra.mxu0 %v3940
        %4601 = vmatmul.f32.gmra.mxu0 %v3945
        %v4602 = vpop.f32.mrf.mxu0
        %v4603 = vadd.f32 %v4278, %v4602
        %4604 = vmatmul.f32.gmra.mxu0 %v3948
        %v4605 = vpop.f32.mrf.mxu0
        %v4606 = vadd.f32 %v4281, %v4605
        %4607 = vmatmul.f32.gmra.mxu0 %v3951
        %v4608 = vpop.f32.mrf.mxu0
        %v4609 = vadd.f32 %v4284, %v4608
        %4610 = vmatmul.f32.gmra.mxu0 %v3954
        %v4611 = vpop.f32.mrf.mxu0
        %v4612 = vadd.f32 %v4287, %v4611
        %4613 = vmatmul.f32.gmra.mxu0 %v3957
        %v4614 = vpop.f32.mrf.mxu0
        %v4615 = vadd.f32 %v4290, %v4614
        %4616 = vmatmul.f32.gmra.mxu0 %v3960
        %v4617 = vpop.f32.mrf.mxu0
        %v4618 = vadd.f32 %v4293, %v4617
        %4619 = vmatmul.f32.gmra.mxu0 %v3963
        %v4620 = vpop.f32.mrf.mxu0
        %v4621 = vadd.f32 %v4296, %v4620
        %4622 = vmatmul.f32.gmra.mxu0 %v3966
        %v4623 = vpop.f32.mrf.mxu0
        %v4624 = vadd.f32 %v4299, %v4623
        %4625 = vmatmul.f32.gmra.mxu0 %v3969
        %v4626 = vpop.f32.mrf.mxu0
        %v4627 = vadd.f32 %v4302, %v4626
        %4628 = vmatmul.f32.gmra.mxu0 %v3972
        %v4629 = vpop.f32.mrf.mxu0
        %v4630 = vadd.f32 %v4305, %v4629
        %4631 = vmatmul.f32.gmra.mxu0 %v3975
        %v4632 = vpop.f32.mrf.mxu0
        %v4633 = vadd.f32 %v4308, %v4632
        %4634 = vmatmul.f32.gmra.mxu0 %v3978
        %v4635 = vpop.f32.mrf.mxu0
        %v4636 = vadd.f32 %v4311, %v4635
        %4637 = vmatmul.f32.gmra.mxu0 %v3981
        %v4638 = vpop.f32.mrf.mxu0
        %v4639 = vadd.f32 %v4314, %v4638
        %4640 = vmatmul.f32.gmra.mxu0 %v3984
        %v4641 = vpop.f32.mrf.mxu0
        %v4642 = vadd.f32 %v4317, %v4641
        %4643 = vmatmul.f32.gmra.mxu0 %v3987
        %v4644 = vpop.f32.mrf.mxu0
        %v4645 = vadd.f32 %v4320, %v4644
        %4646 = vmatmul.f32.gmra.mxu0 %v3990
        %v4647 = vpop.f32.mrf.mxu0
        %v4648 = vadd.f32 %v4323, %v4647
        %4649 = vmatmul.f32.gmra.mxu0 %v3993
        %v4650 = vpop.f32.mrf.mxu0
        %v4651 = vadd.f32 %v4326, %v4650
        %4652 = vmatmul.f32.gmra.mxu0 %v3996
        %v4653 = vpop.f32.mrf.mxu0
        %v4654 = vadd.f32 %v4329, %v4653
        %4655 = vmatmul.f32.gmra.mxu0 %v3999
        %v4656 = vpop.f32.mrf.mxu0
        %v4657 = vadd.f32 %v4332, %v4656
        %4658 = vmatmul.f32.gmra.mxu0 %v4002
        %v4659 = vpop.f32.mrf.mxu0
        %v4660 = vadd.f32 %v4335, %v4659
        %4661 = vmatmul.f32.gmra.mxu0 %v4005
        %v4662 = vpop.f32.mrf.mxu0
        %v4663 = vadd.f32 %v4338, %v4662
        %4664 = vmatmul.f32.gmra.mxu0 %v4008
        %v4665 = vpop.f32.mrf.mxu0
        %v4666 = vadd.f32 %v4341, %v4665
        %4667 = vmatmul.f32.gmra.mxu0 %v4011
        %v4668 = vpop.f32.mrf.mxu0
        %v4669 = vadd.f32 %v4344, %v4668
        %4670 = vmatmul.f32.gmra.mxu0 %v4014
        %v4671 = vpop.f32.mrf.mxu0
        %v4672 = vadd.f32 %v4347, %v4671
        %4673 = vmatmul.f32.gmra.mxu0 %v4017
        %v4674 = vpop.f32.mrf.mxu0
        %v4675 = vadd.f32 %v4350, %v4674
        %4676 = vmatmul.f32.gmra.mxu0 %v4020
        %v4677 = vpop.f32.mrf.mxu0
        %4678 = vmatmul.f32.gmra.mxu0 %v4023
        %v4679 = vpop.f32.mrf.mxu0
        %v4680 = vadd.f32 %v4355, %v4679
        %4681 = vmatmul.f32.gmra.mxu0 %v4026
        %v4682 = vpop.f32.mrf.mxu0
        %v4683 = vadd.f32 %v4358, %v4682
        %4684 = vmatmul.f32.gmra.mxu0 %v4029
        %v4685 = vpop.f32.mrf.mxu0
        %v4686 = vadd.f32 %v4361, %v4685
        %4687 = vmatmul.f32.gmra.mxu0 %v4032
        %v4688 = vpop.f32.mrf.mxu0
        %v4689 = vadd.f32 %v4364, %v4688
        %4690 = vmatmul.f32.gmra.mxu0 %v4035
        %v4691 = vpop.f32.mrf.mxu0
        %v4692 = vadd.f32 %v4367, %v4691
        %4693 = vmatmul.f32.gmra.mxu0 %v4038
        %v4694 = vpop.f32.mrf.mxu0
        %v4695 = vadd.f32 %v4370, %v4694
        %4696 = vmatmul.f32.gmra.mxu0 %v4041
        %v4697 = vpop.f32.mrf.mxu0
        %v4698 = vadd.f32 %v4373, %v4697
        %4699 = vmatmul.f32.gmra.mxu0 %v4044
        %v4700 = vpop.f32.mrf.mxu0
        %v4701 = vadd.f32 %v4376, %v4700
        %4702 = vmatmul.f32.gmra.mxu0 %v4047
        %v4703 = vpop.f32.mrf.mxu0
        %v4704 = vadd.f32 %v4379, %v4703
        %4705 = vmatmul.f32.gmra.mxu0 %v4050
        %v4706 = vpop.f32.mrf.mxu0
        %v4707 = vadd.f32 %v4382, %v4706
        %4708 = vmatmul.f32.gmra.mxu0 %v4053
        %v4709 = vpop.f32.mrf.mxu0
        %v4710 = vadd.f32 %v4385, %v4709
        %4711 = vmatmul.f32.gmra.mxu0 %v4056
        %v4712 = vpop.f32.mrf.mxu0
        %v4713 = vadd.f32 %v4388, %v4712
        %4714 = vmatmul.f32.gmra.mxu0 %v4059
        %v4715 = vpop.f32.mrf.mxu0
        %v4716 = vadd.f32 %v4391, %v4715
        %4717 = vmatmul.f32.gmra.mxu0 %v4062
        %v4718 = vpop.f32.mrf.mxu0
        %v4719 = vadd.f32 %v4394, %v4718
        %4720 = vmatmul.f32.gmra.mxu0 %v4065
        %v4721 = vpop.f32.mrf.mxu0
        %v4722 = vadd.f32 %v4397, %v4721
        %4723 = vmatmul.f32.gmra.mxu0 %v4068
        %v4724 = vpop.f32.mrf.mxu0
        %v4725 = vadd.f32 %v4400, %v4724
        %4726 = vmatmul.f32.gmra.mxu0 %v4071
        %v4727 = vpop.f32.mrf.mxu0
        %v4728 = vadd.f32 %v4403, %v4727
        %4729 = vmatmul.f32.gmra.mxu0 %v4074
        %v4730 = vpop.f32.mrf.mxu0
        %v4731 = vadd.f32 %v4406, %v4730
        %4732 = vmatmul.f32.gmra.mxu0 %v4077
        %v4733 = vpop.f32.mrf.mxu0
        %v4734 = vadd.f32 %v4409, %v4733
        %4735 = vmatmul.f32.gmra.mxu0 %v4080
        %v4736 = vpop.f32.mrf.mxu0
        %v4737 = vadd.f32 %v4412, %v4736
        %4738 = vmatmul.f32.gmra.mxu0 %v4083
        %v4739 = vpop.f32.mrf.mxu0
        %v4740 = vadd.f32 %v4415, %v4739
        %4741 = vmatmul.f32.gmra.mxu0 %v4086
        %v4742 = vpop.f32.mrf.mxu0
        %v4743 = vadd.f32 %v4418, %v4742
        %4744 = vmatmul.f32.gmra.mxu0 %v4089
        %v4745 = vpop.f32.mrf.mxu0
        %v4746 = vadd.f32 %v4421, %v4745
        %4747 = vmatmul.f32.gmra.mxu0 %v4092
        %v4748 = vpop.f32.mrf.mxu0
        %v4749 = vadd.f32 %v4424, %v4748
        %4750 = vmatmul.f32.gmra.mxu0 %v4095
        %v4751 = vpop.f32.mrf.mxu0
        %v4752 = vadd.f32 %v4427, %v4751
        %4753 = vmatmul.f32.gmra.mxu0 %v4098
        %v4754 = vpop.f32.mrf.mxu0
        %4755 = vmatmul.f32.gmra.mxu0 %v4101
        %v4756 = vpop.f32.mrf.mxu0
        %v4757 = vadd.f32 %v4432, %v4756
        %4758 = vmatmul.f32.gmra.mxu0 %v4104
        %v4759 = vpop.f32.mrf.mxu0
        %v4760 = vadd.f32 %v4435, %v4759
        %4761 = vmatmul.f32.gmra.mxu0 %v4107
        %v4762 = vpop.f32.mrf.mxu0
        %v4763 = vadd.f32 %v4438, %v4762
        %4764 = vmatmul.f32.gmra.mxu0 %v4110
        %v4765 = vpop.f32.mrf.mxu0
        %v4766 = vadd.f32 %v4441, %v4765
        %4767 = vmatmul.f32.gmra.mxu0 %v4113
        %v4768 = vpop.f32.mrf.mxu0
        %v4769 = vadd.f32 %v4444, %v4768
        %4770 = vmatmul.f32.gmra.mxu0 %v4116
        %v4771 = vpop.f32.mrf.mxu0
        %v4772 = vadd.f32 %v4447, %v4771
        %4773 = vmatmul.f32.gmra.mxu0 %v4119
        %v4774 = vpop.f32.mrf.mxu0
        %v4775 = vadd.f32 %v4450, %v4774
        %4776 = vmatmul.f32.gmra.mxu0 %v4122
        %v4777 = vpop.f32.mrf.mxu0
        %v4778 = vadd.f32 %v4453, %v4777
        %4779 = vmatmul.f32.gmra.mxu0 %v4125
        %v4780 = vpop.f32.mrf.mxu0
        %v4781 = vadd.f32 %v4456, %v4780
        %4782 = vmatmul.f32.gmra.mxu0 %v4128
        %v4783 = vpop.f32.mrf.mxu0
        %v4784 = vadd.f32 %v4459, %v4783
        %4785 = vmatmul.f32.gmra.mxu0 %v4131
        %v4786 = vpop.f32.mrf.mxu0
        %v4787 = vadd.f32 %v4462, %v4786
        %4788 = vmatmul.f32.gmra.mxu0 %v4134
        %v4789 = vpop.f32.mrf.mxu0
        %v4790 = vadd.f32 %v4465, %v4789
        %4791 = vmatmul.f32.gmra.mxu0 %v4137
        %v4792 = vpop.f32.mrf.mxu0
        %v4793 = vadd.f32 %v4468, %v4792
        %4794 = vmatmul.f32.gmra.mxu0 %v4140
        %v4795 = vpop.f32.mrf.mxu0
        %v4796 = vadd.f32 %v4471, %v4795
        %4797 = vmatmul.f32.gmra.mxu0 %v4143
        %v4798 = vpop.f32.mrf.mxu0
        %v4799 = vadd.f32 %v4474, %v4798
        %4800 = vmatmul.f32.gmra.mxu0 %v4146
        %v4801 = vpop.f32.mrf.mxu0
        %v4802 = vadd.f32 %v4477, %v4801
        %4803 = vmatmul.f32.gmra.mxu0 %v4149
        %v4804 = vpop.f32.mrf.mxu0
        %v4805 = vadd.f32 %v4480, %v4804
        %4806 = vmatmul.f32.gmra.mxu0 %v4152
        %v4807 = vpop.f32.mrf.mxu0
        %v4808 = vadd.f32 %v4483, %v4807
        %4809 = vmatmul.f32.gmra.mxu0 %v4155
        %v4810 = vpop.f32.mrf.mxu0
        %v4811 = vadd.f32 %v4486, %v4810
        %4812 = vmatmul.f32.gmra.mxu0 %v4158
        %v4813 = vpop.f32.mrf.mxu0
        %v4814 = vadd.f32 %v4489, %v4813
        %4815 = vmatmul.f32.gmra.mxu0 %v4161
        %v4816 = vpop.f32.mrf.mxu0
        %v4817 = vadd.f32 %v4492, %v4816
        %4818 = vmatmul.f32.gmra.mxu0 %v4164
        %v4819 = vpop.f32.mrf.mxu0
        %v4820 = vadd.f32 %v4495, %v4819
        %4821 = vmatmul.f32.gmra.mxu0 %v4167
        %v4822 = vpop.f32.mrf.mxu0
        %v4823 = vadd.f32 %v4498, %v4822
        %4824 = vmatmul.f32.gmra.mxu0 %v4170
        %v4825 = vpop.f32.mrf.mxu0
        %v4826 = vadd.f32 %v4501, %v4825
        %4827 = vmatmul.f32.gmra.mxu0 %v4173
        %v4828 = vpop.f32.mrf.mxu0
        %v4829 = vadd.f32 %v4504, %v4828
        %4830 = vmatmul.f32.gmra.mxu0 %v4176
        %v4831 = vpop.f32.mrf.mxu0
        %4832 = vmatmul.f32.gmra.mxu0 %v4179
        %v4833 = vpop.f32.mrf.mxu0
        %v4834 = vadd.f32 %v4509, %v4833
        %4835 = vmatmul.f32.gmra.mxu0 %v4182
        %v4836 = vpop.f32.mrf.mxu0
        %v4837 = vadd.f32 %v4512, %v4836
        %4838 = vmatmul.f32.gmra.mxu0 %v4185
        %v4839 = vpop.f32.mrf.mxu0
        %v4840 = vadd.f32 %v4515, %v4839
        %4841 = vmatmul.f32.gmra.mxu0 %v4188
        %v4842 = vpop.f32.mrf.mxu0
        %v4843 = vadd.f32 %v4518, %v4842
        %4844 = vmatmul.f32.gmra.mxu0 %v4191
        %v4845 = vpop.f32.mrf.mxu0
        %v4846 = vadd.f32 %v4521, %v4845
        %4847 = vmatmul.f32.gmra.mxu0 %v4194
        %v4848 = vpop.f32.mrf.mxu0
        %v4849 = vadd.f32 %v4524, %v4848
        %4850 = vmatmul.f32.gmra.mxu0 %v4197
        %v4851 = vpop.f32.mrf.mxu0
        %v4852 = vadd.f32 %v4527, %v4851
        %4853 = vmatmul.f32.gmra.mxu0 %v4200
        %v4854 = vpop.f32.mrf.mxu0
        %v4855 = vadd.f32 %v4530, %v4854
        %4856 = vmatmul.f32.gmra.mxu0 %v4203
        %v4857 = vpop.f32.mrf.mxu0
        %v4858 = vadd.f32 %v4533, %v4857
        %4859 = vmatmul.f32.gmra.mxu0 %v4206
        %v4860 = vpop.f32.mrf.mxu0
        %v4861 = vadd.f32 %v4536, %v4860
        %4862 = vmatmul.f32.gmra.mxu0 %v4209
        %v4863 = vpop.f32.mrf.mxu0
        %v4864 = vadd.f32 %v4539, %v4863
        %4865 = vmatmul.f32.gmra.mxu0 %v4212
        %v4866 = vpop.f32.mrf.mxu0
        %v4867 = vadd.f32 %v4542, %v4866
        %4868 = vmatmul.f32.gmra.mxu0 %v4215
        %v4869 = vpop.f32.mrf.mxu0
        %v4870 = vadd.f32 %v4545, %v4869
        %4871 = vmatmul.f32.gmra.mxu0 %v4218
        %v4872 = vpop.f32.mrf.mxu0
        %v4873 = vadd.f32 %v4548, %v4872
        %4874 = vmatmul.f32.gmra.mxu0 %v4221
        %v4875 = vpop.f32.mrf.mxu0
        %v4876 = vadd.f32 %v4551, %v4875
        %4877 = vmatmul.f32.gmra.mxu0 %v4224
        %v4878 = vpop.f32.mrf.mxu0
        %v4879 = vadd.f32 %v4554, %v4878
        %4880 = vmatmul.f32.gmra.mxu0 %v4227
        %v4881 = vpop.f32.mrf.mxu0
        %v4882 = vadd.f32 %v4557, %v4881
        %4883 = vmatmul.f32.gmra.mxu0 %v4230
        %v4884 = vpop.f32.mrf.mxu0
        %v4885 = vadd.f32 %v4560, %v4884
        %4886 = vmatmul.f32.gmra.mxu0 %v4233
        %v4887 = vpop.f32.mrf.mxu0
        %v4888 = vadd.f32 %v4563, %v4887
        %4889 = vmatmul.f32.gmra.mxu0 %v4236
        %v4890 = vpop.f32.mrf.mxu0
        %v4891 = vadd.f32 %v4566, %v4890
        %4892 = vmatmul.f32.gmra.mxu0 %v4239
        %v4893 = vpop.f32.mrf.mxu0
        %v4894 = vadd.f32 %v4569, %v4893
        %4895 = vmatmul.f32.gmra.mxu0 %v4242
        %v4896 = vpop.f32.mrf.mxu0
        %v4897 = vadd.f32 %v4572, %v4896
        %4898 = vmatmul.f32.gmra.mxu0 %v4245
        %v4899 = vpop.f32.mrf.mxu0
        %v4900 = vadd.f32 %v4575, %v4899
        %4901 = vmatmul.f32.gmra.mxu0 %v4248
        %v4902 = vpop.f32.mrf.mxu0
        %v4903 = vadd.f32 %v4578, %v4902
        %4904 = vmatmul.f32.gmra.mxu0 %v4251
        %v4905 = vpop.f32.mrf.mxu0
        %v4906 = vadd.f32 %v4581, %v4905
        %4907 = vmatmul.f32.gmra.mxu0 %v4254
        %v4908 = vpop.f32.mrf.mxu0
        %4909 = vdwg.mxu0
        %v4910 = vmax.f32 %v4603, %v4680
        %v4911 = vmax.f32 %v4606, %v4683
        %v4912 = vmax.f32 %v4609, %v4686
        %v4913 = vmax.f32 %v4612, %v4689
        %v4914 = vmax.f32 %v4615, %v4692
        %v4915 = vmax.f32 %v4618, %v4695
        %v4916 = vmax.f32 %v4621, %v4698
        %v4917 = vmax.f32 %v4624, %v4701
        %v4918 = vmax.f32 %v4627, %v4704
        %v4919 = vmax.f32 %v4630, %v4707
        %v4920 = vmax.f32 %v4633, %v4710
        %v4921 = vmax.f32 %v4636, %v4713
        %v4922 = vmax.f32 %v4639, %v4716
        %v4923 = vmax.f32 %v4642, %v4719
        %v4924 = vmax.f32 %v4645, %v4722
        %v4925 = vmax.f32 %v4648, %v4725
        %v4926 = vmax.f32 %v4651, %v4728
        %v4927 = vmax.f32 %v4654, %v4731
        %v4928 = vmax.f32 %v4657, %v4734
        %v4929 = vmax.f32 %v4660, %v4737
        %v4930 = vmax.f32 %v4663, %v4740
        %v4931 = vmax.f32 %v4666, %v4743
        %v4932 = vmax.f32 %v4669, %v4746
        %v4933 = vmax.f32 %v4672, %v4749
        %v4934 = vmax.f32 %v4675, %v4752
        %v4935 = vmax.f32 %v4757, %v4834
        %v4936 = vmax.f32 %v4760, %v4837
        %v4937 = vmax.f32 %v4763, %v4840
        %v4938 = vmax.f32 %v4766, %v4843
        %v4939 = vmax.f32 %v4769, %v4846
        %v4940 = vmax.f32 %v4772, %v4849
        %v4941 = vmax.f32 %v4775, %v4852
        %v4942 = vmax.f32 %v4778, %v4855
        %v4943 = vmax.f32 %v4781, %v4858
        %v4944 = vmax.f32 %v4784, %v4861
        %v4945 = vmax.f32 %v4787, %v4864
        %v4946 = vmax.f32 %v4790, %v4867
        %v4947 = vmax.f32 %v4793, %v4870
        %v4948 = vmax.f32 %v4796, %v4873
        %v4949 = vmax.f32 %v4799, %v4876
        %v4950 = vmax.f32 %v4802, %v4879
        %v4951 = vmax.f32 %v4805, %v4882
        %v4952 = vmax.f32 %v4808, %v4885
        %v4953 = vmax.f32 %v4811, %v4888
        %v4954 = vmax.f32 %v4814, %v4891
        %v4955 = vmax.f32 %v4817, %v4894
        %v4956 = vmax.f32 %v4820, %v4897
        %v4957 = vmax.f32 %v4823, %v4900
        %v4958 = vmax.f32 %v4826, %v4903
        %v4959 = vmax.f32 %v4829, %v4906
        %v4960 = vmax.f32 %v4910, %v4935
        %v4961 = vmax.f32 %v4911, %v4936
        %v4962 = vmax.f32 %v4912, %v4937
        %v4963 = vmax.f32 %v4913, %v4938
        %v4964 = vmax.f32 %v4914, %v4939
        %v4965 = vmax.f32 %v4915, %v4940
        %v4966 = vmax.f32 %v4916, %v4941
        %v4967 = vmax.f32 %v4917, %v4942
        %v4968 = vmax.f32 %v4918, %v4943
        %v4969 = vmax.f32 %v4919, %v4944
        %v4970 = vmax.f32 %v4920, %v4945
        %v4971 = vmax.f32 %v4921, %v4946
        %v4972 = vmax.f32 %v4922, %v4947
        %v4973 = vmax.f32 %v4923, %v4948
        %v4974 = vmax.f32 %v4924, %v4949
        %v4975 = vmax.f32 %v4925, %v4950
        %v4976 = vmax.f32 %v4926, %v4951
        %v4977 = vmax.f32 %v4927, %v4952
        %v4978 = vmax.f32 %v4928, %v4953
        %v4979 = vmax.f32 %v4929, %v4954
        %v4980 = vmax.f32 %v4930, %v4955
        %v4981 = vmax.f32 %v4931, %v4956
        %v4982 = vmax.f32 %v4932, %v4957
        %v4983 = vmax.f32 %v4933, %v4958
        %v4984 = vmax.f32 %v4934, %v4959
        %v4985 = vmax.f32 %v4960, 0.0
        %v4986 = vmax.f32 %v4961, 0.0
        %v4987 = vmax.f32 %v4962, 0.0
        %v4988 = vmax.f32 %v4963, 0.0
        %v4989 = vmax.f32 %v4964, 0.0
        %v4990 = vmax.f32 %v4965, 0.0
        %v4991 = vmax.f32 %v4966, 0.0
        %v4992 = vmax.f32 %v4967, 0.0
        %v4993 = vmax.f32 %v4968, 0.0
        %v4994 = vmax.f32 %v4969, 0.0
        %v4995 = vmax.f32 %v4970, 0.0
        %v4996 = vmax.f32 %v4971, 0.0
        %v4997 = vmax.f32 %v4972, 0.0
        %v4998 = vmax.f32 %v4973, 0.0
        %v4999 = vmax.f32 %v4974, 0.0
        %v5000 = vmax.f32 %v4975, 0.0
        %v5001 = vmax.f32 %v4976, 0.0
        %v5002 = vmax.f32 %v4977, 0.0
        %v5003 = vmax.f32 %v4978, 0.0
        %v5004 = vmax.f32 %v4979, 0.0
        %v5005 = vmax.f32 %v4980, 0.0
        %v5006 = vmax.f32 %v4981, 0.0
        %v5007 = vmax.f32 %v4982, 0.0
        %v5008 = vmax.f32 %v4983, 0.0
        %v5009 = vmax.f32 %v4984, 0.0
        %vm5028 = vcmask 1046528
        %v5029 = vrot.slane %v4985, 1
        %v5030 = vrot.slane %v4986, 1
        %v5031 = vsel %vm5028, %v5029, %v5030
        %v5032 = vrot.slane %v4987, 1
        %v5033 = vsel %vm5028, %v5030, %v5032
        %v5034 = vrot.slane %v4988, 1
        %v5035 = vsel %vm5028, %v5032, %v5034
        %v5036 = vrot.slane %v4989, 1
        %v5037 = vsel %vm5028, %v5034, %v5036
        %v5038 = vrot.slane %v4990, 1
        %v5039 = vsel %vm5028, %v5036, %v5038
        %v5040 = vrot.slane %v4991, 1
        %v5041 = vsel %vm5028, %v5038, %v5040
        %v5042 = vrot.slane %v4992, 1
        %v5043 = vsel %vm5028, %v5040, %v5042
        %v5044 = vrot.slane %v4993, 1
        %v5045 = vsel %vm5028, %v5042, %v5044
        %v5046 = vrot.slane %v4994, 1
        %v5047 = vsel %vm5028, %v5044, %v5046
        %v5048 = vrot.slane %v4995, 1
        %v5049 = vsel %vm5028, %v5046, %v5048
        %v5050 = vrot.slane %v4996, 1
        %v5051 = vsel %vm5028, %v5048, %v5050
        %v5052 = vrot.slane %v4997, 1
        %v5053 = vsel %vm5028, %v5050, %v5052
        %v5054 = vrot.slane %v4998, 1
        %v5055 = vsel %vm5028, %v5052, %v5054
        %v5056 = vrot.slane %v4999, 1
        %v5057 = vsel %vm5028, %v5054, %v5056
        %v5058 = vrot.slane %v5000, 1
        %v5059 = vsel %vm5028, %v5056, %v5058
        %v5060 = vrot.slane %v5001, 1
        %v5061 = vsel %vm5028, %v5058, %v5060
        %v5062 = vrot.slane %v5002, 1
        %v5063 = vsel %vm5028, %v5060, %v5062
        %5064 = vrot.lane.b32.xlu0 %v5031, 6
        %v5065 = vpop.permute.xlu0 %5064
        %5066 = vrot.lane.b32.xlu0 %v5033, 6
        %v5067 = vpop.permute.xlu0 %5066
        %5068 = vrot.lane.b32.xlu0 %v5035, 6
        %v5069 = vpop.permute.xlu0 %5068
        %5070 = vrot.lane.b32.xlu0 %v5037, 6
        %v5071 = vpop.permute.xlu0 %5070
        %5072 = vrot.lane.b32.xlu0 %v5039, 6
        %v5073 = vpop.permute.xlu0 %5072
        %5074 = vrot.lane.b32.xlu0 %v5041, 6
        %v5075 = vpop.permute.xlu0 %5074
        %5076 = vrot.lane.b32.xlu0 %v5043, 6
        %v5077 = vpop.permute.xlu0 %5076
        %5078 = vrot.lane.b32.xlu0 %v5045, 6
        %v5079 = vpop.permute.xlu0 %5078
        %5080 = vrot.lane.b32.xlu0 %v5047, 6
        %v5081 = vpop.permute.xlu0 %5080
        %5082 = vrot.lane.b32.xlu0 %v5049, 6
        %v5083 = vpop.permute.xlu0 %5082
        %5084 = vrot.lane.b32.xlu0 %v5051, 6
        %v5085 = vpop.permute.xlu0 %5084
        %5086 = vrot.lane.b32.xlu0 %v5053, 6
        %v5087 = vpop.permute.xlu0 %5086
        %5088 = vrot.lane.b32.xlu0 %v5055, 6
        %v5089 = vpop.permute.xlu0 %5088
        %5090 = vrot.lane.b32.xlu0 %v5057, 6
        %v5091 = vpop.permute.xlu0 %5090
        %5092 = vrot.lane.b32.xlu0 %v5059, 6
        %v5093 = vpop.permute.xlu0 %5092
        %5094 = vrot.lane.b32.xlu0 %v5061, 6
        %v5095 = vpop.permute.xlu0 %5094
        %5096 = vrot.lane.b32.xlu0 %v5063, 6
        %v5097 = vpop.permute.xlu0 %5096
        %5098 = vrot.lane.b32.xlu0 %v5062, 6
        %v5099 = vpop.permute.xlu0 %5098
        %v5118 = vrot.slane %v4985, 2
        %v5119 = vrot.slane %v4986, 2
        %v5120 = vsel %vm4256, %v5118, %v5119
        %v5121 = vrot.slane %v4987, 2
        %v5122 = vsel %vm4256, %v5119, %v5121
        %v5123 = vrot.slane %v4988, 2
        %v5124 = vsel %vm4256, %v5121, %v5123
        %v5125 = vrot.slane %v4989, 2
        %v5126 = vsel %vm4256, %v5123, %v5125
        %v5127 = vrot.slane %v4990, 2
        %v5128 = vsel %vm4256, %v5125, %v5127
        %v5129 = vrot.slane %v4991, 2
        %v5130 = vsel %vm4256, %v5127, %v5129
        %v5131 = vrot.slane %v4992, 2
        %v5132 = vsel %vm4256, %v5129, %v5131
        %v5133 = vrot.slane %v4993, 2
        %v5134 = vsel %vm4256, %v5131, %v5133
        %v5135 = vrot.slane %v4994, 2
        %v5136 = vsel %vm4256, %v5133, %v5135
        %v5137 = vrot.slane %v4995, 2
        %v5138 = vsel %vm4256, %v5135, %v5137
        %v5139 = vrot.slane %v4996, 2
        %v5140 = vsel %vm4256, %v5137, %v5139
        %v5141 = vrot.slane %v4997, 2
        %v5142 = vsel %vm4256, %v5139, %v5141
        %v5143 = vrot.slane %v4998, 2
        %v5144 = vsel %vm4256, %v5141, %v5143
        %v5145 = vrot.slane %v4999, 2
        %v5146 = vsel %vm4256, %v5143, %v5145
        %v5147 = vrot.slane %v5000, 2
        %v5148 = vsel %vm4256, %v5145, %v5147
        %v5149 = vrot.slane %v5001, 2
        %v5150 = vsel %vm4256, %v5147, %v5149
        %v5151 = vrot.slane %v5002, 2
        %v5152 = vsel %vm4256, %v5149, %v5151
        %5153 = vrot.lane.b32.xlu0 %v5120, 12
        %v5154 = vpop.permute.xlu0 %5153
        %5155 = vrot.lane.b32.xlu0 %v5122, 12
        %v5156 = vpop.permute.xlu0 %5155
        %5157 = vrot.lane.b32.xlu0 %v5124, 12
        %v5158 = vpop.permute.xlu0 %5157
        %5159 = vrot.lane.b32.xlu0 %v5126, 12
        %v5160 = vpop.permute.xlu0 %5159
        %5161 = vrot.lane.b32.xlu0 %v5128, 12
        %v5162 = vpop.permute.xlu0 %5161
        %5163 = vrot.lane.b32.xlu0 %v5130, 12
        %v5164 = vpop.permute.xlu0 %5163
        %5165 = vrot.lane.b32.xlu0 %v5132, 12
        %v5166 = vpop.permute.xlu0 %5165
        %5167 = vrot.lane.b32.xlu0 %v5134, 12
        %v5168 = vpop.permute.xlu0 %5167
        %5169 = vrot.lane.b32.xlu0 %v5136, 12
        %v5170 = vpop.permute.xlu0 %5169
        %5171 = vrot.lane.b32.xlu0 %v5138, 12
        %v5172 = vpop.permute.xlu0 %5171
        %5173 = vrot.lane.b32.xlu0 %v5140, 12
        %v5174 = vpop.permute.xlu0 %5173
        %5175 = vrot.lane.b32.xlu0 %v5142, 12
        %v5176 = vpop.permute.xlu0 %5175
        %5177 = vrot.lane.b32.xlu0 %v5144, 12
        %v5178 = vpop.permute.xlu0 %5177
        %5179 = vrot.lane.b32.xlu0 %v5146, 12
        %v5180 = vpop.permute.xlu0 %5179
        %5181 = vrot.lane.b32.xlu0 %v5148, 12
        %v5182 = vpop.permute.xlu0 %5181
        %5183 = vrot.lane.b32.xlu0 %v5150, 12
        %v5184 = vpop.permute.xlu0 %5183
        %5185 = vrot.lane.b32.xlu0 %v5152, 12
        %v5186 = vpop.permute.xlu0 %5185
        %5187 = vrot.lane.b32.xlu0 %v5151, 12
        %v5188 = vpop.permute.xlu0 %5187
        %v5207 = vrot.slane %v4985, 3
        %v5208 = vrot.slane %v4986, 3
        %v5209 = vsel %vm673, %v5207, %v5208
        %v5210 = vrot.slane %v4987, 3
        %v5211 = vsel %vm673, %v5208, %v5210
        %v5212 = vrot.slane %v4988, 3
        %v5213 = vsel %vm673, %v5210, %v5212
        %v5214 = vrot.slane %v4989, 3
        %v5215 = vsel %vm673, %v5212, %v5214
        %v5216 = vrot.slane %v4990, 3
        %v5217 = vsel %vm673, %v5214, %v5216
        %v5218 = vrot.slane %v4991, 3
        %v5219 = vsel %vm673, %v5216, %v5218
        %v5220 = vrot.slane %v4992, 3
        %v5221 = vsel %vm673, %v5218, %v5220
        %v5222 = vrot.slane %v4993, 3
        %v5223 = vsel %vm673, %v5220, %v5222
        %v5224 = vrot.slane %v4994, 3
        %v5225 = vsel %vm673, %v5222, %v5224
        %v5226 = vrot.slane %v4995, 3
        %v5227 = vsel %vm673, %v5224, %v5226
        %v5228 = vrot.slane %v4996, 3
        %v5229 = vsel %vm673, %v5226, %v5228
        %v5230 = vrot.slane %v4997, 3
        %v5231 = vsel %vm673, %v5228, %v5230
        %v5232 = vrot.slane %v4998, 3
        %v5233 = vsel %vm673, %v5230, %v5232
        %v5234 = vrot.slane %v4999, 3
        %v5235 = vsel %vm673, %v5232, %v5234
        %v5236 = vrot.slane %v5000, 3
        %v5237 = vsel %vm673, %v5234, %v5236
        %v5238 = vrot.slane %v5001, 3
        %v5239 = vsel %vm673, %v5236, %v5238
        %v5240 = vrot.slane %v5002, 3
        %v5241 = vsel %vm673, %v5238, %v5240
        %5242 = vrot.lane.b32.xlu0 %v5209, 18
        %v5243 = vpop.permute.xlu0 %5242
        %5244 = vrot.lane.b32.xlu0 %v5211, 18
        %v5245 = vpop.permute.xlu0 %5244
        %5246 = vrot.lane.b32.xlu0 %v5213, 18
        %v5247 = vpop.permute.xlu0 %5246
        %5248 = vrot.lane.b32.xlu0 %v5215, 18
        %v5249 = vpop.permute.xlu0 %5248
        %5250 = vrot.lane.b32.xlu0 %v5217, 18
        %v5251 = vpop.permute.xlu0 %5250
        %5252 = vrot.lane.b32.xlu0 %v5219, 18
        %v5253 = vpop.permute.xlu0 %5252
        %5254 = vrot.lane.b32.xlu0 %v5221, 18
        %v5255 = vpop.permute.xlu0 %5254
        %5256 = vrot.lane.b32.xlu0 %v5223, 18
        %v5257 = vpop.permute.xlu0 %5256
        %5258 = vrot.lane.b32.xlu0 %v5225, 18
        %v5259 = vpop.permute.xlu0 %5258
        %5260 = vrot.lane.b32.xlu0 %v5227, 18
        %v5261 = vpop.permute.xlu0 %5260
        %5262 = vrot.lane.b32.xlu0 %v5229, 18
        %v5263 = vpop.permute.xlu0 %5262
        %5264 = vrot.lane.b32.xlu0 %v5231, 18
        %v5265 = vpop.permute.xlu0 %5264
        %5266 = vrot.lane.b32.xlu0 %v5233, 18
        %v5267 = vpop.permute.xlu0 %5266
        %5268 = vrot.lane.b32.xlu0 %v5235, 18
        %v5269 = vpop.permute.xlu0 %5268
        %5270 = vrot.lane.b32.xlu0 %v5237, 18
        %v5271 = vpop.permute.xlu0 %5270
        %5272 = vrot.lane.b32.xlu0 %v5239, 18
        %v5273 = vpop.permute.xlu0 %5272
        %5274 = vrot.lane.b32.xlu0 %v5241, 18
        %v5275 = vpop.permute.xlu0 %5274
        %5276 = vrot.lane.b32.xlu0 %v5240, 18
        %v5277 = vpop.permute.xlu0 %5276
        %v5296 = vrot.slane %v4985, 4
        %v5297 = vrot.slane %v4986, 4
        %v5298 = vsel %vm672, %v5296, %v5297
        %v5299 = vrot.slane %v4987, 4
        %v5300 = vsel %vm672, %v5297, %v5299
        %v5301 = vrot.slane %v4988, 4
        %v5302 = vsel %vm672, %v5299, %v5301
        %v5303 = vrot.slane %v4989, 4
        %v5304 = vsel %vm672, %v5301, %v5303
        %v5305 = vrot.slane %v4990, 4
        %v5306 = vsel %vm672, %v5303, %v5305
        %v5307 = vrot.slane %v4991, 4
        %v5308 = vsel %vm672, %v5305, %v5307
        %v5309 = vrot.slane %v4992, 4
        %v5310 = vsel %vm672, %v5307, %v5309
        %v5311 = vrot.slane %v4993, 4
        %v5312 = vsel %vm672, %v5309, %v5311
        %v5313 = vrot.slane %v4994, 4
        %v5314 = vsel %vm672, %v5311, %v5313
        %v5315 = vrot.slane %v4995, 4
        %v5316 = vsel %vm672, %v5313, %v5315
        %v5317 = vrot.slane %v4996, 4
        %v5318 = vsel %vm672, %v5315, %v5317
        %v5319 = vrot.slane %v4997, 4
        %v5320 = vsel %vm672, %v5317, %v5319
        %v5321 = vrot.slane %v4998, 4
        %v5322 = vsel %vm672, %v5319, %v5321
        %v5323 = vrot.slane %v4999, 4
        %v5324 = vsel %vm672, %v5321, %v5323
        %v5325 = vrot.slane %v5000, 4
        %v5326 = vsel %vm672, %v5323, %v5325
        %v5327 = vrot.slane %v5001, 4
        %v5328 = vsel %vm672, %v5325, %v5327
        %v5329 = vrot.slane %v5002, 4
        %v5330 = vsel %vm672, %v5327, %v5329
        %5331 = vrot.lane.b32.xlu0 %v5298, 24
        %v5332 = vpop.permute.xlu0 %5331
        %5333 = vrot.lane.b32.xlu0 %v5300, 24
        %v5334 = vpop.permute.xlu0 %5333
        %5335 = vrot.lane.b32.xlu0 %v5302, 24
        %v5336 = vpop.permute.xlu0 %5335
        %5337 = vrot.lane.b32.xlu0 %v5304, 24
        %v5338 = vpop.permute.xlu0 %5337
        %5339 = vrot.lane.b32.xlu0 %v5306, 24
        %v5340 = vpop.permute.xlu0 %5339
        %5341 = vrot.lane.b32.xlu0 %v5308, 24
        %v5342 = vpop.permute.xlu0 %5341
        %5343 = vrot.lane.b32.xlu0 %v5310, 24
        %v5344 = vpop.permute.xlu0 %5343
        %5345 = vrot.lane.b32.xlu0 %v5312, 24
        %v5346 = vpop.permute.xlu0 %5345
        %5347 = vrot.lane.b32.xlu0 %v5314, 24
        %v5348 = vpop.permute.xlu0 %5347
        %5349 = vrot.lane.b32.xlu0 %v5316, 24
        %v5350 = vpop.permute.xlu0 %5349
        %5351 = vrot.lane.b32.xlu0 %v5318, 24
        %v5352 = vpop.permute.xlu0 %5351
        %5353 = vrot.lane.b32.xlu0 %v5320, 24
        %v5354 = vpop.permute.xlu0 %5353
        %5355 = vrot.lane.b32.xlu0 %v5322, 24
        %v5356 = vpop.permute.xlu0 %5355
        %5357 = vrot.lane.b32.xlu0 %v5324, 24
        %v5358 = vpop.permute.xlu0 %5357
        %5359 = vrot.lane.b32.xlu0 %v5326, 24
        %v5360 = vpop.permute.xlu0 %5359
        %5361 = vrot.lane.b32.xlu0 %v5328, 24
        %v5362 = vpop.permute.xlu0 %5361
        %5363 = vrot.lane.b32.xlu0 %v5330, 24
        %v5364 = vpop.permute.xlu0 %5363
        %5365 = vrot.lane.b32.xlu0 %v5329, 24
        %v5366 = vpop.permute.xlu0 %5365
        %vm5387 = vcmask 1041408
        %v5388 = vrot.slane %v4986, 6
        %v5389 = vrot.slane %v4987, 6
        %v5390 = vsel %vm5387, %v5388, %v5389
        %v5391 = vrot.slane %v4988, 6
        %v5392 = vsel %vm5387, %v5389, %v5391
        %v5393 = vrot.slane %v4989, 6
        %v5394 = vsel %vm5387, %v5391, %v5393
        %v5395 = vrot.slane %v4990, 6
        %v5396 = vsel %vm5387, %v5393, %v5395
        %v5397 = vrot.slane %v4991, 6
        %v5398 = vsel %vm5387, %v5395, %v5397
        %v5399 = vrot.slane %v4992, 6
        %v5400 = vsel %vm5387, %v5397, %v5399
        %v5401 = vrot.slane %v4993, 6
        %v5402 = vsel %vm5387, %v5399, %v5401
        %v5403 = vrot.slane %v4994, 6
        %v5404 = vsel %vm5387, %v5401, %v5403
        %v5405 = vrot.slane %v4995, 6
        %v5406 = vsel %vm5387, %v5403, %v5405
        %v5407 = vrot.slane %v4996, 6
        %v5408 = vsel %vm5387, %v5405, %v5407
        %v5409 = vrot.slane %v4997, 6
        %v5410 = vsel %vm5387, %v5407, %v5409
        %v5411 = vrot.slane %v4998, 6
        %v5412 = vsel %vm5387, %v5409, %v5411
        %v5413 = vrot.slane %v4999, 6
        %v5414 = vsel %vm5387, %v5411, %v5413
        %v5415 = vrot.slane %v5000, 6
        %v5416 = vsel %vm5387, %v5413, %v5415
        %v5417 = vrot.slane %v5001, 6
        %v5418 = vsel %vm5387, %v5415, %v5417
        %v5419 = vrot.slane %v5002, 6
        %v5420 = vsel %vm5387, %v5417, %v5419
        %v5421 = vrot.slane %v5003, 6
        %v5422 = vsel %vm5387, %v5419, %v5421
        %v5423 = vrot.slane %v5004, 6
        %v5424 = vsel %vm5387, %v5421, %v5423
        %5425 = vrot.lane.b32.xlu0 %v5390, 30
        %v5426 = vpop.permute.xlu0 %5425
        %5427 = vrot.lane.b32.xlu0 %v5392, 30
        %v5428 = vpop.permute.xlu0 %5427
        %5429 = vrot.lane.b32.xlu0 %v5394, 30
        %v5430 = vpop.permute.xlu0 %5429
        %5431 = vrot.lane.b32.xlu0 %v5396, 30
        %v5432 = vpop.permute.xlu0 %5431
        %5433 = vrot.lane.b32.xlu0 %v5398, 30
        %v5434 = vpop.permute.xlu0 %5433
        %5435 = vrot.lane.b32.xlu0 %v5400, 30
        %v5436 = vpop.permute.xlu0 %5435
        %5437 = vrot.lane.b32.xlu0 %v5402, 30
        %v5438 = vpop.permute.xlu0 %5437
        %5439 = vrot.lane.b32.xlu0 %v5404, 30
        %v5440 = vpop.permute.xlu0 %5439
        %5441 = vrot.lane.b32.xlu0 %v5406, 30
        %v5442 = vpop.permute.xlu0 %5441
        %5443 = vrot.lane.b32.xlu0 %v5408, 30
        %v5444 = vpop.permute.xlu0 %5443
        %5445 = vrot.lane.b32.xlu0 %v5410, 30
        %v5446 = vpop.permute.xlu0 %5445
        %5447 = vrot.lane.b32.xlu0 %v5412, 30
        %v5448 = vpop.permute.xlu0 %5447
        %5449 = vrot.lane.b32.xlu0 %v5414, 30
        %v5450 = vpop.permute.xlu0 %5449
        %5451 = vrot.lane.b32.xlu0 %v5416, 30
        %v5452 = vpop.permute.xlu0 %5451
        %5453 = vrot.lane.b32.xlu0 %v5418, 30
        %v5454 = vpop.permute.xlu0 %5453
        %5455 = vrot.lane.b32.xlu0 %v5420, 30
        %v5456 = vpop.permute.xlu0 %5455
        %5457 = vrot.lane.b32.xlu0 %v5422, 30
        %v5458 = vpop.permute.xlu0 %5457
        %5459 = vrot.lane.b32.xlu0 %v5424, 30
        %v5460 = vpop.permute.xlu0 %5459
        %vm5479 = vcmask 1040384
        %v5480 = vrot.slane %v4986, 7
        %v5481 = vrot.slane %v4987, 7
        %v5482 = vsel %vm5479, %v5480, %v5481
        %v5483 = vrot.slane %v4988, 7
        %v5484 = vsel %vm5479, %v5481, %v5483
        %v5485 = vrot.slane %v4989, 7
        %v5486 = vsel %vm5479, %v5483, %v5485
        %v5487 = vrot.slane %v4990, 7
        %v5488 = vsel %vm5479, %v5485, %v5487
        %v5489 = vrot.slane %v4991, 7
        %v5490 = vsel %vm5479, %v5487, %v5489
        %v5491 = vrot.slane %v4992, 7
        %v5492 = vsel %vm5479, %v5489, %v5491
        %v5493 = vrot.slane %v4993, 7
        %v5494 = vsel %vm5479, %v5491, %v5493
        %v5495 = vrot.slane %v4994, 7
        %v5496 = vsel %vm5479, %v5493, %v5495
        %v5497 = vrot.slane %v4995, 7
        %v5498 = vsel %vm5479, %v5495, %v5497
        %v5499 = vrot.slane %v4996, 7
        %v5500 = vsel %vm5479, %v5497, %v5499
        %v5501 = vrot.slane %v4997, 7
        %v5502 = vsel %vm5479, %v5499, %v5501
        %v5503 = vrot.slane %v4998, 7
        %v5504 = vsel %vm5479, %v5501, %v5503
        %v5505 = vrot.slane %v4999, 7
        %v5506 = vsel %vm5479, %v5503, %v5505
        %v5507 = vrot.slane %v5000, 7
        %v5508 = vsel %vm5479, %v5505, %v5507
        %v5509 = vrot.slane %v5001, 7
        %v5510 = vsel %vm5479, %v5507, %v5509
        %v5511 = vrot.slane %v5002, 7
        %v5512 = vsel %vm5479, %v5509, %v5511
        %v5513 = vrot.slane %v5003, 7
        %v5514 = vsel %vm5479, %v5511, %v5513
        %v5515 = vrot.slane %v5004, 7
        %v5516 = vsel %vm5479, %v5513, %v5515
        %5517 = vrot.lane.b32.xlu0 %v5482, 36
        %v5518 = vpop.permute.xlu0 %5517
        %5519 = vrot.lane.b32.xlu0 %v5484, 36
        %v5520 = vpop.permute.xlu0 %5519
        %5521 = vrot.lane.b32.xlu0 %v5486, 36
        %v5522 = vpop.permute.xlu0 %5521
        %5523 = vrot.lane.b32.xlu0 %v5488, 36
        %v5524 = vpop.permute.xlu0 %5523
        %5525 = vrot.lane.b32.xlu0 %v5490, 36
        %v5526 = vpop.permute.xlu0 %5525
        %5527 = vrot.lane.b32.xlu0 %v5492, 36
        %v5528 = vpop.permute.xlu0 %5527
        %5529 = vrot.lane.b32.xlu0 %v5494, 36
        %v5530 = vpop.permute.xlu0 %5529
        %5531 = vrot.lane.b32.xlu0 %v5496, 36
        %v5532 = vpop.permute.xlu0 %5531
        %5533 = vrot.lane.b32.xlu0 %v5498, 36
        %v5534 = vpop.permute.xlu0 %5533
        %5535 = vrot.lane.b32.xlu0 %v5500, 36
        %v5536 = vpop.permute.xlu0 %5535
        %5537 = vrot.lane.b32.xlu0 %v5502, 36
        %v5538 = vpop.permute.xlu0 %5537
        %5539 = vrot.lane.b32.xlu0 %v5504, 36
        %v5540 = vpop.permute.xlu0 %5539
        %5541 = vrot.lane.b32.xlu0 %v5506, 36
        %v5542 = vpop.permute.xlu0 %5541
        %5543 = vrot.lane.b32.xlu0 %v5508, 36
        %v5544 = vpop.permute.xlu0 %5543
        %5545 = vrot.lane.b32.xlu0 %v5510, 36
        %v5546 = vpop.permute.xlu0 %5545
        %5547 = vrot.lane.b32.xlu0 %v5512, 36
        %v5548 = vpop.permute.xlu0 %5547
        %5549 = vrot.lane.b32.xlu0 %v5514, 36
        %v5550 = vpop.permute.xlu0 %5549
        %5551 = vrot.lane.b32.xlu0 %v5516, 36
        %v5552 = vpop.permute.xlu0 %5551
        %5571 = vrot.lane.b32.xlu0 %v4987, 42
        %v5572 = vpop.permute.xlu0 %5571
        %5573 = vrot.lane.b32.xlu0 %v4988, 42
        %v5574 = vpop.permute.xlu0 %5573
        %5575 = vrot.lane.b32.xlu0 %v4989, 42
        %v5576 = vpop.permute.xlu0 %5575
        %5577 = vrot.lane.b32.xlu0 %v4990, 42
        %v5578 = vpop.permute.xlu0 %5577
        %5579 = vrot.lane.b32.xlu0 %v4991, 42
        %v5580 = vpop.permute.xlu0 %5579
        %5581 = vrot.lane.b32.xlu0 %v4992, 42
        %v5582 = vpop.permute.xlu0 %5581
        %5583 = vrot.lane.b32.xlu0 %v4993, 42
        %v5584 = vpop.permute.xlu0 %5583
        %5585 = vrot.lane.b32.xlu0 %v4994, 42
        %v5586 = vpop.permute.xlu0 %5585
        %5587 = vrot.lane.b32.xlu0 %v4995, 42
        %v5588 = vpop.permute.xlu0 %5587
        %5589 = vrot.lane.b32.xlu0 %v4996, 42
        %v5590 = vpop.permute.xlu0 %5589
        %5591 = vrot.lane.b32.xlu0 %v4997, 42
        %v5592 = vpop.permute.xlu0 %5591
        %5593 = vrot.lane.b32.xlu0 %v4998, 42
        %v5594 = vpop.permute.xlu0 %5593
        %5595 = vrot.lane.b32.xlu0 %v4999, 42
        %v5596 = vpop.permute.xlu0 %5595
        %5597 = vrot.lane.b32.xlu0 %v5000, 42
        %v5598 = vpop.permute.xlu0 %5597
        %5599 = vrot.lane.b32.xlu0 %v5001, 42
        %v5600 = vpop.permute.xlu0 %5599
        %5601 = vrot.lane.b32.xlu0 %v5002, 42
        %v5602 = vpop.permute.xlu0 %5601
        %5603 = vrot.lane.b32.xlu0 %v5003, 42
        %v5604 = vpop.permute.xlu0 %5603
        %5605 = vrot.lane.b32.xlu0 %v5004, 42
        %v5606 = vpop.permute.xlu0 %5605
        %v5625 = vrot.slane %v5003, 1
        %v5626 = vsel %vm5028, %v5062, %v5625
        %v5627 = vrot.slane %v5004, 1
        %v5628 = vsel %vm5028, %v5625, %v5627
        %5629 = vrot.lane.b32.xlu0 %v5035, 48
        %v5630 = vpop.permute.xlu0 %5629
        %5631 = vrot.lane.b32.xlu0 %v5037, 48
        %v5632 = vpop.permute.xlu0 %5631
        %5633 = vrot.lane.b32.xlu0 %v5039, 48
        %v5634 = vpop.permute.xlu0 %5633
        %5635 = vrot.lane.b32.xlu0 %v5041, 48
        %v5636 = vpop.permute.xlu0 %5635
        %5637 = vrot.lane.b32.xlu0 %v5043, 48
        %v5638 = vpop.permute.xlu0 %5637
        %5639 = vrot.lane.b32.xlu0 %v5045, 48
        %v5640 = vpop.permute.xlu0 %5639
        %5641 = vrot.lane.b32.xlu0 %v5047, 48
        %v5642 = vpop.permute.xlu0 %5641
        %5643 = vrot.lane.b32.xlu0 %v5049, 48
        %v5644 = vpop.permute.xlu0 %5643
        %5645 = vrot.lane.b32.xlu0 %v5051, 48
        %v5646 = vpop.permute.xlu0 %5645
        %5647 = vrot.lane.b32.xlu0 %v5053, 48
        %v5648 = vpop.permute.xlu0 %5647
        %5649 = vrot.lane.b32.xlu0 %v5055, 48
        %v5650 = vpop.permute.xlu0 %5649
        %5651 = vrot.lane.b32.xlu0 %v5057, 48
        %v5652 = vpop.permute.xlu0 %5651
        %5653 = vrot.lane.b32.xlu0 %v5059, 48
        %v5654 = vpop.permute.xlu0 %5653
        %5655 = vrot.lane.b32.xlu0 %v5061, 48
        %v5656 = vpop.permute.xlu0 %5655
        %5657 = vrot.lane.b32.xlu0 %v5063, 48
        %v5658 = vpop.permute.xlu0 %5657
        %5659 = vrot.lane.b32.xlu0 %v5626, 48
        %v5660 = vpop.permute.xlu0 %5659
        %5661 = vrot.lane.b32.xlu0 %v5628, 48
        %v5662 = vpop.permute.xlu0 %5661
        %5663 = vrot.lane.b32.xlu0 %v5627, 48
        %v5664 = vpop.permute.xlu0 %5663
        %v5683 = vrot.slane %v5003, 2
        %v5684 = vsel %vm4256, %v5151, %v5683
        %v5685 = vrot.slane %v5004, 2
        %v5686 = vsel %vm4256, %v5683, %v5685
        %5687 = vrot.lane.b32.xlu0 %v5124, 54
        %v5688 = vpop.permute.xlu0 %5687
        %5689 = vrot.lane.b32.xlu0 %v5126, 54
        %v5690 = vpop.permute.xlu0 %5689
        %5691 = vrot.lane.b32.xlu0 %v5128, 54
        %v5692 = vpop.permute.xlu0 %5691
        %5693 = vrot.lane.b32.xlu0 %v5130, 54
        %v5694 = vpop.permute.xlu0 %5693
        %5695 = vrot.lane.b32.xlu0 %v5132, 54
        %v5696 = vpop.permute.xlu0 %5695
        %5697 = vrot.lane.b32.xlu0 %v5134, 54
        %v5698 = vpop.permute.xlu0 %5697
        %5699 = vrot.lane.b32.xlu0 %v5136, 54
        %v5700 = vpop.permute.xlu0 %5699
        %5701 = vrot.lane.b32.xlu0 %v5138, 54
        %v5702 = vpop.permute.xlu0 %5701
        %5703 = vrot.lane.b32.xlu0 %v5140, 54
        %v5704 = vpop.permute.xlu0 %5703
        %5705 = vrot.lane.b32.xlu0 %v5142, 54
        %v5706 = vpop.permute.xlu0 %5705
        %5707 = vrot.lane.b32.xlu0 %v5144, 54
        %v5708 = vpop.permute.xlu0 %5707
        %5709 = vrot.lane.b32.xlu0 %v5146, 54
        %v5710 = vpop.permute.xlu0 %5709
        %5711 = vrot.lane.b32.xlu0 %v5148, 54
        %v5712 = vpop.permute.xlu0 %5711
        %5713 = vrot.lane.b32.xlu0 %v5150, 54
        %v5714 = vpop.permute.xlu0 %5713
        %5715 = vrot.lane.b32.xlu0 %v5152, 54
        %v5716 = vpop.permute.xlu0 %5715
        %5717 = vrot.lane.b32.xlu0 %v5684, 54
        %v5718 = vpop.permute.xlu0 %5717
        %5719 = vrot.lane.b32.xlu0 %v5686, 54
        %v5720 = vpop.permute.xlu0 %5719
        %5721 = vrot.lane.b32.xlu0 %v5685, 54
        %v5722 = vpop.permute.xlu0 %5721
        %v5742 = vrot.slane %v5003, 4
        %v5743 = vsel %vm672, %v5329, %v5742
        %v5744 = vrot.slane %v5004, 4
        %v5745 = vsel %vm672, %v5742, %v5744
        %v5746 = vrot.slane %v5005, 4
        %v5747 = vsel %vm672, %v5744, %v5746
        %5748 = vrot.lane.b32.xlu0 %v5304, 60
        %v5749 = vpop.permute.xlu0 %5748
        %5750 = vrot.lane.b32.xlu0 %v5306, 60
        %v5751 = vpop.permute.xlu0 %5750
        %5752 = vrot.lane.b32.xlu0 %v5308, 60
        %v5753 = vpop.permute.xlu0 %5752
        %5754 = vrot.lane.b32.xlu0 %v5310, 60
        %v5755 = vpop.permute.xlu0 %5754
        %5756 = vrot.lane.b32.xlu0 %v5312, 60
        %v5757 = vpop.permute.xlu0 %5756
        %5758 = vrot.lane.b32.xlu0 %v5314, 60
        %v5759 = vpop.permute.xlu0 %5758
        %5760 = vrot.lane.b32.xlu0 %v5316, 60
        %v5761 = vpop.permute.xlu0 %5760
        %5762 = vrot.lane.b32.xlu0 %v5318, 60
        %v5763 = vpop.permute.xlu0 %5762
        %5764 = vrot.lane.b32.xlu0 %v5320, 60
        %v5765 = vpop.permute.xlu0 %5764
        %5766 = vrot.lane.b32.xlu0 %v5322, 60
        %v5767 = vpop.permute.xlu0 %5766
        %5768 = vrot.lane.b32.xlu0 %v5324, 60
        %v5769 = vpop.permute.xlu0 %5768
        %5770 = vrot.lane.b32.xlu0 %v5326, 60
        %v5771 = vpop.permute.xlu0 %5770
        %5772 = vrot.lane.b32.xlu0 %v5328, 60
        %v5773 = vpop.permute.xlu0 %5772
        %5774 = vrot.lane.b32.xlu0 %v5330, 60
        %v5775 = vpop.permute.xlu0 %5774
        %5776 = vrot.lane.b32.xlu0 %v5743, 60
        %v5777 = vpop.permute.xlu0 %5776
        %5778 = vrot.lane.b32.xlu0 %v5745, 60
        %v5779 = vpop.permute.xlu0 %5778
        %5780 = vrot.lane.b32.xlu0 %v5747, 60
        %v5781 = vpop.permute.xlu0 %5780
        %5782 = vrot.lane.b32.xlu0 %v5746, 60
        %v5783 = vpop.permute.xlu0 %5782
        %vm5803 = vcmask 1042432
        %v5804 = vrot.slane %v4988, 5
        %v5805 = vrot.slane %v4989, 5
        %v5806 = vsel %vm5803, %v5804, %v5805
        %v5807 = vrot.slane %v4990, 5
        %v5808 = vsel %vm5803, %v5805, %v5807
        %v5809 = vrot.slane %v4991, 5
        %v5810 = vsel %vm5803, %v5807, %v5809
        %v5811 = vrot.slane %v4992, 5
        %v5812 = vsel %vm5803, %v5809, %v5811
        %v5813 = vrot.slane %v4993, 5
        %v5814 = vsel %vm5803, %v5811, %v5813
        %v5815 = vrot.slane %v4994, 5
        %v5816 = vsel %vm5803, %v5813, %v5815
        %v5817 = vrot.slane %v4995, 5
        %v5818 = vsel %vm5803, %v5815, %v5817
        %v5819 = vrot.slane %v4996, 5
        %v5820 = vsel %vm5803, %v5817, %v5819
        %v5821 = vrot.slane %v4997, 5
        %v5822 = vsel %vm5803, %v5819, %v5821
        %v5823 = vrot.slane %v4998, 5
        %v5824 = vsel %vm5803, %v5821, %v5823
        %v5825 = vrot.slane %v4999, 5
        %v5826 = vsel %vm5803, %v5823, %v5825
        %v5827 = vrot.slane %v5000, 5
        %v5828 = vsel %vm5803, %v5825, %v5827
        %v5829 = vrot.slane %v5001, 5
        %v5830 = vsel %vm5803, %v5827, %v5829
        %v5831 = vrot.slane %v5002, 5
        %v5832 = vsel %vm5803, %v5829, %v5831
        %v5833 = vrot.slane %v5003, 5
        %v5834 = vsel %vm5803, %v5831, %v5833
        %v5835 = vrot.slane %v5004, 5
        %v5836 = vsel %vm5803, %v5833, %v5835
        %v5837 = vrot.slane %v5005, 5
        %v5838 = vsel %vm5803, %v5835, %v5837
        %v5839 = vrot.slane %v5006, 5
        %v5840 = vsel %vm5803, %v5837, %v5839
        %5841 = vrot.lane.b32.xlu0 %v5806, 66
        %v5842 = vpop.permute.xlu0 %5841
        %5843 = vrot.lane.b32.xlu0 %v5808, 66
        %v5844 = vpop.permute.xlu0 %5843
        %5845 = vrot.lane.b32.xlu0 %v5810, 66
        %v5846 = vpop.permute.xlu0 %5845
        %5847 = vrot.lane.b32.xlu0 %v5812, 66
        %v5848 = vpop.permute.xlu0 %5847
        %5849 = vrot.lane.b32.xlu0 %v5814, 66
        %v5850 = vpop.permute.xlu0 %5849
        %5851 = vrot.lane.b32.xlu0 %v5816, 66
        %v5852 = vpop.permute.xlu0 %5851
        %5853 = vrot.lane.b32.xlu0 %v5818, 66
        %v5854 = vpop.permute.xlu0 %5853
        %5855 = vrot.lane.b32.xlu0 %v5820, 66
        %v5856 = vpop.permute.xlu0 %5855
        %5857 = vrot.lane.b32.xlu0 %v5822, 66
        %v5858 = vpop.permute.xlu0 %5857
        %5859 = vrot.lane.b32.xlu0 %v5824, 66
        %v5860 = vpop.permute.xlu0 %5859
        %5861 = vrot.lane.b32.xlu0 %v5826, 66
        %v5862 = vpop.permute.xlu0 %5861
        %5863 = vrot.lane.b32.xlu0 %v5828, 66
        %v5864 = vpop.permute.xlu0 %5863
        %5865 = vrot.lane.b32.xlu0 %v5830, 66
        %v5866 = vpop.permute.xlu0 %5865
        %5867 = vrot.lane.b32.xlu0 %v5832, 66
        %v5868 = vpop.permute.xlu0 %5867
        %5869 = vrot.lane.b32.xlu0 %v5834, 66
        %v5870 = vpop.permute.xlu0 %5869
        %5871 = vrot.lane.b32.xlu0 %v5836, 66
        %v5872 = vpop.permute.xlu0 %5871
        %5873 = vrot.lane.b32.xlu0 %v5838, 66
        %v5874 = vpop.permute.xlu0 %5873
        %5875 = vrot.lane.b32.xlu0 %v5840, 66
        %v5876 = vpop.permute.xlu0 %5875
        %v5895 = vrot.slane %v5005, 6
        %v5896 = vsel %vm5387, %v5423, %v5895
        %v5897 = vrot.slane %v5006, 6
        %v5898 = vsel %vm5387, %v5895, %v5897
        %5899 = vrot.lane.b32.xlu0 %v5394, 72
        %v5900 = vpop.permute.xlu0 %5899
        %5901 = vrot.lane.b32.xlu0 %v5396, 72
        %v5902 = vpop.permute.xlu0 %5901
        %5903 = vrot.lane.b32.xlu0 %v5398, 72
        %v5904 = vpop.permute.xlu0 %5903
        %5905 = vrot.lane.b32.xlu0 %v5400, 72
        %v5906 = vpop.permute.xlu0 %5905
        %5907 = vrot.lane.b32.xlu0 %v5402, 72
        %v5908 = vpop.permute.xlu0 %5907
        %5909 = vrot.lane.b32.xlu0 %v5404, 72
        %v5910 = vpop.permute.xlu0 %5909
        %5911 = vrot.lane.b32.xlu0 %v5406, 72
        %v5912 = vpop.permute.xlu0 %5911
        %5913 = vrot.lane.b32.xlu0 %v5408, 72
        %v5914 = vpop.permute.xlu0 %5913
        %5915 = vrot.lane.b32.xlu0 %v5410, 72
        %v5916 = vpop.permute.xlu0 %5915
        %5917 = vrot.lane.b32.xlu0 %v5412, 72
        %v5918 = vpop.permute.xlu0 %5917
        %5919 = vrot.lane.b32.xlu0 %v5414, 72
        %v5920 = vpop.permute.xlu0 %5919
        %5921 = vrot.lane.b32.xlu0 %v5416, 72
        %v5922 = vpop.permute.xlu0 %5921
        %5923 = vrot.lane.b32.xlu0 %v5418, 72
        %v5924 = vpop.permute.xlu0 %5923
        %5925 = vrot.lane.b32.xlu0 %v5420, 72
        %v5926 = vpop.permute.xlu0 %5925
        %5927 = vrot.lane.b32.xlu0 %v5422, 72
        %v5928 = vpop.permute.xlu0 %5927
        %5929 = vrot.lane.b32.xlu0 %v5424, 72
        %v5930 = vpop.permute.xlu0 %5929
        %5931 = vrot.lane.b32.xlu0 %v5896, 72
        %v5932 = vpop.permute.xlu0 %5931
        %5933 = vrot.lane.b32.xlu0 %v5898, 72
        %v5934 = vpop.permute.xlu0 %5933
        %v5953 = vrot.slane %v5005, 7
        %v5954 = vsel %vm5479, %v5515, %v5953
        %v5955 = vrot.slane %v5006, 7
        %v5956 = vsel %vm5479, %v5953, %v5955
        %5957 = vrot.lane.b32.xlu0 %v5486, 78
        %v5958 = vpop.permute.xlu0 %5957
        %5959 = vrot.lane.b32.xlu0 %v5488, 78
        %v5960 = vpop.permute.xlu0 %5959
        %5961 = vrot.lane.b32.xlu0 %v5490, 78
        %v5962 = vpop.permute.xlu0 %5961
        %5963 = vrot.lane.b32.xlu0 %v5492, 78
        %v5964 = vpop.permute.xlu0 %5963
        %5965 = vrot.lane.b32.xlu0 %v5494, 78
        %v5966 = vpop.permute.xlu0 %5965
        %5967 = vrot.lane.b32.xlu0 %v5496, 78
        %v5968 = vpop.permute.xlu0 %5967
        %5969 = vrot.lane.b32.xlu0 %v5498, 78
        %v5970 = vpop.permute.xlu0 %5969
        %5971 = vrot.lane.b32.xlu0 %v5500, 78
        %v5972 = vpop.permute.xlu0 %5971
        %5973 = vrot.lane.b32.xlu0 %v5502, 78
        %v5974 = vpop.permute.xlu0 %5973
        %5975 = vrot.lane.b32.xlu0 %v5504, 78
        %v5976 = vpop.permute.xlu0 %5975
        %5977 = vrot.lane.b32.xlu0 %v5506, 78
        %v5978 = vpop.permute.xlu0 %5977
        %5979 = vrot.lane.b32.xlu0 %v5508, 78
        %v5980 = vpop.permute.xlu0 %5979
        %5981 = vrot.lane.b32.xlu0 %v5510, 78
        %v5982 = vpop.permute.xlu0 %5981
        %5983 = vrot.lane.b32.xlu0 %v5512, 78
        %v5984 = vpop.permute.xlu0 %5983
        %5985 = vrot.lane.b32.xlu0 %v5514, 78
        %v5986 = vpop.permute.xlu0 %5985
        %5987 = vrot.lane.b32.xlu0 %v5516, 78
        %v5988 = vpop.permute.xlu0 %5987
        %5989 = vrot.lane.b32.xlu0 %v5954, 78
        %v5990 = vpop.permute.xlu0 %5989
        %5991 = vrot.lane.b32.xlu0 %v5956, 78
        %v5992 = vpop.permute.xlu0 %5991
        %6011 = vrot.lane.b32.xlu0 %v4989, 84
        %v6012 = vpop.permute.xlu0 %6011
        %6013 = vrot.lane.b32.xlu0 %v4990, 84
        %v6014 = vpop.permute.xlu0 %6013
        %6015 = vrot.lane.b32.xlu0 %v4991, 84
        %v6016 = vpop.permute.xlu0 %6015
        %6017 = vrot.lane.b32.xlu0 %v4992, 84
        %v6018 = vpop.permute.xlu0 %6017
        %6019 = vrot.lane.b32.xlu0 %v4993, 84
        %v6020 = vpop.permute.xlu0 %6019
        %6021 = vrot.lane.b32.xlu0 %v4994, 84
        %v6022 = vpop.permute.xlu0 %6021
        %6023 = vrot.lane.b32.xlu0 %v4995, 84
        %v6024 = vpop.permute.xlu0 %6023
        %6025 = vrot.lane.b32.xlu0 %v4996, 84
        %v6026 = vpop.permute.xlu0 %6025
        %6027 = vrot.lane.b32.xlu0 %v4997, 84
        %v6028 = vpop.permute.xlu0 %6027
        %6029 = vrot.lane.b32.xlu0 %v4998, 84
        %v6030 = vpop.permute.xlu0 %6029
        %6031 = vrot.lane.b32.xlu0 %v4999, 84
        %v6032 = vpop.permute.xlu0 %6031
        %6033 = vrot.lane.b32.xlu0 %v5000, 84
        %v6034 = vpop.permute.xlu0 %6033
        %6035 = vrot.lane.b32.xlu0 %v5001, 84
        %v6036 = vpop.permute.xlu0 %6035
        %6037 = vrot.lane.b32.xlu0 %v5002, 84
        %v6038 = vpop.permute.xlu0 %6037
        %6039 = vrot.lane.b32.xlu0 %v5003, 84
        %v6040 = vpop.permute.xlu0 %6039
        %6041 = vrot.lane.b32.xlu0 %v5004, 84
        %v6042 = vpop.permute.xlu0 %6041
        %6043 = vrot.lane.b32.xlu0 %v5005, 84
        %v6044 = vpop.permute.xlu0 %6043
        %6045 = vrot.lane.b32.xlu0 %v5006, 84
        %v6046 = vpop.permute.xlu0 %6045
        %v6066 = vrot.slane %v5005, 2
        %v6067 = vsel %vm4256, %v5685, %v6066
        %v6068 = vrot.slane %v5006, 2
        %v6069 = vsel %vm4256, %v6066, %v6068
        %v6070 = vrot.slane %v5007, 2
        %v6071 = vsel %vm4256, %v6068, %v6070
        %6072 = vrot.lane.b32.xlu0 %v5130, 90
        %v6073 = vpop.permute.xlu0 %6072
        %6074 = vrot.lane.b32.xlu0 %v5132, 90
        %v6075 = vpop.permute.xlu0 %6074
        %6076 = vrot.lane.b32.xlu0 %v5134, 90
        %v6077 = vpop.permute.xlu0 %6076
        %6078 = vrot.lane.b32.xlu0 %v5136, 90
        %v6079 = vpop.permute.xlu0 %6078
        %6080 = vrot.lane.b32.xlu0 %v5138, 90
        %v6081 = vpop.permute.xlu0 %6080
        %6082 = vrot.lane.b32.xlu0 %v5140, 90
        %v6083 = vpop.permute.xlu0 %6082
        %6084 = vrot.lane.b32.xlu0 %v5142, 90
        %v6085 = vpop.permute.xlu0 %6084
        %6086 = vrot.lane.b32.xlu0 %v5144, 90
        %v6087 = vpop.permute.xlu0 %6086
        %6088 = vrot.lane.b32.xlu0 %v5146, 90
        %v6089 = vpop.permute.xlu0 %6088
        %6090 = vrot.lane.b32.xlu0 %v5148, 90
        %v6091 = vpop.permute.xlu0 %6090
        %6092 = vrot.lane.b32.xlu0 %v5150, 90
        %v6093 = vpop.permute.xlu0 %6092
        %6094 = vrot.lane.b32.xlu0 %v5152, 90
        %v6095 = vpop.permute.xlu0 %6094
        %6096 = vrot.lane.b32.xlu0 %v5684, 90
        %v6097 = vpop.permute.xlu0 %6096
        %6098 = vrot.lane.b32.xlu0 %v5686, 90
        %v6099 = vpop.permute.xlu0 %6098
        %6100 = vrot.lane.b32.xlu0 %v6067, 90
        %v6101 = vpop.permute.xlu0 %6100
        %6102 = vrot.lane.b32.xlu0 %v6069, 90
        %v6103 = vpop.permute.xlu0 %6102
        %6104 = vrot.lane.b32.xlu0 %v6071, 90
        %v6105 = vpop.permute.xlu0 %6104
        %6106 = vrot.lane.b32.xlu0 %v6070, 90
        %v6107 = vpop.permute.xlu0 %6106
        %vm6126 = vcmask 48128
        %v6127 = vsel %vm6126, %v4985, %v5065
        %v6128 = vsel %vm6126, %v4986, %v5067
        %v6129 = vsel %vm6126, %v4987, %v5069
        %v6130 = vsel %vm6126, %v4988, %v5071
        %v6131 = vsel %vm6126, %v4989, %v5073
        %v6132 = vsel %vm6126, %v4990, %v5075
        %v6133 = vsel %vm6126, %v4991, %v5077
        %v6134 = vsel %vm6126, %v4992, %v5079
        %v6135 = vsel %vm6126, %v4993, %v5081
        %v6136 = vsel %vm6126, %v4994, %v5083
        %v6137 = vsel %vm6126, %v4995, %v5085
        %v6138 = vsel %vm6126, %v4996, %v5087
        %v6139 = vsel %vm6126, %v4997, %v5089
        %v6140 = vsel %vm6126, %v4998, %v5091
        %v6141 = vsel %vm6126, %v4999, %v5093
        %v6142 = vsel %vm6126, %v5000, %v5095
        %v6143 = vsel %vm6126, %v5001, %v5097
        %v6144 = vsel %vm6126, %v5002, %v5099
        %vm6145 = vcmask 97280
        %v6146 = vsel %vm6145, %v6127, %v5154
        %v6147 = vsel %vm6145, %v6128, %v5156
        %v6148 = vsel %vm6145, %v6129, %v5158
        %v6149 = vsel %vm6145, %v6130, %v5160
        %v6150 = vsel %vm6145, %v6131, %v5162
        %v6151 = vsel %vm6145, %v6132, %v5164
        %v6152 = vsel %vm6145, %v6133, %v5166
        %v6153 = vsel %vm6145, %v6134, %v5168
        %v6154 = vsel %vm6145, %v6135, %v5170
        %v6155 = vsel %vm6145, %v6136, %v5172
        %v6156 = vsel %vm6145, %v6137, %v5174
        %v6157 = vsel %vm6145, %v6138, %v5176
        %v6158 = vsel %vm6145, %v6139, %v5178
        %v6159 = vsel %vm6145, %v6140, %v5180
        %v6160 = vsel %vm6145, %v6141, %v5182
        %v6161 = vsel %vm6145, %v6142, %v5184
        %v6162 = vsel %vm6145, %v6143, %v5186
        %v6163 = vsel %vm6145, %v6144, %v5188
        %vm6164 = vcmask 146432
        %v6165 = vsel %vm6164, %v6146, %v5243
        %v6166 = vsel %vm6164, %v6147, %v5245
        %v6167 = vsel %vm6164, %v6148, %v5247
        %v6168 = vsel %vm6164, %v6149, %v5249
        %v6169 = vsel %vm6164, %v6150, %v5251
        %v6170 = vsel %vm6164, %v6151, %v5253
        %v6171 = vsel %vm6164, %v6152, %v5255
        %v6172 = vsel %vm6164, %v6153, %v5257
        %v6173 = vsel %vm6164, %v6154, %v5259
        %v6174 = vsel %vm6164, %v6155, %v5261
        %v6175 = vsel %vm6164, %v6156, %v5263
        %v6176 = vsel %vm6164, %v6157, %v5265
        %v6177 = vsel %vm6164, %v6158, %v5267
        %v6178 = vsel %vm6164, %v6159, %v5269
        %v6179 = vsel %vm6164, %v6160, %v5271
        %v6180 = vsel %vm6164, %v6161, %v5273
        %v6181 = vsel %vm6164, %v6162, %v5275
        %v6182 = vsel %vm6164, %v6163, %v5277
        %vm6183 = vcmask 195584
        %v6184 = vsel %vm6183, %v6165, %v5332
        %v6185 = vsel %vm6183, %v6166, %v5334
        %v6186 = vsel %vm6183, %v6167, %v5336
        %v6187 = vsel %vm6183, %v6168, %v5338
        %v6188 = vsel %vm6183, %v6169, %v5340
        %v6189 = vsel %vm6183, %v6170, %v5342
        %v6190 = vsel %vm6183, %v6171, %v5344
        %v6191 = vsel %vm6183, %v6172, %v5346
        %v6192 = vsel %vm6183, %v6173, %v5348
        %v6193 = vsel %vm6183, %v6174, %v5350
        %v6194 = vsel %vm6183, %v6175, %v5352
        %v6195 = vsel %vm6183, %v6176, %v5354
        %v6196 = vsel %vm6183, %v6177, %v5356
        %v6197 = vsel %vm6183, %v6178, %v5358
        %v6198 = vsel %vm6183, %v6179, %v5360
        %v6199 = vsel %vm6183, %v6180, %v5362
        %v6200 = vsel %vm6183, %v6181, %v5364
        %v6201 = vsel %vm6183, %v6182, %v5366
        %vm6202 = vcmask 244736
        %v6203 = vsel %vm6202, %v6184, %v5426
        %v6204 = vsel %vm6202, %v6185, %v5428
        %v6205 = vsel %vm6202, %v6186, %v5430
        %v6206 = vsel %vm6202, %v6187, %v5432
        %v6207 = vsel %vm6202, %v6188, %v5434
        %v6208 = vsel %vm6202, %v6189, %v5436
        %v6209 = vsel %vm6202, %v6190, %v5438
        %v6210 = vsel %vm6202, %v6191, %v5440
        %v6211 = vsel %vm6202, %v6192, %v5442
        %v6212 = vsel %vm6202, %v6193, %v5444
        %v6213 = vsel %vm6202, %v6194, %v5446
        %v6214 = vsel %vm6202, %v6195, %v5448
        %v6215 = vsel %vm6202, %v6196, %v5450
        %v6216 = vsel %vm6202, %v6197, %v5452
        %v6217 = vsel %vm6202, %v6198, %v5454
        %v6218 = vsel %vm6202, %v6199, %v5456
        %v6219 = vsel %vm6202, %v6200, %v5458
        %v6220 = vsel %vm6202, %v6201, %v5460
        %vm6221 = vcmask 293888
        %v6222 = vsel %vm6221, %v6203, %v5518
        %v6223 = vsel %vm6221, %v6204, %v5520
        %v6224 = vsel %vm6221, %v6205, %v5522
        %v6225 = vsel %vm6221, %v6206, %v5524
        %v6226 = vsel %vm6221, %v6207, %v5526
        %v6227 = vsel %vm6221, %v6208, %v5528
        %v6228 = vsel %vm6221, %v6209, %v5530
        %v6229 = vsel %vm6221, %v6210, %v5532
        %v6230 = vsel %vm6221, %v6211, %v5534
        %v6231 = vsel %vm6221, %v6212, %v5536
        %v6232 = vsel %vm6221, %v6213, %v5538
        %v6233 = vsel %vm6221, %v6214, %v5540
        %v6234 = vsel %vm6221, %v6215, %v5542
        %v6235 = vsel %vm6221, %v6216, %v5544
        %v6236 = vsel %vm6221, %v6217, %v5546
        %v6237 = vsel %vm6221, %v6218, %v5548
        %v6238 = vsel %vm6221, %v6219, %v5550
        %v6239 = vsel %vm6221, %v6220, %v5552
        %vm6240 = vcmask 343040
        %v6241 = vsel %vm6240, %v6222, %v5572
        %v6242 = vsel %vm6240, %v6223, %v5574
        %v6243 = vsel %vm6240, %v6224, %v5576
        %v6244 = vsel %vm6240, %v6225, %v5578
        %v6245 = vsel %vm6240, %v6226, %v5580
        %v6246 = vsel %vm6240, %v6227, %v5582
        %v6247 = vsel %vm6240, %v6228, %v5584
        %v6248 = vsel %vm6240, %v6229, %v5586
        %v6249 = vsel %vm6240, %v6230, %v5588
        %v6250 = vsel %vm6240, %v6231, %v5590
        %v6251 = vsel %vm6240, %v6232, %v5592
        %v6252 = vsel %vm6240, %v6233, %v5594
        %v6253 = vsel %vm6240, %v6234, %v5596
        %v6254 = vsel %vm6240, %v6235, %v5598
        %v6255 = vsel %vm6240, %v6236, %v5600
        %v6256 = vsel %vm6240, %v6237, %v5602
        %v6257 = vsel %vm6240, %v6238, %v5604
        %v6258 = vsel %vm6240, %v6239, %v5606
        %vm6259 = vcmask 392192
        %v6260 = vsel %vm6259, %v6241, %v5630
        %v6261 = vsel %vm6259, %v6242, %v5632
        %v6262 = vsel %vm6259, %v6243, %v5634
        %v6263 = vsel %vm6259, %v6244, %v5636
        %v6264 = vsel %vm6259, %v6245, %v5638
        %v6265 = vsel %vm6259, %v6246, %v5640
        %v6266 = vsel %vm6259, %v6247, %v5642
        %v6267 = vsel %vm6259, %v6248, %v5644
        %v6268 = vsel %vm6259, %v6249, %v5646
        %v6269 = vsel %vm6259, %v6250, %v5648
        %v6270 = vsel %vm6259, %v6251, %v5650
        %v6271 = vsel %vm6259, %v6252, %v5652
        %v6272 = vsel %vm6259, %v6253, %v5654
        %v6273 = vsel %vm6259, %v6254, %v5656
        %v6274 = vsel %vm6259, %v6255, %v5658
        %v6275 = vsel %vm6259, %v6256, %v5660
        %v6276 = vsel %vm6259, %v6257, %v5662
        %v6277 = vsel %vm6259, %v6258, %v5664
        %vm6278 = vcmask 441344
        %v6279 = vsel %vm6278, %v6260, %v5688
        %v6280 = vsel %vm6278, %v6261, %v5690
        %v6281 = vsel %vm6278, %v6262, %v5692
        %v6282 = vsel %vm6278, %v6263, %v5694
        %v6283 = vsel %vm6278, %v6264, %v5696
        %v6284 = vsel %vm6278, %v6265, %v5698
        %v6285 = vsel %vm6278, %v6266, %v5700
        %v6286 = vsel %vm6278, %v6267, %v5702
        %v6287 = vsel %vm6278, %v6268, %v5704
        %v6288 = vsel %vm6278, %v6269, %v5706
        %v6289 = vsel %vm6278, %v6270, %v5708
        %v6290 = vsel %vm6278, %v6271, %v5710
        %v6291 = vsel %vm6278, %v6272, %v5712
        %v6292 = vsel %vm6278, %v6273, %v5714
        %v6293 = vsel %vm6278, %v6274, %v5716
        %v6294 = vsel %vm6278, %v6275, %v5718
        %v6295 = vsel %vm6278, %v6276, %v5720
        %v6296 = vsel %vm6278, %v6277, %v5722
        %vm6297 = vcmask 490496
        %v6298 = vsel %vm6297, %v6279, %v5749
        %v6299 = vsel %vm6297, %v6280, %v5751
        %v6300 = vsel %vm6297, %v6281, %v5753
        %v6301 = vsel %vm6297, %v6282, %v5755
        %v6302 = vsel %vm6297, %v6283, %v5757
        %v6303 = vsel %vm6297, %v6284, %v5759
        %v6304 = vsel %vm6297, %v6285, %v5761
        %v6305 = vsel %vm6297, %v6286, %v5763
        %v6306 = vsel %vm6297, %v6287, %v5765
        %v6307 = vsel %vm6297, %v6288, %v5767
        %v6308 = vsel %vm6297, %v6289, %v5769
        %v6309 = vsel %vm6297, %v6290, %v5771
        %v6310 = vsel %vm6297, %v6291, %v5773
        %v6311 = vsel %vm6297, %v6292, %v5775
        %v6312 = vsel %vm6297, %v6293, %v5777
        %v6313 = vsel %vm6297, %v6294, %v5779
        %v6314 = vsel %vm6297, %v6295, %v5781
        %v6315 = vsel %vm6297, %v6296, %v5783
        %vm6316 = vcmask 539648
        %v6317 = vsel %vm6316, %v6298, %v5842
        %v6318 = vsel %vm6316, %v6299, %v5844
        %v6319 = vsel %vm6316, %v6300, %v5846
        %v6320 = vsel %vm6316, %v6301, %v5848
        %v6321 = vsel %vm6316, %v6302, %v5850
        %v6322 = vsel %vm6316, %v6303, %v5852
        %v6323 = vsel %vm6316, %v6304, %v5854
        %v6324 = vsel %vm6316, %v6305, %v5856
        %v6325 = vsel %vm6316, %v6306, %v5858
        %v6326 = vsel %vm6316, %v6307, %v5860
        %v6327 = vsel %vm6316, %v6308, %v5862
        %v6328 = vsel %vm6316, %v6309, %v5864
        %v6329 = vsel %vm6316, %v6310, %v5866
        %v6330 = vsel %vm6316, %v6311, %v5868
        %v6331 = vsel %vm6316, %v6312, %v5870
        %v6332 = vsel %vm6316, %v6313, %v5872
        %v6333 = vsel %vm6316, %v6314, %v5874
        %v6334 = vsel %vm6316, %v6315, %v5876
        %vm6335 = vcmask 588800
        %v6336 = vsel %vm6335, %v6317, %v5900
        %v6337 = vsel %vm6335, %v6318, %v5902
        %v6338 = vsel %vm6335, %v6319, %v5904
        %v6339 = vsel %vm6335, %v6320, %v5906
        %v6340 = vsel %vm6335, %v6321, %v5908
        %v6341 = vsel %vm6335, %v6322, %v5910
        %v6342 = vsel %vm6335, %v6323, %v5912
        %v6343 = vsel %vm6335, %v6324, %v5914
        %v6344 = vsel %vm6335, %v6325, %v5916
        %v6345 = vsel %vm6335, %v6326, %v5918
        %v6346 = vsel %vm6335, %v6327, %v5920
        %v6347 = vsel %vm6335, %v6328, %v5922
        %v6348 = vsel %vm6335, %v6329, %v5924
        %v6349 = vsel %vm6335, %v6330, %v5926
        %v6350 = vsel %vm6335, %v6331, %v5928
        %v6351 = vsel %vm6335, %v6332, %v5930
        %v6352 = vsel %vm6335, %v6333, %v5932
        %v6353 = vsel %vm6335, %v6334, %v5934
        %vm6354 = vcmask 637952
        %v6355 = vsel %vm6354, %v6336, %v5958
        %v6356 = vsel %vm6354, %v6337, %v5960
        %v6357 = vsel %vm6354, %v6338, %v5962
        %v6358 = vsel %vm6354, %v6339, %v5964
        %v6359 = vsel %vm6354, %v6340, %v5966
        %v6360 = vsel %vm6354, %v6341, %v5968
        %v6361 = vsel %vm6354, %v6342, %v5970
        %v6362 = vsel %vm6354, %v6343, %v5972
        %v6363 = vsel %vm6354, %v6344, %v5974
        %v6364 = vsel %vm6354, %v6345, %v5976
        %v6365 = vsel %vm6354, %v6346, %v5978
        %v6366 = vsel %vm6354, %v6347, %v5980
        %v6367 = vsel %vm6354, %v6348, %v5982
        %v6368 = vsel %vm6354, %v6349, %v5984
        %v6369 = vsel %vm6354, %v6350, %v5986
        %v6370 = vsel %vm6354, %v6351, %v5988
        %v6371 = vsel %vm6354, %v6352, %v5990
        %v6372 = vsel %vm6354, %v6353, %v5992
        %vm6373 = vcmask 687104
        %v6374 = vsel %vm6373, %v6355, %v6012
        %v6375 = vsel %vm6373, %v6356, %v6014
        %v6376 = vsel %vm6373, %v6357, %v6016
        %v6377 = vsel %vm6373, %v6358, %v6018
        %v6378 = vsel %vm6373, %v6359, %v6020
        %v6379 = vsel %vm6373, %v6360, %v6022
        %v6380 = vsel %vm6373, %v6361, %v6024
        %v6381 = vsel %vm6373, %v6362, %v6026
        %v6382 = vsel %vm6373, %v6363, %v6028
        %v6383 = vsel %vm6373, %v6364, %v6030
        %v6384 = vsel %vm6373, %v6365, %v6032
        %v6385 = vsel %vm6373, %v6366, %v6034
        %v6386 = vsel %vm6373, %v6367, %v6036
        %v6387 = vsel %vm6373, %v6368, %v6038
        %v6388 = vsel %vm6373, %v6369, %v6040
        %v6389 = vsel %vm6373, %v6370, %v6042
        %v6390 = vsel %vm6373, %v6371, %v6044
        %v6391 = vsel %vm6373, %v6372, %v6046
        %vm6392 = vcmask 736256
        %v6393 = vsel %vm6392, %v6374, %v6073
        %v6394 = vsel %vm6392, %v6375, %v6075
        %v6395 = vsel %vm6392, %v6376, %v6077
        %v6396 = vsel %vm6392, %v6377, %v6079
        %v6397 = vsel %vm6392, %v6378, %v6081
        %v6398 = vsel %vm6392, %v6379, %v6083
        %v6399 = vsel %vm6392, %v6380, %v6085
        %v6400 = vsel %vm6392, %v6381, %v6087
        %v6401 = vsel %vm6392, %v6382, %v6089
        %v6402 = vsel %vm6392, %v6383, %v6091
        %v6403 = vsel %vm6392, %v6384, %v6093
        %v6404 = vsel %vm6392, %v6385, %v6095
        %v6405 = vsel %vm6392, %v6386, %v6097
        %v6406 = vsel %vm6392, %v6387, %v6099
        %v6407 = vsel %vm6392, %v6388, %v6101
        %v6408 = vsel %vm6392, %v6389, %v6103
        %v6409 = vsel %vm6392, %v6390, %v6105
        %v6410 = vsel %vm6392, %v6391, %v6107
        %v6411 = vrot.slane %v5005, 1
        %v6412 = vsel %vm5028, %v5627, %v6411
        %v6413 = vrot.slane %v5006, 1
        %v6414 = vsel %vm5028, %v6411, %v6413
        %v6415 = vrot.slane %v5007, 1
        %v6416 = vsel %vm5028, %v6413, %v6415
        %6417 = vrot.lane.b32.xlu0 %v5626, 6
        %v6418 = vpop.permute.xlu0 %6417
        %6419 = vrot.lane.b32.xlu0 %v5628, 6
        %v6420 = vpop.permute.xlu0 %6419
        %6421 = vrot.lane.b32.xlu0 %v6412, 6
        %v6422 = vpop.permute.xlu0 %6421
        %6423 = vrot.lane.b32.xlu0 %v6414, 6
        %v6424 = vpop.permute.xlu0 %6423
        %6425 = vrot.lane.b32.xlu0 %v6416, 6
        %v6426 = vpop.permute.xlu0 %6425
        %6427 = vrot.lane.b32.xlu0 %v6415, 6
        %v6428 = vpop.permute.xlu0 %6427
        %v6436 = vrot.slane %v5008, 2
        %v6437 = vsel %vm4256, %v6070, %v6436
        %6438 = vrot.lane.b32.xlu0 %v5684, 12
        %v6439 = vpop.permute.xlu0 %6438
        %6440 = vrot.lane.b32.xlu0 %v5686, 12
        %v6441 = vpop.permute.xlu0 %6440
        %6442 = vrot.lane.b32.xlu0 %v6067, 12
        %v6443 = vpop.permute.xlu0 %6442
        %6444 = vrot.lane.b32.xlu0 %v6069, 12
        %v6445 = vpop.permute.xlu0 %6444
        %6446 = vrot.lane.b32.xlu0 %v6071, 12
        %v6447 = vpop.permute.xlu0 %6446
        %6448 = vrot.lane.b32.xlu0 %v6437, 12
        %v6449 = vpop.permute.xlu0 %6448
        %v6456 = vrot.slane %v5003, 3
        %v6457 = vsel %vm673, %v5240, %v6456
        %v6458 = vrot.slane %v5004, 3
        %v6459 = vsel %vm673, %v6456, %v6458
        %v6460 = vrot.slane %v5005, 3
        %v6461 = vsel %vm673, %v6458, %v6460
        %v6462 = vrot.slane %v5006, 3
        %v6463 = vsel %vm673, %v6460, %v6462
        %v6464 = vrot.slane %v5007, 3
        %v6465 = vsel %vm673, %v6462, %v6464
        %v6466 = vrot.slane %v5008, 3
        %v6467 = vsel %vm673, %v6464, %v6466
        %6468 = vrot.lane.b32.xlu0 %v6457, 18
        %v6469 = vpop.permute.xlu0 %6468
        %6470 = vrot.lane.b32.xlu0 %v6459, 18
        %v6471 = vpop.permute.xlu0 %6470
        %6472 = vrot.lane.b32.xlu0 %v6461, 18
        %v6473 = vpop.permute.xlu0 %6472
        %6474 = vrot.lane.b32.xlu0 %v6463, 18
        %v6475 = vpop.permute.xlu0 %6474
        %6476 = vrot.lane.b32.xlu0 %v6465, 18
        %v6477 = vpop.permute.xlu0 %6476
        %6478 = vrot.lane.b32.xlu0 %v6467, 18
        %v6479 = vpop.permute.xlu0 %6478
        %v6487 = vrot.slane %v5007, 5
        %v6488 = vsel %vm5803, %v5839, %v6487
        %v6489 = vrot.slane %v5008, 5
        %v6490 = vsel %vm5803, %v6487, %v6489
        %v6491 = vrot.slane %v5009, 5
        %v6492 = vsel %vm5803, %v6489, %v6491
        %6493 = vrot.lane.b32.xlu0 %v5811, 24
        %v6494 = vpop.permute.xlu0 %6493
        %6495 = vrot.lane.b32.xlu0 %v5814, 24
        %v6496 = vpop.permute.xlu0 %6495
        %6497 = vrot.lane.b32.xlu0 %v5816, 24
        %v6498 = vpop.permute.xlu0 %6497
        %6499 = vrot.lane.b32.xlu0 %v5818, 24
        %v6500 = vpop.permute.xlu0 %6499
        %6501 = vrot.lane.b32.xlu0 %v5820, 24
        %v6502 = vpop.permute.xlu0 %6501
        %6503 = vrot.lane.b32.xlu0 %v5822, 24
        %v6504 = vpop.permute.xlu0 %6503
        %6505 = vrot.lane.b32.xlu0 %v5824, 24
        %v6506 = vpop.permute.xlu0 %6505
        %6507 = vrot.lane.b32.xlu0 %v5826, 24
        %v6508 = vpop.permute.xlu0 %6507
        %6509 = vrot.lane.b32.xlu0 %v5828, 24
        %v6510 = vpop.permute.xlu0 %6509
        %6511 = vrot.lane.b32.xlu0 %v5830, 24
        %v6512 = vpop.permute.xlu0 %6511
        %6513 = vrot.lane.b32.xlu0 %v5832, 24
        %v6514 = vpop.permute.xlu0 %6513
        %6515 = vrot.lane.b32.xlu0 %v5834, 24
        %v6516 = vpop.permute.xlu0 %6515
        %6517 = vrot.lane.b32.xlu0 %v5836, 24
        %v6518 = vpop.permute.xlu0 %6517
        %6519 = vrot.lane.b32.xlu0 %v5838, 24
        %v6520 = vpop.permute.xlu0 %6519
        %6521 = vrot.lane.b32.xlu0 %v5840, 24
        %v6522 = vpop.permute.xlu0 %6521
        %6523 = vrot.lane.b32.xlu0 %v6488, 24
        %v6524 = vpop.permute.xlu0 %6523
        %6525 = vrot.lane.b32.xlu0 %v6490, 24
        %v6526 = vpop.permute.xlu0 %6525
        %6527 = vrot.lane.b32.xlu0 %v6492, 24
        %v6528 = vpop.permute.xlu0 %6527
        %v6547 = vrot.slane %v5007, 6
        %v6548 = vsel %vm5387, %v5897, %v6547
        %v6549 = vrot.slane %v5008, 6
        %v6550 = vsel %vm5387, %v6547, %v6549
        %v6551 = vrot.slane %v5009, 6
        %v6552 = vsel %vm5387, %v6549, %v6551
        %6553 = vrot.lane.b32.xlu0 %v5399, 30
        %v6554 = vpop.permute.xlu0 %6553
        %6555 = vrot.lane.b32.xlu0 %v5896, 30
        %v6556 = vpop.permute.xlu0 %6555
        %6557 = vrot.lane.b32.xlu0 %v5898, 30
        %v6558 = vpop.permute.xlu0 %6557
        %6559 = vrot.lane.b32.xlu0 %v6548, 30
        %v6560 = vpop.permute.xlu0 %6559
        %6561 = vrot.lane.b32.xlu0 %v6550, 30
        %v6562 = vpop.permute.xlu0 %6561
        %6563 = vrot.lane.b32.xlu0 %v6552, 30
        %v6564 = vpop.permute.xlu0 %6563
        %v6571 = vrot.slane %v5007, 7
        %v6572 = vsel %vm5479, %v5955, %v6571
        %v6573 = vrot.slane %v5008, 7
        %v6574 = vsel %vm5479, %v6571, %v6573
        %v6575 = vrot.slane %v5009, 7
        %v6576 = vsel %vm5479, %v6573, %v6575
        %6577 = vrot.lane.b32.xlu0 %v5491, 36
        %v6578 = vpop.permute.xlu0 %6577
        %6579 = vrot.lane.b32.xlu0 %v5954, 36
        %v6580 = vpop.permute.xlu0 %6579
        %6581 = vrot.lane.b32.xlu0 %v5956, 36
        %v6582 = vpop.permute.xlu0 %6581
        %6583 = vrot.lane.b32.xlu0 %v6572, 36
        %v6584 = vpop.permute.xlu0 %6583
        %6585 = vrot.lane.b32.xlu0 %v6574, 36
        %v6586 = vpop.permute.xlu0 %6585
        %6587 = vrot.lane.b32.xlu0 %v6576, 36
        %v6588 = vpop.permute.xlu0 %6587
        %6595 = vrot.lane.b32.xlu0 %v5005, 42
        %v6596 = vpop.permute.xlu0 %6595
        %6597 = vrot.lane.b32.xlu0 %v5006, 42
        %v6598 = vpop.permute.xlu0 %6597
        %6599 = vrot.lane.b32.xlu0 %v5007, 42
        %v6600 = vpop.permute.xlu0 %6599
        %6601 = vrot.lane.b32.xlu0 %v5008, 42
        %v6602 = vpop.permute.xlu0 %6601
        %6603 = vrot.lane.b32.xlu0 %v5009, 42
        %v6604 = vpop.permute.xlu0 %6603
        %v6610 = vrot.slane %v5008, 1
        %v6611 = vsel %vm5028, %v6415, %v6610
        %v6612 = vrot.slane %v5009, 1
        %v6613 = vsel %vm5028, %v6610, %v6612
        %6614 = vrot.lane.b32.xlu0 %v6412, 48
        %v6615 = vpop.permute.xlu0 %6614
        %6616 = vrot.lane.b32.xlu0 %v6414, 48
        %v6617 = vpop.permute.xlu0 %6616
        %6618 = vrot.lane.b32.xlu0 %v6416, 48
        %v6619 = vpop.permute.xlu0 %6618
        %6620 = vrot.lane.b32.xlu0 %v6611, 48
        %v6621 = vpop.permute.xlu0 %6620
        %6622 = vrot.lane.b32.xlu0 %v6613, 48
        %v6623 = vpop.permute.xlu0 %6622
        %6624 = vrot.lane.b32.xlu0 %v6612, 48
        %v6625 = vpop.permute.xlu0 %6624
        %v6632 = vsel %vm6126, %v5002, %v6418
        %v6633 = vsel %vm6126, %v5003, %v6420
        %v6634 = vsel %vm6126, %v5004, %v6422
        %v6635 = vsel %vm6126, %v5005, %v6424
        %v6636 = vsel %vm6126, %v5006, %v6426
        %v6637 = vsel %vm6126, %v5007, %v6428
        %v6638 = vsel %vm6145, %v6632, %v6439
        %v6639 = vsel %vm6145, %v6633, %v6441
        %v6640 = vsel %vm6145, %v6634, %v6443
        %v6641 = vsel %vm6145, %v6635, %v6445
        %v6642 = vsel %vm6145, %v6636, %v6447
        %v6643 = vsel %vm6145, %v6637, %v6449
        %v6644 = vsel %vm6164, %v6638, %v6469
        %v6645 = vsel %vm6164, %v6639, %v6471
        %v6646 = vsel %vm6164, %v6640, %v6473
        %v6647 = vsel %vm6164, %v6641, %v6475
        %v6648 = vsel %vm6164, %v6642, %v6477
        %v6649 = vsel %vm6164, %v6643, %v6479
        %v6650 = vsel %vm6183, %v6170, %v6494
        %v6651 = vsel %vm6183, %v6171, %v6496
        %v6652 = vsel %vm6183, %v6172, %v6498
        %v6653 = vsel %vm6183, %v6173, %v6500
        %v6654 = vsel %vm6183, %v6174, %v6502
        %v6655 = vsel %vm6183, %v6175, %v6504
        %v6656 = vsel %vm6183, %v6176, %v6506
        %v6657 = vsel %vm6183, %v6177, %v6508
        %v6658 = vsel %vm6183, %v6178, %v6510
        %v6659 = vsel %vm6183, %v6179, %v6512
        %v6660 = vsel %vm6183, %v6180, %v6514
        %v6661 = vsel %vm6183, %v6181, %v6516
        %v6662 = vsel %vm6183, %v6644, %v6518
        %v6663 = vsel %vm6183, %v6645, %v6520
        %v6664 = vsel %vm6183, %v6646, %v6522
        %v6665 = vsel %vm6183, %v6647, %v6524
        %v6666 = vsel %vm6183, %v6648, %v6526
        %v6667 = vsel %vm6183, %v6649, %v6528
        %v6668 = vsel %vm6202, %v6650, %v6554
        %v6669 = vsel %vm6202, %v6651, %v5438
        %v6670 = vsel %vm6202, %v6652, %v5440
        %v6671 = vsel %vm6202, %v6653, %v5442
        %v6672 = vsel %vm6202, %v6654, %v5444
        %v6673 = vsel %vm6202, %v6655, %v5446
        %v6674 = vsel %vm6202, %v6656, %v5448
        %v6675 = vsel %vm6202, %v6657, %v5450
        %v6676 = vsel %vm6202, %v6658, %v5452
        %v6677 = vsel %vm6202, %v6659, %v5454
        %v6678 = vsel %vm6202, %v6660, %v5456
        %v6679 = vsel %vm6202, %v6661, %v5458
        %v6680 = vsel %vm6202, %v6662, %v5460
        %v6681 = vsel %vm6202, %v6663, %v6556
        %v6682 = vsel %vm6202, %v6664, %v6558
        %v6683 = vsel %vm6202, %v6665, %v6560
        %v6684 = vsel %vm6202, %v6666, %v6562
        %v6685 = vsel %vm6202, %v6667, %v6564
        %v6686 = vsel %vm6221, %v6668, %v6578
        %v6687 = vsel %vm6221, %v6669, %v5530
        %v6688 = vsel %vm6221, %v6670, %v5532
        %v6689 = vsel %vm6221, %v6671, %v5534
        %v6690 = vsel %vm6221, %v6672, %v5536
        %v6691 = vsel %vm6221, %v6673, %v5538
        %v6692 = vsel %vm6221, %v6674, %v5540
        %v6693 = vsel %vm6221, %v6675, %v5542
        %v6694 = vsel %vm6221, %v6676, %v5544
        %v6695 = vsel %vm6221, %v6677, %v5546
        %v6696 = vsel %vm6221, %v6678, %v5548
        %v6697 = vsel %vm6221, %v6679, %v5550
        %v6698 = vsel %vm6221, %v6680, %v5552
        %v6699 = vsel %vm6221, %v6681, %v6580
        %v6700 = vsel %vm6221, %v6682, %v6582
        %v6701 = vsel %vm6221, %v6683, %v6584
        %v6702 = vsel %vm6221, %v6684, %v6586
        %v6703 = vsel %vm6221, %v6685, %v6588
        %v6704 = vsel %vm6240, %v6686, %v5582
        %v6705 = vsel %vm6240, %v6687, %v5584
        %v6706 = vsel %vm6240, %v6688, %v5586
        %v6707 = vsel %vm6240, %v6689, %v5588
        %v6708 = vsel %vm6240, %v6690, %v5590
        %v6709 = vsel %vm6240, %v6691, %v5592
        %v6710 = vsel %vm6240, %v6692, %v5594
        %v6711 = vsel %vm6240, %v6693, %v5596
        %v6712 = vsel %vm6240, %v6694, %v5598
        %v6713 = vsel %vm6240, %v6695, %v5600
        %v6714 = vsel %vm6240, %v6696, %v5602
        %v6715 = vsel %vm6240, %v6697, %v5604
        %v6716 = vsel %vm6240, %v6698, %v5606
        %v6717 = vsel %vm6240, %v6699, %v6596
        %v6718 = vsel %vm6240, %v6700, %v6598
        %v6719 = vsel %vm6240, %v6701, %v6600
        %v6720 = vsel %vm6240, %v6702, %v6602
        %v6721 = vsel %vm6240, %v6703, %v6604
        %v6722 = vsel %vm6259, %v6704, %v5640
        %v6723 = vsel %vm6259, %v6705, %v5642
        %v6724 = vsel %vm6259, %v6706, %v5644
        %v6725 = vsel %vm6259, %v6707, %v5646
        %v6726 = vsel %vm6259, %v6708, %v5648
        %v6727 = vsel %vm6259, %v6709, %v5650
        %v6728 = vsel %vm6259, %v6710, %v5652
        %v6729 = vsel %vm6259, %v6711, %v5654
        %v6730 = vsel %vm6259, %v6712, %v5656
        %v6731 = vsel %vm6259, %v6713, %v5658
        %v6732 = vsel %vm6259, %v6714, %v5660
        %v6733 = vsel %vm6259, %v6715, %v5662
        %v6734 = vsel %vm6259, %v6716, %v6615
        %v6735 = vsel %vm6259, %v6717, %v6617
        %v6736 = vsel %vm6259, %v6718, %v6619
        %v6737 = vsel %vm6259, %v6719, %v6621
        %v6738 = vsel %vm6259, %v6720, %v6623
        %v6739 = vsel %vm6259, %v6721, %v6625
        %v6758 = vrot.slane %v6722, 3
        %v6759 = vrot.slane %v6723, 3
        %v6760 = vsel %vm673, %v6758, %v6759
        %v6761 = vrot.slane %v6724, 3
        %v6762 = vsel %vm673, %v6759, %v6761
        %v6763 = vrot.slane %v6725, 3
        %v6764 = vsel %vm673, %v6761, %v6763
        %v6765 = vrot.slane %v6726, 3
        %v6766 = vsel %vm673, %v6763, %v6765
        %v6767 = vrot.slane %v6727, 3
        %v6768 = vsel %vm673, %v6765, %v6767
        %v6769 = vrot.slane %v6728, 3
        %v6770 = vsel %vm673, %v6767, %v6769
        %v6771 = vrot.slane %v6729, 3
        %v6772 = vsel %vm673, %v6769, %v6771
        %v6773 = vrot.slane %v6730, 3
        %v6774 = vsel %vm673, %v6771, %v6773
        %v6775 = vrot.slane %v6731, 3
        %v6776 = vsel %vm673, %v6773, %v6775
        %v6777 = vrot.slane %v6732, 3
        %v6778 = vsel %vm673, %v6775, %v6777
        %v6779 = vrot.slane %v6733, 3
        %v6780 = vsel %vm673, %v6777, %v6779
        %v6781 = vrot.slane %v6734, 3
        %v6782 = vsel %vm673, %v6779, %v6781
        %v6783 = vrot.slane %v6735, 3
        %v6784 = vsel %vm673, %v6781, %v6783
        %v6785 = vrot.slane %v6736, 3
        %v6786 = vsel %vm673, %v6783, %v6785
        %v6787 = vrot.slane %v6737, 3
        %v6788 = vsel %vm673, %v6785, %v6787
        %v6789 = vrot.slane %v6738, 3
        %v6790 = vsel %vm673, %v6787, %v6789
        %v6791 = vrot.slane %v6739, 3
        %v6792 = vsel %vm673, %v6789, %v6791
        %6793 = vrot.lane.b32.xlu0 %v6760, 96
        %v6794 = vpop.permute.xlu0 %6793
        %6795 = vrot.lane.b32.xlu0 %v6762, 96
        %v6796 = vpop.permute.xlu0 %6795
        %6797 = vrot.lane.b32.xlu0 %v6764, 96
        %v6798 = vpop.permute.xlu0 %6797
        %6799 = vrot.lane.b32.xlu0 %v6766, 96
        %v6800 = vpop.permute.xlu0 %6799
        %6801 = vrot.lane.b32.xlu0 %v6768, 96
        %v6802 = vpop.permute.xlu0 %6801
        %6803 = vrot.lane.b32.xlu0 %v6770, 96
        %v6804 = vpop.permute.xlu0 %6803
        %6805 = vrot.lane.b32.xlu0 %v6772, 96
        %v6806 = vpop.permute.xlu0 %6805
        %6807 = vrot.lane.b32.xlu0 %v6774, 96
        %v6808 = vpop.permute.xlu0 %6807
        %6809 = vrot.lane.b32.xlu0 %v6776, 96
        %v6810 = vpop.permute.xlu0 %6809
        %6811 = vrot.lane.b32.xlu0 %v6778, 96
        %v6812 = vpop.permute.xlu0 %6811
        %6813 = vrot.lane.b32.xlu0 %v6780, 96
        %v6814 = vpop.permute.xlu0 %6813
        %6815 = vrot.lane.b32.xlu0 %v6782, 96
        %v6816 = vpop.permute.xlu0 %6815
        %6817 = vrot.lane.b32.xlu0 %v6784, 96
        %v6818 = vpop.permute.xlu0 %6817
        %6819 = vrot.lane.b32.xlu0 %v6786, 96
        %v6820 = vpop.permute.xlu0 %6819
        %6821 = vrot.lane.b32.xlu0 %v6788, 96
        %v6822 = vpop.permute.xlu0 %6821
        %6823 = vrot.lane.b32.xlu0 %v6790, 96
        %v6824 = vpop.permute.xlu0 %6823
        %6825 = vrot.lane.b32.xlu0 %v6792, 96
        %v6826 = vpop.permute.xlu0 %6825
        %6827 = vrot.lane.b32.xlu0 %v6791, 96
        %v6828 = vpop.permute.xlu0 %6827
        %vm6847 = vcmask 785408
        %v6848 = vsel %vm6847, %v6393, %v6794
        %v6849 = vsel %vm6847, %v6394, %v6796
        %v6850 = vsel %vm6847, %v6395, %v6798
        %v6851 = vsel %vm6847, %v6396, %v6800
        %v6852 = vsel %vm6847, %v6397, %v6802
        %v6853 = vsel %vm6847, %v6398, %v6804
        %v6854 = vsel %vm6847, %v6399, %v6806
        %v6855 = vsel %vm6847, %v6400, %v6808
        %v6856 = vsel %vm6847, %v6401, %v6810
        %v6857 = vsel %vm6847, %v6402, %v6812
        %v6858 = vsel %vm6847, %v6403, %v6814
        %v6859 = vsel %vm6847, %v6404, %v6816
        %v6860 = vsel %vm6847, %v6405, %v6818
        %v6861 = vsel %vm6847, %v6406, %v6820
        %v6862 = vsel %vm6847, %v6407, %v6822
        %v6863 = vsel %vm6847, %v6408, %v6824
        %v6864 = vsel %vm6847, %v6409, %v6826
        %v6865 = vsel %vm6847, %v6410, %v6828
        %v6866 = vpack.c.bf16 %v6849, %v6848
        %v6867 = vpack.c.bf16 %v6796, %v6794
        %v6868 = vpack.c.bf16 %v6851, %v6850
        %v6869 = vpack.c.bf16 %v6800, %v6798
        %v6870 = vpack.c.bf16 %v6853, %v6852
        %v6871 = vpack.c.bf16 %v6804, %v6802
        %v6872 = vpack.c.bf16 %v6855, %v6854
        %v6873 = vpack.c.bf16 %v6808, %v6806
        %v6874 = vpack.c.bf16 %v6857, %v6856
        %v6875 = vpack.c.bf16 %v6812, %v6810
        %v6876 = vpack.c.bf16 %v6859, %v6858
        %v6877 = vpack.c.bf16 %v6816, %v6814
        %v6878 = vpack.c.bf16 %v6861, %v6860
        %v6879 = vpack.c.bf16 %v6820, %v6818
        %v6880 = vpack.c.bf16 %v6863, %v6862
        %v6881 = vpack.c.bf16 %v6824, %v6822
        %v6882 = vpack.c.bf16 %v6865, %v6864
        %v6883 = vpack.c.bf16 %v6828, %v6826
        %v6884 = vld [vmem:[%s3] sm:$0xf]
        %v6885 = vld [vmem:[%s3 + $0x4] sm:$0xf]
        %v6886 = vld [vmem:[%s3 + $0x8] sm:$0xf]
        %v6887 = vld [vmem:[%s3 + $0xc] sm:$0xf]
        %v6888 = vld [vmem:[%s3 + $0x10] sm:$0xf]
        %v6889 = vld [vmem:[%s3 + $0x14] sm:$0xf]
        %v6890 = vld [vmem:[%s3 + $0x18] sm:$0xf]
        %v6891 = vld [vmem:[%s3 + $0x1c] sm:$0xf]
        %v6892 = vld [vmem:[%s3 + $0x20] sm:$0xf]
        %v6893 = vld [vmem:[%s3 + $0x24] sm:$0xf]
        %v6894 = vld [vmem:[%s3 + $0x28] sm:$0xf]
        %v6895 = vld [vmem:[%s3 + $0x2c] sm:$0xf]
        %v6896 = vld [vmem:[%s3 + $0x30] sm:$0xf]
        %v6897 = vld [vmem:[%s3 + $0x34] sm:$0xf]
        %v6898 = vld [vmem:[%s3 + $0x38] sm:$0xf]
        %v6899 = vld [vmem:[%s3 + $0x3c] sm:$0xf]
        %v6900 = vld [vmem:[%s3 + $0x40] sm:$0xf]
        %v6901 = vld [vmem:[%s3 + $0x44] sm:$0xf]
        %v6902 = vld [vmem:[%s3 + $0x48] sm:$0x7]
        %v6922 = vunpack.c.l.b16 %v6884
        %v6923 = vunpack.c.l.b16 %v6885
        %v6924 = vunpack.c.l.b16 %v6886
        %v6925 = vunpack.c.l.b16 %v6887
        %v6926 = vunpack.c.l.b16 %v6888
        %v6927 = vunpack.c.l.b16 %v6889
        %v6928 = vunpack.c.l.b16 %v6890
        %v6929 = vunpack.c.l.b16 %v6891
        %v6930 = vunpack.c.l.b16 %v6892
        %v6931 = vunpack.c.l.b16 %v6893
        %v6932 = vunpack.c.l.b16 %v6894
        %v6933 = vunpack.c.l.b16 %v6895
        %v6934 = vunpack.c.l.b16 %v6896
        %v6935 = vunpack.c.l.b16 %v6897
        %v6936 = vunpack.c.l.b16 %v6898
        %v6937 = vunpack.c.l.b16 %v6899
        %v6938 = vunpack.c.l.b16 %v6900
        %v6939 = vunpack.c.l.b16 %v6901
        %v6940 = vunpack.c.l.b16 %v6902
        %v6941 = vpack.c.b16 %v6923, %v6922
        %v6942 = vpack.c.b16 %v6925, %v6924
        %v6943 = vpack.c.b16 %v6927, %v6926
        %v6944 = vpack.c.b16 %v6929, %v6928
        %v6945 = vpack.c.b16 %v6931, %v6930
        %v6946 = vpack.c.b16 %v6933, %v6932
        %v6947 = vpack.c.b16 %v6935, %v6934
        %v6948 = vpack.c.b16 %v6937, %v6936
        %v6949 = vpack.c.b16 %v6939, %v6938
        %v6950 = vpack.c.b16 %v6940, %v6940
        %v6961 = vsel %vm3943, %v6867, 0
        %v6964 = vsel %vm3943, %v6869, 0
        %v6967 = vsel %vm3943, %v6871, 0
        %v6970 = vsel %vm3943, %v6873, 0
        %v6973 = vsel %vm3943, %v6875, 0
        %v6976 = vsel %vm3943, %v6877, 0
        %v6979 = vsel %vm3943, %v6879, 0
        %v6982 = vsel %vm3943, %v6881, 0
        %v6985 = vsel %vm3943, %v6883, 0
        %v6988 = vsel %vm5803, %v6950, 0
        %6990 = vmatpush.bf16.msra.mxu0 %v6948
        %6991 = vmatpush.bf16.msra.mxu0 %v6947
        %6992 = vmatpush.bf16.msra.mxu0 %v6946
        %6993 = vmatpush.bf16.msra.mxu0 %v6945
        %6994 = vmatpush.bf16.msra.mxu0 %v6944
        %6995 = vmatpush.bf16.msra.mxu0 %v6943
        %6996 = vmatpush.bf16.msra.mxu0 %v6942
        %6997 = vmatpush.bf16.msra.mxu0 %v6941
        %6998 = vmatmul.bf16.gmra.mxu0 %v6866
        %v6999 = vpop.f32.mrf.mxu0
        %v7000 = vadd.f32 0.0, %v6999
        %v7001 = vpop.f32.mrf.mxu0
        %v7002 = vadd.f32 0.0, %v7001
        %7003 = vmatmul.bf16.gmra.mxu0 %v6868
        %v7004 = vpop.f32.mrf.mxu0
        %v7005 = vadd.f32 0.0, %v7004
        %v7006 = vpop.f32.mrf.mxu0
        %v7007 = vadd.f32 0.0, %v7006
        %7008 = vmatmul.bf16.gmra.mxu0 %v6870
        %v7009 = vpop.f32.mrf.mxu0
        %v7010 = vadd.f32 0.0, %v7009
        %v7011 = vpop.f32.mrf.mxu0
        %v7012 = vadd.f32 0.0, %v7011
        %7013 = vmatmul.bf16.gmra.mxu0 %v6872
        %v7014 = vpop.f32.mrf.mxu0
        %v7015 = vadd.f32 0.0, %v7014
        %v7016 = vpop.f32.mrf.mxu0
        %v7017 = vadd.f32 0.0, %v7016
        %7018 = vmatmul.bf16.gmra.mxu0 %v6874
        %v7019 = vpop.f32.mrf.mxu0
        %v7020 = vadd.f32 0.0, %v7019
        %v7021 = vpop.f32.mrf.mxu0
        %v7022 = vadd.f32 0.0, %v7021
        %7023 = vmatmul.bf16.gmra.mxu0 %v6876
        %v7024 = vpop.f32.mrf.mxu0
        %v7025 = vadd.f32 0.0, %v7024
        %v7026 = vpop.f32.mrf.mxu0
        %v7027 = vadd.f32 0.0, %v7026
        %7028 = vmatmul.bf16.gmra.mxu0 %v6878
        %v7029 = vpop.f32.mrf.mxu0
        %v7030 = vadd.f32 0.0, %v7029
        %v7031 = vpop.f32.mrf.mxu0
        %v7032 = vadd.f32 0.0, %v7031
        %7033 = vmatmul.bf16.gmra.mxu0 %v6880
        %v7034 = vpop.f32.mrf.mxu0
        %v7035 = vadd.f32 0.0, %v7034
        %v7036 = vpop.f32.mrf.mxu0
        %v7037 = vadd.f32 0.0, %v7036
        %7038 = vmatmul.bf16.gmra.mxu0 %v6882
        %v7039 = vpop.f32.mrf.mxu0
        %v7040 = vadd.f32 0.0, %v7039
        %v7041 = vpop.f32.mrf.mxu0
        %v7042 = vadd.f32 0.0, %v7041
        %7043 = vdwg.mxu0
        %7044 = vmatpush.bf16.msra.mxu0 0
        %7045 = vmatpush.bf16.msra.mxu0 0
        %7046 = vmatpush.bf16.msra.mxu0 0
        %7047 = vmatpush.bf16.msra.mxu0 0
        %7048 = vmatpush.bf16.msra.mxu0 0
        %7049 = vmatpush.bf16.msra.mxu0 0
        %7050 = vmatpush.bf16.msra.mxu0 %v6988
        %7051 = vmatpush.bf16.msra.mxu0 %v6949
        %7052 = vmatmul.bf16.gmra.mxu0 %v6961
        %v7053 = vpop.f32.mrf.mxu0
        %v7054 = vadd.f32 %v7000, %v7053
        %v7055 = vpop.f32.mrf.mxu0
        %v7056 = vadd.f32 %v7002, %v7055
        %7057 = vmatmul.bf16.gmra.mxu0 %v6964
        %v7058 = vpop.f32.mrf.mxu0
        %v7059 = vadd.f32 %v7005, %v7058
        %v7060 = vpop.f32.mrf.mxu0
        %v7061 = vadd.f32 %v7007, %v7060
        %7062 = vmatmul.bf16.gmra.mxu0 %v6967
        %v7063 = vpop.f32.mrf.mxu0
        %v7064 = vadd.f32 %v7010, %v7063
        %v7065 = vpop.f32.mrf.mxu0
        %v7066 = vadd.f32 %v7012, %v7065
        %7067 = vmatmul.bf16.gmra.mxu0 %v6970
        %v7068 = vpop.f32.mrf.mxu0
        %v7069 = vadd.f32 %v7015, %v7068
        %v7070 = vpop.f32.mrf.mxu0
        %v7071 = vadd.f32 %v7017, %v7070
        %7072 = vmatmul.bf16.gmra.mxu0 %v6973
        %v7073 = vpop.f32.mrf.mxu0
        %v7074 = vadd.f32 %v7020, %v7073
        %v7075 = vpop.f32.mrf.mxu0
        %v7076 = vadd.f32 %v7022, %v7075
        %7077 = vmatmul.bf16.gmra.mxu0 %v6976
        %v7078 = vpop.f32.mrf.mxu0
        %v7079 = vadd.f32 %v7025, %v7078
        %v7080 = vpop.f32.mrf.mxu0
        %v7081 = vadd.f32 %v7027, %v7080
        %7082 = vmatmul.bf16.gmra.mxu0 %v6979
        %v7083 = vpop.f32.mrf.mxu0
        %v7084 = vadd.f32 %v7030, %v7083
        %v7085 = vpop.f32.mrf.mxu0
        %v7086 = vadd.f32 %v7032, %v7085
        %7087 = vmatmul.bf16.gmra.mxu0 %v6982
        %v7088 = vpop.f32.mrf.mxu0
        %v7089 = vadd.f32 %v7035, %v7088
        %v7090 = vpop.f32.mrf.mxu0
        %v7091 = vadd.f32 %v7037, %v7090
        %7092 = vmatmul.bf16.gmra.mxu0 %v6985
        %v7093 = vpop.f32.mrf.mxu0
        %v7094 = vadd.f32 %v7040, %v7093
        %v7095 = vpop.f32.mrf.mxu0
        %v7096 = vadd.f32 %v7042, %v7095
        %7097 = vdwg.mxu0
        %v7112 = vrot.slane %v7054, 1
        %v7113 = vrot.slane %v7056, 1
        %v7114 = vsel %vm5028, %v7112, %v7113
        %v7115 = vrot.slane %v7059, 1
        %v7116 = vsel %vm5028, %v7113, %v7115
        %v7117 = vrot.slane %v7061, 1
        %v7118 = vrot.slane %v7064, 1
        %v7119 = vsel %vm5028, %v7117, %v7118
        %v7120 = vrot.slane %v7066, 1
        %v7121 = vsel %vm5028, %v7118, %v7120
        %v7122 = vrot.slane %v7071, 1
        %v7123 = vrot.slane %v7074, 1
        %v7124 = vsel %vm5028, %v7122, %v7123
        %v7125 = vrot.slane %v7076, 1
        %v7126 = vsel %vm5028, %v7123, %v7125
        %v7127 = vrot.slane %v7079, 1
        %v7128 = vrot.slane %v7081, 1
        %v7129 = vsel %vm5028, %v7127, %v7128
        %v7130 = vrot.slane %v7084, 1
        %v7131 = vsel %vm5028, %v7128, %v7130
        %v7132 = vrot.slane %v7089, 1
        %v7133 = vrot.slane %v7091, 1
        %v7134 = vsel %vm5028, %v7132, %v7133
        %v7145 = vmax.f32 %v7054, %v7114
        %v7146 = vmax.f32 %v7056, %v7116
        %v7147 = vmax.f32 %v7061, %v7119
        %v7148 = vmax.f32 %v7064, %v7121
        %v7149 = vmax.f32 %v7071, %v7124
        %v7150 = vmax.f32 %v7074, %v7126
        %v7151 = vmax.f32 %v7079, %v7129
        %v7152 = vmax.f32 %v7081, %v7131
        %v7153 = vmax.f32 %v7089, %v7134
        %v7154 = vmax.f32 %v7091, %v7133
        %v7159 = vsel %vm5028, %v7115, %v7117
        %v7160 = vrot.slane %v7069, 1
        %v7161 = vsel %vm5028, %v7120, %v7160
        %v7162 = vsel %vm5028, %v7160, %v7122
        %v7163 = vsel %vm5028, %v7125, %v7127
        %v7164 = vrot.slane %v7086, 1
        %v7165 = vsel %vm5028, %v7130, %v7164
        %v7166 = vsel %vm5028, %v7164, %v7132
        %v7167 = vrot.slane %v7094, 1
        %v7168 = vsel %vm5028, %v7133, %v7167
        %v7169 = vrot.slane %v7096, 1
        %v7170 = vsel %vm5028, %v7167, %v7169
        %v7180 = vmax.f32 %v7059, %v7159
        %v7181 = vmax.f32 %v7066, %v7161
        %v7182 = vmax.f32 %v7069, %v7162
        %v7183 = vmax.f32 %v7076, %v7163
        %v7184 = vmax.f32 %v7084, %v7165
        %v7185 = vmax.f32 %v7086, %v7166
        %v7186 = vmax.f32 %v7091, %v7168
        %v7187 = vmax.f32 %v7094, %v7170
        %v7188 = vmax.f32 %v7096, %v7169
        %v7204 = vrot.slane %v7146, 6
        %v7205 = vrot.slane %v7180, 6
        %v7206 = vsel %vm5387, %v7204, %v7205
        %v7207 = vrot.slane %v7147, 6
        %v7208 = vsel %vm5387, %v7205, %v7207
        %v7209 = vrot.slane %v7148, 6
        %v7210 = vrot.slane %v7181, 6
        %v7211 = vsel %vm5387, %v7209, %v7210
        %v7212 = vrot.slane %v7182, 6
        %v7213 = vsel %vm5387, %v7210, %v7212
        %v7214 = vrot.slane %v7150, 6
        %v7215 = vrot.slane %v7183, 6
        %v7216 = vsel %vm5387, %v7214, %v7215
        %v7217 = vrot.slane %v7151, 6
        %v7218 = vsel %vm5387, %v7215, %v7217
        %v7219 = vrot.slane %v7152, 6
        %v7220 = vrot.slane %v7184, 6
        %v7221 = vsel %vm5387, %v7219, %v7220
        %v7222 = vrot.slane %v7185, 6
        %v7223 = vsel %vm5387, %v7220, %v7222
        %v7224 = vrot.slane %v7186, 6
        %v7225 = vrot.slane %v7187, 6
        %v7226 = vsel %vm5387, %v7224, %v7225
        %v7227 = vrot.slane %v7188, 6
        %v7228 = vsel %vm5387, %v7225, %v7227
        %v7239 = vmax.f32 %v7145, %v7206
        %v7240 = vmax.f32 %v7146, %v7208
        %v7241 = vmax.f32 %v7147, %v7211
        %v7242 = vmax.f32 %v7148, %v7213
        %v7243 = vmax.f32 %v7149, %v7216
        %v7244 = vmax.f32 %v7150, %v7218
        %v7245 = vmax.f32 %v7151, %v7221
        %v7246 = vmax.f32 %v7152, %v7223
        %v7247 = vmax.f32 %v7153, %v7226
        %v7248 = vmax.f32 %v7154, %v7228
        %v7250 = vrot.slane %v7239, 2
        %7251 = vrot.lane.b32.xlu0 %v7250, 64
        %v7252 = vpop.permute.xlu0 %7251
        %v7254 = vrot.slane %v7239, 4
        %v7256 = vrot.slane %v7239, 6
        %7257 = vrot.lane.b32.xlu0 %v7256, 64
        %v7258 = vpop.permute.xlu0 %7257
        %v7261 = vrot.slane %v7241, 4
        %7262 = vrot.lane.b32.xlu0 %v7261, 64
        %v7263 = vpop.permute.xlu0 %7262
        %v7265 = vrot.slane %v7241, 6
        %7268 = vrot.lane.b32.xlu0 %v7242, 64
        %v7269 = vpop.permute.xlu0 %7268
        %v7271 = vrot.slane %v7242, 2
        %v7273 = vrot.slane %v7242, 4
        %7274 = vrot.lane.b32.xlu0 %v7273, 64
        %v7275 = vpop.permute.xlu0 %7274
        %v7278 = vrot.slane %v7243, 2
        %7279 = vrot.lane.b32.xlu0 %v7278, 64
        %v7280 = vpop.permute.xlu0 %7279
        %v7282 = vrot.slane %v7243, 4
        %v7284 = vrot.slane %v7243, 6
        %7285 = vrot.lane.b32.xlu0 %v7284, 64
        %v7286 = vpop.permute.xlu0 %7285
        %v7289 = vrot.slane %v7245, 4
        %7290 = vrot.lane.b32.xlu0 %v7289, 64
        %v7291 = vpop.permute.xlu0 %7290
        %vm7293 = vcmask 523264
        %v7294 = vsel %vm7293, %v7239, %v7252
        %v7295 = vsel %vm7293, %v7254, %v7258
        %v7296 = vsel %vm7293, %v7240, %v7263
        %v7297 = vsel %vm7293, %v7265, %v7269
        %v7298 = vsel %vm7293, %v7271, %v7275
        %v7299 = vsel %vm7293, %v7243, %v7280
        %v7300 = vsel %vm7293, %v7282, %v7286
        %v7301 = vsel %vm7293, %v7244, %v7291
        %v7303 = vrot.slane %v7246, 2
        %7304 = vrot.lane.b32.xlu0 %v7303, 64
        %v7305 = vpop.permute.xlu0 %7304
        %v7307 = vrot.slane %v7246, 4
        %v7309 = vrot.slane %v7246, 6
        %7310 = vrot.lane.b32.xlu0 %v7309, 64
        %v7311 = vpop.permute.xlu0 %7310
        %v7314 = vrot.slane %v7247, 2
        %v7316 = vrot.slane %v7247, 4
        %7317 = vrot.lane.b32.xlu0 %v7316, 64
        %v7318 = vpop.permute.xlu0 %7317
        %v7320 = vrot.slane %v7247, 6
        %7322 = vrot.lane.b32.xlu0 %v7247, 64
        %v7323 = vpop.permute.xlu0 %7322
        %v7326 = vrot.slane %v7248, 2
        %v7327 = vsel %vm7293, %v7245, %v7305
        %v7328 = vsel %vm7293, %v7307, %v7311
        %v7329 = vsel %vm7293, %v7314, %v7318
        %v7330 = vsel %vm7293, %v7320, %v7323
        %v7335 = vrot.slane %v7327, 6
        %v7336 = vrot.slane %v7328, 6
        %v7337 = vrot.slane %v7329, 6
        %v7338 = vrot.slane %v7330, 6
        %v7339 = vrot.slane %v7326, 6
        %v7345 = vld [vmem:[%s4] sm:$0x1]
        %v7347 = vperm.slane %v7345, 0
        %7348 = vrot.lane.b32.xlu0 %v7347, 64
        %v7349 = vpop.permute.xlu0 %7348
        %v7351 = vsel %vm7293, %v7345, %v7349
        %v7352 = vadd.f32 %v7294, %v7351
        %v7353 = vadd.f32 %v7295, %v7351
        %v7354 = vadd.f32 %v7296, %v7351
        %v7355 = vadd.f32 %v7297, %v7351
        %v7356 = vadd.f32 %v7298, %v7351
        %v7357 = vadd.f32 %v7299, %v7351
        %v7358 = vadd.f32 %v7300, %v7351
        %v7359 = vadd.f32 %v7301, %v7351
        %v7360 = vadd.f32 %v7335, %v7351
        %v7361 = vadd.f32 %v7336, %v7351
        %v7362 = vadd.f32 %v7337, %v7351
        %v7363 = vadd.f32 %v7338, %v7351
        %v7364 = vadd.f32 %v7339, %v7345
        %v7365 = vmax.f32 %v7352, 0.0
        %v7366 = vmax.f32 %v7353, 0.0
        %v7367 = vmax.f32 %v7354, 0.0
        %v7368 = vmax.f32 %v7355, 0.0
        %v7369 = vmax.f32 %v7356, 0.0
        %v7370 = vmax.f32 %v7357, 0.0
        %v7371 = vmax.f32 %v7358, 0.0
        %v7372 = vmax.f32 %v7359, 0.0
        %v7373 = vmax.f32 %v7360, 0.0
        %v7374 = vmax.f32 %v7361, 0.0
        %v7375 = vmax.f32 %v7362, 0.0
        %v7376 = vmax.f32 %v7363, 0.0
        %v7377 = vmax.f32 %v7364, 0.0
        %v7378 = vpack.c.bf16 %v7365, %v7365
        %v7379 = vpack.c.bf16 %v7366, %v7366
        %v7380 = vpack.c.bf16 %v7367, %v7367
        %v7381 = vpack.c.bf16 %v7368, %v7368
        %v7382 = vpack.c.bf16 %v7369, %v7369
        %v7383 = vpack.c.bf16 %v7370, %v7370
        %v7384 = vpack.c.bf16 %v7371, %v7371
        %v7385 = vpack.c.bf16 %v7372, %v7372
        %v7386 = vpack.c.bf16 %v7373, %v7373
        %v7387 = vpack.c.bf16 %v7374, %v7374
        %v7388 = vpack.c.bf16 %v7375, %v7375
        %v7389 = vpack.c.bf16 %v7376, %v7376
        %v7390 = vpack.c.bf16 %v7377, %v7377
        %v7391 = vld [vmem:[%s5] sm:$0xf]
        %v7392 = vld [vmem:[%s5 + $0x4] sm:$0xf]
        %v7393 = vld [vmem:[%s5 + $0x8] sm:$0xf]
        %v7394 = vld [vmem:[%s5 + $0xc] sm:$0xf]
        %v7395 = vld [vmem:[%s5 + $0x10] sm:$0xf]
        %v7396 = vld [vmem:[%s5 + $0x14] sm:$0xf]
        %v7397 = vld [vmem:[%s5 + $0x18] sm:$0xf]
        %v7398 = vld [vmem:[%s5 + $0x1c] sm:$0xf]
        %v7399 = vld [vmem:[%s5 + $0x20] sm:$0xf]
        %v7400 = vld [vmem:[%s5 + $0x24] sm:$0xf]
        %v7401 = vld [vmem:[%s5 + $0x28] sm:$0xf]
        %v7402 = vld [vmem:[%s5 + $0x2c] sm:$0xf]
        %v7403 = vld [vmem:[%s5 + $0x30] sm:$0xf]
        %v7404 = vld [vmem:[%s5 + $0x34] sm:$0xf]
        %v7405 = vld [vmem:[%s5 + $0x38] sm:$0xf]
        %v7406 = vld [vmem:[%s5 + $0x3c] sm:$0xf]
        %v7407 = vld [vmem:[%s5 + $0x40] sm:$0xf]
        %v7408 = vld [vmem:[%s5 + $0x44] sm:$0xf]
        %v7409 = vld [vmem:[%s5 + $0x48] sm:$0xf]
        %v7410 = vld [vmem:[%s5 + $0x4c] sm:$0xf]
        %v7411 = vld [vmem:[%s5 + $0x50] sm:$0xf]
        %v7412 = vld [vmem:[%s5 + $0x54] sm:$0xf]
        %v7413 = vld [vmem:[%s5 + $0x58] sm:$0xf]
        %v7414 = vld [vmem:[%s5 + $0x5c] sm:$0xf]
        %v7415 = vld [vmem:[%s5 + $0x60] sm:$0xf]
        %v7416 = vld [vmem:[%s5 + $0x64] sm:$0xf]
        %v7417 = vld [vmem:[%s5 + $0x68] sm:$0xf]
        %v7418 = vld [vmem:[%s5 + $0x6c] sm:$0xf]
        %v7419 = vld [vmem:[%s5 + $0x70] sm:$0xf]
        %v7420 = vld [vmem:[%s5 + $0x74] sm:$0xf]
        %v7421 = vld [vmem:[%s5 + $0x78] sm:$0xf]
        %v7422 = vld [vmem:[%s5 + $0x7c] sm:$0xf]
        %v7423 = vld [vmem:[%s5 + $0x80] sm:$0xf]
        %v7424 = vld [vmem:[%s5 + $0x84] sm:$0xf]
        %v7425 = vld [vmem:[%s5 + $0x88] sm:$0xf]
        %v7426 = vld [vmem:[%s5 + $0x8c] sm:$0xf]
        %v7427 = vld [vmem:[%s5 + $0x90] sm:$0xf]
        %v7428 = vld [vmem:[%s5 + $0x94] sm:$0xf]
        %v7429 = vld [vmem:[%s5 + $0x98] sm:$0xf]
        %v7430 = vld [vmem:[%s5 + $0x9c] sm:$0xf]
        %v7431 = vld [vmem:[%s5 + $0xa0] sm:$0xf]
        %v7432 = vld [vmem:[%s5 + $0xa4] sm:$0xf]
        %v7433 = vld [vmem:[%s5 + $0xa8] sm:$0xf]
        %v7434 = vld [vmem:[%s5 + $0xac] sm:$0xf]
        %v7435 = vld [vmem:[%s5 + $0xb0] sm:$0xf]
        %v7436 = vld [vmem:[%s5 + $0xb4] sm:$0xf]
        %v7437 = vld [vmem:[%s5 + $0xb8] sm:$0xf]
        %v7438 = vld [vmem:[%s5 + $0xbc] sm:$0xf]
        %v7439 = vld [vmem:[%s5 + $0xc0] sm:$0xf]
        %v7440 = vld [vmem:[%s5 + $0xc4] sm:$0xf]
        %v7441 = vld [vmem:[%s5 + $0xc8] sm:$0xf]
        %v7442 = vld [vmem:[%s5 + $0xcc] sm:$0xf]
        %v7443 = vld [vmem:[%s5 + $0xd0] sm:$0xf]
        %v7444 = vld [vmem:[%s5 + $0xd4] sm:$0xf]
        %v7445 = vld [vmem:[%s5 + $0xd8] sm:$0xf]
        %v7446 = vld [vmem:[%s5 + $0xdc] sm:$0xf]
        %v7447 = vld [vmem:[%s5 + $0xe0] sm:$0xf]
        %v7448 = vld [vmem:[%s5 + $0xe4] sm:$0xf]
        %v7449 = vld [vmem:[%s5 + $0xe8] sm:$0xf]
        %v7450 = vld [vmem:[%s5 + $0xec] sm:$0xf]
        %v7451 = vld [vmem:[%s5 + $0xf0] sm:$0xf]
        %v7452 = vld [vmem:[%s5 + $0xf4] sm:$0xf]
        %v7453 = vld [vmem:[%s5 + $0xf8] sm:$0xf]
        %v7454 = vld [vmem:[%s5 + $0xfc] sm:$0xf]
        %v7455 = vld [vmem:[%s5 + $0x100] sm:$0xf]
        %v7456 = vld [vmem:[%s5 + $0x104] sm:$0xf]
        %v7457 = vld [vmem:[%s5 + $0x108] sm:$0xf]
        %v7458 = vld [vmem:[%s5 + $0x10c] sm:$0xf]
        %v7459 = vld [vmem:[%s5 + $0x110] sm:$0xf]
        %v7460 = vld [vmem:[%s5 + $0x114] sm:$0xf]
        %v7461 = vld [vmem:[%s5 + $0x118] sm:$0xf]
        %v7462 = vld [vmem:[%s5 + $0x11c] sm:$0xf]
        %v7463 = vld [vmem:[%s5 + $0x120] sm:$0xf]
        %v7464 = vld [vmem:[%s5 + $0x124] sm:$0xf]
        %v7465 = vld [vmem:[%s5 + $0x128] sm:$0xf]
        %v7466 = vld [vmem:[%s5 + $0x12c] sm:$0xf]
        %v7467 = vld [vmem:[%s5 + $0x130] sm:$0xf]
        %v7468 = vld [vmem:[%s5 + $0x134] sm:$0xf]
        %v7469 = vld [vmem:[%s5 + $0x138] sm:$0xf]
        %v7470 = vld [vmem:[%s5 + $0x13c] sm:$0xf]
        %v7471 = vld [vmem:[%s5 + $0x140] sm:$0xf]
        %v7472 = vld [vmem:[%s5 + $0x144] sm:$0xf]
        %v7473 = vld [vmem:[%s5 + $0x148] sm:$0xf]
        %v7474 = vld [vmem:[%s5 + $0x14c] sm:$0xf]
        %v7475 = vld [vmem:[%s5 + $0x150] sm:$0xf]
        %v7476 = vld [vmem:[%s5 + $0x154] sm:$0xf]
        %v7477 = vld [vmem:[%s5 + $0x158] sm:$0xf]
        %v7478 = vld [vmem:[%s5 + $0x15c] sm:$0xf]
        %v7479 = vld [vmem:[%s5 + $0x160] sm:$0xf]
        %v7480 = vld [vmem:[%s5 + $0x164] sm:$0xf]
        %v7481 = vld [vmem:[%s5 + $0x168] sm:$0xf]
        %v7482 = vld [vmem:[%s5 + $0x16c] sm:$0xf]
        %v7483 = vld [vmem:[%s5 + $0x170] sm:$0xf]
        %v7484 = vld [vmem:[%s5 + $0x174] sm:$0xf]
        %v7485 = vld [vmem:[%s5 + $0x178] sm:$0xf]
        %v7486 = vld [vmem:[%s5 + $0x17c] sm:$0xf]
        %v7487 = vld [vmem:[%s5 + $0x180] sm:$0xf]
        %v7488 = vld [vmem:[%s5 + $0x184] sm:$0xf]
        %v7489 = vld [vmem:[%s5 + $0x188] sm:$0xf]
        %v7490 = vld [vmem:[%s5 + $0x18c] sm:$0xf]
        %v7491 = vld [vmem:[%s5 + $0x190] sm:$0xf]
        %v7492 = vld [vmem:[%s5 + $0x194] sm:$0xf]
        %v7493 = vld [vmem:[%s5 + $0x198] sm:$0xf]
        %v7494 = vld [vmem:[%s5 + $0x19c] sm:$0xf]
        %v7495 = vld [vmem:[%s5 + $0x1a0] sm:$0xf]
        %v7496 = vld [vmem:[%s5 + $0x1a4] sm:$0xf]
        %v7497 = vld [vmem:[%s5 + $0x1a8] sm:$0xf]
        %v7498 = vld [vmem:[%s5 + $0x1ac] sm:$0xf]
        %v7499 = vld [vmem:[%s5 + $0x1b0] sm:$0xf]
        %v7500 = vld [vmem:[%s5 + $0x1b4] sm:$0xf]
        %v7501 = vld [vmem:[%s5 + $0x1b8] sm:$0xf]
        %v7502 = vld [vmem:[%s5 + $0x1bc] sm:$0xf]
        %v7503 = vld [vmem:[%s5 + $0x1c0] sm:$0xf]
        %v7504 = vld [vmem:[%s5 + $0x1c4] sm:$0xf]
        %v7505 = vld [vmem:[%s5 + $0x1c8] sm:$0xf]
        %v7506 = vld [vmem:[%s5 + $0x1cc] sm:$0xf]
        %v7507 = vld [vmem:[%s5 + $0x1d0] sm:$0xf]
        %v7508 = vld [vmem:[%s5 + $0x1d4] sm:$0xf]
        %v7509 = vld [vmem:[%s5 + $0x1d8] sm:$0xf]
        %v7510 = vld [vmem:[%s5 + $0x1dc] sm:$0xf]
        %v7511 = vld [vmem:[%s5 + $0x1e0] sm:$0xf]
        %v7512 = vld [vmem:[%s5 + $0x1e4] sm:$0xf]
        %v7513 = vld [vmem:[%s5 + $0x1e8] sm:$0xf]
        %v7514 = vld [vmem:[%s5 + $0x1ec] sm:$0xf]
        %v7515 = vld [vmem:[%s5 + $0x1f0] sm:$0xf]
        %v7516 = vld [vmem:[%s5 + $0x1f4] sm:$0xf]
        %v7517 = vld [vmem:[%s5 + $0x1f8] sm:$0xf]
        %v7518 = vld [vmem:[%s5 + $0x1fc] sm:$0xf]
        %v7519 = vld [vmem:[%s5 + $0x200] sm:$0xf]
        %v7520 = vld [vmem:[%s5 + $0x204] sm:$0xf]
        %v7521 = vld [vmem:[%s5 + $0x208] sm:$0xf]
        %v7522 = vld [vmem:[%s5 + $0x20c] sm:$0xf]
        %v7523 = vld [vmem:[%s5 + $0x210] sm:$0xf]
        %v7524 = vld [vmem:[%s5 + $0x214] sm:$0xf]
        %v7525 = vld [vmem:[%s5 + $0x218] sm:$0xf]
        %v7526 = vld [vmem:[%s5 + $0x21c] sm:$0xf]
        %v7527 = vld [vmem:[%s5 + $0x220] sm:$0xf]
        %v7528 = vld [vmem:[%s5 + $0x224] sm:$0xf]
        %v7529 = vld [vmem:[%s5 + $0x228] sm:$0xf]
        %v7530 = vld [vmem:[%s5 + $0x22c] sm:$0xf]
        %v7531 = vld [vmem:[%s5 + $0x230] sm:$0xf]
        %v7532 = vld [vmem:[%s5 + $0x234] sm:$0xf]
        %v7533 = vld [vmem:[%s5 + $0x238] sm:$0xf]
        %v7534 = vld [vmem:[%s5 + $0x23c] sm:$0xf]
        %v7535 = vld [vmem:[%s5 + $0x240] sm:$0xf]
        %v7536 = vld [vmem:[%s5 + $0x244] sm:$0xf]
        %v7537 = vld [vmem:[%s5 + $0x248] sm:$0xf]
        %v7538 = vld [vmem:[%s5 + $0x24c] sm:$0xf]
        %v7539 = vld [vmem:[%s5 + $0x250] sm:$0xf]
        %v7540 = vld [vmem:[%s5 + $0x254] sm:$0xf]
        %v7541 = vld [vmem:[%s5 + $0x258] sm:$0xf]
        %v7542 = vld [vmem:[%s5 + $0x25c] sm:$0xf]
        %v7543 = vld [vmem:[%s5 + $0x260] sm:$0xf]
        %v7544 = vld [vmem:[%s5 + $0x264] sm:$0xf]
        %v7545 = vld [vmem:[%s5 + $0x268] sm:$0xf]
        %v7546 = vld [vmem:[%s5 + $0x26c] sm:$0xf]
        %v7547 = vld [vmem:[%s5 + $0x270] sm:$0xf]
        %v7548 = vld [vmem:[%s5 + $0x274] sm:$0xf]
        %v7549 = vld [vmem:[%s5 + $0x278] sm:$0xf]
        %v7550 = vld [vmem:[%s5 + $0x27c] sm:$0xf]
        %v7551 = vld [vmem:[%s5 + $0x280] sm:$0xf]
        %v7552 = vld [vmem:[%s5 + $0x284] sm:$0xf]
        %v7553 = vld [vmem:[%s5 + $0x288] sm:$0xf]
        %v7554 = vld [vmem:[%s5 + $0x28c] sm:$0xf]
        %v7555 = vld [vmem:[%s5 + $0x290] sm:$0xf]
        %v7556 = vld [vmem:[%s5 + $0x294] sm:$0xf]
        %v7557 = vld [vmem:[%s5 + $0x298] sm:$0xf]
        %v7558 = vld [vmem:[%s5 + $0x29c] sm:$0xf]
        %v7559 = vld [vmem:[%s5 + $0x2a0] sm:$0xf]
        %v7560 = vld [vmem:[%s5 + $0x2a4] sm:$0xf]
        %v7561 = vld [vmem:[%s5 + $0x2a8] sm:$0xf]
        %v7562 = vld [vmem:[%s5 + $0x2ac] sm:$0xf]
        %v7563 = vld [vmem:[%s5 + $0x2b0] sm:$0xf]
        %v7564 = vld [vmem:[%s5 + $0x2b4] sm:$0xf]
        %v7565 = vld [vmem:[%s5 + $0x2b8] sm:$0xf]
        %v7566 = vld [vmem:[%s5 + $0x2bc] sm:$0xf]
        %v7567 = vld [vmem:[%s5 + $0x2c0] sm:$0xf]
        %v7568 = vld [vmem:[%s5 + $0x2c4] sm:$0xf]
        %v7569 = vld [vmem:[%s5 + $0x2c8] sm:$0xf]
        %v7570 = vld [vmem:[%s5 + $0x2cc] sm:$0xf]
        %v7571 = vld [vmem:[%s5 + $0x2d0] sm:$0xf]
        %v7572 = vld [vmem:[%s5 + $0x2d4] sm:$0xf]
        %v7573 = vld [vmem:[%s5 + $0x2d8] sm:$0xf]
        %v7574 = vld [vmem:[%s5 + $0x2dc] sm:$0xf]
        %v7575 = vld [vmem:[%s5 + $0x2e0] sm:$0xf]
        %v7576 = vld [vmem:[%s5 + $0x2e4] sm:$0xf]
        %v7577 = vld [vmem:[%s5 + $0x2e8] sm:$0xf]
        %v7578 = vld [vmem:[%s5 + $0x2ec] sm:$0xf]
        %v7579 = vld [vmem:[%s5 + $0x2f0] sm:$0xf]
        %v7580 = vld [vmem:[%s5 + $0x2f4] sm:$0xf]
        %v7581 = vld [vmem:[%s5 + $0x2f8] sm:$0xf]
        %v7582 = vld [vmem:[%s5 + $0x2fc] sm:$0xf]
        %v7583 = vld [vmem:[%s5 + $0x300] sm:$0xf]
        %v7584 = vld [vmem:[%s5 + $0x304] sm:$0xf]
        %v7585 = vld [vmem:[%s5 + $0x308] sm:$0xf]
        %v7586 = vld [vmem:[%s5 + $0x30c] sm:$0xf]
        %v7587 = vld [vmem:[%s5 + $0x310] sm:$0xf]
        %v7588 = vld [vmem:[%s5 + $0x314] sm:$0xf]
        %v7589 = vld [vmem:[%s5 + $0x318] sm:$0xf]
        %v7590 = vld [vmem:[%s5 + $0x31c] sm:$0xf]
        %v7591 = vld [vmem:[%s6] sm:$0x1]
        %v7792 = vunpack.c.l.b16 %v7391
        %v7793 = vunpack.c.l.b16 %v7392
        %v7794 = vunpack.c.l.b16 %v7393
        %v7795 = vunpack.c.l.b16 %v7394
        %v7796 = vunpack.c.l.b16 %v7395
        %v7797 = vunpack.c.l.b16 %v7396
        %v7798 = vunpack.c.l.b16 %v7397
        %v7799 = vunpack.c.l.b16 %v7398
        %v7800 = vunpack.c.l.b16 %v7399
        %v7801 = vunpack.c.l.b16 %v7400
        %v7802 = vunpack.c.l.b16 %v7401
        %v7803 = vunpack.c.l.b16 %v7402
        %v7804 = vunpack.c.l.b16 %v7403
        %v7805 = vunpack.c.l.b16 %v7404
        %v7806 = vunpack.c.l.b16 %v7405
        %v7807 = vunpack.c.l.b16 %v7406
        %v7808 = vunpack.c.l.b16 %v7407
        %v7809 = vunpack.c.l.b16 %v7408
        %v7810 = vunpack.c.l.b16 %v7409
        %v7811 = vunpack.c.l.b16 %v7410
        %v7812 = vunpack.c.l.b16 %v7411
        %v7813 = vunpack.c.l.b16 %v7412
        %v7814 = vunpack.c.l.b16 %v7413
        %v7815 = vunpack.c.l.b16 %v7414
        %v7816 = vunpack.c.l.b16 %v7415
        %v7817 = vunpack.c.l.b16 %v7416
        %v7818 = vunpack.c.l.b16 %v7417
        %v7819 = vunpack.c.l.b16 %v7418
        %v7820 = vunpack.c.l.b16 %v7419
        %v7821 = vunpack.c.l.b16 %v7420
        %v7822 = vunpack.c.l.b16 %v7421
        %v7823 = vunpack.c.l.b16 %v7422
        %v7824 = vunpack.c.l.b16 %v7423
        %v7825 = vunpack.c.l.b16 %v7424
        %v7826 = vunpack.c.l.b16 %v7425
        %v7827 = vunpack.c.l.b16 %v7426
        %v7828 = vunpack.c.l.b16 %v7427
        %v7829 = vunpack.c.l.b16 %v7428
        %v7830 = vunpack.c.l.b16 %v7429
        %v7831 = vunpack.c.l.b16 %v7430
        %v7832 = vunpack.c.l.b16 %v7431
        %v7833 = vunpack.c.l.b16 %v7432
        %v7834 = vunpack.c.l.b16 %v7433
        %v7835 = vunpack.c.l.b16 %v7434
        %v7836 = vunpack.c.l.b16 %v7435
        %v7837 = vunpack.c.l.b16 %v7436
        %v7838 = vunpack.c.l.b16 %v7437
        %v7839 = vunpack.c.l.b16 %v7438
        %v7840 = vunpack.c.l.b16 %v7439
        %v7841 = vunpack.c.l.b16 %v7440
        %v7842 = vunpack.c.l.b16 %v7441
        %v7843 = vunpack.c.l.b16 %v7442
        %v7844 = vunpack.c.l.b16 %v7443
        %v7845 = vunpack.c.l.b16 %v7444
        %v7846 = vunpack.c.l.b16 %v7445
        %v7847 = vunpack.c.l.b16 %v7446
        %v7848 = vunpack.c.l.b16 %v7447
        %v7849 = vunpack.c.l.b16 %v7448
        %v7850 = vunpack.c.l.b16 %v7449
        %v7851 = vunpack.c.l.b16 %v7450
        %v7852 = vunpack.c.l.b16 %v7451
        %v7853 = vunpack.c.l.b16 %v7452
        %v7854 = vunpack.c.l.b16 %v7453
        %v7855 = vunpack.c.l.b16 %v7454
        %v7856 = vunpack.c.l.b16 %v7455
        %v7857 = vunpack.c.l.b16 %v7456
        %v7858 = vunpack.c.l.b16 %v7457
        %v7859 = vunpack.c.l.b16 %v7458
        %v7860 = vunpack.c.l.b16 %v7459
        %v7861 = vunpack.c.l.b16 %v7460
        %v7862 = vunpack.c.l.b16 %v7461
        %v7863 = vunpack.c.l.b16 %v7462
        %v7864 = vunpack.c.l.b16 %v7463
        %v7865 = vunpack.c.l.b16 %v7464
        %v7866 = vunpack.c.l.b16 %v7465
        %v7867 = vunpack.c.l.b16 %v7466
        %v7868 = vunpack.c.l.b16 %v7467
        %v7869 = vunpack.c.l.b16 %v7468
        %v7870 = vunpack.c.l.b16 %v7469
        %v7871 = vunpack.c.l.b16 %v7470
        %v7872 = vunpack.c.l.b16 %v7471
        %v7873 = vunpack.c.l.b16 %v7472
        %v7874 = vunpack.c.l.b16 %v7473
        %v7875 = vunpack.c.l.b16 %v7474
        %v7876 = vunpack.c.l.b16 %v7475
        %v7877 = vunpack.c.l.b16 %v7476
        %v7878 = vunpack.c.l.b16 %v7477
        %v7879 = vunpack.c.l.b16 %v7478
        %v7880 = vunpack.c.l.b16 %v7479
        %v7881 = vunpack.c.l.b16 %v7480
        %v7882 = vunpack.c.l.b16 %v7481
        %v7883 = vunpack.c.l.b16 %v7482
        %v7884 = vunpack.c.l.b16 %v7483
        %v7885 = vunpack.c.l.b16 %v7484
        %v7886 = vunpack.c.l.b16 %v7485
        %v7887 = vunpack.c.l.b16 %v7486
        %v7888 = vunpack.c.l.b16 %v7487
        %v7889 = vunpack.c.l.b16 %v7488
        %v7890 = vunpack.c.l.b16 %v7489
        %v7891 = vunpack.c.l.b16 %v7490
        %v7892 = vunpack.c.l.b16 %v7491
        %v7893 = vunpack.c.l.b16 %v7492
        %v7894 = vunpack.c.l.b16 %v7493
        %v7895 = vunpack.c.l.b16 %v7494
        %v7896 = vunpack.c.l.b16 %v7495
        %v7897 = vunpack.c.l.b16 %v7496
        %v7898 = vunpack.c.l.b16 %v7497
        %v7899 = vunpack.c.l.b16 %v7498
        %v7900 = vunpack.c.l.b16 %v7499
        %v7901 = vunpack.c.l.b16 %v7500
        %v7902 = vunpack.c.l.b16 %v7501
        %v7903 = vunpack.c.l.b16 %v7502
        %v7904 = vunpack.c.l.b16 %v7503
        %v7905 = vunpack.c.l.b16 %v7504
        %v7906 = vunpack.c.l.b16 %v7505
        %v7907 = vunpack.c.l.b16 %v7506
        %v7908 = vunpack.c.l.b16 %v7507
        %v7909 = vunpack.c.l.b16 %v7508
        %v7910 = vunpack.c.l.b16 %v7509
        %v7911 = vunpack.c.l.b16 %v7510
        %v7912 = vunpack.c.l.b16 %v7511
        %v7913 = vunpack.c.l.b16 %v7512
        %v7914 = vunpack.c.l.b16 %v7513
        %v7915 = vunpack.c.l.b16 %v7514
        %v7916 = vunpack.c.l.b16 %v7515
        %v7917 = vunpack.c.l.b16 %v7516
        %v7918 = vunpack.c.l.b16 %v7517
        %v7919 = vunpack.c.l.b16 %v7518
        %v7920 = vunpack.c.l.b16 %v7519
        %v7921 = vunpack.c.l.b16 %v7520
        %v7922 = vunpack.c.l.b16 %v7521
        %v7923 = vunpack.c.l.b16 %v7522
        %v7924 = vunpack.c.l.b16 %v7523
        %v7925 = vunpack.c.l.b16 %v7524
        %v7926 = vunpack.c.l.b16 %v7525
        %v7927 = vunpack.c.l.b16 %v7526
        %v7928 = vunpack.c.l.b16 %v7527
        %v7929 = vunpack.c.l.b16 %v7528
        %v7930 = vunpack.c.l.b16 %v7529
        %v7931 = vunpack.c.l.b16 %v7530
        %v7932 = vunpack.c.l.b16 %v7531
        %v7933 = vunpack.c.l.b16 %v7532
        %v7934 = vunpack.c.l.b16 %v7533
        %v7935 = vunpack.c.l.b16 %v7534
        %v7936 = vunpack.c.l.b16 %v7535
        %v7937 = vunpack.c.l.b16 %v7536
        %v7938 = vunpack.c.l.b16 %v7537
        %v7939 = vunpack.c.l.b16 %v7538
        %v7940 = vunpack.c.l.b16 %v7539
        %v7941 = vunpack.c.l.b16 %v7540
        %v7942 = vunpack.c.l.b16 %v7541
        %v7943 = vunpack.c.l.b16 %v7542
        %v7944 = vunpack.c.l.b16 %v7543
        %v7945 = vunpack.c.l.b16 %v7544
        %v7946 = vunpack.c.l.b16 %v7545
        %v7947 = vunpack.c.l.b16 %v7546
        %v7948 = vunpack.c.l.b16 %v7547
        %v7949 = vunpack.c.l.b16 %v7548
        %v7950 = vunpack.c.l.b16 %v7549
        %v7951 = vunpack.c.l.b16 %v7550
        %v7952 = vunpack.c.l.b16 %v7551
        %v7953 = vunpack.c.l.b16 %v7552
        %v7954 = vunpack.c.l.b16 %v7553
        %v7955 = vunpack.c.l.b16 %v7554
        %v7956 = vunpack.c.l.b16 %v7555
        %v7957 = vunpack.c.l.b16 %v7556
        %v7958 = vunpack.c.l.b16 %v7557
        %v7959 = vunpack.c.l.b16 %v7558
        %v7960 = vunpack.c.l.b16 %v7559
        %v7961 = vunpack.c.l.b16 %v7560
        %v7962 = vunpack.c.l.b16 %v7561
        %v7963 = vunpack.c.l.b16 %v7562
        %v7964 = vunpack.c.l.b16 %v7563
        %v7965 = vunpack.c.l.b16 %v7564
        %v7966 = vunpack.c.l.b16 %v7565
        %v7967 = vunpack.c.l.b16 %v7566
        %v7968 = vunpack.c.l.b16 %v7567
        %v7969 = vunpack.c.l.b16 %v7568
        %v7970 = vunpack.c.l.b16 %v7569
        %v7971 = vunpack.c.l.b16 %v7570
        %v7972 = vunpack.c.l.b16 %v7571
        %v7973 = vunpack.c.l.b16 %v7572
        %v7974 = vunpack.c.l.b16 %v7573
        %v7975 = vunpack.c.l.b16 %v7574
        %v7976 = vunpack.c.l.b16 %v7575
        %v7977 = vunpack.c.l.b16 %v7576
        %v7978 = vunpack.c.l.b16 %v7577
        %v7979 = vunpack.c.l.b16 %v7578
        %v7980 = vunpack.c.l.b16 %v7579
        %v7981 = vunpack.c.l.b16 %v7580
        %v7982 = vunpack.c.l.b16 %v7581
        %v7983 = vunpack.c.l.b16 %v7582
        %v7984 = vunpack.c.l.b16 %v7583
        %v7985 = vunpack.c.l.b16 %v7584
        %v7986 = vunpack.c.l.b16 %v7585
        %v7987 = vunpack.c.l.b16 %v7586
        %v7988 = vunpack.c.l.b16 %v7587
        %v7989 = vunpack.c.l.b16 %v7588
        %v7990 = vunpack.c.l.b16 %v7589
        %v7991 = vunpack.c.l.b16 %v7590
        %v7992 = vpack.c.b16 %v7793, %v7792
        %v7993 = vpack.c.b16 %v7795, %v7794
        %v7994 = vpack.c.b16 %v7797, %v7796
        %v7995 = vpack.c.b16 %v7799, %v7798
        %v7996 = vpack.c.b16 %v7801, %v7800
        %v7997 = vpack.c.b16 %v7803, %v7802
        %v7998 = vpack.c.b16 %v7805, %v7804
        %v7999 = vpack.c.b16 %v7807, %v7806
        %v8000 = vpack.c.b16 %v7809, %v7808
        %v8001 = vpack.c.b16 %v7811, %v7810
        %v8002 = vpack.c.b16 %v7813, %v7812
        %v8003 = vpack.c.b16 %v7815, %v7814
        %v8004 = vpack.c.b16 %v7817, %v7816
        %v8005 = vpack.c.b16 %v7819, %v7818
        %v8006 = vpack.c.b16 %v7821, %v7820
        %v8007 = vpack.c.b16 %v7823, %v7822
        %v8008 = vpack.c.b16 %v7825, %v7824
        %v8009 = vpack.c.b16 %v7827, %v7826
        %v8010 = vpack.c.b16 %v7829, %v7828
        %v8011 = vpack.c.b16 %v7831, %v7830
        %v8012 = vpack.c.b16 %v7833, %v7832
        %v8013 = vpack.c.b16 %v7835, %v7834
        %v8014 = vpack.c.b16 %v7837, %v7836
        %v8015 = vpack.c.b16 %v7839, %v7838
        %v8016 = vpack.c.b16 %v7841, %v7840
        %v8017 = vpack.c.b16 %v7843, %v7842
        %v8018 = vpack.c.b16 %v7845, %v7844
        %v8019 = vpack.c.b16 %v7847, %v7846
        %v8020 = vpack.c.b16 %v7849, %v7848
        %v8021 = vpack.c.b16 %v7851, %v7850
        %v8022 = vpack.c.b16 %v7853, %v7852
        %v8023 = vpack.c.b16 %v7855, %v7854
        %v8024 = vpack.c.b16 %v7857, %v7856
        %v8025 = vpack.c.b16 %v7859, %v7858
        %v8026 = vpack.c.b16 %v7861, %v7860
        %v8027 = vpack.c.b16 %v7863, %v7862
        %v8028 = vpack.c.b16 %v7865, %v7864
        %v8029 = vpack.c.b16 %v7867, %v7866
        %v8030 = vpack.c.b16 %v7869, %v7868
        %v8031 = vpack.c.b16 %v7871, %v7870
        %v8032 = vpack.c.b16 %v7873, %v7872
        %v8033 = vpack.c.b16 %v7875, %v7874
        %v8034 = vpack.c.b16 %v7877, %v7876
        %v8035 = vpack.c.b16 %v7879, %v7878
        %v8036 = vpack.c.b16 %v7881, %v7880
        %v8037 = vpack.c.b16 %v7883, %v7882
        %v8038 = vpack.c.b16 %v7885, %v7884
        %v8039 = vpack.c.b16 %v7887, %v7886
        %v8040 = vpack.c.b16 %v7889, %v7888
        %v8041 = vpack.c.b16 %v7891, %v7890
        %v8042 = vpack.c.b16 %v7893, %v7892
        %v8043 = vpack.c.b16 %v7895, %v7894
        %v8044 = vpack.c.b16 %v7897, %v7896
        %v8045 = vpack.c.b16 %v7899, %v7898
        %v8046 = vpack.c.b16 %v7901, %v7900
        %v8047 = vpack.c.b16 %v7903, %v7902
        %v8048 = vpack.c.b16 %v7905, %v7904
        %v8049 = vpack.c.b16 %v7907, %v7906
        %v8050 = vpack.c.b16 %v7909, %v7908
        %v8051 = vpack.c.b16 %v7911, %v7910
        %v8052 = vpack.c.b16 %v7913, %v7912
        %v8053 = vpack.c.b16 %v7915, %v7914
        %v8054 = vpack.c.b16 %v7917, %v7916
        %v8055 = vpack.c.b16 %v7919, %v7918
        %v8056 = vpack.c.b16 %v7921, %v7920
        %v8057 = vpack.c.b16 %v7923, %v7922
        %v8058 = vpack.c.b16 %v7925, %v7924
        %v8059 = vpack.c.b16 %v7927, %v7926
        %v8060 = vpack.c.b16 %v7929, %v7928
        %v8061 = vpack.c.b16 %v7931, %v7930
        %v8062 = vpack.c.b16 %v7933, %v7932
        %v8063 = vpack.c.b16 %v7935, %v7934
        %v8064 = vpack.c.b16 %v7937, %v7936
        %v8065 = vpack.c.b16 %v7939, %v7938
        %v8066 = vpack.c.b16 %v7941, %v7940
        %v8067 = vpack.c.b16 %v7943, %v7942
        %v8068 = vpack.c.b16 %v7945, %v7944
        %v8069 = vpack.c.b16 %v7947, %v7946
        %v8070 = vpack.c.b16 %v7949, %v7948
        %v8071 = vpack.c.b16 %v7951, %v7950
        %v8072 = vpack.c.b16 %v7953, %v7952
        %v8073 = vpack.c.b16 %v7955, %v7954
        %v8074 = vpack.c.b16 %v7957, %v7956
        %v8075 = vpack.c.b16 %v7959, %v7958
        %v8076 = vpack.c.b16 %v7961, %v7960
        %v8077 = vpack.c.b16 %v7963, %v7962
        %v8078 = vpack.c.b16 %v7965, %v7964
        %v8079 = vpack.c.b16 %v7967, %v7966
        %v8080 = vpack.c.b16 %v7969, %v7968
        %v8081 = vpack.c.b16 %v7971, %v7970
        %v8082 = vpack.c.b16 %v7973, %v7972
        %v8083 = vpack.c.b16 %v7975, %v7974
        %v8084 = vpack.c.b16 %v7977, %v7976
        %v8085 = vpack.c.b16 %v7979, %v7978
        %v8086 = vpack.c.b16 %v7981, %v7980
        %v8087 = vpack.c.b16 %v7983, %v7982
        %v8088 = vpack.c.b16 %v7985, %v7984
        %v8089 = vpack.c.b16 %v7987, %v7986
        %v8090 = vpack.c.b16 %v7989, %v7988
        %v8091 = vpack.c.b16 %v7991, %v7990
        %v8193 = vsel %vm7293, %v7390, 0
        %8195 = vmatpush.bf16.msra.mxu0 %v7999
        %8196 = vmatpush.bf16.msra.mxu0 %v7998
        %8197 = vmatpush.bf16.msra.mxu0 %v7997
        %8198 = vmatpush.bf16.msra.mxu0 %v7996
        %8199 = vmatpush.bf16.msra.mxu0 %v7995
        %8200 = vmatpush.bf16.msra.mxu0 %v7994
        %8201 = vmatpush.bf16.msra.mxu0 %v7993
        %8202 = vmatpush.bf16.msra.mxu0 %v7992
        %8203 = vmatmul.bf16.gmra.mxu0 %v7378
        %v8204 = vpop.f32.mrf.mxu0
        %v8205 = vadd.f32 %v7591, %v8204
        %v8206 = vpop.f32.mrf.mxu0
        %8207 = vdwg.mxu0
        %8208 = vmatpush.bf16.msra.mxu0 %v8007
        %8209 = vmatpush.bf16.msra.mxu0 %v8006
        %8210 = vmatpush.bf16.msra.mxu0 %v8005
        %8211 = vmatpush.bf16.msra.mxu0 %v8004
        %8212 = vmatpush.bf16.msra.mxu0 %v8003
        %8213 = vmatpush.bf16.msra.mxu0 %v8002
        %8214 = vmatpush.bf16.msra.mxu0 %v8001
        %8215 = vmatpush.bf16.msra.mxu0 %v8000
        %8216 = vmatmul.bf16.gmra.mxu0 %v7379
        %v8217 = vpop.f32.mrf.mxu0
        %v8218 = vadd.f32 %v8205, %v8217
        %v8219 = vpop.f32.mrf.mxu0
        %8220 = vdwg.mxu0
        %8221 = vmatpush.bf16.msra.mxu0 %v8015
        %8222 = vmatpush.bf16.msra.mxu0 %v8014
        %8223 = vmatpush.bf16.msra.mxu0 %v8013
        %8224 = vmatpush.bf16.msra.mxu0 %v8012
        %8225 = vmatpush.bf16.msra.mxu0 %v8011
        %8226 = vmatpush.bf16.msra.mxu0 %v8010
        %8227 = vmatpush.bf16.msra.mxu0 %v8009
        %8228 = vmatpush.bf16.msra.mxu0 %v8008
        %8229 = vmatmul.bf16.gmra.mxu0 %v7380
        %v8230 = vpop.f32.mrf.mxu0
        %v8231 = vadd.f32 %v8218, %v8230
        %v8232 = vpop.f32.mrf.mxu0
        %8233 = vdwg.mxu0
        %8234 = vmatpush.bf16.msra.mxu0 %v8023
        %8235 = vmatpush.bf16.msra.mxu0 %v8022
        %8236 = vmatpush.bf16.msra.mxu0 %v8021
        %8237 = vmatpush.bf16.msra.mxu0 %v8020
        %8238 = vmatpush.bf16.msra.mxu0 %v8019
        %8239 = vmatpush.bf16.msra.mxu0 %v8018
        %8240 = vmatpush.bf16.msra.mxu0 %v8017
        %8241 = vmatpush.bf16.msra.mxu0 %v8016
        %8242 = vmatmul.bf16.gmra.mxu0 %v7381
        %v8243 = vpop.f32.mrf.mxu0
        %v8244 = vadd.f32 %v8231, %v8243
        %v8245 = vpop.f32.mrf.mxu0
        %8246 = vdwg.mxu0
        %8247 = vmatpush.bf16.msra.mxu0 %v8031
        %8248 = vmatpush.bf16.msra.mxu0 %v8030
        %8249 = vmatpush.bf16.msra.mxu0 %v8029
        %8250 = vmatpush.bf16.msra.mxu0 %v8028
        %8251 = vmatpush.bf16.msra.mxu0 %v8027
        %8252 = vmatpush.bf16.msra.mxu0 %v8026
        %8253 = vmatpush.bf16.msra.mxu0 %v8025
        %8254 = vmatpush.bf16.msra.mxu0 %v8024
        %8255 = vmatmul.bf16.gmra.mxu0 %v7382
        %v8256 = vpop.f32.mrf.mxu0
        %v8257 = vadd.f32 %v8244, %v8256
        %v8258 = vpop.f32.mrf.mxu0
        %8259 = vdwg.mxu0
        %8260 = vmatpush.bf16.msra.mxu0 %v8039
        %8261 = vmatpush.bf16.msra.mxu0 %v8038
        %8262 = vmatpush.bf16.msra.mxu0 %v8037
        %8263 = vmatpush.bf16.msra.mxu0 %v8036
        %8264 = vmatpush.bf16.msra.mxu0 %v8035
        %8265 = vmatpush.bf16.msra.mxu0 %v8034
        %8266 = vmatpush.bf16.msra.mxu0 %v8033
        %8267 = vmatpush.bf16.msra.mxu0 %v8032
        %8268 = vmatmul.bf16.gmra.mxu0 %v7383
        %v8269 = vpop.f32.mrf.mxu0
        %v8270 = vadd.f32 %v8257, %v8269
        %v8271 = vpop.f32.mrf.mxu0
        %8272 = vdwg.mxu0
        %8273 = vmatpush.bf16.msra.mxu0 %v8047
        %8274 = vmatpush.bf16.msra.mxu0 %v8046
        %8275 = vmatpush.bf16.msra.mxu0 %v8045
        %8276 = vmatpush.bf16.msra.mxu0 %v8044
        %8277 = vmatpush.bf16.msra.mxu0 %v8043
        %8278 = vmatpush.bf16.msra.mxu0 %v8042
        %8279 = vmatpush.bf16.msra.mxu0 %v8041
        %8280 = vmatpush.bf16.msra.mxu0 %v8040
        %8281 = vmatmul.bf16.gmra.mxu0 %v7384
        %v8282 = vpop.f32.mrf.mxu0
        %v8283 = vadd.f32 %v8270, %v8282
        %v8284 = vpop.f32.mrf.mxu0
        %8285 = vdwg.mxu0
        %8286 = vmatpush.bf16.msra.mxu0 %v8055
        %8287 = vmatpush.bf16.msra.mxu0 %v8054
        %8288 = vmatpush.bf16.msra.mxu0 %v8053
        %8289 = vmatpush.bf16.msra.mxu0 %v8052
        %8290 = vmatpush.bf16.msra.mxu0 %v8051
        %8291 = vmatpush.bf16.msra.mxu0 %v8050
        %8292 = vmatpush.bf16.msra.mxu0 %v8049
        %8293 = vmatpush.bf16.msra.mxu0 %v8048
        %8294 = vmatmul.bf16.gmra.mxu0 %v7385
        %v8295 = vpop.f32.mrf.mxu0
        %v8296 = vadd.f32 %v8283, %v8295
        %v8297 = vpop.f32.mrf.mxu0
        %8298 = vdwg.mxu0
        %8299 = vmatpush.bf16.msra.mxu0 %v8063
        %8300 = vmatpush.bf16.msra.mxu0 %v8062
        %8301 = vmatpush.bf16.msra.mxu0 %v8061
        %8302 = vmatpush.bf16.msra.mxu0 %v8060
        %8303 = vmatpush.bf16.msra.mxu0 %v8059
        %8304 = vmatpush.bf16.msra.mxu0 %v8058
        %8305 = vmatpush.bf16.msra.mxu0 %v8057
        %8306 = vmatpush.bf16.msra.mxu0 %v8056
        %8307 = vmatmul.bf16.gmra.mxu0 %v7386
        %v8308 = vpop.f32.mrf.mxu0
        %v8309 = vadd.f32 %v8296, %v8308
        %v8310 = vpop.f32.mrf.mxu0
        %8311 = vdwg.mxu0
        %8312 = vmatpush.bf16.msra.mxu0 %v8071
        %8313 = vmatpush.bf16.msra.mxu0 %v8070
        %8314 = vmatpush.bf16.msra.mxu0 %v8069
        %8315 = vmatpush.bf16.msra.mxu0 %v8068
        %8316 = vmatpush.bf16.msra.mxu0 %v8067
        %8317 = vmatpush.bf16.msra.mxu0 %v8066
        %8318 = vmatpush.bf16.msra.mxu0 %v8065
        %8319 = vmatpush.bf16.msra.mxu0 %v8064
        %8320 = vmatmul.bf16.gmra.mxu0 %v7387
        %v8321 = vpop.f32.mrf.mxu0
        %v8322 = vadd.f32 %v8309, %v8321
        %v8323 = vpop.f32.mrf.mxu0
        %8324 = vdwg.mxu0
        %8325 = vmatpush.bf16.msra.mxu0 %v8079
        %8326 = vmatpush.bf16.msra.mxu0 %v8078
        %8327 = vmatpush.bf16.msra.mxu0 %v8077
        %8328 = vmatpush.bf16.msra.mxu0 %v8076
        %8329 = vmatpush.bf16.msra.mxu0 %v8075
        %8330 = vmatpush.bf16.msra.mxu0 %v8074
        %8331 = vmatpush.bf16.msra.mxu0 %v8073
        %8332 = vmatpush.bf16.msra.mxu0 %v8072
        %8333 = vmatmul.bf16.gmra.mxu0 %v7388
        %v8334 = vpop.f32.mrf.mxu0
        %v8335 = vadd.f32 %v8322, %v8334
        %v8336 = vpop.f32.mrf.mxu0
        %8337 = vdwg.mxu0
        %8338 = vmatpush.bf16.msra.mxu0 %v8087
        %8339 = vmatpush.bf16.msra.mxu0 %v8086
        %8340 = vmatpush.bf16.msra.mxu0 %v8085
        %8341 = vmatpush.bf16.msra.mxu0 %v8084
        %8342 = vmatpush.bf16.msra.mxu0 %v8083
        %8343 = vmatpush.bf16.msra.mxu0 %v8082
        %8344 = vmatpush.bf16.msra.mxu0 %v8081
        %8345 = vmatpush.bf16.msra.mxu0 %v8080
        %8346 = vmatmul.bf16.gmra.mxu0 %v7389
        %v8347 = vpop.f32.mrf.mxu0
        %v8348 = vadd.f32 %v8335, %v8347
        %v8349 = vpop.f32.mrf.mxu0
        %8350 = vdwg.mxu0
        %8351 = vmatpush.bf16.msra.mxu0 0
        %8352 = vmatpush.bf16.msra.mxu0 0
        %8353 = vmatpush.bf16.msra.mxu0 0
        %8354 = vmatpush.bf16.msra.mxu0 0
        %8355 = vmatpush.bf16.msra.mxu0 %v8091
        %8356 = vmatpush.bf16.msra.mxu0 %v8090
        %8357 = vmatpush.bf16.msra.mxu0 %v8089
        %8358 = vmatpush.bf16.msra.mxu0 %v8088
        %8359 = vmatmul.bf16.gmra.mxu0 %v8193
        %v8360 = vpop.f32.mrf.mxu0
        %v8361 = vadd.f32 %v8348, %v8360
        %v8362 = vpop.f32.mrf.mxu0
        %8363 = vdwg.mxu0
        %v8364 = vmax.f32 %v8361, 0.0
        %v8365 = vpack.c.bf16 %v8364, %v8364
        %v8366 = vld [vmem:[%s7] sm:$0xf]
        %v8367 = vld [vmem:[%s7 + $0x4] sm:$0xf]
        %v8368 = vld [vmem:[%s7 + $0x8] sm:$0xf]
        %v8369 = vld [vmem:[%s7 + $0xc] sm:$0xf]
        %v8370 = vld [vmem:[%s7 + $0x10] sm:$0xf]
        %v8371 = vld [vmem:[%s7 + $0x14] sm:$0xf]
        %v8372 = vld [vmem:[%s7 + $0x18] sm:$0xf]
        %v8373 = vld [vmem:[%s7 + $0x1c] sm:$0xf]
        %v8374 = vld [vmem:[%s7 + $0x20] sm:$0xf]
        %v8375 = vld [vmem:[%s7 + $0x24] sm:$0xf]
        %v8376 = vld [vmem:[%s7 + $0x28] sm:$0xf]
        %v8377 = vld [vmem:[%s7 + $0x2c] sm:$0xf]
        %v8378 = vld [vmem:[%s7 + $0x30] sm:$0xf]
        %v8379 = vld [vmem:[%s7 + $0x34] sm:$0xf]
        %v8380 = vld [vmem:[%s7 + $0x38] sm:$0xf]
        %v8381 = vld [vmem:[%s7 + $0x3c] sm:$0xf]
        %v8382 = vld [vmem:[%s8] sm:$0x1]
        %v8399 = vunpack.c.l.b16 %v8366
        %v8400 = vunpack.c.l.b16 %v8367
        %v8401 = vunpack.c.l.b16 %v8368
        %v8402 = vunpack.c.l.b16 %v8369
        %v8403 = vunpack.c.l.b16 %v8370
        %v8404 = vunpack.c.l.b16 %v8371
        %v8405 = vunpack.c.l.b16 %v8372
        %v8406 = vunpack.c.l.b16 %v8373
        %v8407 = vunpack.c.l.b16 %v8374
        %v8408 = vunpack.c.l.b16 %v8375
        %v8409 = vunpack.c.l.b16 %v8376
        %v8410 = vunpack.c.l.b16 %v8377
        %v8411 = vunpack.c.l.b16 %v8378
        %v8412 = vunpack.c.l.b16 %v8379
        %v8413 = vunpack.c.l.b16 %v8380
        %v8414 = vunpack.c.l.b16 %v8381
        %v8415 = vpack.c.b16 %v8400, %v8399
        %v8416 = vpack.c.b16 %v8402, %v8401
        %v8417 = vpack.c.b16 %v8404, %v8403
        %v8418 = vpack.c.b16 %v8406, %v8405
        %v8419 = vpack.c.b16 %v8408, %v8407
        %v8420 = vpack.c.b16 %v8410, %v8409
        %v8421 = vpack.c.b16 %v8412, %v8411
        %v8422 = vpack.c.b16 %v8414, %v8413
        %8431 = vmatpush.bf16.msra.mxu0 %v8422
        %8432 = vmatpush.bf16.msra.mxu0 %v8421
        %8433 = vmatpush.bf16.msra.mxu0 %v8420
        %8434 = vmatpush.bf16.msra.mxu0 %v8419
        %8435 = vmatpush.bf16.msra.mxu0 %v8418
        %8436 = vmatpush.bf16.msra.mxu0 %v8417
        %8437 = vmatpush.bf16.msra.mxu0 %v8416
        %8438 = vmatpush.bf16.msra.mxu0 %v8415
        %8439 = vmatmul.bf16.gmra.mxu0 %v8365
        %v8440 = vpop.f32.mrf.mxu0
        %v8441 = vadd.f32 %v8382, %v8440
        %v8442 = vpop.f32.mrf.mxu0
        %8443 = vdwg.mxu0
        %vm8444 = vcmask 73728
        %v8445 = vsel %vm8444, %v8441, -inf
        %8446 = vmax.xlane.f32.xlu0 %v8445
        %v8447 = vpop.xlane.xlu0 %8446
        %v8448 = vsub.f32 %v8441, %v8447
        %v8449 = vmul.f32 %v8448, 1.442695
        %v8450 = vpow.pop %v8449
        %v8451 = vsel %vm8444, %v8450, 0.0
        %8452 = vadd.xlane.f32.xlu0 %v8451
        %v8453 = vpop.xlane.xlu0 %8452
        %v8454 = vlog2.pop %v8453
        %v8455 = vmul.f32 %v8454, 0.6931472
        %v8456 = vsub.f32 %v8448, %v8455
        %8457 = vst.msk [vmem:[%s324] sm:$0x1] %vm8444, %v8456
        %s8458 = sand.u32 %s225, 1
        %s8459 = scalar_lea.sflag [#allocation3], %s8458
        %s8460 = sand.u32 %s225, 1
        %s8461 = scalar_lea.vmem [#allocation2], %s8460
        // Predicated region
        $region57: #{net_forward.1} parent=55 // pred_check
          %p8462 = pneg %p235
        $region58: #{net_forward.1} parent=55 // pred_check_branch
          %8464 = sbr.rel (%p8462) target = $region60
        $region59: #{net_forward.1} parent=55 // pred_region
          %8466 = vsyncadd %s8459, 0
          %s8467 = scalar_lea.hbm %s9, %s23
          %s8469 = sshll.u32 %s8461, 4
          %s8470 = int_to_ptr.vmem [resolvable:$true] %s8469
          %s8471 = sshll.u32 %s8467, 4
          %s8472 = int_to_ptr.hbm [resolvable:$true] %s8471
          %8474 = dma.vmem_to_hbm [thread:$0]  %s8470, 16, %s8472, %s8459
        $region60: #{net_forward.1} parent=55 // pred_fallthru
          _
      $region56: #{net_forward.1} parent=5 // pred_fallthru
        _
      %p8475 = scmp.le.s32.totalorder 2, %s18
      // Predicated region
      $region61: #{net_forward.1} parent=5 // pred_check
        %p8476 = pneg %p8475
      $region62: #{net_forward.1} parent=5 // pred_check_branch
        %8478 = sbr.rel (%p8476) target = $region64
      $region63: #{net_forward.1} parent=5 // pred_region
        %s8479 = ssub.s32 %s18, 2
        // Predicated region
        $region65: #{net_forward.1} parent=63 // pred_check
          %p8480 = pneg %p241
        $region66: #{net_forward.1} parent=63 // pred_check_branch
          %8482 = sbr.rel (%p8480) target = $region68
        $region67: #{net_forward.1} parent=63 // pred_region
          %s8483 = sand.u32 %s226, 1
          %s8484 = scalar_lea.sflag [#allocation3], %s8483
          %s8485 = sand.u32 %s226, 1
          %s8486 = scalar_lea.vmem [#allocation2], %s8485
          %8488 = dma.done %s8484, 16
        $region68: #{net_forward.1} parent=63 // pred_fallthru
          _
      $region64: #{net_forward.1} parent=5 // pred_fallthru
        _
    $region6: #{net_forward.1} parent=1 // loop_footer
      %s22 = sadd.s32 1, %s18
    $region7: #{net_forward.1} parent=1 // loop_footer_branch
      %17 = sbr.rel target = $region3
    $region8: #{net_forward.1} parent=1 // loop_exit
      _
    %8489 = vsyncpa [#allocation3], 1
    %s8490 = scalar_lea.sflag [#allocation3], 1
    %8491 = vsyncpa %s8490, 1

</llo_original>
